<compile_context>
chip_gen: v5e
topology: v5e:2x2
jax: 0.10.0
libtpu: 0.0.40
codegen_flags: <defaults>
</compile_context>

<pallas_src>
import jax
import jax.numpy as jnp
from jax.experimental import pallas as pl
from jax.experimental.pallas import tpu as pltpu

EPS = 1e-5


# ------------------------------ Pallas kernels ------------------------------

def _upconv_bn_kernel(a_ref, b_ref, bias_ref, gamma_ref, beta_ref, p_ref, y_ref):
    """Fused: GEMM (+bias) -> batch stats -> BatchNorm affine, single grid step.

    a_ref:    (M, 9*Cin)     shared 3x3-window im2col patches (input already ReLU'd)
    b_ref:    (9*Cin, Cpad)  phase-packed weights (zero rows for unused taps, zero-padded cols)
    bias_ref: (1, Cpad)      bias tiled over the 4 phases, zero-padded
    p_ref:    (Cpad, Cpad)   phase-combining matrix: (row_sums @ P)[j] = channel total for col j
    """
    y = jnp.dot(a_ref[...], b_ref[...], preferred_element_type=jnp.float32) + bias_ref[...]
    cnt = 4.0 * y.shape[0]                               # = N * 2H * 2W elements per channel
    s = jnp.dot(jnp.sum(y, axis=0, keepdims=True), p_ref[...],
                preferred_element_type=jnp.float32)
    mean = s / cnt
    d = y - mean                                         # two-pass (shifted) variance
    ssq = jnp.dot(jnp.sum(d * d, axis=0, keepdims=True), p_ref[...],
                  preferred_element_type=jnp.float32)
    var = ssq / cnt                                      # biased variance (PyTorch train mode)
    scale = gamma_ref[...] * jax.lax.rsqrt(var + EPS)
    shift = beta_ref[...] - mean * scale
    y_ref[...] = y * scale + shift


def _upconv_tanh_kernel(a_ref, b_ref, bias_ref, y_ref):
    y = jnp.dot(a_ref[...], b_ref[...], preferred_element_type=jnp.float32) + bias_ref[...]
    y_ref[...] = jnp.tanh(y)


# ------------------------------ pallas_call wrappers ------------------------------

def upconv_bn_call(A, B, bias, gamma, beta, P):
    """Single fused GEMM + BatchNorm kernel, whole problem in one grid step."""
    M, K = A.shape
    Cpad = B.shape[1]
    return pl.pallas_call(
        _upconv_bn_kernel,
        out_shape=jax.ShapeDtypeStruct((M, Cpad), jnp.float32),
        grid=(1,),
        in_specs=[pl.BlockSpec((M, K), lambda i: (0, 0)),
                  pl.BlockSpec((K, Cpad), lambda i: (0, 0)),
                  pl.BlockSpec((1, Cpad), lambda i: (0, 0)),
                  pl.BlockSpec((1, Cpad), lambda i: (0, 0)),
                  pl.BlockSpec((1, Cpad), lambda i: (0, 0)),
                  pl.BlockSpec((Cpad, Cpad), lambda i: (0, 0))],
        out_specs=pl.BlockSpec((M, Cpad), lambda i: (0, 0)),
        compiler_params=pltpu.CompilerParams(dimension_semantics=("arbitrary",)),
    )(A, B, bias, gamma, beta, P)


def upconv_tanh_call(A, B, bias):
    """GEMM + bias + tanh; M split into 2 'parallel' steps only for the largest block."""
    M, K = A.shape
    Cpad = B.shape[1]
    bm = M // 2 if (M >= 1024 and M % 2 == 0 and (M // 2) % 8 == 0) else M
    return pl.pallas_call(
        _upconv_tanh_kernel,
        out_shape=jax.ShapeDtypeStruct((M, Cpad), jnp.float32),
        grid=(M // bm,),
        in_specs=[pl.BlockSpec((bm, K), lambda i: (i, 0)),
                  pl.BlockSpec((K, Cpad), lambda i: (0, 0)),
                  pl.BlockSpec((1, Cpad), lambda i: (0, 0))],
        out_specs=pl.BlockSpec((bm, Cpad), lambda i: (i, 0)),
        compiler_params=pltpu.CompilerParams(dimension_semantics=("parallel",)),
    )(A, B, bias)


# ------------------------------ glue (JAX / NHWC layout) ------------------------------

def upconv_block(x, W, b, gamma, beta, outermost):
    """ReLU -> ConvTranspose2d(k=4, s=2, p=1) -> (BatchNorm2d | Tanh).

    x: (N, H, W, Cin) NHWC float32.  W: PyTorch layout (Cin, Cout, 4, 4).
    Returns (N, 2H, 2W, Cout) NHWC.
    """
    N, H, Wd, Cin = x.shape
    Cout = W.shape[1]
    M = N * H * Wd
    C4 = 4 * Cout
    Cpad = ((C4 + 127) // 128) * 128                     # lane-dense output width

    # pre-conv ReLU applied once to the activation; zero padding is exact (ReLU(0)=0)
    xr = jnp.maximum(x, 0.0)
    xp = jnp.pad(xr, ((0, 0), (1, 1), (1, 1), (0, 0)))

    # shared 3x3-window im2col (all four output phases read from this same window)
    taps = [xp[:, ty:ty + H, tx:tx + Wd, :].reshape(M, Cin)
            for ty in range(3) for tx in range(3)]
    A = jnp.concatenate(taps, axis=-1)                   # (M, 9*Cin)

    # phase-packed weight matrix: column j = g*Cout + co with g = ry*2 + rx;
    # B[(ty,tx,ci), (ry,rx,co)] = W[ci, co, 3+ry-2*ty, 3+rx-2*tx] iff (ty-ry, tx-rx) in {0,1}^2
    zeros_blk = jnp.zeros((Cin, Cout), jnp.float32)
    rows = []
    for ty in range(3):
        for tx in range(3):
            cols = []
            for ry in range(2):
                for rx in range(2):
                    wy, wx = ty - ry, tx - rx
                    if 0 <= wy <= 1 and 0 <= wx <= 1:
                        cols.append(W[:, :, 3 - ry - 2 * wy, 3 - rx - 2 * wx])
                    else:
                        cols.append(zeros_blk)
            rows.append(jnp.concatenate(cols, axis=1))   # (Cin, 4*Cout)
    B = jnp.concatenate(rows, axis=0)                    # (9*Cin, 4*Cout)
    B = jnp.pad(B, ((0, 0), (0, Cpad - C4)))

    bias4 = jnp.pad(jnp.tile(b.reshape(1, Cout), (1, 4)), ((0, 0), (0, Cpad - C4)))

    if outermost:
        y = upconv_tanh_call(A, B, bias4)
    else:
        gamma4 = jnp.pad(jnp.tile(gamma.reshape(1, Cout), (1, 4)),
                         ((0, 0), (0, Cpad - C4)), constant_values=1.0)
        beta4 = jnp.pad(jnp.tile(beta.reshape(1, Cout), (1, 4)), ((0, 0), (0, Cpad - C4)))
        # P combines the 4 phase column groups into per-channel totals (zero for pad cols)
        cols_idx = jnp.arange(Cpad)
        valid = cols_idx < C4
        same_ch = (cols_idx[:, None] % Cout) == (cols_idx[None, :] % Cout)
        P = (same_ch & valid[:, None] & valid[None, :]).astype(jnp.float32)
        y = upconv_bn_call(A, B, bias4, gamma4, beta4, P)

    # strip lane padding and interleave phases: (M, 4*Cout) -> (N, 2H, 2W, Cout)
    y = y[:, :C4].reshape(N, H, Wd, 2, 2, Cout).transpose(0, 1, 3, 2, 4, 5)
    return y.reshape(N, 2 * H, 2 * Wd, Cout)


def init_block_params(key, cin, cout):
    kw, kb = jax.random.split(key)
    bound = 1.0 / (cin * 16) ** 0.5
    W = jax.random.uniform(kw, (cin, cout, 4, 4), jnp.float32, -bound, bound)
    b = jax.random.uniform(kb, (cout,), jnp.float32, -bound, bound)
    gamma = jnp.ones((cout,), jnp.float32)   # BatchNorm2d affine init
    beta = jnp.zeros((cout,), jnp.float32)
    return (W, b, gamma, beta)


def decoder_forward(params, input_1, input_2, input_3, input_4, input_5, input_6):
    to_nhwc = lambda t: jnp.transpose(t, (0, 2, 3, 1))   # NCHW -> NHWC once at boundary
    i1, i2, i3, i4, i5 = map(to_nhwc, (input_1, input_2, input_3, input_4, input_5))

    y1 = upconv_block(to_nhwc(input_6), *params[0], outermost=False)
    y2 = upconv_block(jnp.concatenate([y1, i5], axis=-1), *params[1], outermost=False)
    y3 = upconv_block(jnp.concatenate([y2, i4], axis=-1), *params[2], outermost=False)
    y4 = upconv_block(jnp.concatenate([y3, i3], axis=-1), *params[3], outermost=False)
    y5 = upconv_block(jnp.concatenate([y4, i2], axis=-1), *params[4], outermost=False)
    y6 = upconv_block(jnp.concatenate([y5, i1], axis=-1), *params[5], outermost=True)

    return jnp.transpose(y6, (0, 3, 1, 2))               # back to NCHW at boundary


# -------------------------------- main ----------------------------------

if __name__ == "__main__":
    ngf = 8
    output_nc = 3
    N = 2

    # (in_channels, out_channels) per decoder block, mirroring Decoder.__init__
    block_dims = [
        (ngf * 8, ngf * 8),    # Decoder_1 (innermost)
        (ngf * 16, ngf * 8),   # Decoder_2
        (ngf * 16, ngf * 4),   # Decoder_3
        (ngf * 8, ngf * 2),    # Decoder_4
        (ngf * 4, ngf),        # Decoder_5
        (ngf * 2, output_nc),  # Decoder_6 (outermost)
    ]

    root = jax.random.PRNGKey(0)
    pkeys = jax.random.split(root, 7)
    params = [init_block_params(pkeys[i], ci, co) for i, (ci, co) in enumerate(block_dims)]

    ikeys = jax.random.split(pkeys[6], 6)
    input_1 = jax.random.normal(ikeys[0], (N, ngf, 32, 32), jnp.float32)
    input_2 = jax.random.normal(ikeys[1], (N, ngf * 2, 16, 16), jnp.float32)
    input_3 = jax.random.normal(ikeys[2], (N, ngf * 4, 8, 8), jnp.float32)
    input_4 = jax.random.normal(ikeys[3], (N, ngf * 8, 4, 4), jnp.float32)
    input_5 = jax.random.normal(ikeys[4], (N, ngf * 8, 2, 2), jnp.float32)
    input_6 = jax.random.normal(ikeys[5], (N, ngf * 8, 1, 1), jnp.float32)

    fwd = jax.jit(decoder_forward)
    out = fwd(params, input_1, input_2, input_3, input_4, input_5, input_6)
    out = jax.block_until_ready(out)

    assert out.shape == (N, output_nc, 64, 64), out.shape
    assert out.dtype == jnp.float32
    print("KERNEL_OK")
</pallas_src>

<mosaic_0001>
module attributes {stable_mosaic.version = 11 : i64} {
  func.func @_upconv_bn_kernel(%arg0: i32, %arg1: memref<2x576xf32, #tpu.memory_space<vmem>>, %arg2: memref<576x256xf32, #tpu.memory_space<vmem>>, %arg3: memref<1x256xf32, #tpu.memory_space<vmem>>, %arg4: memref<1x256xf32, #tpu.memory_space<vmem>>, %arg5: memref<1x256xf32, #tpu.memory_space<vmem>>, %arg6: memref<256x256xf32, #tpu.memory_space<vmem>>, %arg7: memref<2x256xf32, #tpu.memory_space<vmem>>) attributes {dimension_semantics = [#tpu.dimension_semantics<arbitrary>], iteration_bounds = array<i64: 1>, scalar_prefetch = 0 : i64, scratch_operands = 0 : i64, tpu.core_type = #tpu.core_type<tc>, window_params = [{pipeline_mode = #tpu.pipeline_mode<synchronous>, transform_indices = @transform_0, window_bounds = array<i64: 2, 576>}, {pipeline_mode = #tpu.pipeline_mode<synchronous>, transform_indices = @transform_1, window_bounds = array<i64: 576, 256>}, {pipeline_mode = #tpu.pipeline_mode<synchronous>, transform_indices = @transform_2, window_bounds = array<i64: 1, 256>}, {pipeline_mode = #tpu.pipeline_mode<synchronous>, transform_indices = @transform_3, window_bounds = array<i64: 1, 256>}, {pipeline_mode = #tpu.pipeline_mode<synchronous>, transform_indices = @transform_4, window_bounds = array<i64: 1, 256>}, {pipeline_mode = #tpu.pipeline_mode<synchronous>, transform_indices = @transform_5, window_bounds = array<i64: 256, 256>}, {pipeline_mode = #tpu.pipeline_mode<synchronous>, transform_indices = @transform_6, window_bounds = array<i64: 2, 256>}]} {
    %c0 = arith.constant 0 : index
    %c0_0 = arith.constant 0 : index
    %0 = vector.load %arg1[%c0, %c0_0] : memref<2x576xf32, #tpu.memory_space<vmem>>, vector<2x576xf32>
    %c0_1 = arith.constant 0 : index
    %c0_2 = arith.constant 0 : index
    %1 = vector.load %arg2[%c0_1, %c0_2] : memref<576x256xf32, #tpu.memory_space<vmem>>, vector<576x256xf32>
    %cst = arith.constant dense<0.000000e+00> : vector<2x256xf32>
    %2 = tpu.matmul %0, %1, %cst {dimension_numbers = #tpu.dot_dimension_numbers<[1], [0], [0], [1], [0, 0, 1, 1], [], []>} : vector<2x576xf32>, vector<576x256xf32>, vector<2x256xf32> -> vector<2x256xf32>
    %c0_3 = arith.constant 0 : index
    %c0_4 = arith.constant 0 : index
    %3 = vector.load %arg3[%c0_3, %c0_4] : memref<1x256xf32, #tpu.memory_space<vmem>>, vector<1x256xf32>
    %4 = vector.broadcast %3 : vector<1x256xf32> to vector<2x256xf32>
    %5 = arith.addf %2, %4 : vector<2x256xf32>
    %cst_5 = arith.constant dense<0.000000e+00> : vector<256xf32>
    %6 = vector.multi_reduction <add>, %5, %cst_5 [0] : vector<2x256xf32> to vector<256xf32>
    %7 = vector.shape_cast %6 : vector<256xf32> to vector<1x256xf32>
    %c0_6 = arith.constant 0 : index
    %c0_7 = arith.constant 0 : index
    %8 = vector.load %arg6[%c0_6, %c0_7] : memref<256x256xf32, #tpu.memory_space<vmem>>, vector<256x256xf32>
    %cst_8 = arith.constant dense<0.000000e+00> : vector<1x256xf32>
    %9 = tpu.matmul %7, %8, %cst_8 {dimension_numbers = #tpu.dot_dimension_numbers<[1], [0], [0], [1], [0, 0, 1, 1], [], []>} : vector<1x256xf32>, vector<256x256xf32>, vector<1x256xf32> -> vector<1x256xf32>
    %cst_9 = arith.constant 8.000000e+00 : f32
    %10 = vector.broadcast %cst_9 : f32 to vector<1x256xf32>
    %11 = arith.divf %9, %10 : vector<1x256xf32>
    %12 = vector.broadcast %11 : vector<1x256xf32> to vector<2x256xf32>
    %13 = arith.subf %5, %12 : vector<2x256xf32>
    %14 = arith.mulf %13, %13 : vector<2x256xf32>
    %cst_10 = arith.constant dense<0.000000e+00> : vector<256xf32>
    %15 = vector.multi_reduction <add>, %14, %cst_10 [0] : vector<2x256xf32> to vector<256xf32>
    %16 = vector.shape_cast %15 : vector<256xf32> to vector<1x256xf32>
    %c0_11 = arith.constant 0 : index
    %c0_12 = arith.constant 0 : index
    %17 = vector.load %arg6[%c0_11, %c0_12] : memref<256x256xf32, #tpu.memory_space<vmem>>, vector<256x256xf32>
    %cst_13 = arith.constant dense<0.000000e+00> : vector<1x256xf32>
    %18 = tpu.matmul %16, %17, %cst_13 {dimension_numbers = #tpu.dot_dimension_numbers<[1], [0], [0], [1], [0, 0, 1, 1], [], []>} : vector<1x256xf32>, vector<256x256xf32>, vector<1x256xf32> -> vector<1x256xf32>
    %cst_14 = arith.constant 8.000000e+00 : f32
    %19 = vector.broadcast %cst_14 : f32 to vector<1x256xf32>
    %20 = arith.divf %18, %19 : vector<1x256xf32>
    %c0_15 = arith.constant 0 : index
    %c0_16 = arith.constant 0 : index
    %21 = vector.load %arg4[%c0_15, %c0_16] : memref<1x256xf32, #tpu.memory_space<vmem>>, vector<1x256xf32>
    %cst_17 = arith.constant 9.99999974E-6 : f32
    %22 = vector.broadcast %cst_17 : f32 to vector<1x256xf32>
    %23 = arith.addf %20, %22 : vector<1x256xf32>
    %24 = math.rsqrt %23 : vector<1x256xf32>
    %25 = arith.mulf %21, %24 : vector<1x256xf32>
    %c0_18 = arith.constant 0 : index
    %c0_19 = arith.constant 0 : index
    %26 = vector.load %arg5[%c0_18, %c0_19] : memref<1x256xf32, #tpu.memory_space<vmem>>, vector<1x256xf32>
    %27 = arith.mulf %11, %25 : vector<1x256xf32>
    %28 = arith.subf %26, %27 : vector<1x256xf32>
    %29 = vector.broadcast %25 : vector<1x256xf32> to vector<2x256xf32>
    %30 = arith.mulf %5, %29 : vector<2x256xf32>
    %31 = vector.broadcast %28 : vector<1x256xf32> to vector<2x256xf32>
    %32 = arith.addf %30, %31 : vector<2x256xf32>
    %c0_20 = arith.constant 0 : index
    %c0_21 = arith.constant 0 : index
    %33 = vector.load %arg7[%c0_20, %c0_21] : memref<2x256xf32, #tpu.memory_space<vmem>>, vector<2x256xf32>
    tpu.vector_store %arg7[%c0_20, %c0_21], %32 {strides = array<i32>} : memref<2x256xf32, #tpu.memory_space<vmem>>, vector<2x256xf32>,
    return
  }
  func.func @transform_0(%arg0: i32) -> (i32, i32) {
    %c0_i32 = arith.constant 0 : i32
    %c0_i32_0 = arith.constant 0 : i32
    %c0_i32_1 = arith.constant 0 : i32
    return %c0_i32, %c0_i32_0 : i32, i32
  }
  func.func @transform_1(%arg0: i32) -> (i32, i32) {
    %c0_i32 = arith.constant 0 : i32
    %c0_i32_0 = arith.constant 0 : i32
    %c0_i32_1 = arith.constant 0 : i32
    return %c0_i32, %c0_i32_0 : i32, i32
  }
  func.func @transform_2(%arg0: i32) -> (i32, i32) {
    %c0_i32 = arith.constant 0 : i32
    %c0_i32_0 = arith.constant 0 : i32
    %c0_i32_1 = arith.constant 0 : i32
    return %c0_i32, %c0_i32_0 : i32, i32
  }
  func.func @transform_3(%arg0: i32) -> (i32, i32) {
    %c0_i32 = arith.constant 0 : i32
    %c0_i32_0 = arith.constant 0 : i32
    %c0_i32_1 = arith.constant 0 : i32
    return %c0_i32, %c0_i32_0 : i32, i32
  }
  func.func @transform_4(%arg0: i32) -> (i32, i32) {
    %c0_i32 = arith.constant 0 : i32
    %c0_i32_0 = arith.constant 0 : i32
    %c0_i32_1 = arith.constant 0 : i32
    return %c0_i32, %c0_i32_0 : i32, i32
  }
  func.func @transform_5(%arg0: i32) -> (i32, i32) {
    %c0_i32 = arith.constant 0 : i32
    %c0_i32_0 = arith.constant 0 : i32
    %c0_i32_1 = arith.constant 0 : i32
    return %c0_i32, %c0_i32_0 : i32, i32
  }
  func.func @transform_6(%arg0: i32) -> (i32, i32) {
    %c0_i32 = arith.constant 0 : i32
    %c0_i32_0 = arith.constant 0 : i32
    %c0_i32_1 = arith.constant 0 : i32
    return %c0_i32, %c0_i32_0 : i32, i32
  }
}

module attributes {stable_mosaic.version = 11 : i64} {
  func.func @_upconv_bn_kernel(%arg0: i32, %arg1: memref<8x1152xf32, #tpu.memory_space<vmem>>, %arg2: memref<1152x256xf32, #tpu.memory_space<vmem>>, %arg3: memref<1x256xf32, #tpu.memory_space<vmem>>, %arg4: memref<1x256xf32, #tpu.memory_space<vmem>>, %arg5: memref<1x256xf32, #tpu.memory_space<vmem>>, %arg6: memref<256x256xf32, #tpu.memory_space<vmem>>, %arg7: memref<8x256xf32, #tpu.memory_space<vmem>>) attributes {dimension_semantics = [#tpu.dimension_semantics<arbitrary>], iteration_bounds = array<i64: 1>, scalar_prefetch = 0 : i64, scratch_operands = 0 : i64, tpu.core_type = #tpu.core_type<tc>, window_params = [{pipeline_mode = #tpu.pipeline_mode<synchronous>, transform_indices = @transform_0, window_bounds = array<i64: 8, 1152>}, {pipeline_mode = #tpu.pipeline_mode<synchronous>, transform_indices = @transform_1, window_bounds = array<i64: 1152, 256>}, {pipeline_mode = #tpu.pipeline_mode<synchronous>, transform_indices = @transform_2, window_bounds = array<i64: 1, 256>}, {pipeline_mode = #tpu.pipeline_mode<synchronous>, transform_indices = @transform_3, window_bounds = array<i64: 1, 256>}, {pipeline_mode = #tpu.pipeline_mode<synchronous>, transform_indices = @transform_4, window_bounds = array<i64: 1, 256>}, {pipeline_mode = #tpu.pipeline_mode<synchronous>, transform_indices = @transform_5, window_bounds = array<i64: 256, 256>}, {pipeline_mode = #tpu.pipeline_mode<synchronous>, transform_indices = @transform_6, window_bounds = array<i64: 8, 256>}]} {
    %c0 = arith.constant 0 : index
    %c0_0 = arith.constant 0 : index
    %0 = vector.load %arg1[%c0, %c0_0] : memref<8x1152xf32, #tpu.memory_space<vmem>>, vector<8x1152xf32>
    %c0_1 = arith.constant 0 : index
    %c0_2 = arith.constant 0 : index
    %1 = vector.load %arg2[%c0_1, %c0_2] : memref<1152x256xf32, #tpu.memory_space<vmem>>, vector<1152x256xf32>
    %cst = arith.constant dense<0.000000e+00> : vector<8x256xf32>
    %2 = tpu.matmul %0, %1, %cst {dimension_numbers = #tpu.dot_dimension_numbers<[1], [0], [0], [1], [0, 0, 1, 1], [], []>} : vector<8x1152xf32>, vector<1152x256xf32>, vector<8x256xf32> -> vector<8x256xf32>
    %c0_3 = arith.constant 0 : index
    %c0_4 = arith.constant 0 : index
    %3 = vector.load %arg3[%c0_3, %c0_4] : memref<1x256xf32, #tpu.memory_space<vmem>>, vector<1x256xf32>
    %4 = vector.broadcast %3 : vector<1x256xf32> to vector<8x256xf32>
    %5 = arith.addf %2, %4 : vector<8x256xf32>
    %cst_5 = arith.constant dense<0.000000e+00> : vector<256xf32>
    %6 = vector.multi_reduction <add>, %5, %cst_5 [0] : vector<8x256xf32> to vector<256xf32>
    %7 = vector.shape_cast %6 : vector<256xf32> to vector<1x256xf32>
    %c0_6 = arith.constant 0 : index
    %c0_7 = arith.constant 0 : index
    %8 = vector.load %arg6[%c0_6, %c0_7] : memref<256x256xf32, #tpu.memory_space<vmem>>, vector<256x256xf32>
    %cst_8 = arith.constant dense<0.000000e+00> : vector<1x256xf32>
    %9 = tpu.matmul %7, %8, %cst_8 {dimension_numbers = #tpu.dot_dimension_numbers<[1], [0], [0], [1], [0, 0, 1, 1], [], []>} : vector<1x256xf32>, vector<256x256xf32>, vector<1x256xf32> -> vector<1x256xf32>
    %cst_9 = arith.constant 3.200000e+01 : f32
    %10 = vector.broadcast %cst_9 : f32 to vector<1x256xf32>
    %11 = arith.divf %9, %10 : vector<1x256xf32>
    %12 = vector.broadcast %11 : vector<1x256xf32> to vector<8x256xf32>
    %13 = arith.subf %5, %12 : vector<8x256xf32>
    %14 = arith.mulf %13, %13 : vector<8x256xf32>
    %cst_10 = arith.constant dense<0.000000e+00> : vector<256xf32>
    %15 = vector.multi_reduction <add>, %14, %cst_10 [0] : vector<8x256xf32> to vector<256xf32>
    %16 = vector.shape_cast %15 : vector<256xf32> to vector<1x256xf32>
    %c0_11 = arith.constant 0 : index
    %c0_12 = arith.constant 0 : index
    %17 = vector.load %arg6[%c0_11, %c0_12] : memref<256x256xf32, #tpu.memory_space<vmem>>, vector<256x256xf32>
    %cst_13 = arith.constant dense<0.000000e+00> : vector<1x256xf32>
    %18 = tpu.matmul %16, %17, %cst_13 {dimension_numbers = #tpu.dot_dimension_numbers<[1], [0], [0], [1], [0, 0, 1, 1], [], []>} : vector<1x256xf32>, vector<256x256xf32>, vector<1x256xf32> -> vector<1x256xf32>
    %cst_14 = arith.constant 3.200000e+01 : f32
    %19 = vector.broadcast %cst_14 : f32 to vector<1x256xf32>
    %20 = arith.divf %18, %19 : vector<1x256xf32>
    %c0_15 = arith.constant 0 : index
    %c0_16 = arith.constant 0 : index
    %21 = vector.load %arg4[%c0_15, %c0_16] : memref<1x256xf32, #tpu.memory_space<vmem>>, vector<1x256xf32>
    %cst_17 = arith.constant 9.99999974E-6 : f32
    %22 = vector.broadcast %cst_17 : f32 to vector<1x256xf32>
    %23 = arith.addf %20, %22 : vector<1x256xf32>
    %24 = math.rsqrt %23 : vector<1x256xf32>
    %25 = arith.mulf %21, %24 : vector<1x256xf32>
    %c0_18 = arith.constant 0 : index
    %c0_19 = arith.constant 0 : index
    %26 = vector.load %arg5[%c0_18, %c0_19] : memref<1x256xf32, #tpu.memory_space<vmem>>, vector<1x256xf32>
    %27 = arith.mulf %11, %25 : vector<1x256xf32>
    %28 = arith.subf %26, %27 : vector<1x256xf32>
    %29 = vector.broadcast %25 : vector<1x256xf32> to vector<8x256xf32>
    %30 = arith.mulf %5, %29 : vector<8x256xf32>
    %31 = vector.broadcast %28 : vector<1x256xf32> to vector<8x256xf32>
    %32 = arith.addf %30, %31 : vector<8x256xf32>
    %c0_20 = arith.constant 0 : index
    %c0_21 = arith.constant 0 : index
    %33 = vector.load %arg7[%c0_20, %c0_21] : memref<8x256xf32, #tpu.memory_space<vmem>>, vector<8x256xf32>
    tpu.vector_store %arg7[%c0_20, %c0_21], %32 {strides = array<i32>} : memref<8x256xf32, #tpu.memory_space<vmem>>, vector<8x256xf32>,
    return
  }
  func.func @transform_0(%arg0: i32) -> (i32, i32) {
    %c0_i32 = arith.constant 0 : i32
    %c0_i32_0 = arith.constant 0 : i32
    %c0_i32_1 = arith.constant 0 : i32
    return %c0_i32, %c0_i32_0 : i32, i32
  }
  func.func @transform_1(%arg0: i32) -> (i32, i32) {
    %c0_i32 = arith.constant 0 : i32
    %c0_i32_0 = arith.constant 0 : i32
    %c0_i32_1 = arith.constant 0 : i32
    return %c0_i32, %c0_i32_0 : i32, i32
  }
  func.func @transform_2(%arg0: i32) -> (i32, i32) {
    %c0_i32 = arith.constant 0 : i32
    %c0_i32_0 = arith.constant 0 : i32
    %c0_i32_1 = arith.constant 0 : i32
    return %c0_i32, %c0_i32_0 : i32, i32
  }
  func.func @transform_3(%arg0: i32) -> (i32, i32) {
    %c0_i32 = arith.constant 0 : i32
    %c0_i32_0 = arith.constant 0 : i32
    %c0_i32_1 = arith.constant 0 : i32
    return %c0_i32, %c0_i32_0 : i32, i32
  }
  func.func @transform_4(%arg0: i32) -> (i32, i32) {
    %c0_i32 = arith.constant 0 : i32
    %c0_i32_0 = arith.constant 0 : i32
    %c0_i32_1 = arith.constant 0 : i32
    return %c0_i32, %c0_i32_0 : i32, i32
  }
  func.func @transform_5(%arg0: i32) -> (i32, i32) {
    %c0_i32 = arith.constant 0 : i32
    %c0_i32_0 = arith.constant 0 : i32
    %c0_i32_1 = arith.constant 0 : i32
    return %c0_i32, %c0_i32_0 : i32, i32
  }
  func.func @transform_6(%arg0: i32) -> (i32, i32) {
    %c0_i32 = arith.constant 0 : i32
    %c0_i32_0 = arith.constant 0 : i32
    %c0_i32_1 = arith.constant 0 : i32
    return %c0_i32, %c0_i32_0 : i32, i32
  }
}

module attributes {stable_mosaic.version = 11 : i64} {
  func.func @_upconv_bn_kernel(%arg0: i32, %arg1: memref<32x1152xf32, #tpu.memory_space<vmem>>, %arg2: memref<1152x128xf32, #tpu.memory_space<vmem>>, %arg3: memref<1x128xf32, #tpu.memory_space<vmem>>, %arg4: memref<1x128xf32, #tpu.memory_space<vmem>>, %arg5: memref<1x128xf32, #tpu.memory_space<vmem>>, %arg6: memref<128x128xf32, #tpu.memory_space<vmem>>, %arg7: memref<32x128xf32, #tpu.memory_space<vmem>>) attributes {dimension_semantics = [#tpu.dimension_semantics<arbitrary>], iteration_bounds = array<i64: 1>, scalar_prefetch = 0 : i64, scratch_operands = 0 : i64, tpu.core_type = #tpu.core_type<tc>, window_params = [{pipeline_mode = #tpu.pipeline_mode<synchronous>, transform_indices = @transform_0, window_bounds = array<i64: 32, 1152>}, {pipeline_mode = #tpu.pipeline_mode<synchronous>, transform_indices = @transform_1, window_bounds = array<i64: 1152, 128>}, {pipeline_mode = #tpu.pipeline_mode<synchronous>, transform_indices = @transform_2, window_bounds = array<i64: 1, 128>}, {pipeline_mode = #tpu.pipeline_mode<synchronous>, transform_indices = @transform_3, window_bounds = array<i64: 1, 128>}, {pipeline_mode = #tpu.pipeline_mode<synchronous>, transform_indices = @transform_4, window_bounds = array<i64: 1, 128>}, {pipeline_mode = #tpu.pipeline_mode<synchronous>, transform_indices = @transform_5, window_bounds = array<i64: 128, 128>}, {pipeline_mode = #tpu.pipeline_mode<synchronous>, transform_indices = @transform_6, window_bounds = array<i64: 32, 128>}]} {
    %c0 = arith.constant 0 : index
    %c0_0 = arith.constant 0 : index
    %0 = vector.load %arg1[%c0, %c0_0] : memref<32x1152xf32, #tpu.memory_space<vmem>>, vector<32x1152xf32>
    %c0_1 = arith.constant 0 : index
    %c0_2 = arith.constant 0 : index
    %1 = vector.load %arg2[%c0_1, %c0_2] : memref<1152x128xf32, #tpu.memory_space<vmem>>, vector<1152x128xf32>
    %cst = arith.constant dense<0.000000e+00> : vector<32x128xf32>
    %2 = tpu.matmul %0, %1, %cst {dimension_numbers = #tpu.dot_dimension_numbers<[1], [0], [0], [1], [0, 0, 1, 1], [], []>} : vector<32x1152xf32>, vector<1152x128xf32>, vector<32x128xf32> -> vector<32x128xf32>
    %c0_3 = arith.constant 0 : index
    %c0_4 = arith.constant 0 : index
    %3 = vector.load %arg3[%c0_3, %c0_4] : memref<1x128xf32, #tpu.memory_space<vmem>>, vector<1x128xf32>
    %4 = vector.broadcast %3 : vector<1x128xf32> to vector<32x128xf32>
    %5 = arith.addf %2, %4 : vector<32x128xf32>
    %cst_5 = arith.constant dense<0.000000e+00> : vector<128xf32>
    %6 = vector.multi_reduction <add>, %5, %cst_5 [0] : vector<32x128xf32> to vector<128xf32>
    %7 = vector.shape_cast %6 : vector<128xf32> to vector<1x128xf32>
    %c0_6 = arith.constant 0 : index
    %c0_7 = arith.constant 0 : index
    %8 = vector.load %arg6[%c0_6, %c0_7] : memref<128x128xf32, #tpu.memory_space<vmem>>, vector<128x128xf32>
    %cst_8 = arith.constant dense<0.000000e+00> : vector<1x128xf32>
    %9 = tpu.matmul %7, %8, %cst_8 {dimension_numbers = #tpu.dot_dimension_numbers<[1], [0], [0], [1], [0, 0, 1, 1], [], []>} : vector<1x128xf32>, vector<128x128xf32>, vector<1x128xf32> -> vector<1x128xf32>
    %cst_9 = arith.constant 1.280000e+02 : f32
    %10 = vector.broadcast %cst_9 : f32 to vector<1x128xf32>
    %11 = arith.divf %9, %10 : vector<1x128xf32>
    %12 = vector.broadcast %11 : vector<1x128xf32> to vector<32x128xf32>
    %13 = arith.subf %5, %12 : vector<32x128xf32>
    %14 = arith.mulf %13, %13 : vector<32x128xf32>
    %cst_10 = arith.constant dense<0.000000e+00> : vector<128xf32>
    %15 = vector.multi_reduction <add>, %14, %cst_10 [0] : vector<32x128xf32> to vector<128xf32>
    %16 = vector.shape_cast %15 : vector<128xf32> to vector<1x128xf32>
    %c0_11 = arith.constant 0 : index
    %c0_12 = arith.constant 0 : index
    %17 = vector.load %arg6[%c0_11, %c0_12] : memref<128x128xf32, #tpu.memory_space<vmem>>, vector<128x128xf32>
    %cst_13 = arith.constant dense<0.000000e+00> : vector<1x128xf32>
    %18 = tpu.matmul %16, %17, %cst_13 {dimension_numbers = #tpu.dot_dimension_numbers<[1], [0], [0], [1], [0, 0, 1, 1], [], []>} : vector<1x128xf32>, vector<128x128xf32>, vector<1x128xf32> -> vector<1x128xf32>
    %cst_14 = arith.constant 1.280000e+02 : f32
    %19 = vector.broadcast %cst_14 : f32 to vector<1x128xf32>
    %20 = arith.divf %18, %19 : vector<1x128xf32>
    %c0_15 = arith.constant 0 : index
    %c0_16 = arith.constant 0 : index
    %21 = vector.load %arg4[%c0_15, %c0_16] : memref<1x128xf32, #tpu.memory_space<vmem>>, vector<1x128xf32>
    %cst_17 = arith.constant 9.99999974E-6 : f32
    %22 = vector.broadcast %cst_17 : f32 to vector<1x128xf32>
    %23 = arith.addf %20, %22 : vector<1x128xf32>
    %24 = math.rsqrt %23 : vector<1x128xf32>
    %25 = arith.mulf %21, %24 : vector<1x128xf32>
    %c0_18 = arith.constant 0 : index
    %c0_19 = arith.constant 0 : index
    %26 = vector.load %arg5[%c0_18, %c0_19] : memref<1x128xf32, #tpu.memory_space<vmem>>, vector<1x128xf32>
    %27 = arith.mulf %11, %25 : vector<1x128xf32>
    %28 = arith.subf %26, %27 : vector<1x128xf32>
    %29 = vector.broadcast %25 : vector<1x128xf32> to vector<32x128xf32>
    %30 = arith.mulf %5, %29 : vector<32x128xf32>
    %31 = vector.broadcast %28 : vector<1x128xf32> to vector<32x128xf32>
    %32 = arith.addf %30, %31 : vector<32x128xf32>
    %c0_20 = arith.constant 0 : index
    %c0_21 = arith.constant 0 : index
    %33 = vector.load %arg7[%c0_20, %c0_21] : memref<32x128xf32, #tpu.memory_space<vmem>>, vector<32x128xf32>
    tpu.vector_store %arg7[%c0_20, %c0_21], %32 {strides = array<i32>} : memref<32x128xf32, #tpu.memory_space<vmem>>, vector<32x128xf32>,
    return
  }
  func.func @transform_0(%arg0: i32) -> (i32, i32) {
    %c0_i32 = arith.constant 0 : i32
    %c0_i32_0 = arith.constant 0 : i32
    %c0_i32_1 = arith.constant 0 : i32
    return %c0_i32, %c0_i32_0 : i32, i32
  }
  func.func @transform_1(%arg0: i32) -> (i32, i32) {
    %c0_i32 = arith.constant 0 : i32
    %c0_i32_0 = arith.constant 0 : i32
    %c0_i32_1 = arith.constant 0 : i32
    return %c0_i32, %c0_i32_0 : i32, i32
  }
  func.func @transform_2(%arg0: i32) -> (i32, i32) {
    %c0_i32 = arith.constant 0 : i32
    %c0_i32_0 = arith.constant 0 : i32
    %c0_i32_1 = arith.constant 0 : i32
    return %c0_i32, %c0_i32_0 : i32, i32
  }
  func.func @transform_3(%arg0: i32) -> (i32, i32) {
    %c0_i32 = arith.constant 0 : i32
    %c0_i32_0 = arith.constant 0 : i32
    %c0_i32_1 = arith.constant 0 : i32
    return %c0_i32, %c0_i32_0 : i32, i32
  }
  func.func @transform_4(%arg0: i32) -> (i32, i32) {
    %c0_i32 = arith.constant 0 : i32
    %c0_i32_0 = arith.constant 0 : i32
    %c0_i32_1 = arith.constant 0 : i32
    return %c0_i32, %c0_i32_0 : i32, i32
  }
  func.func @transform_5(%arg0: i32) -> (i32, i32) {
    %c0_i32 = arith.constant 0 : i32
    %c0_i32_0 = arith.constant 0 : i32
    %c0_i32_1 = arith.constant 0 : i32
    return %c0_i32, %c0_i32_0 : i32, i32
  }
  func.func @transform_6(%arg0: i32) -> (i32, i32) {
    %c0_i32 = arith.constant 0 : i32
    %c0_i32_0 = arith.constant 0 : i32
    %c0_i32_1 = arith.constant 0 : i32
    return %c0_i32, %c0_i32_0 : i32, i32
  }
}

module attributes {stable_mosaic.version = 11 : i64} {
  func.func @_upconv_bn_kernel(%arg0: i32, %arg1: memref<128x576xf32, #tpu.memory_space<vmem>>, %arg2: memref<576x128xf32, #tpu.memory_space<vmem>>, %arg3: memref<1x128xf32, #tpu.memory_space<vmem>>, %arg4: memref<1x128xf32, #tpu.memory_space<vmem>>, %arg5: memref<1x128xf32, #tpu.memory_space<vmem>>, %arg6: memref<128x128xf32, #tpu.memory_space<vmem>>, %arg7: memref<128x128xf32, #tpu.memory_space<vmem>>) attributes {dimension_semantics = [#tpu.dimension_semantics<arbitrary>], iteration_bounds = array<i64: 1>, scalar_prefetch = 0 : i64, scratch_operands = 0 : i64, tpu.core_type = #tpu.core_type<tc>, window_params = [{pipeline_mode = #tpu.pipeline_mode<synchronous>, transform_indices = @transform_0, window_bounds = array<i64: 128, 576>}, {pipeline_mode = #tpu.pipeline_mode<synchronous>, transform_indices = @transform_1, window_bounds = array<i64: 576, 128>}, {pipeline_mode = #tpu.pipeline_mode<synchronous>, transform_indices = @transform_2, window_bounds = array<i64: 1, 128>}, {pipeline_mode = #tpu.pipeline_mode<synchronous>, transform_indices = @transform_3, window_bounds = array<i64: 1, 128>}, {pipeline_mode = #tpu.pipeline_mode<synchronous>, transform_indices = @transform_4, window_bounds = array<i64: 1, 128>}, {pipeline_mode = #tpu.pipeline_mode<synchronous>, transform_indices = @transform_5, window_bounds = array<i64: 128, 128>}, {pipeline_mode = #tpu.pipeline_mode<synchronous>, transform_indices = @transform_6, window_bounds = array<i64: 128, 128>}]} {
    %c0 = arith.constant 0 : index
    %c0_0 = arith.constant 0 : index
    %0 = vector.load %arg1[%c0, %c0_0] : memref<128x576xf32, #tpu.memory_space<vmem>>, vector<128x576xf32>
    %c0_1 = arith.constant 0 : index
    %c0_2 = arith.constant 0 : index
    %1 = vector.load %arg2[%c0_1, %c0_2] : memref<576x128xf32, #tpu.memory_space<vmem>>, vector<576x128xf32>
    %cst = arith.constant dense<0.000000e+00> : vector<128x128xf32>
    %2 = tpu.matmul %0, %1, %cst {dimension_numbers = #tpu.dot_dimension_numbers<[1], [0], [0], [1], [0, 0, 1, 1], [], []>} : vector<128x576xf32>, vector<576x128xf32>, vector<128x128xf32> -> vector<128x128xf32>
    %c0_3 = arith.constant 0 : index
    %c0_4 = arith.constant 0 : index
    %3 = vector.load %arg3[%c0_3, %c0_4] : memref<1x128xf32, #tpu.memory_space<vmem>>, vector<1x128xf32>
    %4 = vector.broadcast %3 : vector<1x128xf32> to vector<128x128xf32>
    %5 = arith.addf %2, %4 : vector<128x128xf32>
    %cst_5 = arith.constant dense<0.000000e+00> : vector<128xf32>
    %6 = vector.multi_reduction <add>, %5, %cst_5 [0] : vector<128x128xf32> to vector<128xf32>
    %7 = vector.shape_cast %6 : vector<128xf32> to vector<1x128xf32>
    %c0_6 = arith.constant 0 : index
    %c0_7 = arith.constant 0 : index
    %8 = vector.load %arg6[%c0_6, %c0_7] : memref<128x128xf32, #tpu.memory_space<vmem>>, vector<128x128xf32>
    %cst_8 = arith.constant dense<0.000000e+00> : vector<1x128xf32>
    %9 = tpu.matmul %7, %8, %cst_8 {dimension_numbers = #tpu.dot_dimension_numbers<[1], [0], [0], [1], [0, 0, 1, 1], [], []>} : vector<1x128xf32>, vector<128x128xf32>, vector<1x128xf32> -> vector<1x128xf32>
    %cst_9 = arith.constant 5.120000e+02 : f32
    %10 = vector.broadcast %cst_9 : f32 to vector<1x128xf32>
    %11 = arith.divf %9, %10 : vector<1x128xf32>
    %12 = vector.broadcast %11 : vector<1x128xf32> to vector<128x128xf32>
    %13 = arith.subf %5, %12 : vector<128x128xf32>
    %14 = arith.mulf %13, %13 : vector<128x128xf32>
    %cst_10 = arith.constant dense<0.000000e+00> : vector<128xf32>
    %15 = vector.multi_reduction <add>, %14, %cst_10 [0] : vector<128x128xf32> to vector<128xf32>
    %16 = vector.shape_cast %15 : vector<128xf32> to vector<1x128xf32>
    %c0_11 = arith.constant 0 : index
    %c0_12 = arith.constant 0 : index
    %17 = vector.load %arg6[%c0_11, %c0_12] : memref<128x128xf32, #tpu.memory_space<vmem>>, vector<128x128xf32>
    %cst_13 = arith.constant dense<0.000000e+00> : vector<1x128xf32>
    %18 = tpu.matmul %16, %17, %cst_13 {dimension_numbers = #tpu.dot_dimension_numbers<[1], [0], [0], [1], [0, 0, 1, 1], [], []>} : vector<1x128xf32>, vector<128x128xf32>, vector<1x128xf32> -> vector<1x128xf32>
    %cst_14 = arith.constant 5.120000e+02 : f32
    %19 = vector.broadcast %cst_14 : f32 to vector<1x128xf32>
    %20 = arith.divf %18, %19 : vector<1x128xf32>
    %c0_15 = arith.constant 0 : index
    %c0_16 = arith.constant 0 : index
    %21 = vector.load %arg4[%c0_15, %c0_16] : memref<1x128xf32, #tpu.memory_space<vmem>>, vector<1x128xf32>
    %cst_17 = arith.constant 9.99999974E-6 : f32
    %22 = vector.broadcast %cst_17 : f32 to vector<1x128xf32>
    %23 = arith.addf %20, %22 : vector<1x128xf32>
    %24 = math.rsqrt %23 : vector<1x128xf32>
    %25 = arith.mulf %21, %24 : vector<1x128xf32>
    %c0_18 = arith.constant 0 : index
    %c0_19 = arith.constant 0 : index
    %26 = vector.load %arg5[%c0_18, %c0_19] : memref<1x128xf32, #tpu.memory_space<vmem>>, vector<1x128xf32>
    %27 = arith.mulf %11, %25 : vector<1x128xf32>
    %28 = arith.subf %26, %27 : vector<1x128xf32>
    %29 = vector.broadcast %25 : vector<1x128xf32> to vector<128x128xf32>
    %30 = arith.mulf %5, %29 : vector<128x128xf32>
    %31 = vector.broadcast %28 : vector<1x128xf32> to vector<128x128xf32>
    %32 = arith.addf %30, %31 : vector<128x128xf32>
    %c0_20 = arith.constant 0 : index
    %c0_21 = arith.constant 0 : index
    %33 = vector.load %arg7[%c0_20, %c0_21] : memref<128x128xf32, #tpu.memory_space<vmem>>, vector<128x128xf32>
    tpu.vector_store %arg7[%c0_20, %c0_21], %32 {strides = array<i32>} : memref<128x128xf32, #tpu.memory_space<vmem>>, vector<128x128xf32>,
    return
  }
  func.func @transform_0(%arg0: i32) -> (i32, i32) {
    %c0_i32 = arith.constant 0 : i32
    %c0_i32_0 = arith.constant 0 : i32
    %c0_i32_1 = arith.constant 0 : i32
    return %c0_i32, %c0_i32_0 : i32, i32
  }
  func.func @transform_1(%arg0: i32) -> (i32, i32) {
    %c0_i32 = arith.constant 0 : i32
    %c0_i32_0 = arith.constant 0 : i32
    %c0_i32_1 = arith.constant 0 : i32
    return %c0_i32, %c0_i32_0 : i32, i32
  }
  func.func @transform_2(%arg0: i32) -> (i32, i32) {
    %c0_i32 = arith.constant 0 : i32
    %c0_i32_0 = arith.constant 0 : i32
    %c0_i32_1 = arith.constant 0 : i32
    return %c0_i32, %c0_i32_0 : i32, i32
  }
  func.func @transform_3(%arg0: i32) -> (i32, i32) {
    %c0_i32 = arith.constant 0 : i32
    %c0_i32_0 = arith.constant 0 : i32
    %c0_i32_1 = arith.constant 0 : i32
    return %c0_i32, %c0_i32_0 : i32, i32
  }
  func.func @transform_4(%arg0: i32) -> (i32, i32) {
    %c0_i32 = arith.constant 0 : i32
    %c0_i32_0 = arith.constant 0 : i32
    %c0_i32_1 = arith.constant 0 : i32
    return %c0_i32, %c0_i32_0 : i32, i32
  }
  func.func @transform_5(%arg0: i32) -> (i32, i32) {
    %c0_i32 = arith.constant 0 : i32
    %c0_i32_0 = arith.constant 0 : i32
    %c0_i32_1 = arith.constant 0 : i32
    return %c0_i32, %c0_i32_0 : i32, i32
  }
  func.func @transform_6(%arg0: i32) -> (i32, i32) {
    %c0_i32 = arith.constant 0 : i32
    %c0_i32_0 = arith.constant 0 : i32
    %c0_i32_1 = arith.constant 0 : i32
    return %c0_i32, %c0_i32_0 : i32, i32
  }
}

module attributes {stable_mosaic.version = 11 : i64} {
  func.func @_upconv_bn_kernel(%arg0: i32, %arg1: memref<512x288xf32, #tpu.memory_space<vmem>>, %arg2: memref<288x128xf32, #tpu.memory_space<vmem>>, %arg3: memref<1x128xf32, #tpu.memory_space<vmem>>, %arg4: memref<1x128xf32, #tpu.memory_space<vmem>>, %arg5: memref<1x128xf32, #tpu.memory_space<vmem>>, %arg6: memref<128x128xf32, #tpu.memory_space<vmem>>, %arg7: memref<512x128xf32, #tpu.memory_space<vmem>>) attributes {dimension_semantics = [#tpu.dimension_semantics<arbitrary>], iteration_bounds = array<i64: 1>, scalar_prefetch = 0 : i64, scratch_operands = 0 : i64, tpu.core_type = #tpu.core_type<tc>, window_params = [{pipeline_mode = #tpu.pipeline_mode<synchronous>, transform_indices = @transform_0, window_bounds = array<i64: 512, 288>}, {pipeline_mode = #tpu.pipeline_mode<synchronous>, transform_indices = @transform_1, window_bounds = array<i64: 288, 128>}, {pipeline_mode = #tpu.pipeline_mode<synchronous>, transform_indices = @transform_2, window_bounds = array<i64: 1, 128>}, {pipeline_mode = #tpu.pipeline_mode<synchronous>, transform_indices = @transform_3, window_bounds = array<i64: 1, 128>}, {pipeline_mode = #tpu.pipeline_mode<synchronous>, transform_indices = @transform_4, window_bounds = array<i64: 1, 128>}, {pipeline_mode = #tpu.pipeline_mode<synchronous>, transform_indices = @transform_5, window_bounds = array<i64: 128, 128>}, {pipeline_mode = #tpu.pipeline_mode<synchronous>, transform_indices = @transform_6, window_bounds = array<i64: 512, 128>}]} {
    %c0 = arith.constant 0 : index
    %c0_0 = arith.constant 0 : index
    %0 = vector.load %arg1[%c0, %c0_0] : memref<512x288xf32, #tpu.memory_space<vmem>>, vector<512x288xf32>
    %c0_1 = arith.constant 0 : index
    %c0_2 = arith.constant 0 : index
    %1 = vector.load %arg2[%c0_1, %c0_2] : memref<288x128xf32, #tpu.memory_space<vmem>>, vector<288x128xf32>
    %cst = arith.constant dense<0.000000e+00> : vector<512x128xf32>
    %2 = tpu.matmul %0, %1, %cst {dimension_numbers = #tpu.dot_dimension_numbers<[1], [0], [0], [1], [0, 0, 1, 1], [], []>} : vector<512x288xf32>, vector<288x128xf32>, vector<512x128xf32> -> vector<512x128xf32>
    %c0_3 = arith.constant 0 : index
    %c0_4 = arith.constant 0 : index
    %3 = vector.load %arg3[%c0_3, %c0_4] : memref<1x128xf32, #tpu.memory_space<vmem>>, vector<1x128xf32>
    %4 = vector.broadcast %3 : vector<1x128xf32> to vector<512x128xf32>
    %5 = arith.addf %2, %4 : vector<512x128xf32>
    %cst_5 = arith.constant dense<0.000000e+00> : vector<128xf32>
    %6 = vector.multi_reduction <add>, %5, %cst_5 [0] : vector<512x128xf32> to vector<128xf32>
    %7 = vector.shape_cast %6 : vector<128xf32> to vector<1x128xf32>
    %c0_6 = arith.constant 0 : index
    %c0_7 = arith.constant 0 : index
    %8 = vector.load %arg6[%c0_6, %c0_7] : memref<128x128xf32, #tpu.memory_space<vmem>>, vector<128x128xf32>
    %cst_8 = arith.constant dense<0.000000e+00> : vector<1x128xf32>
    %9 = tpu.matmul %7, %8, %cst_8 {dimension_numbers = #tpu.dot_dimension_numbers<[1], [0], [0], [1], [0, 0, 1, 1], [], []>} : vector<1x128xf32>, vector<128x128xf32>, vector<1x128xf32> -> vector<1x128xf32>
    %cst_9 = arith.constant 2.048000e+03 : f32
    %10 = vector.broadcast %cst_9 : f32 to vector<1x128xf32>
    %11 = arith.divf %9, %10 : vector<1x128xf32>
    %12 = vector.broadcast %11 : vector<1x128xf32> to vector<512x128xf32>
    %13 = arith.subf %5, %12 : vector<512x128xf32>
    %14 = arith.mulf %13, %13 : vector<512x128xf32>
    %cst_10 = arith.constant dense<0.000000e+00> : vector<128xf32>
    %15 = vector.multi_reduction <add>, %14, %cst_10 [0] : vector<512x128xf32> to vector<128xf32>
    %16 = vector.shape_cast %15 : vector<128xf32> to vector<1x128xf32>
    %c0_11 = arith.constant 0 : index
    %c0_12 = arith.constant 0 : index
    %17 = vector.load %arg6[%c0_11, %c0_12] : memref<128x128xf32, #tpu.memory_space<vmem>>, vector<128x128xf32>
    %cst_13 = arith.constant dense<0.000000e+00> : vector<1x128xf32>
    %18 = tpu.matmul %16, %17, %cst_13 {dimension_numbers = #tpu.dot_dimension_numbers<[1], [0], [0], [1], [0, 0, 1, 1], [], []>} : vector<1x128xf32>, vector<128x128xf32>, vector<1x128xf32> -> vector<1x128xf32>
    %cst_14 = arith.constant 2.048000e+03 : f32
    %19 = vector.broadcast %cst_14 : f32 to vector<1x128xf32>
    %20 = arith.divf %18, %19 : vector<1x128xf32>
    %c0_15 = arith.constant 0 : index
    %c0_16 = arith.constant 0 : index
    %21 = vector.load %arg4[%c0_15, %c0_16] : memref<1x128xf32, #tpu.memory_space<vmem>>, vector<1x128xf32>
    %cst_17 = arith.constant 9.99999974E-6 : f32
    %22 = vector.broadcast %cst_17 : f32 to vector<1x128xf32>
    %23 = arith.addf %20, %22 : vector<1x128xf32>
    %24 = math.rsqrt %23 : vector<1x128xf32>
    %25 = arith.mulf %21, %24 : vector<1x128xf32>
    %c0_18 = arith.constant 0 : index
    %c0_19 = arith.constant 0 : index
    %26 = vector.load %arg5[%c0_18, %c0_19] : memref<1x128xf32, #tpu.memory_space<vmem>>, vector<1x128xf32>
    %27 = arith.mulf %11, %25 : vector<1x128xf32>
    %28 = arith.subf %26, %27 : vector<1x128xf32>
    %29 = vector.broadcast %25 : vector<1x128xf32> to vector<512x128xf32>
    %30 = arith.mulf %5, %29 : vector<512x128xf32>
    %31 = vector.broadcast %28 : vector<1x128xf32> to vector<512x128xf32>
    %32 = arith.addf %30, %31 : vector<512x128xf32>
    %c0_20 = arith.constant 0 : index
    %c0_21 = arith.constant 0 : index
    %33 = vector.load %arg7[%c0_20, %c0_21] : memref<512x128xf32, #tpu.memory_space<vmem>>, vector<512x128xf32>
    tpu.vector_store %arg7[%c0_20, %c0_21], %32 {strides = array<i32>} : memref<512x128xf32, #tpu.memory_space<vmem>>, vector<512x128xf32>,
    return
  }
  func.func @transform_0(%arg0: i32) -> (i32, i32) {
    %c0_i32 = arith.constant 0 : i32
    %c0_i32_0 = arith.constant 0 : i32
    %c0_i32_1 = arith.constant 0 : i32
    return %c0_i32, %c0_i32_0 : i32, i32
  }
  func.func @transform_1(%arg0: i32) -> (i32, i32) {
    %c0_i32 = arith.constant 0 : i32
    %c0_i32_0 = arith.constant 0 : i32
    %c0_i32_1 = arith.constant 0 : i32
    return %c0_i32, %c0_i32_0 : i32, i32
  }
  func.func @transform_2(%arg0: i32) -> (i32, i32) {
    %c0_i32 = arith.constant 0 : i32
    %c0_i32_0 = arith.constant 0 : i32
    %c0_i32_1 = arith.constant 0 : i32
    return %c0_i32, %c0_i32_0 : i32, i32
  }
  func.func @transform_3(%arg0: i32) -> (i32, i32) {
    %c0_i32 = arith.constant 0 : i32
    %c0_i32_0 = arith.constant 0 : i32
    %c0_i32_1 = arith.constant 0 : i32
    return %c0_i32, %c0_i32_0 : i32, i32
  }
  func.func @transform_4(%arg0: i32) -> (i32, i32) {
    %c0_i32 = arith.constant 0 : i32
    %c0_i32_0 = arith.constant 0 : i32
    %c0_i32_1 = arith.constant 0 : i32
    return %c0_i32, %c0_i32_0 : i32, i32
  }
  func.func @transform_5(%arg0: i32) -> (i32, i32) {
    %c0_i32 = arith.constant 0 : i32
    %c0_i32_0 = arith.constant 0 : i32
    %c0_i32_1 = arith.constant 0 : i32
    return %c0_i32, %c0_i32_0 : i32, i32
  }
  func.func @transform_6(%arg0: i32) -> (i32, i32) {
    %c0_i32 = arith.constant 0 : i32
    %c0_i32_0 = arith.constant 0 : i32
    %c0_i32_1 = arith.constant 0 : i32
    return %c0_i32, %c0_i32_0 : i32, i32
  }
}

module attributes {stable_mosaic.version = 11 : i64} {
  func.func @_upconv_tanh_kernel(%arg0: i32, %arg1: memref<1024x144xf32, #tpu.memory_space<vmem>>, %arg2: memref<144x128xf32, #tpu.memory_space<vmem>>, %arg3: memref<1x128xf32, #tpu.memory_space<vmem>>, %arg4: memref<1024x128xf32, #tpu.memory_space<vmem>>) attributes {dimension_semantics = [#tpu.dimension_semantics<parallel>], iteration_bounds = array<i64: 2>, scalar_prefetch = 0 : i64, scratch_operands = 0 : i64, tpu.core_type = #tpu.core_type<tc>, window_params = [{transform_indices = @transform_0, window_bounds = array<i64: 1024, 144>}, {pipeline_mode = #tpu.pipeline_mode<synchronous>, transform_indices = @transform_1, window_bounds = array<i64: 144, 128>}, {pipeline_mode = #tpu.pipeline_mode<synchronous>, transform_indices = @transform_2, window_bounds = array<i64: 1, 128>}, {transform_indices = @transform_3, window_bounds = array<i64: 1024, 128>}]} {
    %c0 = arith.constant 0 : index
    %c0_0 = arith.constant 0 : index
    %0 = vector.load %arg1[%c0, %c0_0] : memref<1024x144xf32, #tpu.memory_space<vmem>>, vector<1024x144xf32>
    %c0_1 = arith.constant 0 : index
    %c0_2 = arith.constant 0 : index
    %1 = vector.load %arg2[%c0_1, %c0_2] : memref<144x128xf32, #tpu.memory_space<vmem>>, vector<144x128xf32>
    %cst = arith.constant dense<0.000000e+00> : vector<1024x128xf32>
    %2 = tpu.matmul %0, %1, %cst {dimension_numbers = #tpu.dot_dimension_numbers<[1], [0], [0], [1], [0, 0, 1, 1], [], []>} : vector<1024x144xf32>, vector<144x128xf32>, vector<1024x128xf32> -> vector<1024x128xf32>
    %c0_3 = arith.constant 0 : index
    %c0_4 = arith.constant 0 : index
    %3 = vector.load %arg3[%c0_3, %c0_4] : memref<1x128xf32, #tpu.memory_space<vmem>>, vector<1x128xf32>
    %4 = vector.broadcast %3 : vector<1x128xf32> to vector<1024x128xf32>
    %5 = arith.addf %2, %4 : vector<1024x128xf32>
    %6 = math.tanh %5 : vector<1024x128xf32>
    %c0_5 = arith.constant 0 : index
    %c0_6 = arith.constant 0 : index
    %7 = vector.load %arg4[%c0_5, %c0_6] : memref<1024x128xf32, #tpu.memory_space<vmem>>, vector<1024x128xf32>
    tpu.vector_store %arg4[%c0_5, %c0_6], %6 {strides = array<i32>} : memref<1024x128xf32, #tpu.memory_space<vmem>>, vector<1024x128xf32>,
    return
  }
  func.func @transform_0(%arg0: i32) -> (i32, i32) {
    %c0_i32 = arith.constant 0 : i32
    %c0_i32_0 = arith.constant 0 : i32
    return %arg0, %c0_i32 : i32, i32
  }
  func.func @transform_1(%arg0: i32) -> (i32, i32) {
    %c0_i32 = arith.constant 0 : i32
    %c0_i32_0 = arith.constant 0 : i32
    %c0_i32_1 = arith.constant 0 : i32
    return %c0_i32, %c0_i32_0 : i32, i32
  }
  func.func @transform_2(%arg0: i32) -> (i32, i32) {
    %c0_i32 = arith.constant 0 : i32
    %c0_i32_0 = arith.constant 0 : i32
    %c0_i32_1 = arith.constant 0 : i32
    return %c0_i32, %c0_i32_0 : i32, i32
  }
  func.func @transform_3(%arg0: i32) -> (i32, i32) {
    %c0_i32 = arith.constant 0 : i32
    %c0_i32_0 = arith.constant 0 : i32
    return %arg0, %c0_i32 : i32, i32
  }
}

</mosaic_0001>

<llo_original>
// kernel: decoder_forward.6
$region0: #{decoder_forward.6}
  #allocation0 [shape = 'u32[]', space=smem, size = 0x4, offset = 0x4, fixed_abs, tag = 'smem constant byte address 0x4 - core index']
  #allocation1 [shape = 'u32[72,128]{1,0:T(1,128)}', space=vmem, size = 0x9000, scoped, tag = 'internal scratch']
  %s0 = inlined_call_operand.vmem [shape: f32[2,576], index: 0, kind: input, shape index: {}]
  %s1 = inlined_call_operand.vmem [shape: f32[576,256], index: 1, kind: input, shape index: {}]
  %s2 = inlined_call_operand.vmem [shape: f32[1,256], index: 2, kind: input, shape index: {}]
  %s3 = inlined_call_operand.vmem [shape: f32[1,256], index: 3, kind: input, shape index: {}]
  %s4 = inlined_call_operand.vmem [shape: f32[1,256], index: 4, kind: input, shape index: {}]
  %s5 = inlined_call_operand.vmem [shape: f32[256,256], index: 5, kind: input, shape index: {}]
  %s6 = inlined_call_operand.vmem [shape: f32[2,256], index: 6, kind: output, shape index: {}]
  %s7 = sld [smem:[#allocation0]]
  $region34: #{decoder_forward.6} parent=0
    _
  %s9 = ssub.s32 1, %s7
  %s10 = scalar_select 0, %s9, %s7
  // Predicated region
  $region2: #{decoder_forward.6} parent=0 // pred_check
    _
  $region3: #{decoder_forward.6} parent=0 // pred_check_branch
    %12 = sbr.rel (0) target = $region5
  $region4: #{decoder_forward.6} parent=0 // pred_region
    _
  $region5: #{decoder_forward.6} parent=0 // pred_fallthru
    _
  // Predicated region
  $region6: #{decoder_forward.6} parent=0 // pred_check
    _
  $region7: #{decoder_forward.6} parent=0 // pred_check_branch
    %14 = sbr.rel (0) target = $region9
  $region8: #{decoder_forward.6} parent=0 // pred_region
    _
  $region9: #{decoder_forward.6} parent=0 // pred_fallthru
    _
  // Predicated region
  $region10: #{decoder_forward.6} parent=0 // pred_check
    _
  $region11: #{decoder_forward.6} parent=0 // pred_check_branch
    %16 = sbr.rel (0) target = $region13
  $region12: #{decoder_forward.6} parent=0 // pred_region
    _
  $region13: #{decoder_forward.6} parent=0 // pred_fallthru
    _
  // Predicated region
  $region14: #{decoder_forward.6} parent=0 // pred_check
    _
  $region15: #{decoder_forward.6} parent=0 // pred_check_branch
    %18 = sbr.rel (0) target = $region17
  $region16: #{decoder_forward.6} parent=0 // pred_region
    _
  $region17: #{decoder_forward.6} parent=0 // pred_fallthru
    _
  // Predicated region
  $region18: #{decoder_forward.6} parent=0 // pred_check
    _
  $region19: #{decoder_forward.6} parent=0 // pred_check_branch
    %20 = sbr.rel (0) target = $region21
  $region20: #{decoder_forward.6} parent=0 // pred_region
    _
  $region21: #{decoder_forward.6} parent=0 // pred_fallthru
    _
  // Predicated region
  $region22: #{decoder_forward.6} parent=0 // pred_check
    _
  $region23: #{decoder_forward.6} parent=0 // pred_check_branch
    %22 = sbr.rel (0) target = $region25
  $region24: #{decoder_forward.6} parent=0 // pred_region
    _
  $region25: #{decoder_forward.6} parent=0 // pred_fallthru
    _
  %v23 = vld [vmem:[%s0] sm:$0xff]
  %v24 = vld [vmem:[%s0 + $0x8] sm:$0x3]
  %v25 = vld [vmem:[%s1] sm:$0xff]
  %v26 = vld [vmem:[%s1 + $0x8] sm:$0xff]
  %v27 = vld [vmem:[%s1 + $0x10] sm:$0xff]
  %v28 = vld [vmem:[%s1 + $0x18] sm:$0xff]
  %v29 = vld [vmem:[%s1 + $0x20] sm:$0xff]
  %v30 = vld [vmem:[%s1 + $0x28] sm:$0xff]
  %v31 = vld [vmem:[%s1 + $0x30] sm:$0xff]
  %v32 = vld [vmem:[%s1 + $0x38] sm:$0xff]
  %v33 = vld [vmem:[%s1 + $0x40] sm:$0xff]
  %v34 = vld [vmem:[%s1 + $0x48] sm:$0xff]
  %v35 = vld [vmem:[%s1 + $0x50] sm:$0xff]
  %v36 = vld [vmem:[%s1 + $0x58] sm:$0xff]
  %v37 = vld [vmem:[%s1 + $0x60] sm:$0xff]
  %v38 = vld [vmem:[%s1 + $0x68] sm:$0xff]
  %v39 = vld [vmem:[%s1 + $0x70] sm:$0xff]
  %v40 = vld [vmem:[%s1 + $0x78] sm:$0xff]
  %v41 = vld [vmem:[%s1 + $0x80] sm:$0xff]
  %v42 = vld [vmem:[%s1 + $0x88] sm:$0xff]
  %v43 = vld [vmem:[%s1 + $0x90] sm:$0xff]
  %v44 = vld [vmem:[%s1 + $0x98] sm:$0xff]
  %v45 = vld [vmem:[%s1 + $0xa0] sm:$0xff]
  %v46 = vld [vmem:[%s1 + $0xa8] sm:$0xff]
  %v47 = vld [vmem:[%s1 + $0xb0] sm:$0xff]
  %v48 = vld [vmem:[%s1 + $0xb8] sm:$0xff]
  %v49 = vld [vmem:[%s1 + $0xc0] sm:$0xff]
  %v50 = vld [vmem:[%s1 + $0xc8] sm:$0xff]
  %v51 = vld [vmem:[%s1 + $0xd0] sm:$0xff]
  %v52 = vld [vmem:[%s1 + $0xd8] sm:$0xff]
  %v53 = vld [vmem:[%s1 + $0xe0] sm:$0xff]
  %v54 = vld [vmem:[%s1 + $0xe8] sm:$0xff]
  %v55 = vld [vmem:[%s1 + $0xf0] sm:$0xff]
  %v56 = vld [vmem:[%s1 + $0xf8] sm:$0xff]
  %v57 = vld [vmem:[%s1 + $0x100] sm:$0xff]
  %v58 = vld [vmem:[%s1 + $0x108] sm:$0xff]
  %v59 = vld [vmem:[%s1 + $0x110] sm:$0xff]
  %v60 = vld [vmem:[%s1 + $0x118] sm:$0xff]
  %v61 = vld [vmem:[%s1 + $0x120] sm:$0xff]
  %v62 = vld [vmem:[%s1 + $0x128] sm:$0xff]
  %v63 = vld [vmem:[%s1 + $0x130] sm:$0xff]
  %v64 = vld [vmem:[%s1 + $0x138] sm:$0xff]
  %v65 = vld [vmem:[%s1 + $0x140] sm:$0xff]
  %v66 = vld [vmem:[%s1 + $0x148] sm:$0xff]
  %v67 = vld [vmem:[%s1 + $0x150] sm:$0xff]
  %v68 = vld [vmem:[%s1 + $0x158] sm:$0xff]
  %v69 = vld [vmem:[%s1 + $0x160] sm:$0xff]
  %v70 = vld [vmem:[%s1 + $0x168] sm:$0xff]
  %v71 = vld [vmem:[%s1 + $0x170] sm:$0xff]
  %v72 = vld [vmem:[%s1 + $0x178] sm:$0xff]
  %v73 = vld [vmem:[%s1 + $0x180] sm:$0xff]
  %v74 = vld [vmem:[%s1 + $0x188] sm:$0xff]
  %v75 = vld [vmem:[%s1 + $0x190] sm:$0xff]
  %v76 = vld [vmem:[%s1 + $0x198] sm:$0xff]
  %v77 = vld [vmem:[%s1 + $0x1a0] sm:$0xff]
  %v78 = vld [vmem:[%s1 + $0x1a8] sm:$0xff]
  %v79 = vld [vmem:[%s1 + $0x1b0] sm:$0xff]
  %v80 = vld [vmem:[%s1 + $0x1b8] sm:$0xff]
  %v81 = vld [vmem:[%s1 + $0x1c0] sm:$0xff]
  %v82 = vld [vmem:[%s1 + $0x1c8] sm:$0xff]
  %v83 = vld [vmem:[%s1 + $0x1d0] sm:$0xff]
  %v84 = vld [vmem:[%s1 + $0x1d8] sm:$0xff]
  %v85 = vld [vmem:[%s1 + $0x1e0] sm:$0xff]
  %v86 = vld [vmem:[%s1 + $0x1e8] sm:$0xff]
  %v87 = vld [vmem:[%s1 + $0x1f0] sm:$0xff]
  %v88 = vld [vmem:[%s1 + $0x1f8] sm:$0xff]
  %v89 = vld [vmem:[%s1 + $0x200] sm:$0xff]
  %v90 = vld [vmem:[%s1 + $0x208] sm:$0xff]
  %v91 = vld [vmem:[%s1 + $0x210] sm:$0xff]
  %v92 = vld [vmem:[%s1 + $0x218] sm:$0xff]
  %v93 = vld [vmem:[%s1 + $0x220] sm:$0xff]
  %v94 = vld [vmem:[%s1 + $0x228] sm:$0xff]
  %v95 = vld [vmem:[%s1 + $0x230] sm:$0xff]
  %v96 = vld [vmem:[%s1 + $0x238] sm:$0xff]
  %v97 = vld [vmem:[%s1 + $0x240] sm:$0xff]
  %v98 = vld [vmem:[%s1 + $0x248] sm:$0xff]
  %v99 = vld [vmem:[%s1 + $0x250] sm:$0xff]
  %v100 = vld [vmem:[%s1 + $0x258] sm:$0xff]
  %v101 = vld [vmem:[%s1 + $0x260] sm:$0xff]
  %v102 = vld [vmem:[%s1 + $0x268] sm:$0xff]
  %v103 = vld [vmem:[%s1 + $0x270] sm:$0xff]
  %v104 = vld [vmem:[%s1 + $0x278] sm:$0xff]
  %v105 = vld [vmem:[%s1 + $0x280] sm:$0xff]
  %v106 = vld [vmem:[%s1 + $0x288] sm:$0xff]
  %v107 = vld [vmem:[%s1 + $0x290] sm:$0xff]
  %v108 = vld [vmem:[%s1 + $0x298] sm:$0xff]
  %v109 = vld [vmem:[%s1 + $0x2a0] sm:$0xff]
  %v110 = vld [vmem:[%s1 + $0x2a8] sm:$0xff]
  %v111 = vld [vmem:[%s1 + $0x2b0] sm:$0xff]
  %v112 = vld [vmem:[%s1 + $0x2b8] sm:$0xff]
  %v113 = vld [vmem:[%s1 + $0x2c0] sm:$0xff]
  %v114 = vld [vmem:[%s1 + $0x2c8] sm:$0xff]
  %v115 = vld [vmem:[%s1 + $0x2d0] sm:$0xff]
  %v116 = vld [vmem:[%s1 + $0x2d8] sm:$0xff]
  %v117 = vld [vmem:[%s1 + $0x2e0] sm:$0xff]
  %v118 = vld [vmem:[%s1 + $0x2e8] sm:$0xff]
  %v119 = vld [vmem:[%s1 + $0x2f0] sm:$0xff]
  %v120 = vld [vmem:[%s1 + $0x2f8] sm:$0xff]
  %v121 = vld [vmem:[%s1 + $0x300] sm:$0xff]
  %v122 = vld [vmem:[%s1 + $0x308] sm:$0xff]
  %v123 = vld [vmem:[%s1 + $0x310] sm:$0xff]
  %v124 = vld [vmem:[%s1 + $0x318] sm:$0xff]
  %v125 = vld [vmem:[%s1 + $0x320] sm:$0xff]
  %v126 = vld [vmem:[%s1 + $0x328] sm:$0xff]
  %v127 = vld [vmem:[%s1 + $0x330] sm:$0xff]
  %v128 = vld [vmem:[%s1 + $0x338] sm:$0xff]
  %v129 = vld [vmem:[%s1 + $0x340] sm:$0xff]
  %v130 = vld [vmem:[%s1 + $0x348] sm:$0xff]
  %v131 = vld [vmem:[%s1 + $0x350] sm:$0xff]
  %v132 = vld [vmem:[%s1 + $0x358] sm:$0xff]
  %v133 = vld [vmem:[%s1 + $0x360] sm:$0xff]
  %v134 = vld [vmem:[%s1 + $0x368] sm:$0xff]
  %v135 = vld [vmem:[%s1 + $0x370] sm:$0xff]
  %v136 = vld [vmem:[%s1 + $0x378] sm:$0xff]
  %v137 = vld [vmem:[%s1 + $0x380] sm:$0xff]
  %v138 = vld [vmem:[%s1 + $0x388] sm:$0xff]
  %v139 = vld [vmem:[%s1 + $0x390] sm:$0xff]
  %v140 = vld [vmem:[%s1 + $0x398] sm:$0xff]
  %v141 = vld [vmem:[%s1 + $0x3a0] sm:$0xff]
  %v142 = vld [vmem:[%s1 + $0x3a8] sm:$0xff]
  %v143 = vld [vmem:[%s1 + $0x3b0] sm:$0xff]
  %v144 = vld [vmem:[%s1 + $0x3b8] sm:$0xff]
  %v145 = vld [vmem:[%s1 + $0x3c0] sm:$0xff]
  %v146 = vld [vmem:[%s1 + $0x3c8] sm:$0xff]
  %v147 = vld [vmem:[%s1 + $0x3d0] sm:$0xff]
  %v148 = vld [vmem:[%s1 + $0x3d8] sm:$0xff]
  %v149 = vld [vmem:[%s1 + $0x3e0] sm:$0xff]
  %v150 = vld [vmem:[%s1 + $0x3e8] sm:$0xff]
  %v151 = vld [vmem:[%s1 + $0x3f0] sm:$0xff]
  %v152 = vld [vmem:[%s1 + $0x3f8] sm:$0xff]
  %v153 = vld [vmem:[%s1 + $0x400] sm:$0xff]
  %v154 = vld [vmem:[%s1 + $0x408] sm:$0xff]
  %v155 = vld [vmem:[%s1 + $0x410] sm:$0xff]
  %v156 = vld [vmem:[%s1 + $0x418] sm:$0xff]
  %v157 = vld [vmem:[%s1 + $0x420] sm:$0xff]
  %v158 = vld [vmem:[%s1 + $0x428] sm:$0xff]
  %v159 = vld [vmem:[%s1 + $0x430] sm:$0xff]
  %v160 = vld [vmem:[%s1 + $0x438] sm:$0xff]
  %v161 = vld [vmem:[%s1 + $0x440] sm:$0xff]
  %v162 = vld [vmem:[%s1 + $0x448] sm:$0xff]
  %v163 = vld [vmem:[%s1 + $0x450] sm:$0xff]
  %v164 = vld [vmem:[%s1 + $0x458] sm:$0xff]
  %v165 = vld [vmem:[%s1 + $0x460] sm:$0xff]
  %v166 = vld [vmem:[%s1 + $0x468] sm:$0xff]
  %v167 = vld [vmem:[%s1 + $0x470] sm:$0xff]
  %v168 = vld [vmem:[%s1 + $0x478] sm:$0xff]
  %v169 = vld [vmem:[%s2] sm:$0x3]
  %v171 = vperm.slane %v169, 0
  %v172 = vperm.slane %v169, 1
  %177 = vst [vmem:[#allocation1] ss:$4 sm:$0xff] %v23
  %s178 = scalar_lea.vmem [#allocation1], 32
  %179 = vst [vmem:[%s178] ss:$4 sm:$0xff] %v24
  %v180 = vld.sshfl [vmem:[#allocation1] sm:$0xff pattern:$0x73625140]
  %v181 = vld.sshfl [vmem:[#allocation1 + $0x8] sm:$0xff pattern:$0x73625140]
  %v182 = vld.sshfl [vmem:[#allocation1 + $0x10] sm:$0xff pattern:$0x73625140]
  %v183 = vld.sshfl [vmem:[#allocation1 + $0x18] sm:$0xff pattern:$0x73625140]
  %v184 = vld.sshfl [vmem:[#allocation1 + $0x20] sm:$0xff pattern:$0x73625140]
  %vm189 = vcmask 523264
  %v190 = vsel %vm189, %v184, 0
  %192 = vmatpush.msra.mxu0 %v55
  %193 = vmatpush.msra.mxu0 %v53
  %194 = vmatpush.msra.mxu0 %v51
  %195 = vmatpush.msra.mxu0 %v49
  %196 = vmatpush.msra.mxu0 %v47
  %197 = vmatpush.msra.mxu0 %v45
  %198 = vmatpush.msra.mxu0 %v43
  %199 = vmatpush.msra.mxu0 %v41
  %200 = vmatpush.msra.mxu0 %v39
  %201 = vmatpush.msra.mxu0 %v37
  %202 = vmatpush.msra.mxu0 %v35
  %203 = vmatpush.msra.mxu0 %v33
  %204 = vmatpush.msra.mxu0 %v31
  %205 = vmatpush.msra.mxu0 %v29
  %206 = vmatpush.msra.mxu0 %v27
  %207 = vmatpush.msra.mxu0 %v25
  %208 = vmatmul.f32.gmra.mxu0 %v180
  %v209 = vpop.f32.mrf.mxu0
  %v210 = vadd.f32 %v171, %v209
  %211 = vdwg.mxu0
  %212 = vmatpush.msra.mxu0 %v87
  %213 = vmatpush.msra.mxu0 %v85
  %214 = vmatpush.msra.mxu0 %v83
  %215 = vmatpush.msra.mxu0 %v81
  %216 = vmatpush.msra.mxu0 %v79
  %217 = vmatpush.msra.mxu0 %v77
  %218 = vmatpush.msra.mxu0 %v75
  %219 = vmatpush.msra.mxu0 %v73
  %220 = vmatpush.msra.mxu0 %v71
  %221 = vmatpush.msra.mxu0 %v69
  %222 = vmatpush.msra.mxu0 %v67
  %223 = vmatpush.msra.mxu0 %v65
  %224 = vmatpush.msra.mxu0 %v63
  %225 = vmatpush.msra.mxu0 %v61
  %226 = vmatpush.msra.mxu0 %v59
  %227 = vmatpush.msra.mxu0 %v57
  %228 = vmatmul.f32.gmra.mxu0 %v181
  %v229 = vpop.f32.mrf.mxu0
  %v230 = vadd.f32 %v210, %v229
  %231 = vdwg.mxu0
  %232 = vmatpush.msra.mxu0 %v119
  %233 = vmatpush.msra.mxu0 %v117
  %234 = vmatpush.msra.mxu0 %v115
  %235 = vmatpush.msra.mxu0 %v113
  %236 = vmatpush.msra.mxu0 %v111
  %237 = vmatpush.msra.mxu0 %v109
  %238 = vmatpush.msra.mxu0 %v107
  %239 = vmatpush.msra.mxu0 %v105
  %240 = vmatpush.msra.mxu0 %v103
  %241 = vmatpush.msra.mxu0 %v101
  %242 = vmatpush.msra.mxu0 %v99
  %243 = vmatpush.msra.mxu0 %v97
  %244 = vmatpush.msra.mxu0 %v95
  %245 = vmatpush.msra.mxu0 %v93
  %246 = vmatpush.msra.mxu0 %v91
  %247 = vmatpush.msra.mxu0 %v89
  %248 = vmatmul.f32.gmra.mxu0 %v182
  %v249 = vpop.f32.mrf.mxu0
  %v250 = vadd.f32 %v230, %v249
  %251 = vdwg.mxu0
  %252 = vmatpush.msra.mxu0 %v151
  %253 = vmatpush.msra.mxu0 %v149
  %254 = vmatpush.msra.mxu0 %v147
  %255 = vmatpush.msra.mxu0 %v145
  %256 = vmatpush.msra.mxu0 %v143
  %257 = vmatpush.msra.mxu0 %v141
  %258 = vmatpush.msra.mxu0 %v139
  %259 = vmatpush.msra.mxu0 %v137
  %260 = vmatpush.msra.mxu0 %v135
  %261 = vmatpush.msra.mxu0 %v133
  %262 = vmatpush.msra.mxu0 %v131
  %263 = vmatpush.msra.mxu0 %v129
  %264 = vmatpush.msra.mxu0 %v127
  %265 = vmatpush.msra.mxu0 %v125
  %266 = vmatpush.msra.mxu0 %v123
  %267 = vmatpush.msra.mxu0 %v121
  %268 = vmatmul.f32.gmra.mxu0 %v183
  %v269 = vpop.f32.mrf.mxu0
  %v270 = vadd.f32 %v250, %v269
  %271 = vdwg.mxu0
  %272 = vmatpush.msra.mxu0 0.0
  %273 = vmatpush.msra.mxu0 0.0
  %274 = vmatpush.msra.mxu0 0.0
  %275 = vmatpush.msra.mxu0 0.0
  %276 = vmatpush.msra.mxu0 0.0
  %277 = vmatpush.msra.mxu0 0.0
  %278 = vmatpush.msra.mxu0 0.0
  %279 = vmatpush.msra.mxu0 0.0
  %280 = vmatpush.msra.mxu0 %v167
  %281 = vmatpush.msra.mxu0 %v165
  %282 = vmatpush.msra.mxu0 %v163
  %283 = vmatpush.msra.mxu0 %v161
  %284 = vmatpush.msra.mxu0 %v159
  %285 = vmatpush.msra.mxu0 %v157
  %286 = vmatpush.msra.mxu0 %v155
  %287 = vmatpush.msra.mxu0 %v153
  %288 = vmatmul.f32.gmra.mxu0 %v190
  %v289 = vpop.f32.mrf.mxu0
  %v290 = vadd.f32 %v270, %v289
  %291 = vdwg.mxu0
  %292 = vmatpush.msra.mxu0 %v56
  %293 = vmatpush.msra.mxu0 %v54
  %294 = vmatpush.msra.mxu0 %v52
  %295 = vmatpush.msra.mxu0 %v50
  %296 = vmatpush.msra.mxu0 %v48
  %297 = vmatpush.msra.mxu0 %v46
  %298 = vmatpush.msra.mxu0 %v44
  %299 = vmatpush.msra.mxu0 %v42
  %300 = vmatpush.msra.mxu0 %v40
  %301 = vmatpush.msra.mxu0 %v38
  %302 = vmatpush.msra.mxu0 %v36
  %303 = vmatpush.msra.mxu0 %v34
  %304 = vmatpush.msra.mxu0 %v32
  %305 = vmatpush.msra.mxu0 %v30
  %306 = vmatpush.msra.mxu0 %v28
  %307 = vmatpush.msra.mxu0 %v26
  %308 = vmatmul.f32.gmra.mxu0 %v180
  %v309 = vpop.f32.mrf.mxu0
  %v310 = vadd.f32 %v172, %v309
  %311 = vdwg.mxu0
  %312 = vmatpush.msra.mxu0 %v88
  %313 = vmatpush.msra.mxu0 %v86
  %314 = vmatpush.msra.mxu0 %v84
  %315 = vmatpush.msra.mxu0 %v82
  %316 = vmatpush.msra.mxu0 %v80
  %317 = vmatpush.msra.mxu0 %v78
  %318 = vmatpush.msra.mxu0 %v76
  %319 = vmatpush.msra.mxu0 %v74
  %320 = vmatpush.msra.mxu0 %v72
  %321 = vmatpush.msra.mxu0 %v70
  %322 = vmatpush.msra.mxu0 %v68
  %323 = vmatpush.msra.mxu0 %v66
  %324 = vmatpush.msra.mxu0 %v64
  %325 = vmatpush.msra.mxu0 %v62
  %326 = vmatpush.msra.mxu0 %v60
  %327 = vmatpush.msra.mxu0 %v58
  %328 = vmatmul.f32.gmra.mxu0 %v181
  %v329 = vpop.f32.mrf.mxu0
  %v330 = vadd.f32 %v310, %v329
  %331 = vdwg.mxu0
  %332 = vmatpush.msra.mxu0 %v120
  %333 = vmatpush.msra.mxu0 %v118
  %334 = vmatpush.msra.mxu0 %v116
  %335 = vmatpush.msra.mxu0 %v114
  %336 = vmatpush.msra.mxu0 %v112
  %337 = vmatpush.msra.mxu0 %v110
  %338 = vmatpush.msra.mxu0 %v108
  %339 = vmatpush.msra.mxu0 %v106
  %340 = vmatpush.msra.mxu0 %v104
  %341 = vmatpush.msra.mxu0 %v102
  %342 = vmatpush.msra.mxu0 %v100
  %343 = vmatpush.msra.mxu0 %v98
  %344 = vmatpush.msra.mxu0 %v96
  %345 = vmatpush.msra.mxu0 %v94
  %346 = vmatpush.msra.mxu0 %v92
  %347 = vmatpush.msra.mxu0 %v90
  %348 = vmatmul.f32.gmra.mxu0 %v182
  %v349 = vpop.f32.mrf.mxu0
  %v350 = vadd.f32 %v330, %v349
  %351 = vdwg.mxu0
  %352 = vmatpush.msra.mxu0 %v152
  %353 = vmatpush.msra.mxu0 %v150
  %354 = vmatpush.msra.mxu0 %v148
  %355 = vmatpush.msra.mxu0 %v146
  %356 = vmatpush.msra.mxu0 %v144
  %357 = vmatpush.msra.mxu0 %v142
  %358 = vmatpush.msra.mxu0 %v140
  %359 = vmatpush.msra.mxu0 %v138
  %360 = vmatpush.msra.mxu0 %v136
  %361 = vmatpush.msra.mxu0 %v134
  %362 = vmatpush.msra.mxu0 %v132
  %363 = vmatpush.msra.mxu0 %v130
  %364 = vmatpush.msra.mxu0 %v128
  %365 = vmatpush.msra.mxu0 %v126
  %366 = vmatpush.msra.mxu0 %v124
  %367 = vmatpush.msra.mxu0 %v122
  %368 = vmatmul.f32.gmra.mxu0 %v183
  %v369 = vpop.f32.mrf.mxu0
  %v370 = vadd.f32 %v350, %v369
  %371 = vdwg.mxu0
  %372 = vmatpush.msra.mxu0 0.0
  %373 = vmatpush.msra.mxu0 0.0
  %374 = vmatpush.msra.mxu0 0.0
  %375 = vmatpush.msra.mxu0 0.0
  %376 = vmatpush.msra.mxu0 0.0
  %377 = vmatpush.msra.mxu0 0.0
  %378 = vmatpush.msra.mxu0 0.0
  %379 = vmatpush.msra.mxu0 0.0
  %380 = vmatpush.msra.mxu0 %v168
  %381 = vmatpush.msra.mxu0 %v166
  %382 = vmatpush.msra.mxu0 %v164
  %383 = vmatpush.msra.mxu0 %v162
  %384 = vmatpush.msra.mxu0 %v160
  %385 = vmatpush.msra.mxu0 %v158
  %386 = vmatpush.msra.mxu0 %v156
  %387 = vmatpush.msra.mxu0 %v154
  %388 = vmatmul.f32.gmra.mxu0 %v190
  %v389 = vpop.f32.mrf.mxu0
  %v390 = vadd.f32 %v370, %v389
  %391 = vdwg.mxu0
  %vm392 = vcmask 1041408
  %v393 = vsel %vm392, %v290, 0.0
  %v394 = vrot.slane %v393, 4
  %v395 = vadd.f32 %v393, %v394
  %v396 = vrot.slane %v395, 2
  %v397 = vadd.f32 %v395, %v396
  %v398 = vrot.slane %v397, 1
  %v399 = vadd.f32 %v397, %v398
  %v400 = vsel %vm392, %v390, 0.0
  %v401 = vrot.slane %v400, 4
  %v402 = vadd.f32 %v400, %v401
  %v403 = vrot.slane %v402, 2
  %v404 = vadd.f32 %v402, %v403
  %v405 = vrot.slane %v404, 1
  %v406 = vadd.f32 %v404, %v405
  %v407 = vld [vmem:[%s5] sm:$0xff]
  %v408 = vld [vmem:[%s5 + $0x8] sm:$0xff]
  %v409 = vld [vmem:[%s5 + $0x10] sm:$0xff]
  %v410 = vld [vmem:[%s5 + $0x18] sm:$0xff]
  %v411 = vld [vmem:[%s5 + $0x20] sm:$0xff]
  %v412 = vld [vmem:[%s5 + $0x28] sm:$0xff]
  %v413 = vld [vmem:[%s5 + $0x30] sm:$0xff]
  %v414 = vld [vmem:[%s5 + $0x38] sm:$0xff]
  %v415 = vld [vmem:[%s5 + $0x40] sm:$0xff]
  %v416 = vld [vmem:[%s5 + $0x48] sm:$0xff]
  %v417 = vld [vmem:[%s5 + $0x50] sm:$0xff]
  %v418 = vld [vmem:[%s5 + $0x58] sm:$0xff]
  %v419 = vld [vmem:[%s5 + $0x60] sm:$0xff]
  %v420 = vld [vmem:[%s5 + $0x68] sm:$0xff]
  %v421 = vld [vmem:[%s5 + $0x70] sm:$0xff]
  %v422 = vld [vmem:[%s5 + $0x78] sm:$0xff]
  %v423 = vld [vmem:[%s5 + $0x80] sm:$0xff]
  %v424 = vld [vmem:[%s5 + $0x88] sm:$0xff]
  %v425 = vld [vmem:[%s5 + $0x90] sm:$0xff]
  %v426 = vld [vmem:[%s5 + $0x98] sm:$0xff]
  %v427 = vld [vmem:[%s5 + $0xa0] sm:$0xff]
  %v428 = vld [vmem:[%s5 + $0xa8] sm:$0xff]
  %v429 = vld [vmem:[%s5 + $0xb0] sm:$0xff]
  %v430 = vld [vmem:[%s5 + $0xb8] sm:$0xff]
  %v431 = vld [vmem:[%s5 + $0xc0] sm:$0xff]
  %v432 = vld [vmem:[%s5 + $0xc8] sm:$0xff]
  %v433 = vld [vmem:[%s5 + $0xd0] sm:$0xff]
  %v434 = vld [vmem:[%s5 + $0xd8] sm:$0xff]
  %v435 = vld [vmem:[%s5 + $0xe0] sm:$0xff]
  %v436 = vld [vmem:[%s5 + $0xe8] sm:$0xff]
  %v437 = vld [vmem:[%s5 + $0xf0] sm:$0xff]
  %v438 = vld [vmem:[%s5 + $0xf8] sm:$0xff]
  %v439 = vld [vmem:[%s5 + $0x100] sm:$0xff]
  %v440 = vld [vmem:[%s5 + $0x108] sm:$0xff]
  %v441 = vld [vmem:[%s5 + $0x110] sm:$0xff]
  %v442 = vld [vmem:[%s5 + $0x118] sm:$0xff]
  %v443 = vld [vmem:[%s5 + $0x120] sm:$0xff]
  %v444 = vld [vmem:[%s5 + $0x128] sm:$0xff]
  %v445 = vld [vmem:[%s5 + $0x130] sm:$0xff]
  %v446 = vld [vmem:[%s5 + $0x138] sm:$0xff]
  %v447 = vld [vmem:[%s5 + $0x140] sm:$0xff]
  %v448 = vld [vmem:[%s5 + $0x148] sm:$0xff]
  %v449 = vld [vmem:[%s5 + $0x150] sm:$0xff]
  %v450 = vld [vmem:[%s5 + $0x158] sm:$0xff]
  %v451 = vld [vmem:[%s5 + $0x160] sm:$0xff]
  %v452 = vld [vmem:[%s5 + $0x168] sm:$0xff]
  %v453 = vld [vmem:[%s5 + $0x170] sm:$0xff]
  %v454 = vld [vmem:[%s5 + $0x178] sm:$0xff]
  %v455 = vld [vmem:[%s5 + $0x180] sm:$0xff]
  %v456 = vld [vmem:[%s5 + $0x188] sm:$0xff]
  %v457 = vld [vmem:[%s5 + $0x190] sm:$0xff]
  %v458 = vld [vmem:[%s5 + $0x198] sm:$0xff]
  %v459 = vld [vmem:[%s5 + $0x1a0] sm:$0xff]
  %v460 = vld [vmem:[%s5 + $0x1a8] sm:$0xff]
  %v461 = vld [vmem:[%s5 + $0x1b0] sm:$0xff]
  %v462 = vld [vmem:[%s5 + $0x1b8] sm:$0xff]
  %v463 = vld [vmem:[%s5 + $0x1c0] sm:$0xff]
  %v464 = vld [vmem:[%s5 + $0x1c8] sm:$0xff]
  %v465 = vld [vmem:[%s5 + $0x1d0] sm:$0xff]
  %v466 = vld [vmem:[%s5 + $0x1d8] sm:$0xff]
  %v467 = vld [vmem:[%s5 + $0x1e0] sm:$0xff]
  %v468 = vld [vmem:[%s5 + $0x1e8] sm:$0xff]
  %v469 = vld [vmem:[%s5 + $0x1f0] sm:$0xff]
  %v470 = vld [vmem:[%s5 + $0x1f8] sm:$0xff]
  %471 = vmatpush.msra.mxu0 %v437
  %472 = vmatpush.msra.mxu0 %v435
  %473 = vmatpush.msra.mxu0 %v433
  %474 = vmatpush.msra.mxu0 %v431
  %475 = vmatpush.msra.mxu0 %v429
  %476 = vmatpush.msra.mxu0 %v427
  %477 = vmatpush.msra.mxu0 %v425
  %478 = vmatpush.msra.mxu0 %v423
  %479 = vmatpush.msra.mxu0 %v421
  %480 = vmatpush.msra.mxu0 %v419
  %481 = vmatpush.msra.mxu0 %v417
  %482 = vmatpush.msra.mxu0 %v415
  %483 = vmatpush.msra.mxu0 %v413
  %484 = vmatpush.msra.mxu0 %v411
  %485 = vmatpush.msra.mxu0 %v409
  %486 = vmatpush.msra.mxu0 %v407
  %487 = vmatmul.f32.gmra.mxu0 %v399
  %v488 = vpop.f32.mrf.mxu0
  %v489 = vadd.f32 0.0, %v488
  %490 = vdwg.mxu0
  %491 = vmatpush.msra.mxu0 %v469
  %492 = vmatpush.msra.mxu0 %v467
  %493 = vmatpush.msra.mxu0 %v465
  %494 = vmatpush.msra.mxu0 %v463
  %495 = vmatpush.msra.mxu0 %v461
  %496 = vmatpush.msra.mxu0 %v459
  %497 = vmatpush.msra.mxu0 %v457
  %498 = vmatpush.msra.mxu0 %v455
  %499 = vmatpush.msra.mxu0 %v453
  %500 = vmatpush.msra.mxu0 %v451
  %501 = vmatpush.msra.mxu0 %v449
  %502 = vmatpush.msra.mxu0 %v447
  %503 = vmatpush.msra.mxu0 %v445
  %504 = vmatpush.msra.mxu0 %v443
  %505 = vmatpush.msra.mxu0 %v441
  %506 = vmatpush.msra.mxu0 %v439
  %507 = vmatmul.f32.gmra.mxu0 %v406
  %v508 = vpop.f32.mrf.mxu0
  %v509 = vadd.f32 %v489, %v508
  %510 = vdwg.mxu0
  %511 = vmatpush.msra.mxu0 %v438
  %512 = vmatpush.msra.mxu0 %v436
  %513 = vmatpush.msra.mxu0 %v434
  %514 = vmatpush.msra.mxu0 %v432
  %515 = vmatpush.msra.mxu0 %v430
  %516 = vmatpush.msra.mxu0 %v428
  %517 = vmatpush.msra.mxu0 %v426
  %518 = vmatpush.msra.mxu0 %v424
  %519 = vmatpush.msra.mxu0 %v422
  %520 = vmatpush.msra.mxu0 %v420
  %521 = vmatpush.msra.mxu0 %v418
  %522 = vmatpush.msra.mxu0 %v416
  %523 = vmatpush.msra.mxu0 %v414
  %524 = vmatpush.msra.mxu0 %v412
  %525 = vmatpush.msra.mxu0 %v410
  %526 = vmatpush.msra.mxu0 %v408
  %527 = vmatmul.f32.gmra.mxu0 %v399
  %v528 = vpop.f32.mrf.mxu0
  %v529 = vadd.f32 0.0, %v528
  %530 = vdwg.mxu0
  %531 = vmatpush.msra.mxu0 %v470
  %532 = vmatpush.msra.mxu0 %v468
  %533 = vmatpush.msra.mxu0 %v466
  %534 = vmatpush.msra.mxu0 %v464
  %535 = vmatpush.msra.mxu0 %v462
  %536 = vmatpush.msra.mxu0 %v460
  %537 = vmatpush.msra.mxu0 %v458
  %538 = vmatpush.msra.mxu0 %v456
  %539 = vmatpush.msra.mxu0 %v454
  %540 = vmatpush.msra.mxu0 %v452
  %541 = vmatpush.msra.mxu0 %v450
  %542 = vmatpush.msra.mxu0 %v448
  %543 = vmatpush.msra.mxu0 %v446
  %544 = vmatpush.msra.mxu0 %v444
  %545 = vmatpush.msra.mxu0 %v442
  %546 = vmatpush.msra.mxu0 %v440
  %547 = vmatmul.f32.gmra.mxu0 %v406
  %v548 = vpop.f32.mrf.mxu0
  %v549 = vadd.f32 %v529, %v548
  %550 = vdwg.mxu0
  %v551 = vrcp.pop 8.0
  %v552 = vmul.f32 8.0, %v551
  %v553 = vsub.f32 1.0, %v552
  %v554 = vmul.f32 %v551, %v553
  %v555 = vadd.f32 %v551, %v554
  %vm556 = vweird.f32 %v551
  %v557 = vsel %vm556, %v551, %v555
  %v558 = vmul.f32 %v509, %v557
  %v559 = vmul.f32 %v549, %v557
  %v560 = vperm.slane %v558, 0
  %v561 = vperm.slane %v559, 0
  %v562 = vsub.f32 %v290, %v560
  %v563 = vsub.f32 %v390, %v561
  %v564 = vmul.f32 %v562, %v562
  %v565 = vmul.f32 %v563, %v563
  %v566 = vsel %vm392, %v564, 0.0
  %v567 = vrot.slane %v566, 4
  %v568 = vadd.f32 %v566, %v567
  %v569 = vrot.slane %v568, 2
  %v570 = vadd.f32 %v568, %v569
  %v571 = vrot.slane %v570, 1
  %v572 = vadd.f32 %v570, %v571
  %v573 = vsel %vm392, %v565, 0.0
  %v574 = vrot.slane %v573, 4
  %v575 = vadd.f32 %v573, %v574
  %v576 = vrot.slane %v575, 2
  %v577 = vadd.f32 %v575, %v576
  %v578 = vrot.slane %v577, 1
  %v579 = vadd.f32 %v577, %v578
  %580 = vmatpush.msra.mxu0 %v437
  %581 = vmatpush.msra.mxu0 %v435
  %582 = vmatpush.msra.mxu0 %v433
  %583 = vmatpush.msra.mxu0 %v431
  %584 = vmatpush.msra.mxu0 %v429
  %585 = vmatpush.msra.mxu0 %v427
  %586 = vmatpush.msra.mxu0 %v425
  %587 = vmatpush.msra.mxu0 %v423
  %588 = vmatpush.msra.mxu0 %v421
  %589 = vmatpush.msra.mxu0 %v419
  %590 = vmatpush.msra.mxu0 %v417
  %591 = vmatpush.msra.mxu0 %v415
  %592 = vmatpush.msra.mxu0 %v413
  %593 = vmatpush.msra.mxu0 %v411
  %594 = vmatpush.msra.mxu0 %v409
  %595 = vmatpush.msra.mxu0 %v407
  %596 = vmatmul.f32.gmra.mxu0 %v572
  %v597 = vpop.f32.mrf.mxu0
  %v598 = vadd.f32 0.0, %v597
  %599 = vdwg.mxu0
  %600 = vmatpush.msra.mxu0 %v469
  %601 = vmatpush.msra.mxu0 %v467
  %602 = vmatpush.msra.mxu0 %v465
  %603 = vmatpush.msra.mxu0 %v463
  %604 = vmatpush.msra.mxu0 %v461
  %605 = vmatpush.msra.mxu0 %v459
  %606 = vmatpush.msra.mxu0 %v457
  %607 = vmatpush.msra.mxu0 %v455
  %608 = vmatpush.msra.mxu0 %v453
  %609 = vmatpush.msra.mxu0 %v451
  %610 = vmatpush.msra.mxu0 %v449
  %611 = vmatpush.msra.mxu0 %v447
  %612 = vmatpush.msra.mxu0 %v445
  %613 = vmatpush.msra.mxu0 %v443
  %614 = vmatpush.msra.mxu0 %v441
  %615 = vmatpush.msra.mxu0 %v439
  %616 = vmatmul.f32.gmra.mxu0 %v579
  %v617 = vpop.f32.mrf.mxu0
  %v618 = vadd.f32 %v598, %v617
  %619 = vdwg.mxu0
  %620 = vmatpush.msra.mxu0 %v438
  %621 = vmatpush.msra.mxu0 %v436
  %622 = vmatpush.msra.mxu0 %v434
  %623 = vmatpush.msra.mxu0 %v432
  %624 = vmatpush.msra.mxu0 %v430
  %625 = vmatpush.msra.mxu0 %v428
  %626 = vmatpush.msra.mxu0 %v426
  %627 = vmatpush.msra.mxu0 %v424
  %628 = vmatpush.msra.mxu0 %v422
  %629 = vmatpush.msra.mxu0 %v420
  %630 = vmatpush.msra.mxu0 %v418
  %631 = vmatpush.msra.mxu0 %v416
  %632 = vmatpush.msra.mxu0 %v414
  %633 = vmatpush.msra.mxu0 %v412
  %634 = vmatpush.msra.mxu0 %v410
  %635 = vmatpush.msra.mxu0 %v408
  %636 = vmatmul.f32.gmra.mxu0 %v572
  %v637 = vpop.f32.mrf.mxu0
  %v638 = vadd.f32 0.0, %v637
  %639 = vdwg.mxu0
  %640 = vmatpush.msra.mxu0 %v470
  %641 = vmatpush.msra.mxu0 %v468
  %642 = vmatpush.msra.mxu0 %v466
  %643 = vmatpush.msra.mxu0 %v464
  %644 = vmatpush.msra.mxu0 %v462
  %645 = vmatpush.msra.mxu0 %v460
  %646 = vmatpush.msra.mxu0 %v458
  %647 = vmatpush.msra.mxu0 %v456
  %648 = vmatpush.msra.mxu0 %v454
  %649 = vmatpush.msra.mxu0 %v452
  %650 = vmatpush.msra.mxu0 %v450
  %651 = vmatpush.msra.mxu0 %v448
  %652 = vmatpush.msra.mxu0 %v446
  %653 = vmatpush.msra.mxu0 %v444
  %654 = vmatpush.msra.mxu0 %v442
  %655 = vmatpush.msra.mxu0 %v440
  %656 = vmatmul.f32.gmra.mxu0 %v579
  %v657 = vpop.f32.mrf.mxu0
  %v658 = vadd.f32 %v638, %v657
  %659 = vdwg.mxu0
  %v660 = vmul.f32 %v618, %v557
  %v661 = vmul.f32 %v658, %v557
  %v662 = vld [vmem:[%s3] sm:$0x3]
  %v663 = vadd.f32 %v660, 1e-05
  %v664 = vadd.f32 %v661, 1e-05
  %v665 = vrsqrt.pop %v663
  %v666 = vmul.f32 %v665, %v663
  %v667 = vmul.f32 %v666, %v665
  %v668 = vmul.f32 0.5, %v667
  %v669 = vsub.f32 1.5, %v668
  %v670 = vmul.f32 %v665, %v669
  %vm671 = vweird.f32 %v663
  %vm672 = vweird.f32 %v665
  %vm673 = vmor %vm671, %vm672
  %v674 = vsel %vm673, %v665, %v670
  %v675 = vrsqrt.pop %v664
  %v676 = vmul.f32 %v675, %v664
  %v677 = vmul.f32 %v676, %v675
  %v678 = vmul.f32 0.5, %v677
  %v679 = vsub.f32 1.5, %v678
  %v680 = vmul.f32 %v675, %v679
  %vm681 = vweird.f32 %v664
  %vm682 = vweird.f32 %v675
  %vm683 = vmor %vm681, %vm682
  %v684 = vsel %vm683, %v675, %v680
  %v687 = vrot.slane %v684, 7
  %vm688 = vcmask 1040384
  %v689 = vsel %vm688, %v674, %v687
  %v691 = vmul.f32 %v662, %v689
  %v692 = vld [vmem:[%s4] sm:$0x3]
  %v694 = vperm.slane %v691, 0
  %v695 = vperm.slane %v691, 1
  %v698 = vmul.f32 %v558, %v694
  %v699 = vmul.f32 %v559, %v695
  %v702 = vrot.slane %v699, 7
  %v703 = vsel %vm688, %v698, %v702
  %v705 = vsub.f32 %v692, %v703
  %v706 = vmul.f32 %v290, %v694
  %v707 = vmul.f32 %v390, %v695
  %v709 = vperm.slane %v705, 0
  %v710 = vperm.slane %v705, 1
  %v713 = vadd.f32 %v706, %v709
  %v714 = vadd.f32 %v707, %v710
  %v717 = vrot.slane %v714, 6
  %v718 = vsel %vm392, %v713, %v717
  %720 = vst [vmem:[%s6] sm:$0xf] %v718
  // Predicated region
  $region26: #{decoder_forward.6} parent=0 // pred_check
    _
  $region27: #{decoder_forward.6} parent=0 // pred_check_branch
    %722 = sbr.rel (0) target = $region29
  $region28: #{decoder_forward.6} parent=0 // pred_region
    _
  $region29: #{decoder_forward.6} parent=0 // pred_fallthru
    _
  // Predicated region
  $region30: #{decoder_forward.6} parent=0 // pred_check
    _
  $region31: #{decoder_forward.6} parent=0 // pred_check_branch
    %724 = sbr.rel (0) target = $region33
  $region32: #{decoder_forward.6} parent=0 // pred_region
    _
  $region33: #{decoder_forward.6} parent=0 // pred_fallthru
    _

// kernel: decoder_forward.7
$region0: #{decoder_forward.7}
  #allocation0 [shape = 'u32[]', space=smem, size = 0x4, offset = 0x4, fixed_abs, tag = 'smem constant byte address 0x4 - core index']
  #allocation1 [shape = 'u32[72,128]{1,0:T(1,128)}', space=vmem, size = 0x9000, scoped, tag = 'internal scratch']
  %s0 = inlined_call_operand.vmem [shape: f32[8,1152], index: 0, kind: input, shape index: {}]
  %s1 = inlined_call_operand.vmem [shape: f32[1152,256], index: 1, kind: input, shape index: {}]
  %s2 = inlined_call_operand.vmem [shape: f32[1,256], index: 2, kind: input, shape index: {}]
  %s3 = inlined_call_operand.vmem [shape: f32[1,256], index: 3, kind: input, shape index: {}]
  %s4 = inlined_call_operand.vmem [shape: f32[1,256], index: 4, kind: input, shape index: {}]
  %s5 = inlined_call_operand.vmem [shape: f32[256,256], index: 5, kind: input, shape index: {}]
  %s6 = inlined_call_operand.vmem [shape: f32[8,256], index: 6, kind: output, shape index: {}]
  %s7 = sld [smem:[#allocation0]]
  $region34: #{decoder_forward.7} parent=0
    _
  %s9 = ssub.s32 1, %s7
  %s10 = scalar_select 0, %s9, %s7
  // Predicated region
  $region2: #{decoder_forward.7} parent=0 // pred_check
    _
  $region3: #{decoder_forward.7} parent=0 // pred_check_branch
    %12 = sbr.rel (0) target = $region5
  $region4: #{decoder_forward.7} parent=0 // pred_region
    _
  $region5: #{decoder_forward.7} parent=0 // pred_fallthru
    _
  // Predicated region
  $region6: #{decoder_forward.7} parent=0 // pred_check
    _
  $region7: #{decoder_forward.7} parent=0 // pred_check_branch
    %14 = sbr.rel (0) target = $region9
  $region8: #{decoder_forward.7} parent=0 // pred_region
    _
  $region9: #{decoder_forward.7} parent=0 // pred_fallthru
    _
  // Predicated region
  $region10: #{decoder_forward.7} parent=0 // pred_check
    _
  $region11: #{decoder_forward.7} parent=0 // pred_check_branch
    %16 = sbr.rel (0) target = $region13
  $region12: #{decoder_forward.7} parent=0 // pred_region
    _
  $region13: #{decoder_forward.7} parent=0 // pred_fallthru
    _
  // Predicated region
  $region14: #{decoder_forward.7} parent=0 // pred_check
    _
  $region15: #{decoder_forward.7} parent=0 // pred_check_branch
    %18 = sbr.rel (0) target = $region17
  $region16: #{decoder_forward.7} parent=0 // pred_region
    _
  $region17: #{decoder_forward.7} parent=0 // pred_fallthru
    _
  // Predicated region
  $region18: #{decoder_forward.7} parent=0 // pred_check
    _
  $region19: #{decoder_forward.7} parent=0 // pred_check_branch
    %20 = sbr.rel (0) target = $region21
  $region20: #{decoder_forward.7} parent=0 // pred_region
    _
  $region21: #{decoder_forward.7} parent=0 // pred_fallthru
    _
  // Predicated region
  $region22: #{decoder_forward.7} parent=0 // pred_check
    _
  $region23: #{decoder_forward.7} parent=0 // pred_check_branch
    %22 = sbr.rel (0) target = $region25
  $region24: #{decoder_forward.7} parent=0 // pred_region
    _
  $region25: #{decoder_forward.7} parent=0 // pred_fallthru
    _
  %v23 = vld [vmem:[%s0] sm:$0xff]
  %v24 = vld [vmem:[%s0 + $0x8] sm:$0xff]
  %v25 = vld [vmem:[%s0 + $0x10] sm:$0xff]
  %v26 = vld [vmem:[%s0 + $0x18] sm:$0xff]
  %v27 = vld [vmem:[%s0 + $0x20] sm:$0xff]
  %v28 = vld [vmem:[%s0 + $0x28] sm:$0xff]
  %v29 = vld [vmem:[%s0 + $0x30] sm:$0xff]
  %v30 = vld [vmem:[%s0 + $0x38] sm:$0xff]
  %v31 = vld [vmem:[%s0 + $0x40] sm:$0xff]
  %v32 = vld [vmem:[%s1] sm:$0xff]
  %v33 = vld [vmem:[%s1 + $0x8] sm:$0xff]
  %v34 = vld [vmem:[%s1 + $0x10] sm:$0xff]
  %v35 = vld [vmem:[%s1 + $0x18] sm:$0xff]
  %v36 = vld [vmem:[%s1 + $0x20] sm:$0xff]
  %v37 = vld [vmem:[%s1 + $0x28] sm:$0xff]
  %v38 = vld [vmem:[%s1 + $0x30] sm:$0xff]
  %v39 = vld [vmem:[%s1 + $0x38] sm:$0xff]
  %v40 = vld [vmem:[%s1 + $0x40] sm:$0xff]
  %v41 = vld [vmem:[%s1 + $0x48] sm:$0xff]
  %v42 = vld [vmem:[%s1 + $0x50] sm:$0xff]
  %v43 = vld [vmem:[%s1 + $0x58] sm:$0xff]
  %v44 = vld [vmem:[%s1 + $0x60] sm:$0xff]
  %v45 = vld [vmem:[%s1 + $0x68] sm:$0xff]
  %v46 = vld [vmem:[%s1 + $0x70] sm:$0xff]
  %v47 = vld [vmem:[%s1 + $0x78] sm:$0xff]
  %v48 = vld [vmem:[%s1 + $0x80] sm:$0xff]
  %v49 = vld [vmem:[%s1 + $0x88] sm:$0xff]
  %v50 = vld [vmem:[%s1 + $0x90] sm:$0xff]
  %v51 = vld [vmem:[%s1 + $0x98] sm:$0xff]
  %v52 = vld [vmem:[%s1 + $0xa0] sm:$0xff]
  %v53 = vld [vmem:[%s1 + $0xa8] sm:$0xff]
  %v54 = vld [vmem:[%s1 + $0xb0] sm:$0xff]
  %v55 = vld [vmem:[%s1 + $0xb8] sm:$0xff]
  %v56 = vld [vmem:[%s1 + $0xc0] sm:$0xff]
  %v57 = vld [vmem:[%s1 + $0xc8] sm:$0xff]
  %v58 = vld [vmem:[%s1 + $0xd0] sm:$0xff]
  %v59 = vld [vmem:[%s1 + $0xd8] sm:$0xff]
  %v60 = vld [vmem:[%s1 + $0xe0] sm:$0xff]
  %v61 = vld [vmem:[%s1 + $0xe8] sm:$0xff]
  %v62 = vld [vmem:[%s1 + $0xf0] sm:$0xff]
  %v63 = vld [vmem:[%s1 + $0xf8] sm:$0xff]
  %v64 = vld [vmem:[%s1 + $0x100] sm:$0xff]
  %v65 = vld [vmem:[%s1 + $0x108] sm:$0xff]
  %v66 = vld [vmem:[%s1 + $0x110] sm:$0xff]
  %v67 = vld [vmem:[%s1 + $0x118] sm:$0xff]
  %v68 = vld [vmem:[%s1 + $0x120] sm:$0xff]
  %v69 = vld [vmem:[%s1 + $0x128] sm:$0xff]
  %v70 = vld [vmem:[%s1 + $0x130] sm:$0xff]
  %v71 = vld [vmem:[%s1 + $0x138] sm:$0xff]
  %v72 = vld [vmem:[%s1 + $0x140] sm:$0xff]
  %v73 = vld [vmem:[%s1 + $0x148] sm:$0xff]
  %v74 = vld [vmem:[%s1 + $0x150] sm:$0xff]
  %v75 = vld [vmem:[%s1 + $0x158] sm:$0xff]
  %v76 = vld [vmem:[%s1 + $0x160] sm:$0xff]
  %v77 = vld [vmem:[%s1 + $0x168] sm:$0xff]
  %v78 = vld [vmem:[%s1 + $0x170] sm:$0xff]
  %v79 = vld [vmem:[%s1 + $0x178] sm:$0xff]
  %v80 = vld [vmem:[%s1 + $0x180] sm:$0xff]
  %v81 = vld [vmem:[%s1 + $0x188] sm:$0xff]
  %v82 = vld [vmem:[%s1 + $0x190] sm:$0xff]
  %v83 = vld [vmem:[%s1 + $0x198] sm:$0xff]
  %v84 = vld [vmem:[%s1 + $0x1a0] sm:$0xff]
  %v85 = vld [vmem:[%s1 + $0x1a8] sm:$0xff]
  %v86 = vld [vmem:[%s1 + $0x1b0] sm:$0xff]
  %v87 = vld [vmem:[%s1 + $0x1b8] sm:$0xff]
  %v88 = vld [vmem:[%s1 + $0x1c0] sm:$0xff]
  %v89 = vld [vmem:[%s1 + $0x1c8] sm:$0xff]
  %v90 = vld [vmem:[%s1 + $0x1d0] sm:$0xff]
  %v91 = vld [vmem:[%s1 + $0x1d8] sm:$0xff]
  %v92 = vld [vmem:[%s1 + $0x1e0] sm:$0xff]
  %v93 = vld [vmem:[%s1 + $0x1e8] sm:$0xff]
  %v94 = vld [vmem:[%s1 + $0x1f0] sm:$0xff]
  %v95 = vld [vmem:[%s1 + $0x1f8] sm:$0xff]
  %v96 = vld [vmem:[%s1 + $0x200] sm:$0xff]
  %v97 = vld [vmem:[%s1 + $0x208] sm:$0xff]
  %v98 = vld [vmem:[%s1 + $0x210] sm:$0xff]
  %v99 = vld [vmem:[%s1 + $0x218] sm:$0xff]
  %v100 = vld [vmem:[%s1 + $0x220] sm:$0xff]
  %v101 = vld [vmem:[%s1 + $0x228] sm:$0xff]
  %v102 = vld [vmem:[%s1 + $0x230] sm:$0xff]
  %v103 = vld [vmem:[%s1 + $0x238] sm:$0xff]
  %v104 = vld [vmem:[%s1 + $0x240] sm:$0xff]
  %v105 = vld [vmem:[%s1 + $0x248] sm:$0xff]
  %v106 = vld [vmem:[%s1 + $0x250] sm:$0xff]
  %v107 = vld [vmem:[%s1 + $0x258] sm:$0xff]
  %v108 = vld [vmem:[%s1 + $0x260] sm:$0xff]
  %v109 = vld [vmem:[%s1 + $0x268] sm:$0xff]
  %v110 = vld [vmem:[%s1 + $0x270] sm:$0xff]
  %v111 = vld [vmem:[%s1 + $0x278] sm:$0xff]
  %v112 = vld [vmem:[%s1 + $0x280] sm:$0xff]
  %v113 = vld [vmem:[%s1 + $0x288] sm:$0xff]
  %v114 = vld [vmem:[%s1 + $0x290] sm:$0xff]
  %v115 = vld [vmem:[%s1 + $0x298] sm:$0xff]
  %v116 = vld [vmem:[%s1 + $0x2a0] sm:$0xff]
  %v117 = vld [vmem:[%s1 + $0x2a8] sm:$0xff]
  %v118 = vld [vmem:[%s1 + $0x2b0] sm:$0xff]
  %v119 = vld [vmem:[%s1 + $0x2b8] sm:$0xff]
  %v120 = vld [vmem:[%s1 + $0x2c0] sm:$0xff]
  %v121 = vld [vmem:[%s1 + $0x2c8] sm:$0xff]
  %v122 = vld [vmem:[%s1 + $0x2d0] sm:$0xff]
  %v123 = vld [vmem:[%s1 + $0x2d8] sm:$0xff]
  %v124 = vld [vmem:[%s1 + $0x2e0] sm:$0xff]
  %v125 = vld [vmem:[%s1 + $0x2e8] sm:$0xff]
  %v126 = vld [vmem:[%s1 + $0x2f0] sm:$0xff]
  %v127 = vld [vmem:[%s1 + $0x2f8] sm:$0xff]
  %v128 = vld [vmem:[%s1 + $0x300] sm:$0xff]
  %v129 = vld [vmem:[%s1 + $0x308] sm:$0xff]
  %v130 = vld [vmem:[%s1 + $0x310] sm:$0xff]
  %v131 = vld [vmem:[%s1 + $0x318] sm:$0xff]
  %v132 = vld [vmem:[%s1 + $0x320] sm:$0xff]
  %v133 = vld [vmem:[%s1 + $0x328] sm:$0xff]
  %v134 = vld [vmem:[%s1 + $0x330] sm:$0xff]
  %v135 = vld [vmem:[%s1 + $0x338] sm:$0xff]
  %v136 = vld [vmem:[%s1 + $0x340] sm:$0xff]
  %v137 = vld [vmem:[%s1 + $0x348] sm:$0xff]
  %v138 = vld [vmem:[%s1 + $0x350] sm:$0xff]
  %v139 = vld [vmem:[%s1 + $0x358] sm:$0xff]
  %v140 = vld [vmem:[%s1 + $0x360] sm:$0xff]
  %v141 = vld [vmem:[%s1 + $0x368] sm:$0xff]
  %v142 = vld [vmem:[%s1 + $0x370] sm:$0xff]
  %v143 = vld [vmem:[%s1 + $0x378] sm:$0xff]
  %v144 = vld [vmem:[%s1 + $0x380] sm:$0xff]
  %v145 = vld [vmem:[%s1 + $0x388] sm:$0xff]
  %v146 = vld [vmem:[%s1 + $0x390] sm:$0xff]
  %v147 = vld [vmem:[%s1 + $0x398] sm:$0xff]
  %v148 = vld [vmem:[%s1 + $0x3a0] sm:$0xff]
  %v149 = vld [vmem:[%s1 + $0x3a8] sm:$0xff]
  %v150 = vld [vmem:[%s1 + $0x3b0] sm:$0xff]
  %v151 = vld [vmem:[%s1 + $0x3b8] sm:$0xff]
  %v152 = vld [vmem:[%s1 + $0x3c0] sm:$0xff]
  %v153 = vld [vmem:[%s1 + $0x3c8] sm:$0xff]
  %v154 = vld [vmem:[%s1 + $0x3d0] sm:$0xff]
  %v155 = vld [vmem:[%s1 + $0x3d8] sm:$0xff]
  %v156 = vld [vmem:[%s1 + $0x3e0] sm:$0xff]
  %v157 = vld [vmem:[%s1 + $0x3e8] sm:$0xff]
  %v158 = vld [vmem:[%s1 + $0x3f0] sm:$0xff]
  %v159 = vld [vmem:[%s1 + $0x3f8] sm:$0xff]
  %v160 = vld [vmem:[%s1 + $0x400] sm:$0xff]
  %v161 = vld [vmem:[%s1 + $0x408] sm:$0xff]
  %v162 = vld [vmem:[%s1 + $0x410] sm:$0xff]
  %v163 = vld [vmem:[%s1 + $0x418] sm:$0xff]
  %v164 = vld [vmem:[%s1 + $0x420] sm:$0xff]
  %v165 = vld [vmem:[%s1 + $0x428] sm:$0xff]
  %v166 = vld [vmem:[%s1 + $0x430] sm:$0xff]
  %v167 = vld [vmem:[%s1 + $0x438] sm:$0xff]
  %v168 = vld [vmem:[%s1 + $0x440] sm:$0xff]
  %v169 = vld [vmem:[%s1 + $0x448] sm:$0xff]
  %v170 = vld [vmem:[%s1 + $0x450] sm:$0xff]
  %v171 = vld [vmem:[%s1 + $0x458] sm:$0xff]
  %v172 = vld [vmem:[%s1 + $0x460] sm:$0xff]
  %v173 = vld [vmem:[%s1 + $0x468] sm:$0xff]
  %v174 = vld [vmem:[%s1 + $0x470] sm:$0xff]
  %v175 = vld [vmem:[%s1 + $0x478] sm:$0xff]
  %v176 = vld [vmem:[%s1 + $0x480] sm:$0xff]
  %v177 = vld [vmem:[%s1 + $0x488] sm:$0xff]
  %v178 = vld [vmem:[%s1 + $0x490] sm:$0xff]
  %v179 = vld [vmem:[%s1 + $0x498] sm:$0xff]
  %v180 = vld [vmem:[%s1 + $0x4a0] sm:$0xff]
  %v181 = vld [vmem:[%s1 + $0x4a8] sm:$0xff]
  %v182 = vld [vmem:[%s1 + $0x4b0] sm:$0xff]
  %v183 = vld [vmem:[%s1 + $0x4b8] sm:$0xff]
  %v184 = vld [vmem:[%s1 + $0x4c0] sm:$0xff]
  %v185 = vld [vmem:[%s1 + $0x4c8] sm:$0xff]
  %v186 = vld [vmem:[%s1 + $0x4d0] sm:$0xff]
  %v187 = vld [vmem:[%s1 + $0x4d8] sm:$0xff]
  %v188 = vld [vmem:[%s1 + $0x4e0] sm:$0xff]
  %v189 = vld [vmem:[%s1 + $0x4e8] sm:$0xff]
  %v190 = vld [vmem:[%s1 + $0x4f0] sm:$0xff]
  %v191 = vld [vmem:[%s1 + $0x4f8] sm:$0xff]
  %v192 = vld [vmem:[%s1 + $0x500] sm:$0xff]
  %v193 = vld [vmem:[%s1 + $0x508] sm:$0xff]
  %v194 = vld [vmem:[%s1 + $0x510] sm:$0xff]
  %v195 = vld [vmem:[%s1 + $0x518] sm:$0xff]
  %v196 = vld [vmem:[%s1 + $0x520] sm:$0xff]
  %v197 = vld [vmem:[%s1 + $0x528] sm:$0xff]
  %v198 = vld [vmem:[%s1 + $0x530] sm:$0xff]
  %v199 = vld [vmem:[%s1 + $0x538] sm:$0xff]
  %v200 = vld [vmem:[%s1 + $0x540] sm:$0xff]
  %v201 = vld [vmem:[%s1 + $0x548] sm:$0xff]
  %v202 = vld [vmem:[%s1 + $0x550] sm:$0xff]
  %v203 = vld [vmem:[%s1 + $0x558] sm:$0xff]
  %v204 = vld [vmem:[%s1 + $0x560] sm:$0xff]
  %v205 = vld [vmem:[%s1 + $0x568] sm:$0xff]
  %v206 = vld [vmem:[%s1 + $0x570] sm:$0xff]
  %v207 = vld [vmem:[%s1 + $0x578] sm:$0xff]
  %v208 = vld [vmem:[%s1 + $0x580] sm:$0xff]
  %v209 = vld [vmem:[%s1 + $0x588] sm:$0xff]
  %v210 = vld [vmem:[%s1 + $0x590] sm:$0xff]
  %v211 = vld [vmem:[%s1 + $0x598] sm:$0xff]
  %v212 = vld [vmem:[%s1 + $0x5a0] sm:$0xff]
  %v213 = vld [vmem:[%s1 + $0x5a8] sm:$0xff]
  %v214 = vld [vmem:[%s1 + $0x5b0] sm:$0xff]
  %v215 = vld [vmem:[%s1 + $0x5b8] sm:$0xff]
  %v216 = vld [vmem:[%s1 + $0x5c0] sm:$0xff]
  %v217 = vld [vmem:[%s1 + $0x5c8] sm:$0xff]
  %v218 = vld [vmem:[%s1 + $0x5d0] sm:$0xff]
  %v219 = vld [vmem:[%s1 + $0x5d8] sm:$0xff]
  %v220 = vld [vmem:[%s1 + $0x5e0] sm:$0xff]
  %v221 = vld [vmem:[%s1 + $0x5e8] sm:$0xff]
  %v222 = vld [vmem:[%s1 + $0x5f0] sm:$0xff]
  %v223 = vld [vmem:[%s1 + $0x5f8] sm:$0xff]
  %v224 = vld [vmem:[%s1 + $0x600] sm:$0xff]
  %v225 = vld [vmem:[%s1 + $0x608] sm:$0xff]
  %v226 = vld [vmem:[%s1 + $0x610] sm:$0xff]
  %v227 = vld [vmem:[%s1 + $0x618] sm:$0xff]
  %v228 = vld [vmem:[%s1 + $0x620] sm:$0xff]
  %v229 = vld [vmem:[%s1 + $0x628] sm:$0xff]
  %v230 = vld [vmem:[%s1 + $0x630] sm:$0xff]
  %v231 = vld [vmem:[%s1 + $0x638] sm:$0xff]
  %v232 = vld [vmem:[%s1 + $0x640] sm:$0xff]
  %v233 = vld [vmem:[%s1 + $0x648] sm:$0xff]
  %v234 = vld [vmem:[%s1 + $0x650] sm:$0xff]
  %v235 = vld [vmem:[%s1 + $0x658] sm:$0xff]
  %v236 = vld [vmem:[%s1 + $0x660] sm:$0xff]
  %v237 = vld [vmem:[%s1 + $0x668] sm:$0xff]
  %v238 = vld [vmem:[%s1 + $0x670] sm:$0xff]
  %v239 = vld [vmem:[%s1 + $0x678] sm:$0xff]
  %v240 = vld [vmem:[%s1 + $0x680] sm:$0xff]
  %v241 = vld [vmem:[%s1 + $0x688] sm:$0xff]
  %v242 = vld [vmem:[%s1 + $0x690] sm:$0xff]
  %v243 = vld [vmem:[%s1 + $0x698] sm:$0xff]
  %v244 = vld [vmem:[%s1 + $0x6a0] sm:$0xff]
  %v245 = vld [vmem:[%s1 + $0x6a8] sm:$0xff]
  %v246 = vld [vmem:[%s1 + $0x6b0] sm:$0xff]
  %v247 = vld [vmem:[%s1 + $0x6b8] sm:$0xff]
  %v248 = vld [vmem:[%s1 + $0x6c0] sm:$0xff]
  %v249 = vld [vmem:[%s1 + $0x6c8] sm:$0xff]
  %v250 = vld [vmem:[%s1 + $0x6d0] sm:$0xff]
  %v251 = vld [vmem:[%s1 + $0x6d8] sm:$0xff]
  %v252 = vld [vmem:[%s1 + $0x6e0] sm:$0xff]
  %v253 = vld [vmem:[%s1 + $0x6e8] sm:$0xff]
  %v254 = vld [vmem:[%s1 + $0x6f0] sm:$0xff]
  %v255 = vld [vmem:[%s1 + $0x6f8] sm:$0xff]
  %v256 = vld [vmem:[%s1 + $0x700] sm:$0xff]
  %v257 = vld [vmem:[%s1 + $0x708] sm:$0xff]
  %v258 = vld [vmem:[%s1 + $0x710] sm:$0xff]
  %v259 = vld [vmem:[%s1 + $0x718] sm:$0xff]
  %v260 = vld [vmem:[%s1 + $0x720] sm:$0xff]
  %v261 = vld [vmem:[%s1 + $0x728] sm:$0xff]
  %v262 = vld [vmem:[%s1 + $0x730] sm:$0xff]
  %v263 = vld [vmem:[%s1 + $0x738] sm:$0xff]
  %v264 = vld [vmem:[%s1 + $0x740] sm:$0xff]
  %v265 = vld [vmem:[%s1 + $0x748] sm:$0xff]
  %v266 = vld [vmem:[%s1 + $0x750] sm:$0xff]
  %v267 = vld [vmem:[%s1 + $0x758] sm:$0xff]
  %v268 = vld [vmem:[%s1 + $0x760] sm:$0xff]
  %v269 = vld [vmem:[%s1 + $0x768] sm:$0xff]
  %v270 = vld [vmem:[%s1 + $0x770] sm:$0xff]
  %v271 = vld [vmem:[%s1 + $0x778] sm:$0xff]
  %v272 = vld [vmem:[%s1 + $0x780] sm:$0xff]
  %v273 = vld [vmem:[%s1 + $0x788] sm:$0xff]
  %v274 = vld [vmem:[%s1 + $0x790] sm:$0xff]
  %v275 = vld [vmem:[%s1 + $0x798] sm:$0xff]
  %v276 = vld [vmem:[%s1 + $0x7a0] sm:$0xff]
  %v277 = vld [vmem:[%s1 + $0x7a8] sm:$0xff]
  %v278 = vld [vmem:[%s1 + $0x7b0] sm:$0xff]
  %v279 = vld [vmem:[%s1 + $0x7b8] sm:$0xff]
  %v280 = vld [vmem:[%s1 + $0x7c0] sm:$0xff]
  %v281 = vld [vmem:[%s1 + $0x7c8] sm:$0xff]
  %v282 = vld [vmem:[%s1 + $0x7d0] sm:$0xff]
  %v283 = vld [vmem:[%s1 + $0x7d8] sm:$0xff]
  %v284 = vld [vmem:[%s1 + $0x7e0] sm:$0xff]
  %v285 = vld [vmem:[%s1 + $0x7e8] sm:$0xff]
  %v286 = vld [vmem:[%s1 + $0x7f0] sm:$0xff]
  %v287 = vld [vmem:[%s1 + $0x7f8] sm:$0xff]
  %v288 = vld [vmem:[%s1 + $0x800] sm:$0xff]
  %v289 = vld [vmem:[%s1 + $0x808] sm:$0xff]
  %v290 = vld [vmem:[%s1 + $0x810] sm:$0xff]
  %v291 = vld [vmem:[%s1 + $0x818] sm:$0xff]
  %v292 = vld [vmem:[%s1 + $0x820] sm:$0xff]
  %v293 = vld [vmem:[%s1 + $0x828] sm:$0xff]
  %v294 = vld [vmem:[%s1 + $0x830] sm:$0xff]
  %v295 = vld [vmem:[%s1 + $0x838] sm:$0xff]
  %v296 = vld [vmem:[%s1 + $0x840] sm:$0xff]
  %v297 = vld [vmem:[%s1 + $0x848] sm:$0xff]
  %v298 = vld [vmem:[%s1 + $0x850] sm:$0xff]
  %v299 = vld [vmem:[%s1 + $0x858] sm:$0xff]
  %v300 = vld [vmem:[%s1 + $0x860] sm:$0xff]
  %v301 = vld [vmem:[%s1 + $0x868] sm:$0xff]
  %v302 = vld [vmem:[%s1 + $0x870] sm:$0xff]
  %v303 = vld [vmem:[%s1 + $0x878] sm:$0xff]
  %v304 = vld [vmem:[%s1 + $0x880] sm:$0xff]
  %v305 = vld [vmem:[%s1 + $0x888] sm:$0xff]
  %v306 = vld [vmem:[%s1 + $0x890] sm:$0xff]
  %v307 = vld [vmem:[%s1 + $0x898] sm:$0xff]
  %v308 = vld [vmem:[%s1 + $0x8a0] sm:$0xff]
  %v309 = vld [vmem:[%s1 + $0x8a8] sm:$0xff]
  %v310 = vld [vmem:[%s1 + $0x8b0] sm:$0xff]
  %v311 = vld [vmem:[%s1 + $0x8b8] sm:$0xff]
  %v312 = vld [vmem:[%s1 + $0x8c0] sm:$0xff]
  %v313 = vld [vmem:[%s1 + $0x8c8] sm:$0xff]
  %v314 = vld [vmem:[%s1 + $0x8d0] sm:$0xff]
  %v315 = vld [vmem:[%s1 + $0x8d8] sm:$0xff]
  %v316 = vld [vmem:[%s1 + $0x8e0] sm:$0xff]
  %v317 = vld [vmem:[%s1 + $0x8e8] sm:$0xff]
  %v318 = vld [vmem:[%s1 + $0x8f0] sm:$0xff]
  %v319 = vld [vmem:[%s1 + $0x8f8] sm:$0xff]
  %v320 = vld [vmem:[%s2] sm:$0x3]
  %v322 = vperm.slane %v320, 0
  %v323 = vperm.slane %v320, 1
  %326 = vmatpush.msra.mxu0 %v62
  %327 = vmatpush.msra.mxu0 %v60
  %328 = vmatpush.msra.mxu0 %v58
  %329 = vmatpush.msra.mxu0 %v56
  %330 = vmatpush.msra.mxu0 %v54
  %331 = vmatpush.msra.mxu0 %v52
  %332 = vmatpush.msra.mxu0 %v50
  %333 = vmatpush.msra.mxu0 %v48
  %334 = vmatpush.msra.mxu0 %v46
  %335 = vmatpush.msra.mxu0 %v44
  %336 = vmatpush.msra.mxu0 %v42
  %337 = vmatpush.msra.mxu0 %v40
  %338 = vmatpush.msra.mxu0 %v38
  %339 = vmatpush.msra.mxu0 %v36
  %340 = vmatpush.msra.mxu0 %v34
  %341 = vmatpush.msra.mxu0 %v32
  %342 = vmatmul.f32.gmra.mxu0 %v23
  %v343 = vpop.f32.mrf.mxu0
  %v344 = vadd.f32 %v322, %v343
  %345 = vdwg.mxu0
  %346 = vmatpush.msra.mxu0 %v94
  %347 = vmatpush.msra.mxu0 %v92
  %348 = vmatpush.msra.mxu0 %v90
  %349 = vmatpush.msra.mxu0 %v88
  %350 = vmatpush.msra.mxu0 %v86
  %351 = vmatpush.msra.mxu0 %v84
  %352 = vmatpush.msra.mxu0 %v82
  %353 = vmatpush.msra.mxu0 %v80
  %354 = vmatpush.msra.mxu0 %v78
  %355 = vmatpush.msra.mxu0 %v76
  %356 = vmatpush.msra.mxu0 %v74
  %357 = vmatpush.msra.mxu0 %v72
  %358 = vmatpush.msra.mxu0 %v70
  %359 = vmatpush.msra.mxu0 %v68
  %360 = vmatpush.msra.mxu0 %v66
  %361 = vmatpush.msra.mxu0 %v64
  %362 = vmatmul.f32.gmra.mxu0 %v24
  %v363 = vpop.f32.mrf.mxu0
  %v364 = vadd.f32 %v344, %v363
  %365 = vdwg.mxu0
  %366 = vmatpush.msra.mxu0 %v126
  %367 = vmatpush.msra.mxu0 %v124
  %368 = vmatpush.msra.mxu0 %v122
  %369 = vmatpush.msra.mxu0 %v120
  %370 = vmatpush.msra.mxu0 %v118
  %371 = vmatpush.msra.mxu0 %v116
  %372 = vmatpush.msra.mxu0 %v114
  %373 = vmatpush.msra.mxu0 %v112
  %374 = vmatpush.msra.mxu0 %v110
  %375 = vmatpush.msra.mxu0 %v108
  %376 = vmatpush.msra.mxu0 %v106
  %377 = vmatpush.msra.mxu0 %v104
  %378 = vmatpush.msra.mxu0 %v102
  %379 = vmatpush.msra.mxu0 %v100
  %380 = vmatpush.msra.mxu0 %v98
  %381 = vmatpush.msra.mxu0 %v96
  %382 = vmatmul.f32.gmra.mxu0 %v25
  %v383 = vpop.f32.mrf.mxu0
  %v384 = vadd.f32 %v364, %v383
  %385 = vdwg.mxu0
  %386 = vmatpush.msra.mxu0 %v158
  %387 = vmatpush.msra.mxu0 %v156
  %388 = vmatpush.msra.mxu0 %v154
  %389 = vmatpush.msra.mxu0 %v152
  %390 = vmatpush.msra.mxu0 %v150
  %391 = vmatpush.msra.mxu0 %v148
  %392 = vmatpush.msra.mxu0 %v146
  %393 = vmatpush.msra.mxu0 %v144
  %394 = vmatpush.msra.mxu0 %v142
  %395 = vmatpush.msra.mxu0 %v140
  %396 = vmatpush.msra.mxu0 %v138
  %397 = vmatpush.msra.mxu0 %v136
  %398 = vmatpush.msra.mxu0 %v134
  %399 = vmatpush.msra.mxu0 %v132
  %400 = vmatpush.msra.mxu0 %v130
  %401 = vmatpush.msra.mxu0 %v128
  %402 = vmatmul.f32.gmra.mxu0 %v26
  %v403 = vpop.f32.mrf.mxu0
  %v404 = vadd.f32 %v384, %v403
  %405 = vdwg.mxu0
  %406 = vmatpush.msra.mxu0 %v190
  %407 = vmatpush.msra.mxu0 %v188
  %408 = vmatpush.msra.mxu0 %v186
  %409 = vmatpush.msra.mxu0 %v184
  %410 = vmatpush.msra.mxu0 %v182
  %411 = vmatpush.msra.mxu0 %v180
  %412 = vmatpush.msra.mxu0 %v178
  %413 = vmatpush.msra.mxu0 %v176
  %414 = vmatpush.msra.mxu0 %v174
  %415 = vmatpush.msra.mxu0 %v172
  %416 = vmatpush.msra.mxu0 %v170
  %417 = vmatpush.msra.mxu0 %v168
  %418 = vmatpush.msra.mxu0 %v166
  %419 = vmatpush.msra.mxu0 %v164
  %420 = vmatpush.msra.mxu0 %v162
  %421 = vmatpush.msra.mxu0 %v160
  %422 = vmatmul.f32.gmra.mxu0 %v27
  %v423 = vpop.f32.mrf.mxu0
  %v424 = vadd.f32 %v404, %v423
  %425 = vdwg.mxu0
  %426 = vmatpush.msra.mxu0 %v222
  %427 = vmatpush.msra.mxu0 %v220
  %428 = vmatpush.msra.mxu0 %v218
  %429 = vmatpush.msra.mxu0 %v216
  %430 = vmatpush.msra.mxu0 %v214
  %431 = vmatpush.msra.mxu0 %v212
  %432 = vmatpush.msra.mxu0 %v210
  %433 = vmatpush.msra.mxu0 %v208
  %434 = vmatpush.msra.mxu0 %v206
  %435 = vmatpush.msra.mxu0 %v204
  %436 = vmatpush.msra.mxu0 %v202
  %437 = vmatpush.msra.mxu0 %v200
  %438 = vmatpush.msra.mxu0 %v198
  %439 = vmatpush.msra.mxu0 %v196
  %440 = vmatpush.msra.mxu0 %v194
  %441 = vmatpush.msra.mxu0 %v192
  %442 = vmatmul.f32.gmra.mxu0 %v28
  %v443 = vpop.f32.mrf.mxu0
  %v444 = vadd.f32 %v424, %v443
  %445 = vdwg.mxu0
  %446 = vmatpush.msra.mxu0 %v254
  %447 = vmatpush.msra.mxu0 %v252
  %448 = vmatpush.msra.mxu0 %v250
  %449 = vmatpush.msra.mxu0 %v248
  %450 = vmatpush.msra.mxu0 %v246
  %451 = vmatpush.msra.mxu0 %v244
  %452 = vmatpush.msra.mxu0 %v242
  %453 = vmatpush.msra.mxu0 %v240
  %454 = vmatpush.msra.mxu0 %v238
  %455 = vmatpush.msra.mxu0 %v236
  %456 = vmatpush.msra.mxu0 %v234
  %457 = vmatpush.msra.mxu0 %v232
  %458 = vmatpush.msra.mxu0 %v230
  %459 = vmatpush.msra.mxu0 %v228
  %460 = vmatpush.msra.mxu0 %v226
  %461 = vmatpush.msra.mxu0 %v224
  %462 = vmatmul.f32.gmra.mxu0 %v29
  %v463 = vpop.f32.mrf.mxu0
  %v464 = vadd.f32 %v444, %v463
  %465 = vdwg.mxu0
  %466 = vmatpush.msra.mxu0 %v286
  %467 = vmatpush.msra.mxu0 %v284
  %468 = vmatpush.msra.mxu0 %v282
  %469 = vmatpush.msra.mxu0 %v280
  %470 = vmatpush.msra.mxu0 %v278
  %471 = vmatpush.msra.mxu0 %v276
  %472 = vmatpush.msra.mxu0 %v274
  %473 = vmatpush.msra.mxu0 %v272
  %474 = vmatpush.msra.mxu0 %v270
  %475 = vmatpush.msra.mxu0 %v268
  %476 = vmatpush.msra.mxu0 %v266
  %477 = vmatpush.msra.mxu0 %v264
  %478 = vmatpush.msra.mxu0 %v262
  %479 = vmatpush.msra.mxu0 %v260
  %480 = vmatpush.msra.mxu0 %v258
  %481 = vmatpush.msra.mxu0 %v256
  %482 = vmatmul.f32.gmra.mxu0 %v30
  %v483 = vpop.f32.mrf.mxu0
  %v484 = vadd.f32 %v464, %v483
  %485 = vdwg.mxu0
  %486 = vmatpush.msra.mxu0 %v318
  %487 = vmatpush.msra.mxu0 %v316
  %488 = vmatpush.msra.mxu0 %v314
  %489 = vmatpush.msra.mxu0 %v312
  %490 = vmatpush.msra.mxu0 %v310
  %491 = vmatpush.msra.mxu0 %v308
  %492 = vmatpush.msra.mxu0 %v306
  %493 = vmatpush.msra.mxu0 %v304
  %494 = vmatpush.msra.mxu0 %v302
  %495 = vmatpush.msra.mxu0 %v300
  %496 = vmatpush.msra.mxu0 %v298
  %497 = vmatpush.msra.mxu0 %v296
  %498 = vmatpush.msra.mxu0 %v294
  %499 = vmatpush.msra.mxu0 %v292
  %500 = vmatpush.msra.mxu0 %v290
  %501 = vmatpush.msra.mxu0 %v288
  %502 = vmatmul.f32.gmra.mxu0 %v31
  %v503 = vpop.f32.mrf.mxu0
  %v504 = vadd.f32 %v484, %v503
  %505 = vdwg.mxu0
  %506 = vmatpush.msra.mxu0 %v63
  %507 = vmatpush.msra.mxu0 %v61
  %508 = vmatpush.msra.mxu0 %v59
  %509 = vmatpush.msra.mxu0 %v57
  %510 = vmatpush.msra.mxu0 %v55
  %511 = vmatpush.msra.mxu0 %v53
  %512 = vmatpush.msra.mxu0 %v51
  %513 = vmatpush.msra.mxu0 %v49
  %514 = vmatpush.msra.mxu0 %v47
  %515 = vmatpush.msra.mxu0 %v45
  %516 = vmatpush.msra.mxu0 %v43
  %517 = vmatpush.msra.mxu0 %v41
  %518 = vmatpush.msra.mxu0 %v39
  %519 = vmatpush.msra.mxu0 %v37
  %520 = vmatpush.msra.mxu0 %v35
  %521 = vmatpush.msra.mxu0 %v33
  %522 = vmatmul.f32.gmra.mxu0 %v23
  %v523 = vpop.f32.mrf.mxu0
  %v524 = vadd.f32 %v323, %v523
  %525 = vdwg.mxu0
  %526 = vmatpush.msra.mxu0 %v95
  %527 = vmatpush.msra.mxu0 %v93
  %528 = vmatpush.msra.mxu0 %v91
  %529 = vmatpush.msra.mxu0 %v89
  %530 = vmatpush.msra.mxu0 %v87
  %531 = vmatpush.msra.mxu0 %v85
  %532 = vmatpush.msra.mxu0 %v83
  %533 = vmatpush.msra.mxu0 %v81
  %534 = vmatpush.msra.mxu0 %v79
  %535 = vmatpush.msra.mxu0 %v77
  %536 = vmatpush.msra.mxu0 %v75
  %537 = vmatpush.msra.mxu0 %v73
  %538 = vmatpush.msra.mxu0 %v71
  %539 = vmatpush.msra.mxu0 %v69
  %540 = vmatpush.msra.mxu0 %v67
  %541 = vmatpush.msra.mxu0 %v65
  %542 = vmatmul.f32.gmra.mxu0 %v24
  %v543 = vpop.f32.mrf.mxu0
  %v544 = vadd.f32 %v524, %v543
  %545 = vdwg.mxu0
  %546 = vmatpush.msra.mxu0 %v127
  %547 = vmatpush.msra.mxu0 %v125
  %548 = vmatpush.msra.mxu0 %v123
  %549 = vmatpush.msra.mxu0 %v121
  %550 = vmatpush.msra.mxu0 %v119
  %551 = vmatpush.msra.mxu0 %v117
  %552 = vmatpush.msra.mxu0 %v115
  %553 = vmatpush.msra.mxu0 %v113
  %554 = vmatpush.msra.mxu0 %v111
  %555 = vmatpush.msra.mxu0 %v109
  %556 = vmatpush.msra.mxu0 %v107
  %557 = vmatpush.msra.mxu0 %v105
  %558 = vmatpush.msra.mxu0 %v103
  %559 = vmatpush.msra.mxu0 %v101
  %560 = vmatpush.msra.mxu0 %v99
  %561 = vmatpush.msra.mxu0 %v97
  %562 = vmatmul.f32.gmra.mxu0 %v25
  %v563 = vpop.f32.mrf.mxu0
  %v564 = vadd.f32 %v544, %v563
  %565 = vdwg.mxu0
  %566 = vmatpush.msra.mxu0 %v159
  %567 = vmatpush.msra.mxu0 %v157
  %568 = vmatpush.msra.mxu0 %v155
  %569 = vmatpush.msra.mxu0 %v153
  %570 = vmatpush.msra.mxu0 %v151
  %571 = vmatpush.msra.mxu0 %v149
  %572 = vmatpush.msra.mxu0 %v147
  %573 = vmatpush.msra.mxu0 %v145
  %574 = vmatpush.msra.mxu0 %v143
  %575 = vmatpush.msra.mxu0 %v141
  %576 = vmatpush.msra.mxu0 %v139
  %577 = vmatpush.msra.mxu0 %v137
  %578 = vmatpush.msra.mxu0 %v135
  %579 = vmatpush.msra.mxu0 %v133
  %580 = vmatpush.msra.mxu0 %v131
  %581 = vmatpush.msra.mxu0 %v129
  %582 = vmatmul.f32.gmra.mxu0 %v26
  %v583 = vpop.f32.mrf.mxu0
  %v584 = vadd.f32 %v564, %v583
  %585 = vdwg.mxu0
  %586 = vmatpush.msra.mxu0 %v191
  %587 = vmatpush.msra.mxu0 %v189
  %588 = vmatpush.msra.mxu0 %v187
  %589 = vmatpush.msra.mxu0 %v185
  %590 = vmatpush.msra.mxu0 %v183
  %591 = vmatpush.msra.mxu0 %v181
  %592 = vmatpush.msra.mxu0 %v179
  %593 = vmatpush.msra.mxu0 %v177
  %594 = vmatpush.msra.mxu0 %v175
  %595 = vmatpush.msra.mxu0 %v173
  %596 = vmatpush.msra.mxu0 %v171
  %597 = vmatpush.msra.mxu0 %v169
  %598 = vmatpush.msra.mxu0 %v167
  %599 = vmatpush.msra.mxu0 %v165
  %600 = vmatpush.msra.mxu0 %v163
  %601 = vmatpush.msra.mxu0 %v161
  %602 = vmatmul.f32.gmra.mxu0 %v27
  %v603 = vpop.f32.mrf.mxu0
  %v604 = vadd.f32 %v584, %v603
  %605 = vdwg.mxu0
  %606 = vmatpush.msra.mxu0 %v223
  %607 = vmatpush.msra.mxu0 %v221
  %608 = vmatpush.msra.mxu0 %v219
  %609 = vmatpush.msra.mxu0 %v217
  %610 = vmatpush.msra.mxu0 %v215
  %611 = vmatpush.msra.mxu0 %v213
  %612 = vmatpush.msra.mxu0 %v211
  %613 = vmatpush.msra.mxu0 %v209
  %614 = vmatpush.msra.mxu0 %v207
  %615 = vmatpush.msra.mxu0 %v205
  %616 = vmatpush.msra.mxu0 %v203
  %617 = vmatpush.msra.mxu0 %v201
  %618 = vmatpush.msra.mxu0 %v199
  %619 = vmatpush.msra.mxu0 %v197
  %620 = vmatpush.msra.mxu0 %v195
  %621 = vmatpush.msra.mxu0 %v193
  %622 = vmatmul.f32.gmra.mxu0 %v28
  %v623 = vpop.f32.mrf.mxu0
  %v624 = vadd.f32 %v604, %v623
  %625 = vdwg.mxu0
  %626 = vmatpush.msra.mxu0 %v255
  %627 = vmatpush.msra.mxu0 %v253
  %628 = vmatpush.msra.mxu0 %v251
  %629 = vmatpush.msra.mxu0 %v249
  %630 = vmatpush.msra.mxu0 %v247
  %631 = vmatpush.msra.mxu0 %v245
  %632 = vmatpush.msra.mxu0 %v243
  %633 = vmatpush.msra.mxu0 %v241
  %634 = vmatpush.msra.mxu0 %v239
  %635 = vmatpush.msra.mxu0 %v237
  %636 = vmatpush.msra.mxu0 %v235
  %637 = vmatpush.msra.mxu0 %v233
  %638 = vmatpush.msra.mxu0 %v231
  %639 = vmatpush.msra.mxu0 %v229
  %640 = vmatpush.msra.mxu0 %v227
  %641 = vmatpush.msra.mxu0 %v225
  %642 = vmatmul.f32.gmra.mxu0 %v29
  %v643 = vpop.f32.mrf.mxu0
  %v644 = vadd.f32 %v624, %v643
  %645 = vdwg.mxu0
  %646 = vmatpush.msra.mxu0 %v287
  %647 = vmatpush.msra.mxu0 %v285
  %648 = vmatpush.msra.mxu0 %v283
  %649 = vmatpush.msra.mxu0 %v281
  %650 = vmatpush.msra.mxu0 %v279
  %651 = vmatpush.msra.mxu0 %v277
  %652 = vmatpush.msra.mxu0 %v275
  %653 = vmatpush.msra.mxu0 %v273
  %654 = vmatpush.msra.mxu0 %v271
  %655 = vmatpush.msra.mxu0 %v269
  %656 = vmatpush.msra.mxu0 %v267
  %657 = vmatpush.msra.mxu0 %v265
  %658 = vmatpush.msra.mxu0 %v263
  %659 = vmatpush.msra.mxu0 %v261
  %660 = vmatpush.msra.mxu0 %v259
  %661 = vmatpush.msra.mxu0 %v257
  %662 = vmatmul.f32.gmra.mxu0 %v30
  %v663 = vpop.f32.mrf.mxu0
  %v664 = vadd.f32 %v644, %v663
  %665 = vdwg.mxu0
  %666 = vmatpush.msra.mxu0 %v319
  %667 = vmatpush.msra.mxu0 %v317
  %668 = vmatpush.msra.mxu0 %v315
  %669 = vmatpush.msra.mxu0 %v313
  %670 = vmatpush.msra.mxu0 %v311
  %671 = vmatpush.msra.mxu0 %v309
  %672 = vmatpush.msra.mxu0 %v307
  %673 = vmatpush.msra.mxu0 %v305
  %674 = vmatpush.msra.mxu0 %v303
  %675 = vmatpush.msra.mxu0 %v301
  %676 = vmatpush.msra.mxu0 %v299
  %677 = vmatpush.msra.mxu0 %v297
  %678 = vmatpush.msra.mxu0 %v295
  %679 = vmatpush.msra.mxu0 %v293
  %680 = vmatpush.msra.mxu0 %v291
  %681 = vmatpush.msra.mxu0 %v289
  %682 = vmatmul.f32.gmra.mxu0 %v31
  %v683 = vpop.f32.mrf.mxu0
  %v684 = vadd.f32 %v664, %v683
  %685 = vdwg.mxu0
  %v686 = vrot.slane %v504, 4
  %v687 = vadd.f32 %v504, %v686
  %v688 = vrot.slane %v687, 2
  %v689 = vadd.f32 %v687, %v688
  %v690 = vrot.slane %v689, 1
  %v691 = vadd.f32 %v689, %v690
  %v692 = vrot.slane %v684, 4
  %v693 = vadd.f32 %v684, %v692
  %v694 = vrot.slane %v693, 2
  %v695 = vadd.f32 %v693, %v694
  %v696 = vrot.slane %v695, 1
  %v697 = vadd.f32 %v695, %v696
  %v698 = vld [vmem:[%s5] sm:$0xff]
  %v699 = vld [vmem:[%s5 + $0x8] sm:$0xff]
  %v700 = vld [vmem:[%s5 + $0x10] sm:$0xff]
  %v701 = vld [vmem:[%s5 + $0x18] sm:$0xff]
  %v702 = vld [vmem:[%s5 + $0x20] sm:$0xff]
  %v703 = vld [vmem:[%s5 + $0x28] sm:$0xff]
  %v704 = vld [vmem:[%s5 + $0x30] sm:$0xff]
  %v705 = vld [vmem:[%s5 + $0x38] sm:$0xff]
  %v706 = vld [vmem:[%s5 + $0x40] sm:$0xff]
  %v707 = vld [vmem:[%s5 + $0x48] sm:$0xff]
  %v708 = vld [vmem:[%s5 + $0x50] sm:$0xff]
  %v709 = vld [vmem:[%s5 + $0x58] sm:$0xff]
  %v710 = vld [vmem:[%s5 + $0x60] sm:$0xff]
  %v711 = vld [vmem:[%s5 + $0x68] sm:$0xff]
  %v712 = vld [vmem:[%s5 + $0x70] sm:$0xff]
  %v713 = vld [vmem:[%s5 + $0x78] sm:$0xff]
  %v714 = vld [vmem:[%s5 + $0x80] sm:$0xff]
  %v715 = vld [vmem:[%s5 + $0x88] sm:$0xff]
  %v716 = vld [vmem:[%s5 + $0x90] sm:$0xff]
  %v717 = vld [vmem:[%s5 + $0x98] sm:$0xff]
  %v718 = vld [vmem:[%s5 + $0xa0] sm:$0xff]
  %v719 = vld [vmem:[%s5 + $0xa8] sm:$0xff]
  %v720 = vld [vmem:[%s5 + $0xb0] sm:$0xff]
  %v721 = vld [vmem:[%s5 + $0xb8] sm:$0xff]
  %v722 = vld [vmem:[%s5 + $0xc0] sm:$0xff]
  %v723 = vld [vmem:[%s5 + $0xc8] sm:$0xff]
  %v724 = vld [vmem:[%s5 + $0xd0] sm:$0xff]
  %v725 = vld [vmem:[%s5 + $0xd8] sm:$0xff]
  %v726 = vld [vmem:[%s5 + $0xe0] sm:$0xff]
  %v727 = vld [vmem:[%s5 + $0xe8] sm:$0xff]
  %v728 = vld [vmem:[%s5 + $0xf0] sm:$0xff]
  %v729 = vld [vmem:[%s5 + $0xf8] sm:$0xff]
  %v730 = vld [vmem:[%s5 + $0x100] sm:$0xff]
  %v731 = vld [vmem:[%s5 + $0x108] sm:$0xff]
  %v732 = vld [vmem:[%s5 + $0x110] sm:$0xff]
  %v733 = vld [vmem:[%s5 + $0x118] sm:$0xff]
  %v734 = vld [vmem:[%s5 + $0x120] sm:$0xff]
  %v735 = vld [vmem:[%s5 + $0x128] sm:$0xff]
  %v736 = vld [vmem:[%s5 + $0x130] sm:$0xff]
  %v737 = vld [vmem:[%s5 + $0x138] sm:$0xff]
  %v738 = vld [vmem:[%s5 + $0x140] sm:$0xff]
  %v739 = vld [vmem:[%s5 + $0x148] sm:$0xff]
  %v740 = vld [vmem:[%s5 + $0x150] sm:$0xff]
  %v741 = vld [vmem:[%s5 + $0x158] sm:$0xff]
  %v742 = vld [vmem:[%s5 + $0x160] sm:$0xff]
  %v743 = vld [vmem:[%s5 + $0x168] sm:$0xff]
  %v744 = vld [vmem:[%s5 + $0x170] sm:$0xff]
  %v745 = vld [vmem:[%s5 + $0x178] sm:$0xff]
  %v746 = vld [vmem:[%s5 + $0x180] sm:$0xff]
  %v747 = vld [vmem:[%s5 + $0x188] sm:$0xff]
  %v748 = vld [vmem:[%s5 + $0x190] sm:$0xff]
  %v749 = vld [vmem:[%s5 + $0x198] sm:$0xff]
  %v750 = vld [vmem:[%s5 + $0x1a0] sm:$0xff]
  %v751 = vld [vmem:[%s5 + $0x1a8] sm:$0xff]
  %v752 = vld [vmem:[%s5 + $0x1b0] sm:$0xff]
  %v753 = vld [vmem:[%s5 + $0x1b8] sm:$0xff]
  %v754 = vld [vmem:[%s5 + $0x1c0] sm:$0xff]
  %v755 = vld [vmem:[%s5 + $0x1c8] sm:$0xff]
  %v756 = vld [vmem:[%s5 + $0x1d0] sm:$0xff]
  %v757 = vld [vmem:[%s5 + $0x1d8] sm:$0xff]
  %v758 = vld [vmem:[%s5 + $0x1e0] sm:$0xff]
  %v759 = vld [vmem:[%s5 + $0x1e8] sm:$0xff]
  %v760 = vld [vmem:[%s5 + $0x1f0] sm:$0xff]
  %v761 = vld [vmem:[%s5 + $0x1f8] sm:$0xff]
  %762 = vmatpush.msra.mxu0 %v728
  %763 = vmatpush.msra.mxu0 %v726
  %764 = vmatpush.msra.mxu0 %v724
  %765 = vmatpush.msra.mxu0 %v722
  %766 = vmatpush.msra.mxu0 %v720
  %767 = vmatpush.msra.mxu0 %v718
  %768 = vmatpush.msra.mxu0 %v716
  %769 = vmatpush.msra.mxu0 %v714
  %770 = vmatpush.msra.mxu0 %v712
  %771 = vmatpush.msra.mxu0 %v710
  %772 = vmatpush.msra.mxu0 %v708
  %773 = vmatpush.msra.mxu0 %v706
  %774 = vmatpush.msra.mxu0 %v704
  %775 = vmatpush.msra.mxu0 %v702
  %776 = vmatpush.msra.mxu0 %v700
  %777 = vmatpush.msra.mxu0 %v698
  %778 = vmatmul.f32.gmra.mxu0 %v691
  %v779 = vpop.f32.mrf.mxu0
  %v780 = vadd.f32 0.0, %v779
  %781 = vdwg.mxu0
  %782 = vmatpush.msra.mxu0 %v760
  %783 = vmatpush.msra.mxu0 %v758
  %784 = vmatpush.msra.mxu0 %v756
  %785 = vmatpush.msra.mxu0 %v754
  %786 = vmatpush.msra.mxu0 %v752
  %787 = vmatpush.msra.mxu0 %v750
  %788 = vmatpush.msra.mxu0 %v748
  %789 = vmatpush.msra.mxu0 %v746
  %790 = vmatpush.msra.mxu0 %v744
  %791 = vmatpush.msra.mxu0 %v742
  %792 = vmatpush.msra.mxu0 %v740
  %793 = vmatpush.msra.mxu0 %v738
  %794 = vmatpush.msra.mxu0 %v736
  %795 = vmatpush.msra.mxu0 %v734
  %796 = vmatpush.msra.mxu0 %v732
  %797 = vmatpush.msra.mxu0 %v730
  %798 = vmatmul.f32.gmra.mxu0 %v697
  %v799 = vpop.f32.mrf.mxu0
  %v800 = vadd.f32 %v780, %v799
  %801 = vdwg.mxu0
  %802 = vmatpush.msra.mxu0 %v729
  %803 = vmatpush.msra.mxu0 %v727
  %804 = vmatpush.msra.mxu0 %v725
  %805 = vmatpush.msra.mxu0 %v723
  %806 = vmatpush.msra.mxu0 %v721
  %807 = vmatpush.msra.mxu0 %v719
  %808 = vmatpush.msra.mxu0 %v717
  %809 = vmatpush.msra.mxu0 %v715
  %810 = vmatpush.msra.mxu0 %v713
  %811 = vmatpush.msra.mxu0 %v711
  %812 = vmatpush.msra.mxu0 %v709
  %813 = vmatpush.msra.mxu0 %v707
  %814 = vmatpush.msra.mxu0 %v705
  %815 = vmatpush.msra.mxu0 %v703
  %816 = vmatpush.msra.mxu0 %v701
  %817 = vmatpush.msra.mxu0 %v699
  %818 = vmatmul.f32.gmra.mxu0 %v691
  %v819 = vpop.f32.mrf.mxu0
  %v820 = vadd.f32 0.0, %v819
  %821 = vdwg.mxu0
  %822 = vmatpush.msra.mxu0 %v761
  %823 = vmatpush.msra.mxu0 %v759
  %824 = vmatpush.msra.mxu0 %v757
  %825 = vmatpush.msra.mxu0 %v755
  %826 = vmatpush.msra.mxu0 %v753
  %827 = vmatpush.msra.mxu0 %v751
  %828 = vmatpush.msra.mxu0 %v749
  %829 = vmatpush.msra.mxu0 %v747
  %830 = vmatpush.msra.mxu0 %v745
  %831 = vmatpush.msra.mxu0 %v743
  %832 = vmatpush.msra.mxu0 %v741
  %833 = vmatpush.msra.mxu0 %v739
  %834 = vmatpush.msra.mxu0 %v737
  %835 = vmatpush.msra.mxu0 %v735
  %836 = vmatpush.msra.mxu0 %v733
  %837 = vmatpush.msra.mxu0 %v731
  %838 = vmatmul.f32.gmra.mxu0 %v697
  %v839 = vpop.f32.mrf.mxu0
  %v840 = vadd.f32 %v820, %v839
  %841 = vdwg.mxu0
  %v842 = vrcp.pop 32.0
  %v843 = vmul.f32 32.0, %v842
  %v844 = vsub.f32 1.0, %v843
  %v845 = vmul.f32 %v842, %v844
  %v846 = vadd.f32 %v842, %v845
  %vm847 = vweird.f32 %v842
  %v848 = vsel %vm847, %v842, %v846
  %v849 = vmul.f32 %v800, %v848
  %v850 = vmul.f32 %v840, %v848
  %v851 = vperm.slane %v849, 0
  %v852 = vperm.slane %v850, 0
  %v853 = vsub.f32 %v504, %v851
  %v854 = vsub.f32 %v684, %v852
  %v855 = vmul.f32 %v853, %v853
  %v856 = vmul.f32 %v854, %v854
  %v857 = vrot.slane %v855, 4
  %v858 = vadd.f32 %v855, %v857
  %v859 = vrot.slane %v858, 2
  %v860 = vadd.f32 %v858, %v859
  %v861 = vrot.slane %v860, 1
  %v862 = vadd.f32 %v860, %v861
  %v863 = vrot.slane %v856, 4
  %v864 = vadd.f32 %v856, %v863
  %v865 = vrot.slane %v864, 2
  %v866 = vadd.f32 %v864, %v865
  %v867 = vrot.slane %v866, 1
  %v868 = vadd.f32 %v866, %v867
  %869 = vmatpush.msra.mxu0 %v728
  %870 = vmatpush.msra.mxu0 %v726
  %871 = vmatpush.msra.mxu0 %v724
  %872 = vmatpush.msra.mxu0 %v722
  %873 = vmatpush.msra.mxu0 %v720
  %874 = vmatpush.msra.mxu0 %v718
  %875 = vmatpush.msra.mxu0 %v716
  %876 = vmatpush.msra.mxu0 %v714
  %877 = vmatpush.msra.mxu0 %v712
  %878 = vmatpush.msra.mxu0 %v710
  %879 = vmatpush.msra.mxu0 %v708
  %880 = vmatpush.msra.mxu0 %v706
  %881 = vmatpush.msra.mxu0 %v704
  %882 = vmatpush.msra.mxu0 %v702
  %883 = vmatpush.msra.mxu0 %v700
  %884 = vmatpush.msra.mxu0 %v698
  %885 = vmatmul.f32.gmra.mxu0 %v862
  %v886 = vpop.f32.mrf.mxu0
  %v887 = vadd.f32 0.0, %v886
  %888 = vdwg.mxu0
  %889 = vmatpush.msra.mxu0 %v760
  %890 = vmatpush.msra.mxu0 %v758
  %891 = vmatpush.msra.mxu0 %v756
  %892 = vmatpush.msra.mxu0 %v754
  %893 = vmatpush.msra.mxu0 %v752
  %894 = vmatpush.msra.mxu0 %v750
  %895 = vmatpush.msra.mxu0 %v748
  %896 = vmatpush.msra.mxu0 %v746
  %897 = vmatpush.msra.mxu0 %v744
  %898 = vmatpush.msra.mxu0 %v742
  %899 = vmatpush.msra.mxu0 %v740
  %900 = vmatpush.msra.mxu0 %v738
  %901 = vmatpush.msra.mxu0 %v736
  %902 = vmatpush.msra.mxu0 %v734
  %903 = vmatpush.msra.mxu0 %v732
  %904 = vmatpush.msra.mxu0 %v730
  %905 = vmatmul.f32.gmra.mxu0 %v868
  %v906 = vpop.f32.mrf.mxu0
  %v907 = vadd.f32 %v887, %v906
  %908 = vdwg.mxu0
  %909 = vmatpush.msra.mxu0 %v729
  %910 = vmatpush.msra.mxu0 %v727
  %911 = vmatpush.msra.mxu0 %v725
  %912 = vmatpush.msra.mxu0 %v723
  %913 = vmatpush.msra.mxu0 %v721
  %914 = vmatpush.msra.mxu0 %v719
  %915 = vmatpush.msra.mxu0 %v717
  %916 = vmatpush.msra.mxu0 %v715
  %917 = vmatpush.msra.mxu0 %v713
  %918 = vmatpush.msra.mxu0 %v711
  %919 = vmatpush.msra.mxu0 %v709
  %920 = vmatpush.msra.mxu0 %v707
  %921 = vmatpush.msra.mxu0 %v705
  %922 = vmatpush.msra.mxu0 %v703
  %923 = vmatpush.msra.mxu0 %v701
  %924 = vmatpush.msra.mxu0 %v699
  %925 = vmatmul.f32.gmra.mxu0 %v862
  %v926 = vpop.f32.mrf.mxu0
  %v927 = vadd.f32 0.0, %v926
  %928 = vdwg.mxu0
  %929 = vmatpush.msra.mxu0 %v761
  %930 = vmatpush.msra.mxu0 %v759
  %931 = vmatpush.msra.mxu0 %v757
  %932 = vmatpush.msra.mxu0 %v755
  %933 = vmatpush.msra.mxu0 %v753
  %934 = vmatpush.msra.mxu0 %v751
  %935 = vmatpush.msra.mxu0 %v749
  %936 = vmatpush.msra.mxu0 %v747
  %937 = vmatpush.msra.mxu0 %v745
  %938 = vmatpush.msra.mxu0 %v743
  %939 = vmatpush.msra.mxu0 %v741
  %940 = vmatpush.msra.mxu0 %v739
  %941 = vmatpush.msra.mxu0 %v737
  %942 = vmatpush.msra.mxu0 %v735
  %943 = vmatpush.msra.mxu0 %v733
  %944 = vmatpush.msra.mxu0 %v731
  %945 = vmatmul.f32.gmra.mxu0 %v868
  %v946 = vpop.f32.mrf.mxu0
  %v947 = vadd.f32 %v927, %v946
  %948 = vdwg.mxu0
  %v949 = vmul.f32 %v907, %v848
  %v950 = vmul.f32 %v947, %v848
  %v951 = vld [vmem:[%s3] sm:$0x3]
  %v952 = vadd.f32 %v949, 1e-05
  %v953 = vadd.f32 %v950, 1e-05
  %v954 = vrsqrt.pop %v952
  %v955 = vmul.f32 %v954, %v952
  %v956 = vmul.f32 %v955, %v954
  %v957 = vmul.f32 0.5, %v956
  %v958 = vsub.f32 1.5, %v957
  %v959 = vmul.f32 %v954, %v958
  %vm960 = vweird.f32 %v952
  %vm961 = vweird.f32 %v954
  %vm962 = vmor %vm960, %vm961
  %v963 = vsel %vm962, %v954, %v959
  %v964 = vrsqrt.pop %v953
  %v965 = vmul.f32 %v964, %v953
  %v966 = vmul.f32 %v965, %v964
  %v967 = vmul.f32 0.5, %v966
  %v968 = vsub.f32 1.5, %v967
  %v969 = vmul.f32 %v964, %v968
  %vm970 = vweird.f32 %v953
  %vm971 = vweird.f32 %v964
  %vm972 = vmor %vm970, %vm971
  %v973 = vsel %vm972, %v964, %v969
  %v976 = vrot.slane %v973, 7
  %vm977 = vcmask 1040384
  %v978 = vsel %vm977, %v963, %v976
  %v980 = vmul.f32 %v951, %v978
  %v981 = vld [vmem:[%s4] sm:$0x3]
  %v983 = vperm.slane %v980, 0
  %v984 = vperm.slane %v980, 1
  %v987 = vmul.f32 %v849, %v983
  %v988 = vmul.f32 %v850, %v984
  %v991 = vrot.slane %v988, 7
  %v992 = vsel %vm977, %v987, %v991
  %v994 = vsub.f32 %v981, %v992
  %v995 = vmul.f32 %v504, %v983
  %v996 = vmul.f32 %v684, %v984
  %v998 = vperm.slane %v994, 0
  %v999 = vperm.slane %v994, 1
  %v1002 = vadd.f32 %v995, %v998
  %v1003 = vadd.f32 %v996, %v999
  %1004 = vst [vmem:[%s6] sm:$0xff] %v1002
  %1005 = vst [vmem:[%s6 + $0x8] sm:$0xff] %v1003
  // Predicated region
  $region26: #{decoder_forward.7} parent=0 // pred_check
    _
  $region27: #{decoder_forward.7} parent=0 // pred_check_branch
    %1007 = sbr.rel (0) target = $region29
  $region28: #{decoder_forward.7} parent=0 // pred_region
    _
  $region29: #{decoder_forward.7} parent=0 // pred_fallthru
    _
  // Predicated region
  $region30: #{decoder_forward.7} parent=0 // pred_check
    _
  $region31: #{decoder_forward.7} parent=0 // pred_check_branch
    %1009 = sbr.rel (0) target = $region33
  $region32: #{decoder_forward.7} parent=0 // pred_region
    _
  $region33: #{decoder_forward.7} parent=0 // pred_fallthru
    _

// kernel: decoder_forward.8
$region0: #{decoder_forward.8}
  #allocation0 [shape = 'u32[]', space=smem, size = 0x4, offset = 0x4, fixed_abs, tag = 'smem constant byte address 0x4 - core index']
  #allocation1 [shape = 'u32[72,128]{1,0:T(1,128)}', space=vmem, size = 0x9000, scoped, tag = 'internal scratch']
  %s0 = inlined_call_operand.vmem [shape: f32[32,1152], index: 0, kind: input, shape index: {}]
  %s1 = inlined_call_operand.vmem [shape: f32[1152,128], index: 1, kind: input, shape index: {}]
  %s2 = inlined_call_operand.vmem [shape: f32[1,128], index: 2, kind: input, shape index: {}]
  %s3 = inlined_call_operand.vmem [shape: f32[1,128], index: 3, kind: input, shape index: {}]
  %s4 = inlined_call_operand.vmem [shape: f32[1,128], index: 4, kind: input, shape index: {}]
  %s5 = inlined_call_operand.vmem [shape: f32[128,128], index: 5, kind: input, shape index: {}]
  %s6 = inlined_call_operand.vmem [shape: f32[32,128], index: 6, kind: output, shape index: {}]
  %s7 = sld [smem:[#allocation0]]
  $region34: #{decoder_forward.8} parent=0
    _
  %s9 = ssub.s32 1, %s7
  %s10 = scalar_select 0, %s9, %s7
  // Predicated region
  $region2: #{decoder_forward.8} parent=0 // pred_check
    _
  $region3: #{decoder_forward.8} parent=0 // pred_check_branch
    %12 = sbr.rel (0) target = $region5
  $region4: #{decoder_forward.8} parent=0 // pred_region
    _
  $region5: #{decoder_forward.8} parent=0 // pred_fallthru
    _
  // Predicated region
  $region6: #{decoder_forward.8} parent=0 // pred_check
    _
  $region7: #{decoder_forward.8} parent=0 // pred_check_branch
    %14 = sbr.rel (0) target = $region9
  $region8: #{decoder_forward.8} parent=0 // pred_region
    _
  $region9: #{decoder_forward.8} parent=0 // pred_fallthru
    _
  // Predicated region
  $region10: #{decoder_forward.8} parent=0 // pred_check
    _
  $region11: #{decoder_forward.8} parent=0 // pred_check_branch
    %16 = sbr.rel (0) target = $region13
  $region12: #{decoder_forward.8} parent=0 // pred_region
    _
  $region13: #{decoder_forward.8} parent=0 // pred_fallthru
    _
  // Predicated region
  $region14: #{decoder_forward.8} parent=0 // pred_check
    _
  $region15: #{decoder_forward.8} parent=0 // pred_check_branch
    %18 = sbr.rel (0) target = $region17
  $region16: #{decoder_forward.8} parent=0 // pred_region
    _
  $region17: #{decoder_forward.8} parent=0 // pred_fallthru
    _
  // Predicated region
  $region18: #{decoder_forward.8} parent=0 // pred_check
    _
  $region19: #{decoder_forward.8} parent=0 // pred_check_branch
    %20 = sbr.rel (0) target = $region21
  $region20: #{decoder_forward.8} parent=0 // pred_region
    _
  $region21: #{decoder_forward.8} parent=0 // pred_fallthru
    _
  // Predicated region
  $region22: #{decoder_forward.8} parent=0 // pred_check
    _
  $region23: #{decoder_forward.8} parent=0 // pred_check_branch
    %22 = sbr.rel (0) target = $region25
  $region24: #{decoder_forward.8} parent=0 // pred_region
    _
  $region25: #{decoder_forward.8} parent=0 // pred_fallthru
    _
  %v23 = vld [vmem:[%s0] sm:$0xff]
  %v24 = vld [vmem:[%s0 + $0x8] sm:$0xff]
  %v25 = vld [vmem:[%s0 + $0x10] sm:$0xff]
  %v26 = vld [vmem:[%s0 + $0x18] sm:$0xff]
  %v27 = vld [vmem:[%s0 + $0x20] sm:$0xff]
  %v28 = vld [vmem:[%s0 + $0x28] sm:$0xff]
  %v29 = vld [vmem:[%s0 + $0x30] sm:$0xff]
  %v30 = vld [vmem:[%s0 + $0x38] sm:$0xff]
  %v31 = vld [vmem:[%s0 + $0x40] sm:$0xff]
  %v32 = vld [vmem:[%s0 + $0x48] sm:$0xff]
  %v33 = vld [vmem:[%s0 + $0x50] sm:$0xff]
  %v34 = vld [vmem:[%s0 + $0x58] sm:$0xff]
  %v35 = vld [vmem:[%s0 + $0x60] sm:$0xff]
  %v36 = vld [vmem:[%s0 + $0x68] sm:$0xff]
  %v37 = vld [vmem:[%s0 + $0x70] sm:$0xff]
  %v38 = vld [vmem:[%s0 + $0x78] sm:$0xff]
  %v39 = vld [vmem:[%s0 + $0x80] sm:$0xff]
  %v40 = vld [vmem:[%s0 + $0x88] sm:$0xff]
  %v41 = vld [vmem:[%s0 + $0x90] sm:$0xff]
  %v42 = vld [vmem:[%s0 + $0x98] sm:$0xff]
  %v43 = vld [vmem:[%s0 + $0xa0] sm:$0xff]
  %v44 = vld [vmem:[%s0 + $0xa8] sm:$0xff]
  %v45 = vld [vmem:[%s0 + $0xb0] sm:$0xff]
  %v46 = vld [vmem:[%s0 + $0xb8] sm:$0xff]
  %v47 = vld [vmem:[%s0 + $0xc0] sm:$0xff]
  %v48 = vld [vmem:[%s0 + $0xc8] sm:$0xff]
  %v49 = vld [vmem:[%s0 + $0xd0] sm:$0xff]
  %v50 = vld [vmem:[%s0 + $0xd8] sm:$0xff]
  %v51 = vld [vmem:[%s0 + $0xe0] sm:$0xff]
  %v52 = vld [vmem:[%s0 + $0xe8] sm:$0xff]
  %v53 = vld [vmem:[%s0 + $0xf0] sm:$0xff]
  %v54 = vld [vmem:[%s0 + $0xf8] sm:$0xff]
  %v55 = vld [vmem:[%s0 + $0x100] sm:$0xff]
  %v56 = vld [vmem:[%s0 + $0x108] sm:$0xff]
  %v57 = vld [vmem:[%s0 + $0x110] sm:$0xff]
  %v58 = vld [vmem:[%s0 + $0x118] sm:$0xff]
  %v59 = vld [vmem:[%s1] sm:$0xff]
  %v60 = vld [vmem:[%s1 + $0x8] sm:$0xff]
  %v61 = vld [vmem:[%s1 + $0x10] sm:$0xff]
  %v62 = vld [vmem:[%s1 + $0x18] sm:$0xff]
  %v63 = vld [vmem:[%s1 + $0x20] sm:$0xff]
  %v64 = vld [vmem:[%s1 + $0x28] sm:$0xff]
  %v65 = vld [vmem:[%s1 + $0x30] sm:$0xff]
  %v66 = vld [vmem:[%s1 + $0x38] sm:$0xff]
  %v67 = vld [vmem:[%s1 + $0x40] sm:$0xff]
  %v68 = vld [vmem:[%s1 + $0x48] sm:$0xff]
  %v69 = vld [vmem:[%s1 + $0x50] sm:$0xff]
  %v70 = vld [vmem:[%s1 + $0x58] sm:$0xff]
  %v71 = vld [vmem:[%s1 + $0x60] sm:$0xff]
  %v72 = vld [vmem:[%s1 + $0x68] sm:$0xff]
  %v73 = vld [vmem:[%s1 + $0x70] sm:$0xff]
  %v74 = vld [vmem:[%s1 + $0x78] sm:$0xff]
  %v75 = vld [vmem:[%s1 + $0x80] sm:$0xff]
  %v76 = vld [vmem:[%s1 + $0x88] sm:$0xff]
  %v77 = vld [vmem:[%s1 + $0x90] sm:$0xff]
  %v78 = vld [vmem:[%s1 + $0x98] sm:$0xff]
  %v79 = vld [vmem:[%s1 + $0xa0] sm:$0xff]
  %v80 = vld [vmem:[%s1 + $0xa8] sm:$0xff]
  %v81 = vld [vmem:[%s1 + $0xb0] sm:$0xff]
  %v82 = vld [vmem:[%s1 + $0xb8] sm:$0xff]
  %v83 = vld [vmem:[%s1 + $0xc0] sm:$0xff]
  %v84 = vld [vmem:[%s1 + $0xc8] sm:$0xff]
  %v85 = vld [vmem:[%s1 + $0xd0] sm:$0xff]
  %v86 = vld [vmem:[%s1 + $0xd8] sm:$0xff]
  %v87 = vld [vmem:[%s1 + $0xe0] sm:$0xff]
  %v88 = vld [vmem:[%s1 + $0xe8] sm:$0xff]
  %v89 = vld [vmem:[%s1 + $0xf0] sm:$0xff]
  %v90 = vld [vmem:[%s1 + $0xf8] sm:$0xff]
  %v91 = vld [vmem:[%s1 + $0x100] sm:$0xff]
  %v92 = vld [vmem:[%s1 + $0x108] sm:$0xff]
  %v93 = vld [vmem:[%s1 + $0x110] sm:$0xff]
  %v94 = vld [vmem:[%s1 + $0x118] sm:$0xff]
  %v95 = vld [vmem:[%s1 + $0x120] sm:$0xff]
  %v96 = vld [vmem:[%s1 + $0x128] sm:$0xff]
  %v97 = vld [vmem:[%s1 + $0x130] sm:$0xff]
  %v98 = vld [vmem:[%s1 + $0x138] sm:$0xff]
  %v99 = vld [vmem:[%s1 + $0x140] sm:$0xff]
  %v100 = vld [vmem:[%s1 + $0x148] sm:$0xff]
  %v101 = vld [vmem:[%s1 + $0x150] sm:$0xff]
  %v102 = vld [vmem:[%s1 + $0x158] sm:$0xff]
  %v103 = vld [vmem:[%s1 + $0x160] sm:$0xff]
  %v104 = vld [vmem:[%s1 + $0x168] sm:$0xff]
  %v105 = vld [vmem:[%s1 + $0x170] sm:$0xff]
  %v106 = vld [vmem:[%s1 + $0x178] sm:$0xff]
  %v107 = vld [vmem:[%s1 + $0x180] sm:$0xff]
  %v108 = vld [vmem:[%s1 + $0x188] sm:$0xff]
  %v109 = vld [vmem:[%s1 + $0x190] sm:$0xff]
  %v110 = vld [vmem:[%s1 + $0x198] sm:$0xff]
  %v111 = vld [vmem:[%s1 + $0x1a0] sm:$0xff]
  %v112 = vld [vmem:[%s1 + $0x1a8] sm:$0xff]
  %v113 = vld [vmem:[%s1 + $0x1b0] sm:$0xff]
  %v114 = vld [vmem:[%s1 + $0x1b8] sm:$0xff]
  %v115 = vld [vmem:[%s1 + $0x1c0] sm:$0xff]
  %v116 = vld [vmem:[%s1 + $0x1c8] sm:$0xff]
  %v117 = vld [vmem:[%s1 + $0x1d0] sm:$0xff]
  %v118 = vld [vmem:[%s1 + $0x1d8] sm:$0xff]
  %v119 = vld [vmem:[%s1 + $0x1e0] sm:$0xff]
  %v120 = vld [vmem:[%s1 + $0x1e8] sm:$0xff]
  %v121 = vld [vmem:[%s1 + $0x1f0] sm:$0xff]
  %v122 = vld [vmem:[%s1 + $0x1f8] sm:$0xff]
  %v123 = vld [vmem:[%s1 + $0x200] sm:$0xff]
  %v124 = vld [vmem:[%s1 + $0x208] sm:$0xff]
  %v125 = vld [vmem:[%s1 + $0x210] sm:$0xff]
  %v126 = vld [vmem:[%s1 + $0x218] sm:$0xff]
  %v127 = vld [vmem:[%s1 + $0x220] sm:$0xff]
  %v128 = vld [vmem:[%s1 + $0x228] sm:$0xff]
  %v129 = vld [vmem:[%s1 + $0x230] sm:$0xff]
  %v130 = vld [vmem:[%s1 + $0x238] sm:$0xff]
  %v131 = vld [vmem:[%s1 + $0x240] sm:$0xff]
  %v132 = vld [vmem:[%s1 + $0x248] sm:$0xff]
  %v133 = vld [vmem:[%s1 + $0x250] sm:$0xff]
  %v134 = vld [vmem:[%s1 + $0x258] sm:$0xff]
  %v135 = vld [vmem:[%s1 + $0x260] sm:$0xff]
  %v136 = vld [vmem:[%s1 + $0x268] sm:$0xff]
  %v137 = vld [vmem:[%s1 + $0x270] sm:$0xff]
  %v138 = vld [vmem:[%s1 + $0x278] sm:$0xff]
  %v139 = vld [vmem:[%s1 + $0x280] sm:$0xff]
  %v140 = vld [vmem:[%s1 + $0x288] sm:$0xff]
  %v141 = vld [vmem:[%s1 + $0x290] sm:$0xff]
  %v142 = vld [vmem:[%s1 + $0x298] sm:$0xff]
  %v143 = vld [vmem:[%s1 + $0x2a0] sm:$0xff]
  %v144 = vld [vmem:[%s1 + $0x2a8] sm:$0xff]
  %v145 = vld [vmem:[%s1 + $0x2b0] sm:$0xff]
  %v146 = vld [vmem:[%s1 + $0x2b8] sm:$0xff]
  %v147 = vld [vmem:[%s1 + $0x2c0] sm:$0xff]
  %v148 = vld [vmem:[%s1 + $0x2c8] sm:$0xff]
  %v149 = vld [vmem:[%s1 + $0x2d0] sm:$0xff]
  %v150 = vld [vmem:[%s1 + $0x2d8] sm:$0xff]
  %v151 = vld [vmem:[%s1 + $0x2e0] sm:$0xff]
  %v152 = vld [vmem:[%s1 + $0x2e8] sm:$0xff]
  %v153 = vld [vmem:[%s1 + $0x2f0] sm:$0xff]
  %v154 = vld [vmem:[%s1 + $0x2f8] sm:$0xff]
  %v155 = vld [vmem:[%s1 + $0x300] sm:$0xff]
  %v156 = vld [vmem:[%s1 + $0x308] sm:$0xff]
  %v157 = vld [vmem:[%s1 + $0x310] sm:$0xff]
  %v158 = vld [vmem:[%s1 + $0x318] sm:$0xff]
  %v159 = vld [vmem:[%s1 + $0x320] sm:$0xff]
  %v160 = vld [vmem:[%s1 + $0x328] sm:$0xff]
  %v161 = vld [vmem:[%s1 + $0x330] sm:$0xff]
  %v162 = vld [vmem:[%s1 + $0x338] sm:$0xff]
  %v163 = vld [vmem:[%s1 + $0x340] sm:$0xff]
  %v164 = vld [vmem:[%s1 + $0x348] sm:$0xff]
  %v165 = vld [vmem:[%s1 + $0x350] sm:$0xff]
  %v166 = vld [vmem:[%s1 + $0x358] sm:$0xff]
  %v167 = vld [vmem:[%s1 + $0x360] sm:$0xff]
  %v168 = vld [vmem:[%s1 + $0x368] sm:$0xff]
  %v169 = vld [vmem:[%s1 + $0x370] sm:$0xff]
  %v170 = vld [vmem:[%s1 + $0x378] sm:$0xff]
  %v171 = vld [vmem:[%s1 + $0x380] sm:$0xff]
  %v172 = vld [vmem:[%s1 + $0x388] sm:$0xff]
  %v173 = vld [vmem:[%s1 + $0x390] sm:$0xff]
  %v174 = vld [vmem:[%s1 + $0x398] sm:$0xff]
  %v175 = vld [vmem:[%s1 + $0x3a0] sm:$0xff]
  %v176 = vld [vmem:[%s1 + $0x3a8] sm:$0xff]
  %v177 = vld [vmem:[%s1 + $0x3b0] sm:$0xff]
  %v178 = vld [vmem:[%s1 + $0x3b8] sm:$0xff]
  %v179 = vld [vmem:[%s1 + $0x3c0] sm:$0xff]
  %v180 = vld [vmem:[%s1 + $0x3c8] sm:$0xff]
  %v181 = vld [vmem:[%s1 + $0x3d0] sm:$0xff]
  %v182 = vld [vmem:[%s1 + $0x3d8] sm:$0xff]
  %v183 = vld [vmem:[%s1 + $0x3e0] sm:$0xff]
  %v184 = vld [vmem:[%s1 + $0x3e8] sm:$0xff]
  %v185 = vld [vmem:[%s1 + $0x3f0] sm:$0xff]
  %v186 = vld [vmem:[%s1 + $0x3f8] sm:$0xff]
  %v187 = vld [vmem:[%s1 + $0x400] sm:$0xff]
  %v188 = vld [vmem:[%s1 + $0x408] sm:$0xff]
  %v189 = vld [vmem:[%s1 + $0x410] sm:$0xff]
  %v190 = vld [vmem:[%s1 + $0x418] sm:$0xff]
  %v191 = vld [vmem:[%s1 + $0x420] sm:$0xff]
  %v192 = vld [vmem:[%s1 + $0x428] sm:$0xff]
  %v193 = vld [vmem:[%s1 + $0x430] sm:$0xff]
  %v194 = vld [vmem:[%s1 + $0x438] sm:$0xff]
  %v195 = vld [vmem:[%s1 + $0x440] sm:$0xff]
  %v196 = vld [vmem:[%s1 + $0x448] sm:$0xff]
  %v197 = vld [vmem:[%s1 + $0x450] sm:$0xff]
  %v198 = vld [vmem:[%s1 + $0x458] sm:$0xff]
  %v199 = vld [vmem:[%s1 + $0x460] sm:$0xff]
  %v200 = vld [vmem:[%s1 + $0x468] sm:$0xff]
  %v201 = vld [vmem:[%s1 + $0x470] sm:$0xff]
  %v202 = vld [vmem:[%s1 + $0x478] sm:$0xff]
  %v203 = vld [vmem:[%s2] sm:$0x1]
  %v205 = vperm.slane %v203, 0
  %207 = vmatpush.msra.mxu0 %v74
  %208 = vmatpush.msra.mxu0 %v73
  %209 = vmatpush.msra.mxu0 %v72
  %210 = vmatpush.msra.mxu0 %v71
  %211 = vmatpush.msra.mxu0 %v70
  %212 = vmatpush.msra.mxu0 %v69
  %213 = vmatpush.msra.mxu0 %v68
  %214 = vmatpush.msra.mxu0 %v67
  %215 = vmatpush.msra.mxu0 %v66
  %216 = vmatpush.msra.mxu0 %v65
  %217 = vmatpush.msra.mxu0 %v64
  %218 = vmatpush.msra.mxu0 %v63
  %219 = vmatpush.msra.mxu0 %v62
  %220 = vmatpush.msra.mxu0 %v61
  %221 = vmatpush.msra.mxu0 %v60
  %222 = vmatpush.msra.mxu0 %v59
  %223 = vmatmul.f32.gmra.mxu0 %v23
  %v224 = vpop.f32.mrf.mxu0
  %v225 = vadd.f32 %v205, %v224
  %226 = vmatmul.f32.gmra.mxu0 %v32
  %v227 = vpop.f32.mrf.mxu0
  %v228 = vadd.f32 %v205, %v227
  %229 = vmatmul.f32.gmra.mxu0 %v41
  %v230 = vpop.f32.mrf.mxu0
  %v231 = vadd.f32 %v205, %v230
  %232 = vmatmul.f32.gmra.mxu0 %v50
  %v233 = vpop.f32.mrf.mxu0
  %v234 = vadd.f32 %v205, %v233
  %235 = vdwg.mxu0
  %236 = vmatpush.msra.mxu0 %v90
  %237 = vmatpush.msra.mxu0 %v89
  %238 = vmatpush.msra.mxu0 %v88
  %239 = vmatpush.msra.mxu0 %v87
  %240 = vmatpush.msra.mxu0 %v86
  %241 = vmatpush.msra.mxu0 %v85
  %242 = vmatpush.msra.mxu0 %v84
  %243 = vmatpush.msra.mxu0 %v83
  %244 = vmatpush.msra.mxu0 %v82
  %245 = vmatpush.msra.mxu0 %v81
  %246 = vmatpush.msra.mxu0 %v80
  %247 = vmatpush.msra.mxu0 %v79
  %248 = vmatpush.msra.mxu0 %v78
  %249 = vmatpush.msra.mxu0 %v77
  %250 = vmatpush.msra.mxu0 %v76
  %251 = vmatpush.msra.mxu0 %v75
  %252 = vmatmul.f32.gmra.mxu0 %v24
  %v253 = vpop.f32.mrf.mxu0
  %v254 = vadd.f32 %v225, %v253
  %255 = vmatmul.f32.gmra.mxu0 %v33
  %v256 = vpop.f32.mrf.mxu0
  %v257 = vadd.f32 %v228, %v256
  %258 = vmatmul.f32.gmra.mxu0 %v42
  %v259 = vpop.f32.mrf.mxu0
  %v260 = vadd.f32 %v231, %v259
  %261 = vmatmul.f32.gmra.mxu0 %v51
  %v262 = vpop.f32.mrf.mxu0
  %v263 = vadd.f32 %v234, %v262
  %264 = vdwg.mxu0
  %265 = vmatpush.msra.mxu0 %v106
  %266 = vmatpush.msra.mxu0 %v105
  %267 = vmatpush.msra.mxu0 %v104
  %268 = vmatpush.msra.mxu0 %v103
  %269 = vmatpush.msra.mxu0 %v102
  %270 = vmatpush.msra.mxu0 %v101
  %271 = vmatpush.msra.mxu0 %v100
  %272 = vmatpush.msra.mxu0 %v99
  %273 = vmatpush.msra.mxu0 %v98
  %274 = vmatpush.msra.mxu0 %v97
  %275 = vmatpush.msra.mxu0 %v96
  %276 = vmatpush.msra.mxu0 %v95
  %277 = vmatpush.msra.mxu0 %v94
  %278 = vmatpush.msra.mxu0 %v93
  %279 = vmatpush.msra.mxu0 %v92
  %280 = vmatpush.msra.mxu0 %v91
  %281 = vmatmul.f32.gmra.mxu0 %v25
  %v282 = vpop.f32.mrf.mxu0
  %v283 = vadd.f32 %v254, %v282
  %284 = vmatmul.f32.gmra.mxu0 %v34
  %v285 = vpop.f32.mrf.mxu0
  %v286 = vadd.f32 %v257, %v285
  %287 = vmatmul.f32.gmra.mxu0 %v43
  %v288 = vpop.f32.mrf.mxu0
  %v289 = vadd.f32 %v260, %v288
  %290 = vmatmul.f32.gmra.mxu0 %v52
  %v291 = vpop.f32.mrf.mxu0
  %v292 = vadd.f32 %v263, %v291
  %293 = vdwg.mxu0
  %294 = vmatpush.msra.mxu0 %v122
  %295 = vmatpush.msra.mxu0 %v121
  %296 = vmatpush.msra.mxu0 %v120
  %297 = vmatpush.msra.mxu0 %v119
  %298 = vmatpush.msra.mxu0 %v118
  %299 = vmatpush.msra.mxu0 %v117
  %300 = vmatpush.msra.mxu0 %v116
  %301 = vmatpush.msra.mxu0 %v115
  %302 = vmatpush.msra.mxu0 %v114
  %303 = vmatpush.msra.mxu0 %v113
  %304 = vmatpush.msra.mxu0 %v112
  %305 = vmatpush.msra.mxu0 %v111
  %306 = vmatpush.msra.mxu0 %v110
  %307 = vmatpush.msra.mxu0 %v109
  %308 = vmatpush.msra.mxu0 %v108
  %309 = vmatpush.msra.mxu0 %v107
  %310 = vmatmul.f32.gmra.mxu0 %v26
  %v311 = vpop.f32.mrf.mxu0
  %v312 = vadd.f32 %v283, %v311
  %313 = vmatmul.f32.gmra.mxu0 %v35
  %v314 = vpop.f32.mrf.mxu0
  %v315 = vadd.f32 %v286, %v314
  %316 = vmatmul.f32.gmra.mxu0 %v44
  %v317 = vpop.f32.mrf.mxu0
  %v318 = vadd.f32 %v289, %v317
  %319 = vmatmul.f32.gmra.mxu0 %v53
  %v320 = vpop.f32.mrf.mxu0
  %v321 = vadd.f32 %v292, %v320
  %322 = vdwg.mxu0
  %323 = vmatpush.msra.mxu0 %v138
  %324 = vmatpush.msra.mxu0 %v137
  %325 = vmatpush.msra.mxu0 %v136
  %326 = vmatpush.msra.mxu0 %v135
  %327 = vmatpush.msra.mxu0 %v134
  %328 = vmatpush.msra.mxu0 %v133
  %329 = vmatpush.msra.mxu0 %v132
  %330 = vmatpush.msra.mxu0 %v131
  %331 = vmatpush.msra.mxu0 %v130
  %332 = vmatpush.msra.mxu0 %v129
  %333 = vmatpush.msra.mxu0 %v128
  %334 = vmatpush.msra.mxu0 %v127
  %335 = vmatpush.msra.mxu0 %v126
  %336 = vmatpush.msra.mxu0 %v125
  %337 = vmatpush.msra.mxu0 %v124
  %338 = vmatpush.msra.mxu0 %v123
  %339 = vmatmul.f32.gmra.mxu0 %v27
  %v340 = vpop.f32.mrf.mxu0
  %v341 = vadd.f32 %v312, %v340
  %342 = vmatmul.f32.gmra.mxu0 %v36
  %v343 = vpop.f32.mrf.mxu0
  %v344 = vadd.f32 %v315, %v343
  %345 = vmatmul.f32.gmra.mxu0 %v45
  %v346 = vpop.f32.mrf.mxu0
  %v347 = vadd.f32 %v318, %v346
  %348 = vmatmul.f32.gmra.mxu0 %v54
  %v349 = vpop.f32.mrf.mxu0
  %v350 = vadd.f32 %v321, %v349
  %351 = vdwg.mxu0
  %352 = vmatpush.msra.mxu0 %v154
  %353 = vmatpush.msra.mxu0 %v153
  %354 = vmatpush.msra.mxu0 %v152
  %355 = vmatpush.msra.mxu0 %v151
  %356 = vmatpush.msra.mxu0 %v150
  %357 = vmatpush.msra.mxu0 %v149
  %358 = vmatpush.msra.mxu0 %v148
  %359 = vmatpush.msra.mxu0 %v147
  %360 = vmatpush.msra.mxu0 %v146
  %361 = vmatpush.msra.mxu0 %v145
  %362 = vmatpush.msra.mxu0 %v144
  %363 = vmatpush.msra.mxu0 %v143
  %364 = vmatpush.msra.mxu0 %v142
  %365 = vmatpush.msra.mxu0 %v141
  %366 = vmatpush.msra.mxu0 %v140
  %367 = vmatpush.msra.mxu0 %v139
  %368 = vmatmul.f32.gmra.mxu0 %v28
  %v369 = vpop.f32.mrf.mxu0
  %v370 = vadd.f32 %v341, %v369
  %371 = vmatmul.f32.gmra.mxu0 %v37
  %v372 = vpop.f32.mrf.mxu0
  %v373 = vadd.f32 %v344, %v372
  %374 = vmatmul.f32.gmra.mxu0 %v46
  %v375 = vpop.f32.mrf.mxu0
  %v376 = vadd.f32 %v347, %v375
  %377 = vmatmul.f32.gmra.mxu0 %v55
  %v378 = vpop.f32.mrf.mxu0
  %v379 = vadd.f32 %v350, %v378
  %380 = vdwg.mxu0
  %381 = vmatpush.msra.mxu0 %v170
  %382 = vmatpush.msra.mxu0 %v169
  %383 = vmatpush.msra.mxu0 %v168
  %384 = vmatpush.msra.mxu0 %v167
  %385 = vmatpush.msra.mxu0 %v166
  %386 = vmatpush.msra.mxu0 %v165
  %387 = vmatpush.msra.mxu0 %v164
  %388 = vmatpush.msra.mxu0 %v163
  %389 = vmatpush.msra.mxu0 %v162
  %390 = vmatpush.msra.mxu0 %v161
  %391 = vmatpush.msra.mxu0 %v160
  %392 = vmatpush.msra.mxu0 %v159
  %393 = vmatpush.msra.mxu0 %v158
  %394 = vmatpush.msra.mxu0 %v157
  %395 = vmatpush.msra.mxu0 %v156
  %396 = vmatpush.msra.mxu0 %v155
  %397 = vmatmul.f32.gmra.mxu0 %v29
  %v398 = vpop.f32.mrf.mxu0
  %v399 = vadd.f32 %v370, %v398
  %400 = vmatmul.f32.gmra.mxu0 %v38
  %v401 = vpop.f32.mrf.mxu0
  %v402 = vadd.f32 %v373, %v401
  %403 = vmatmul.f32.gmra.mxu0 %v47
  %v404 = vpop.f32.mrf.mxu0
  %v405 = vadd.f32 %v376, %v404
  %406 = vmatmul.f32.gmra.mxu0 %v56
  %v407 = vpop.f32.mrf.mxu0
  %v408 = vadd.f32 %v379, %v407
  %409 = vdwg.mxu0
  %410 = vmatpush.msra.mxu0 %v186
  %411 = vmatpush.msra.mxu0 %v185
  %412 = vmatpush.msra.mxu0 %v184
  %413 = vmatpush.msra.mxu0 %v183
  %414 = vmatpush.msra.mxu0 %v182
  %415 = vmatpush.msra.mxu0 %v181
  %416 = vmatpush.msra.mxu0 %v180
  %417 = vmatpush.msra.mxu0 %v179
  %418 = vmatpush.msra.mxu0 %v178
  %419 = vmatpush.msra.mxu0 %v177
  %420 = vmatpush.msra.mxu0 %v176
  %421 = vmatpush.msra.mxu0 %v175
  %422 = vmatpush.msra.mxu0 %v174
  %423 = vmatpush.msra.mxu0 %v173
  %424 = vmatpush.msra.mxu0 %v172
  %425 = vmatpush.msra.mxu0 %v171
  %426 = vmatmul.f32.gmra.mxu0 %v30
  %v427 = vpop.f32.mrf.mxu0
  %v428 = vadd.f32 %v399, %v427
  %429 = vmatmul.f32.gmra.mxu0 %v39
  %v430 = vpop.f32.mrf.mxu0
  %v431 = vadd.f32 %v402, %v430
  %432 = vmatmul.f32.gmra.mxu0 %v48
  %v433 = vpop.f32.mrf.mxu0
  %v434 = vadd.f32 %v405, %v433
  %435 = vmatmul.f32.gmra.mxu0 %v57
  %v436 = vpop.f32.mrf.mxu0
  %v437 = vadd.f32 %v408, %v436
  %438 = vdwg.mxu0
  %439 = vmatpush.msra.mxu0 %v202
  %440 = vmatpush.msra.mxu0 %v201
  %441 = vmatpush.msra.mxu0 %v200
  %442 = vmatpush.msra.mxu0 %v199
  %443 = vmatpush.msra.mxu0 %v198
  %444 = vmatpush.msra.mxu0 %v197
  %445 = vmatpush.msra.mxu0 %v196
  %446 = vmatpush.msra.mxu0 %v195
  %447 = vmatpush.msra.mxu0 %v194
  %448 = vmatpush.msra.mxu0 %v193
  %449 = vmatpush.msra.mxu0 %v192
  %450 = vmatpush.msra.mxu0 %v191
  %451 = vmatpush.msra.mxu0 %v190
  %452 = vmatpush.msra.mxu0 %v189
  %453 = vmatpush.msra.mxu0 %v188
  %454 = vmatpush.msra.mxu0 %v187
  %455 = vmatmul.f32.gmra.mxu0 %v31
  %v456 = vpop.f32.mrf.mxu0
  %v457 = vadd.f32 %v428, %v456
  %458 = vmatmul.f32.gmra.mxu0 %v40
  %v459 = vpop.f32.mrf.mxu0
  %v460 = vadd.f32 %v431, %v459
  %461 = vmatmul.f32.gmra.mxu0 %v49
  %v462 = vpop.f32.mrf.mxu0
  %v463 = vadd.f32 %v434, %v462
  %464 = vmatmul.f32.gmra.mxu0 %v58
  %v465 = vpop.f32.mrf.mxu0
  %v466 = vadd.f32 %v437, %v465
  %467 = vdwg.mxu0
  %v468 = vadd.f32 %v457, %v460
  %v469 = vadd.f32 %v468, %v463
  %v470 = vadd.f32 %v469, %v466
  %v471 = vrot.slane %v470, 4
  %v472 = vadd.f32 %v470, %v471
  %v473 = vrot.slane %v472, 2
  %v474 = vadd.f32 %v472, %v473
  %v475 = vrot.slane %v474, 1
  %v476 = vadd.f32 %v474, %v475
  %v477 = vld [vmem:[%s5] sm:$0xff]
  %v478 = vld [vmem:[%s5 + $0x8] sm:$0xff]
  %v479 = vld [vmem:[%s5 + $0x10] sm:$0xff]
  %v480 = vld [vmem:[%s5 + $0x18] sm:$0xff]
  %v481 = vld [vmem:[%s5 + $0x20] sm:$0xff]
  %v482 = vld [vmem:[%s5 + $0x28] sm:$0xff]
  %v483 = vld [vmem:[%s5 + $0x30] sm:$0xff]
  %v484 = vld [vmem:[%s5 + $0x38] sm:$0xff]
  %v485 = vld [vmem:[%s5 + $0x40] sm:$0xff]
  %v486 = vld [vmem:[%s5 + $0x48] sm:$0xff]
  %v487 = vld [vmem:[%s5 + $0x50] sm:$0xff]
  %v488 = vld [vmem:[%s5 + $0x58] sm:$0xff]
  %v489 = vld [vmem:[%s5 + $0x60] sm:$0xff]
  %v490 = vld [vmem:[%s5 + $0x68] sm:$0xff]
  %v491 = vld [vmem:[%s5 + $0x70] sm:$0xff]
  %v492 = vld [vmem:[%s5 + $0x78] sm:$0xff]
  %493 = vmatpush.msra.mxu0 %v492
  %494 = vmatpush.msra.mxu0 %v491
  %495 = vmatpush.msra.mxu0 %v490
  %496 = vmatpush.msra.mxu0 %v489
  %497 = vmatpush.msra.mxu0 %v488
  %498 = vmatpush.msra.mxu0 %v487
  %499 = vmatpush.msra.mxu0 %v486
  %500 = vmatpush.msra.mxu0 %v485
  %501 = vmatpush.msra.mxu0 %v484
  %502 = vmatpush.msra.mxu0 %v483
  %503 = vmatpush.msra.mxu0 %v482
  %504 = vmatpush.msra.mxu0 %v481
  %505 = vmatpush.msra.mxu0 %v480
  %506 = vmatpush.msra.mxu0 %v479
  %507 = vmatpush.msra.mxu0 %v478
  %508 = vmatpush.msra.mxu0 %v477
  %509 = vmatmul.f32.gmra.mxu0 %v476
  %v510 = vpop.f32.mrf.mxu0
  %v511 = vadd.f32 0.0, %v510
  %512 = vdwg.mxu0
  %v513 = vrcp.pop 128.0
  %v514 = vmul.f32 128.0, %v513
  %v515 = vsub.f32 1.0, %v514
  %v516 = vmul.f32 %v513, %v515
  %v517 = vadd.f32 %v513, %v516
  %vm518 = vweird.f32 %v513
  %v519 = vsel %vm518, %v513, %v517
  %v520 = vmul.f32 %v511, %v519
  %v521 = vperm.slane %v520, 0
  %v522 = vsub.f32 %v457, %v521
  %v523 = vsub.f32 %v460, %v521
  %v524 = vsub.f32 %v463, %v521
  %v525 = vsub.f32 %v466, %v521
  %v526 = vmul.f32 %v522, %v522
  %v527 = vmul.f32 %v523, %v523
  %v528 = vmul.f32 %v524, %v524
  %v529 = vmul.f32 %v525, %v525
  %v530 = vadd.f32 %v526, %v527
  %v531 = vadd.f32 %v530, %v528
  %v532 = vadd.f32 %v531, %v529
  %v533 = vrot.slane %v532, 4
  %v534 = vadd.f32 %v532, %v533
  %v535 = vrot.slane %v534, 2
  %v536 = vadd.f32 %v534, %v535
  %v537 = vrot.slane %v536, 1
  %v538 = vadd.f32 %v536, %v537
  %539 = vmatpush.msra.mxu0 %v492
  %540 = vmatpush.msra.mxu0 %v491
  %541 = vmatpush.msra.mxu0 %v490
  %542 = vmatpush.msra.mxu0 %v489
  %543 = vmatpush.msra.mxu0 %v488
  %544 = vmatpush.msra.mxu0 %v487
  %545 = vmatpush.msra.mxu0 %v486
  %546 = vmatpush.msra.mxu0 %v485
  %547 = vmatpush.msra.mxu0 %v484
  %548 = vmatpush.msra.mxu0 %v483
  %549 = vmatpush.msra.mxu0 %v482
  %550 = vmatpush.msra.mxu0 %v481
  %551 = vmatpush.msra.mxu0 %v480
  %552 = vmatpush.msra.mxu0 %v479
  %553 = vmatpush.msra.mxu0 %v478
  %554 = vmatpush.msra.mxu0 %v477
  %555 = vmatmul.f32.gmra.mxu0 %v538
  %v556 = vpop.f32.mrf.mxu0
  %v557 = vadd.f32 0.0, %v556
  %558 = vdwg.mxu0
  %v559 = vmul.f32 %v557, %v519
  %v560 = vld [vmem:[%s3] sm:$0x1]
  %v561 = vadd.f32 %v559, 1e-05
  %v562 = vrsqrt.pop %v561
  %v563 = vmul.f32 %v562, %v561
  %v564 = vmul.f32 %v563, %v562
  %v565 = vmul.f32 0.5, %v564
  %v566 = vsub.f32 1.5, %v565
  %v567 = vmul.f32 %v562, %v566
  %vm568 = vweird.f32 %v561
  %vm569 = vweird.f32 %v562
  %vm570 = vmor %vm568, %vm569
  %v571 = vsel %vm570, %v562, %v567
  %v572 = vmul.f32 %v560, %v571
  %v573 = vld [vmem:[%s4] sm:$0x1]
  %v574 = vmul.f32 %v520, %v572
  %v575 = vsub.f32 %v573, %v574
  %v577 = vperm.slane %v572, 0
  %v579 = vmul.f32 %v457, %v577
  %v580 = vmul.f32 %v460, %v577
  %v581 = vmul.f32 %v463, %v577
  %v582 = vmul.f32 %v466, %v577
  %v584 = vperm.slane %v575, 0
  %v586 = vadd.f32 %v579, %v584
  %v587 = vadd.f32 %v580, %v584
  %v588 = vadd.f32 %v581, %v584
  %v589 = vadd.f32 %v582, %v584
  %590 = vst [vmem:[%s6] sm:$0xff] %v586
  %591 = vst [vmem:[%s6 + $0x8] sm:$0xff] %v587
  %592 = vst [vmem:[%s6 + $0x10] sm:$0xff] %v588
  %593 = vst [vmem:[%s6 + $0x18] sm:$0xff] %v589
  // Predicated region
  $region26: #{decoder_forward.8} parent=0 // pred_check
    _
  $region27: #{decoder_forward.8} parent=0 // pred_check_branch
    %595 = sbr.rel (0) target = $region29
  $region28: #{decoder_forward.8} parent=0 // pred_region
    _
  $region29: #{decoder_forward.8} parent=0 // pred_fallthru
    _
  // Predicated region
  $region30: #{decoder_forward.8} parent=0 // pred_check
    _
  $region31: #{decoder_forward.8} parent=0 // pred_check_branch
    %597 = sbr.rel (0) target = $region33
  $region32: #{decoder_forward.8} parent=0 // pred_region
    _
  $region33: #{decoder_forward.8} parent=0 // pred_fallthru
    _

// kernel: decoder_forward.9
$region0: #{decoder_forward.9}
  #allocation0 [shape = 'u32[]', space=smem, size = 0x4, offset = 0x4, fixed_abs, tag = 'smem constant byte address 0x4 - core index']
  #allocation1 [shape = 'u32[72,128]{1,0:T(1,128)}', space=vmem, size = 0x9000, scoped, tag = 'internal scratch']
  %s0 = inlined_call_operand.vmem [shape: f32[128,576], index: 0, kind: input, shape index: {}]
  %s1 = inlined_call_operand.vmem [shape: f32[576,128], index: 1, kind: input, shape index: {}]
  %s2 = inlined_call_operand.vmem [shape: f32[1,128], index: 2, kind: input, shape index: {}]
  %s3 = inlined_call_operand.vmem [shape: f32[1,128], index: 3, kind: input, shape index: {}]
  %s4 = inlined_call_operand.vmem [shape: f32[1,128], index: 4, kind: input, shape index: {}]
  %s5 = inlined_call_operand.vmem [shape: f32[128,128], index: 5, kind: input, shape index: {}]
  %s6 = inlined_call_operand.vmem [shape: f32[128,128], index: 6, kind: output, shape index: {}]
  %s7 = sld [smem:[#allocation0]]
  $region34: #{decoder_forward.9} parent=0
    _
  %s9 = ssub.s32 1, %s7
  %s10 = scalar_select 0, %s9, %s7
  // Predicated region
  $region2: #{decoder_forward.9} parent=0 // pred_check
    _
  $region3: #{decoder_forward.9} parent=0 // pred_check_branch
    %12 = sbr.rel (0) target = $region5
  $region4: #{decoder_forward.9} parent=0 // pred_region
    _
  $region5: #{decoder_forward.9} parent=0 // pred_fallthru
    _
  // Predicated region
  $region6: #{decoder_forward.9} parent=0 // pred_check
    _
  $region7: #{decoder_forward.9} parent=0 // pred_check_branch
    %14 = sbr.rel (0) target = $region9
  $region8: #{decoder_forward.9} parent=0 // pred_region
    _
  $region9: #{decoder_forward.9} parent=0 // pred_fallthru
    _
  // Predicated region
  $region10: #{decoder_forward.9} parent=0 // pred_check
    _
  $region11: #{decoder_forward.9} parent=0 // pred_check_branch
    %16 = sbr.rel (0) target = $region13
  $region12: #{decoder_forward.9} parent=0 // pred_region
    _
  $region13: #{decoder_forward.9} parent=0 // pred_fallthru
    _
  // Predicated region
  $region14: #{decoder_forward.9} parent=0 // pred_check
    _
  $region15: #{decoder_forward.9} parent=0 // pred_check_branch
    %18 = sbr.rel (0) target = $region17
  $region16: #{decoder_forward.9} parent=0 // pred_region
    _
  $region17: #{decoder_forward.9} parent=0 // pred_fallthru
    _
  // Predicated region
  $region18: #{decoder_forward.9} parent=0 // pred_check
    _
  $region19: #{decoder_forward.9} parent=0 // pred_check_branch
    %20 = sbr.rel (0) target = $region21
  $region20: #{decoder_forward.9} parent=0 // pred_region
    _
  $region21: #{decoder_forward.9} parent=0 // pred_fallthru
    _
  // Predicated region
  $region22: #{decoder_forward.9} parent=0 // pred_check
    _
  $region23: #{decoder_forward.9} parent=0 // pred_check_branch
    %22 = sbr.rel (0) target = $region25
  $region24: #{decoder_forward.9} parent=0 // pred_region
    _
  $region25: #{decoder_forward.9} parent=0 // pred_fallthru
    _
  %v23 = vld [vmem:[%s0] sm:$0xff]
  %v24 = vld [vmem:[%s0 + $0x8] sm:$0xff]
  %v25 = vld [vmem:[%s0 + $0x10] sm:$0xff]
  %v26 = vld [vmem:[%s0 + $0x18] sm:$0xff]
  %v27 = vld [vmem:[%s0 + $0x20] sm:$0xff]
  %v28 = vld [vmem:[%s0 + $0x28] sm:$0xff]
  %v29 = vld [vmem:[%s0 + $0x30] sm:$0xff]
  %v30 = vld [vmem:[%s0 + $0x38] sm:$0xff]
  %v31 = vld [vmem:[%s0 + $0x40] sm:$0xff]
  %v32 = vld [vmem:[%s0 + $0x48] sm:$0xff]
  %v33 = vld [vmem:[%s0 + $0x50] sm:$0xff]
  %v34 = vld [vmem:[%s0 + $0x58] sm:$0xff]
  %v35 = vld [vmem:[%s0 + $0x60] sm:$0xff]
  %v36 = vld [vmem:[%s0 + $0x68] sm:$0xff]
  %v37 = vld [vmem:[%s0 + $0x70] sm:$0xff]
  %v38 = vld [vmem:[%s0 + $0x78] sm:$0xff]
  %v39 = vld [vmem:[%s0 + $0x80] sm:$0xff]
  %v40 = vld [vmem:[%s0 + $0x88] sm:$0xff]
  %v41 = vld [vmem:[%s0 + $0x90] sm:$0xff]
  %v42 = vld [vmem:[%s0 + $0x98] sm:$0xff]
  %v43 = vld [vmem:[%s0 + $0xa0] sm:$0xff]
  %v44 = vld [vmem:[%s0 + $0xa8] sm:$0xff]
  %v45 = vld [vmem:[%s0 + $0xb0] sm:$0xff]
  %v46 = vld [vmem:[%s0 + $0xb8] sm:$0xff]
  %v47 = vld [vmem:[%s0 + $0xc0] sm:$0xff]
  %v48 = vld [vmem:[%s0 + $0xc8] sm:$0xff]
  %v49 = vld [vmem:[%s0 + $0xd0] sm:$0xff]
  %v50 = vld [vmem:[%s0 + $0xd8] sm:$0xff]
  %v51 = vld [vmem:[%s0 + $0xe0] sm:$0xff]
  %v52 = vld [vmem:[%s0 + $0xe8] sm:$0xff]
  %v53 = vld [vmem:[%s0 + $0xf0] sm:$0xff]
  %v54 = vld [vmem:[%s0 + $0xf8] sm:$0xff]
  %v55 = vld [vmem:[%s0 + $0x100] sm:$0xff]
  %v56 = vld [vmem:[%s0 + $0x108] sm:$0xff]
  %v57 = vld [vmem:[%s0 + $0x110] sm:$0xff]
  %v58 = vld [vmem:[%s0 + $0x118] sm:$0xff]
  %v59 = vld [vmem:[%s0 + $0x120] sm:$0xff]
  %v60 = vld [vmem:[%s0 + $0x128] sm:$0xff]
  %v61 = vld [vmem:[%s0 + $0x130] sm:$0xff]
  %v62 = vld [vmem:[%s0 + $0x138] sm:$0xff]
  %v63 = vld [vmem:[%s0 + $0x140] sm:$0xff]
  %v64 = vld [vmem:[%s0 + $0x148] sm:$0xff]
  %v65 = vld [vmem:[%s0 + $0x150] sm:$0xff]
  %v66 = vld [vmem:[%s0 + $0x158] sm:$0xff]
  %v67 = vld [vmem:[%s0 + $0x160] sm:$0xff]
  %v68 = vld [vmem:[%s0 + $0x168] sm:$0xff]
  %v69 = vld [vmem:[%s0 + $0x170] sm:$0xff]
  %v70 = vld [vmem:[%s0 + $0x178] sm:$0xff]
  %v71 = vld [vmem:[%s0 + $0x180] sm:$0xff]
  %v72 = vld [vmem:[%s0 + $0x188] sm:$0xff]
  %v73 = vld [vmem:[%s0 + $0x190] sm:$0xff]
  %v74 = vld [vmem:[%s0 + $0x198] sm:$0xff]
  %v75 = vld [vmem:[%s0 + $0x1a0] sm:$0xff]
  %v76 = vld [vmem:[%s0 + $0x1a8] sm:$0xff]
  %v77 = vld [vmem:[%s0 + $0x1b0] sm:$0xff]
  %v78 = vld [vmem:[%s0 + $0x1b8] sm:$0xff]
  %v79 = vld [vmem:[%s0 + $0x1c0] sm:$0xff]
  %v80 = vld [vmem:[%s0 + $0x1c8] sm:$0xff]
  %v81 = vld [vmem:[%s0 + $0x1d0] sm:$0xff]
  %v82 = vld [vmem:[%s0 + $0x1d8] sm:$0xff]
  %v83 = vld [vmem:[%s0 + $0x1e0] sm:$0xff]
  %v84 = vld [vmem:[%s0 + $0x1e8] sm:$0xff]
  %v85 = vld [vmem:[%s0 + $0x1f0] sm:$0xff]
  %v86 = vld [vmem:[%s0 + $0x1f8] sm:$0xff]
  %v87 = vld [vmem:[%s0 + $0x200] sm:$0xff]
  %v88 = vld [vmem:[%s0 + $0x208] sm:$0xff]
  %v89 = vld [vmem:[%s0 + $0x210] sm:$0xff]
  %v90 = vld [vmem:[%s0 + $0x218] sm:$0xff]
  %v91 = vld [vmem:[%s0 + $0x220] sm:$0xff]
  %v92 = vld [vmem:[%s0 + $0x228] sm:$0xff]
  %v93 = vld [vmem:[%s0 + $0x230] sm:$0xff]
  %v94 = vld [vmem:[%s0 + $0x238] sm:$0xff]
  %v95 = vld [vmem:[%s0 + $0x240] sm:$0xff]
  %v96 = vld [vmem:[%s0 + $0x248] sm:$0xff]
  %v97 = vld [vmem:[%s0 + $0x250] sm:$0xff]
  %v98 = vld [vmem:[%s0 + $0x258] sm:$0xff]
  %v99 = vld [vmem:[%s0 + $0x260] sm:$0xff]
  %v100 = vld [vmem:[%s0 + $0x268] sm:$0xff]
  %v101 = vld [vmem:[%s0 + $0x270] sm:$0xff]
  %v102 = vld [vmem:[%s0 + $0x278] sm:$0xff]
  %v103 = vld [vmem:[%s1] sm:$0xff]
  %v104 = vld [vmem:[%s1 + $0x8] sm:$0xff]
  %v105 = vld [vmem:[%s1 + $0x10] sm:$0xff]
  %v106 = vld [vmem:[%s1 + $0x18] sm:$0xff]
  %v107 = vld [vmem:[%s1 + $0x20] sm:$0xff]
  %v108 = vld [vmem:[%s1 + $0x28] sm:$0xff]
  %v109 = vld [vmem:[%s1 + $0x30] sm:$0xff]
  %v110 = vld [vmem:[%s1 + $0x38] sm:$0xff]
  %v111 = vld [vmem:[%s1 + $0x40] sm:$0xff]
  %v112 = vld [vmem:[%s1 + $0x48] sm:$0xff]
  %v113 = vld [vmem:[%s1 + $0x50] sm:$0xff]
  %v114 = vld [vmem:[%s1 + $0x58] sm:$0xff]
  %v115 = vld [vmem:[%s1 + $0x60] sm:$0xff]
  %v116 = vld [vmem:[%s1 + $0x68] sm:$0xff]
  %v117 = vld [vmem:[%s1 + $0x70] sm:$0xff]
  %v118 = vld [vmem:[%s1 + $0x78] sm:$0xff]
  %v119 = vld [vmem:[%s1 + $0x80] sm:$0xff]
  %v120 = vld [vmem:[%s1 + $0x88] sm:$0xff]
  %v121 = vld [vmem:[%s1 + $0x90] sm:$0xff]
  %v122 = vld [vmem:[%s1 + $0x98] sm:$0xff]
  %v123 = vld [vmem:[%s1 + $0xa0] sm:$0xff]
  %v124 = vld [vmem:[%s1 + $0xa8] sm:$0xff]
  %v125 = vld [vmem:[%s1 + $0xb0] sm:$0xff]
  %v126 = vld [vmem:[%s1 + $0xb8] sm:$0xff]
  %v127 = vld [vmem:[%s1 + $0xc0] sm:$0xff]
  %v128 = vld [vmem:[%s1 + $0xc8] sm:$0xff]
  %v129 = vld [vmem:[%s1 + $0xd0] sm:$0xff]
  %v130 = vld [vmem:[%s1 + $0xd8] sm:$0xff]
  %v131 = vld [vmem:[%s1 + $0xe0] sm:$0xff]
  %v132 = vld [vmem:[%s1 + $0xe8] sm:$0xff]
  %v133 = vld [vmem:[%s1 + $0xf0] sm:$0xff]
  %v134 = vld [vmem:[%s1 + $0xf8] sm:$0xff]
  %v135 = vld [vmem:[%s1 + $0x100] sm:$0xff]
  %v136 = vld [vmem:[%s1 + $0x108] sm:$0xff]
  %v137 = vld [vmem:[%s1 + $0x110] sm:$0xff]
  %v138 = vld [vmem:[%s1 + $0x118] sm:$0xff]
  %v139 = vld [vmem:[%s1 + $0x120] sm:$0xff]
  %v140 = vld [vmem:[%s1 + $0x128] sm:$0xff]
  %v141 = vld [vmem:[%s1 + $0x130] sm:$0xff]
  %v142 = vld [vmem:[%s1 + $0x138] sm:$0xff]
  %v143 = vld [vmem:[%s1 + $0x140] sm:$0xff]
  %v144 = vld [vmem:[%s1 + $0x148] sm:$0xff]
  %v145 = vld [vmem:[%s1 + $0x150] sm:$0xff]
  %v146 = vld [vmem:[%s1 + $0x158] sm:$0xff]
  %v147 = vld [vmem:[%s1 + $0x160] sm:$0xff]
  %v148 = vld [vmem:[%s1 + $0x168] sm:$0xff]
  %v149 = vld [vmem:[%s1 + $0x170] sm:$0xff]
  %v150 = vld [vmem:[%s1 + $0x178] sm:$0xff]
  %v151 = vld [vmem:[%s1 + $0x180] sm:$0xff]
  %v152 = vld [vmem:[%s1 + $0x188] sm:$0xff]
  %v153 = vld [vmem:[%s1 + $0x190] sm:$0xff]
  %v154 = vld [vmem:[%s1 + $0x198] sm:$0xff]
  %v155 = vld [vmem:[%s1 + $0x1a0] sm:$0xff]
  %v156 = vld [vmem:[%s1 + $0x1a8] sm:$0xff]
  %v157 = vld [vmem:[%s1 + $0x1b0] sm:$0xff]
  %v158 = vld [vmem:[%s1 + $0x1b8] sm:$0xff]
  %v159 = vld [vmem:[%s1 + $0x1c0] sm:$0xff]
  %v160 = vld [vmem:[%s1 + $0x1c8] sm:$0xff]
  %v161 = vld [vmem:[%s1 + $0x1d0] sm:$0xff]
  %v162 = vld [vmem:[%s1 + $0x1d8] sm:$0xff]
  %v163 = vld [vmem:[%s1 + $0x1e0] sm:$0xff]
  %v164 = vld [vmem:[%s1 + $0x1e8] sm:$0xff]
  %v165 = vld [vmem:[%s1 + $0x1f0] sm:$0xff]
  %v166 = vld [vmem:[%s1 + $0x1f8] sm:$0xff]
  %v167 = vld [vmem:[%s1 + $0x200] sm:$0xff]
  %v168 = vld [vmem:[%s1 + $0x208] sm:$0xff]
  %v169 = vld [vmem:[%s1 + $0x210] sm:$0xff]
  %v170 = vld [vmem:[%s1 + $0x218] sm:$0xff]
  %v171 = vld [vmem:[%s1 + $0x220] sm:$0xff]
  %v172 = vld [vmem:[%s1 + $0x228] sm:$0xff]
  %v173 = vld [vmem:[%s1 + $0x230] sm:$0xff]
  %v174 = vld [vmem:[%s1 + $0x238] sm:$0xff]
  %v175 = vld [vmem:[%s2] sm:$0x1]
  %v177 = vperm.slane %v175, 0
  %vm179 = vcmask 523264
  %v181 = vsel %vm179, %v27, 0
  %v184 = vsel %vm179, %v32, 0
  %v187 = vsel %vm179, %v37, 0
  %v190 = vsel %vm179, %v42, 0
  %v193 = vsel %vm179, %v47, 0
  %v196 = vsel %vm179, %v52, 0
  %v199 = vsel %vm179, %v57, 0
  %v202 = vsel %vm179, %v62, 0
  %v205 = vsel %vm179, %v67, 0
  %v208 = vsel %vm179, %v72, 0
  %v211 = vsel %vm179, %v77, 0
  %v214 = vsel %vm179, %v82, 0
  %v217 = vsel %vm179, %v87, 0
  %v220 = vsel %vm179, %v92, 0
  %v223 = vsel %vm179, %v97, 0
  %v226 = vsel %vm179, %v102, 0
  %228 = vmatpush.msra.mxu0 %v118
  %229 = vmatpush.msra.mxu0 %v117
  %230 = vmatpush.msra.mxu0 %v116
  %231 = vmatpush.msra.mxu0 %v115
  %232 = vmatpush.msra.mxu0 %v114
  %233 = vmatpush.msra.mxu0 %v113
  %234 = vmatpush.msra.mxu0 %v112
  %235 = vmatpush.msra.mxu0 %v111
  %236 = vmatpush.msra.mxu0 %v110
  %237 = vmatpush.msra.mxu0 %v109
  %238 = vmatpush.msra.mxu0 %v108
  %239 = vmatpush.msra.mxu0 %v107
  %240 = vmatpush.msra.mxu0 %v106
  %241 = vmatpush.msra.mxu0 %v105
  %242 = vmatpush.msra.mxu0 %v104
  %243 = vmatpush.msra.mxu0 %v103
  %244 = vmatmul.f32.gmra.mxu0 %v23
  %v245 = vpop.f32.mrf.mxu0
  %v246 = vadd.f32 %v177, %v245
  %247 = vmatmul.f32.gmra.mxu0 %v28
  %v248 = vpop.f32.mrf.mxu0
  %v249 = vadd.f32 %v177, %v248
  %250 = vmatmul.f32.gmra.mxu0 %v33
  %v251 = vpop.f32.mrf.mxu0
  %v252 = vadd.f32 %v177, %v251
  %253 = vmatmul.f32.gmra.mxu0 %v38
  %v254 = vpop.f32.mrf.mxu0
  %v255 = vadd.f32 %v177, %v254
  %256 = vmatmul.f32.gmra.mxu0 %v43
  %v257 = vpop.f32.mrf.mxu0
  %v258 = vadd.f32 %v177, %v257
  %259 = vmatmul.f32.gmra.mxu0 %v48
  %v260 = vpop.f32.mrf.mxu0
  %v261 = vadd.f32 %v177, %v260
  %262 = vmatmul.f32.gmra.mxu0 %v53
  %v263 = vpop.f32.mrf.mxu0
  %v264 = vadd.f32 %v177, %v263
  %265 = vmatmul.f32.gmra.mxu0 %v58
  %v266 = vpop.f32.mrf.mxu0
  %v267 = vadd.f32 %v177, %v266
  %268 = vmatmul.f32.gmra.mxu0 %v63
  %v269 = vpop.f32.mrf.mxu0
  %v270 = vadd.f32 %v177, %v269
  %271 = vmatmul.f32.gmra.mxu0 %v68
  %v272 = vpop.f32.mrf.mxu0
  %v273 = vadd.f32 %v177, %v272
  %274 = vmatmul.f32.gmra.mxu0 %v73
  %v275 = vpop.f32.mrf.mxu0
  %v276 = vadd.f32 %v177, %v275
  %277 = vmatmul.f32.gmra.mxu0 %v78
  %v278 = vpop.f32.mrf.mxu0
  %v279 = vadd.f32 %v177, %v278
  %280 = vmatmul.f32.gmra.mxu0 %v83
  %v281 = vpop.f32.mrf.mxu0
  %v282 = vadd.f32 %v177, %v281
  %283 = vmatmul.f32.gmra.mxu0 %v88
  %v284 = vpop.f32.mrf.mxu0
  %v285 = vadd.f32 %v177, %v284
  %286 = vmatmul.f32.gmra.mxu0 %v93
  %v287 = vpop.f32.mrf.mxu0
  %v288 = vadd.f32 %v177, %v287
  %289 = vmatmul.f32.gmra.mxu0 %v98
  %v290 = vpop.f32.mrf.mxu0
  %v291 = vadd.f32 %v177, %v290
  %292 = vdwg.mxu0
  %293 = vmatpush.msra.mxu0 %v134
  %294 = vmatpush.msra.mxu0 %v133
  %295 = vmatpush.msra.mxu0 %v132
  %296 = vmatpush.msra.mxu0 %v131
  %297 = vmatpush.msra.mxu0 %v130
  %298 = vmatpush.msra.mxu0 %v129
  %299 = vmatpush.msra.mxu0 %v128
  %300 = vmatpush.msra.mxu0 %v127
  %301 = vmatpush.msra.mxu0 %v126
  %302 = vmatpush.msra.mxu0 %v125
  %303 = vmatpush.msra.mxu0 %v124
  %304 = vmatpush.msra.mxu0 %v123
  %305 = vmatpush.msra.mxu0 %v122
  %306 = vmatpush.msra.mxu0 %v121
  %307 = vmatpush.msra.mxu0 %v120
  %308 = vmatpush.msra.mxu0 %v119
  %309 = vmatmul.f32.gmra.mxu0 %v24
  %v310 = vpop.f32.mrf.mxu0
  %v311 = vadd.f32 %v246, %v310
  %312 = vmatmul.f32.gmra.mxu0 %v29
  %v313 = vpop.f32.mrf.mxu0
  %v314 = vadd.f32 %v249, %v313
  %315 = vmatmul.f32.gmra.mxu0 %v34
  %v316 = vpop.f32.mrf.mxu0
  %v317 = vadd.f32 %v252, %v316
  %318 = vmatmul.f32.gmra.mxu0 %v39
  %v319 = vpop.f32.mrf.mxu0
  %v320 = vadd.f32 %v255, %v319
  %321 = vmatmul.f32.gmra.mxu0 %v44
  %v322 = vpop.f32.mrf.mxu0
  %v323 = vadd.f32 %v258, %v322
  %324 = vmatmul.f32.gmra.mxu0 %v49
  %v325 = vpop.f32.mrf.mxu0
  %v326 = vadd.f32 %v261, %v325
  %327 = vmatmul.f32.gmra.mxu0 %v54
  %v328 = vpop.f32.mrf.mxu0
  %v329 = vadd.f32 %v264, %v328
  %330 = vmatmul.f32.gmra.mxu0 %v59
  %v331 = vpop.f32.mrf.mxu0
  %v332 = vadd.f32 %v267, %v331
  %333 = vmatmul.f32.gmra.mxu0 %v64
  %v334 = vpop.f32.mrf.mxu0
  %v335 = vadd.f32 %v270, %v334
  %336 = vmatmul.f32.gmra.mxu0 %v69
  %v337 = vpop.f32.mrf.mxu0
  %v338 = vadd.f32 %v273, %v337
  %339 = vmatmul.f32.gmra.mxu0 %v74
  %v340 = vpop.f32.mrf.mxu0
  %v341 = vadd.f32 %v276, %v340
  %342 = vmatmul.f32.gmra.mxu0 %v79
  %v343 = vpop.f32.mrf.mxu0
  %v344 = vadd.f32 %v279, %v343
  %345 = vmatmul.f32.gmra.mxu0 %v84
  %v346 = vpop.f32.mrf.mxu0
  %v347 = vadd.f32 %v282, %v346
  %348 = vmatmul.f32.gmra.mxu0 %v89
  %v349 = vpop.f32.mrf.mxu0
  %v350 = vadd.f32 %v285, %v349
  %351 = vmatmul.f32.gmra.mxu0 %v94
  %v352 = vpop.f32.mrf.mxu0
  %v353 = vadd.f32 %v288, %v352
  %354 = vmatmul.f32.gmra.mxu0 %v99
  %v355 = vpop.f32.mrf.mxu0
  %v356 = vadd.f32 %v291, %v355
  %357 = vdwg.mxu0
  %358 = vmatpush.msra.mxu0 %v150
  %359 = vmatpush.msra.mxu0 %v149
  %360 = vmatpush.msra.mxu0 %v148
  %361 = vmatpush.msra.mxu0 %v147
  %362 = vmatpush.msra.mxu0 %v146
  %363 = vmatpush.msra.mxu0 %v145
  %364 = vmatpush.msra.mxu0 %v144
  %365 = vmatpush.msra.mxu0 %v143
  %366 = vmatpush.msra.mxu0 %v142
  %367 = vmatpush.msra.mxu0 %v141
  %368 = vmatpush.msra.mxu0 %v140
  %369 = vmatpush.msra.mxu0 %v139
  %370 = vmatpush.msra.mxu0 %v138
  %371 = vmatpush.msra.mxu0 %v137
  %372 = vmatpush.msra.mxu0 %v136
  %373 = vmatpush.msra.mxu0 %v135
  %374 = vmatmul.f32.gmra.mxu0 %v25
  %v375 = vpop.f32.mrf.mxu0
  %v376 = vadd.f32 %v311, %v375
  %377 = vmatmul.f32.gmra.mxu0 %v30
  %v378 = vpop.f32.mrf.mxu0
  %v379 = vadd.f32 %v314, %v378
  %380 = vmatmul.f32.gmra.mxu0 %v35
  %v381 = vpop.f32.mrf.mxu0
  %v382 = vadd.f32 %v317, %v381
  %383 = vmatmul.f32.gmra.mxu0 %v40
  %v384 = vpop.f32.mrf.mxu0
  %v385 = vadd.f32 %v320, %v384
  %386 = vmatmul.f32.gmra.mxu0 %v45
  %v387 = vpop.f32.mrf.mxu0
  %v388 = vadd.f32 %v323, %v387
  %389 = vmatmul.f32.gmra.mxu0 %v50
  %v390 = vpop.f32.mrf.mxu0
  %v391 = vadd.f32 %v326, %v390
  %392 = vmatmul.f32.gmra.mxu0 %v55
  %v393 = vpop.f32.mrf.mxu0
  %v394 = vadd.f32 %v329, %v393
  %395 = vmatmul.f32.gmra.mxu0 %v60
  %v396 = vpop.f32.mrf.mxu0
  %v397 = vadd.f32 %v332, %v396
  %398 = vmatmul.f32.gmra.mxu0 %v65
  %v399 = vpop.f32.mrf.mxu0
  %v400 = vadd.f32 %v335, %v399
  %401 = vmatmul.f32.gmra.mxu0 %v70
  %v402 = vpop.f32.mrf.mxu0
  %v403 = vadd.f32 %v338, %v402
  %404 = vmatmul.f32.gmra.mxu0 %v75
  %v405 = vpop.f32.mrf.mxu0
  %v406 = vadd.f32 %v341, %v405
  %407 = vmatmul.f32.gmra.mxu0 %v80
  %v408 = vpop.f32.mrf.mxu0
  %v409 = vadd.f32 %v344, %v408
  %410 = vmatmul.f32.gmra.mxu0 %v85
  %v411 = vpop.f32.mrf.mxu0
  %v412 = vadd.f32 %v347, %v411
  %413 = vmatmul.f32.gmra.mxu0 %v90
  %v414 = vpop.f32.mrf.mxu0
  %v415 = vadd.f32 %v350, %v414
  %416 = vmatmul.f32.gmra.mxu0 %v95
  %v417 = vpop.f32.mrf.mxu0
  %v418 = vadd.f32 %v353, %v417
  %419 = vmatmul.f32.gmra.mxu0 %v100
  %v420 = vpop.f32.mrf.mxu0
  %v421 = vadd.f32 %v356, %v420
  %422 = vdwg.mxu0
  %423 = vmatpush.msra.mxu0 %v166
  %424 = vmatpush.msra.mxu0 %v165
  %425 = vmatpush.msra.mxu0 %v164
  %426 = vmatpush.msra.mxu0 %v163
  %427 = vmatpush.msra.mxu0 %v162
  %428 = vmatpush.msra.mxu0 %v161
  %429 = vmatpush.msra.mxu0 %v160
  %430 = vmatpush.msra.mxu0 %v159
  %431 = vmatpush.msra.mxu0 %v158
  %432 = vmatpush.msra.mxu0 %v157
  %433 = vmatpush.msra.mxu0 %v156
  %434 = vmatpush.msra.mxu0 %v155
  %435 = vmatpush.msra.mxu0 %v154
  %436 = vmatpush.msra.mxu0 %v153
  %437 = vmatpush.msra.mxu0 %v152
  %438 = vmatpush.msra.mxu0 %v151
  %439 = vmatmul.f32.gmra.mxu0 %v26
  %v440 = vpop.f32.mrf.mxu0
  %v441 = vadd.f32 %v376, %v440
  %442 = vmatmul.f32.gmra.mxu0 %v31
  %v443 = vpop.f32.mrf.mxu0
  %v444 = vadd.f32 %v379, %v443
  %445 = vmatmul.f32.gmra.mxu0 %v36
  %v446 = vpop.f32.mrf.mxu0
  %v447 = vadd.f32 %v382, %v446
  %448 = vmatmul.f32.gmra.mxu0 %v41
  %v449 = vpop.f32.mrf.mxu0
  %v450 = vadd.f32 %v385, %v449
  %451 = vmatmul.f32.gmra.mxu0 %v46
  %v452 = vpop.f32.mrf.mxu0
  %v453 = vadd.f32 %v388, %v452
  %454 = vmatmul.f32.gmra.mxu0 %v51
  %v455 = vpop.f32.mrf.mxu0
  %v456 = vadd.f32 %v391, %v455
  %457 = vmatmul.f32.gmra.mxu0 %v56
  %v458 = vpop.f32.mrf.mxu0
  %v459 = vadd.f32 %v394, %v458
  %460 = vmatmul.f32.gmra.mxu0 %v61
  %v461 = vpop.f32.mrf.mxu0
  %v462 = vadd.f32 %v397, %v461
  %463 = vmatmul.f32.gmra.mxu0 %v66
  %v464 = vpop.f32.mrf.mxu0
  %v465 = vadd.f32 %v400, %v464
  %466 = vmatmul.f32.gmra.mxu0 %v71
  %v467 = vpop.f32.mrf.mxu0
  %v468 = vadd.f32 %v403, %v467
  %469 = vmatmul.f32.gmra.mxu0 %v76
  %v470 = vpop.f32.mrf.mxu0
  %v471 = vadd.f32 %v406, %v470
  %472 = vmatmul.f32.gmra.mxu0 %v81
  %v473 = vpop.f32.mrf.mxu0
  %v474 = vadd.f32 %v409, %v473
  %475 = vmatmul.f32.gmra.mxu0 %v86
  %v476 = vpop.f32.mrf.mxu0
  %v477 = vadd.f32 %v412, %v476
  %478 = vmatmul.f32.gmra.mxu0 %v91
  %v479 = vpop.f32.mrf.mxu0
  %v480 = vadd.f32 %v415, %v479
  %481 = vmatmul.f32.gmra.mxu0 %v96
  %v482 = vpop.f32.mrf.mxu0
  %v483 = vadd.f32 %v418, %v482
  %484 = vmatmul.f32.gmra.mxu0 %v101
  %v485 = vpop.f32.mrf.mxu0
  %v486 = vadd.f32 %v421, %v485
  %487 = vdwg.mxu0
  %488 = vmatpush.msra.mxu0 0.0
  %489 = vmatpush.msra.mxu0 0.0
  %490 = vmatpush.msra.mxu0 0.0
  %491 = vmatpush.msra.mxu0 0.0
  %492 = vmatpush.msra.mxu0 0.0
  %493 = vmatpush.msra.mxu0 0.0
  %494 = vmatpush.msra.mxu0 0.0
  %495 = vmatpush.msra.mxu0 0.0
  %496 = vmatpush.msra.mxu0 %v174
  %497 = vmatpush.msra.mxu0 %v173
  %498 = vmatpush.msra.mxu0 %v172
  %499 = vmatpush.msra.mxu0 %v171
  %500 = vmatpush.msra.mxu0 %v170
  %501 = vmatpush.msra.mxu0 %v169
  %502 = vmatpush.msra.mxu0 %v168
  %503 = vmatpush.msra.mxu0 %v167
  %504 = vmatmul.f32.gmra.mxu0 %v181
  %v505 = vpop.f32.mrf.mxu0
  %v506 = vadd.f32 %v441, %v505
  %507 = vmatmul.f32.gmra.mxu0 %v184
  %v508 = vpop.f32.mrf.mxu0
  %v509 = vadd.f32 %v444, %v508
  %510 = vmatmul.f32.gmra.mxu0 %v187
  %v511 = vpop.f32.mrf.mxu0
  %v512 = vadd.f32 %v447, %v511
  %513 = vmatmul.f32.gmra.mxu0 %v190
  %v514 = vpop.f32.mrf.mxu0
  %v515 = vadd.f32 %v450, %v514
  %516 = vmatmul.f32.gmra.mxu0 %v193
  %v517 = vpop.f32.mrf.mxu0
  %v518 = vadd.f32 %v453, %v517
  %519 = vmatmul.f32.gmra.mxu0 %v196
  %v520 = vpop.f32.mrf.mxu0
  %v521 = vadd.f32 %v456, %v520
  %522 = vmatmul.f32.gmra.mxu0 %v199
  %v523 = vpop.f32.mrf.mxu0
  %v524 = vadd.f32 %v459, %v523
  %525 = vmatmul.f32.gmra.mxu0 %v202
  %v526 = vpop.f32.mrf.mxu0
  %v527 = vadd.f32 %v462, %v526
  %528 = vmatmul.f32.gmra.mxu0 %v205
  %v529 = vpop.f32.mrf.mxu0
  %v530 = vadd.f32 %v465, %v529
  %531 = vmatmul.f32.gmra.mxu0 %v208
  %v532 = vpop.f32.mrf.mxu0
  %v533 = vadd.f32 %v468, %v532
  %534 = vmatmul.f32.gmra.mxu0 %v211
  %v535 = vpop.f32.mrf.mxu0
  %v536 = vadd.f32 %v471, %v535
  %537 = vmatmul.f32.gmra.mxu0 %v214
  %v538 = vpop.f32.mrf.mxu0
  %v539 = vadd.f32 %v474, %v538
  %540 = vmatmul.f32.gmra.mxu0 %v217
  %v541 = vpop.f32.mrf.mxu0
  %v542 = vadd.f32 %v477, %v541
  %543 = vmatmul.f32.gmra.mxu0 %v220
  %v544 = vpop.f32.mrf.mxu0
  %v545 = vadd.f32 %v480, %v544
  %546 = vmatmul.f32.gmra.mxu0 %v223
  %v547 = vpop.f32.mrf.mxu0
  %v548 = vadd.f32 %v483, %v547
  %549 = vmatmul.f32.gmra.mxu0 %v226
  %v550 = vpop.f32.mrf.mxu0
  %v551 = vadd.f32 %v486, %v550
  %552 = vdwg.mxu0
  %v553 = vadd.f32 %v506, %v509
  %v554 = vadd.f32 %v553, %v512
  %v555 = vadd.f32 %v554, %v515
  %v556 = vadd.f32 %v555, %v518
  %v557 = vadd.f32 %v556, %v521
  %v558 = vadd.f32 %v557, %v524
  %v559 = vadd.f32 %v558, %v527
  %v560 = vadd.f32 %v559, %v530
  %v561 = vadd.f32 %v560, %v533
  %v562 = vadd.f32 %v561, %v536
  %v563 = vadd.f32 %v562, %v539
  %v564 = vadd.f32 %v563, %v542
  %v565 = vadd.f32 %v564, %v545
  %v566 = vadd.f32 %v565, %v548
  %v567 = vadd.f32 %v566, %v551
  %v568 = vrot.slane %v567, 4
  %v569 = vadd.f32 %v567, %v568
  %v570 = vrot.slane %v569, 2
  %v571 = vadd.f32 %v569, %v570
  %v572 = vrot.slane %v571, 1
  %v573 = vadd.f32 %v571, %v572
  %v574 = vld [vmem:[%s5] sm:$0xff]
  %v575 = vld [vmem:[%s5 + $0x8] sm:$0xff]
  %v576 = vld [vmem:[%s5 + $0x10] sm:$0xff]
  %v577 = vld [vmem:[%s5 + $0x18] sm:$0xff]
  %v578 = vld [vmem:[%s5 + $0x20] sm:$0xff]
  %v579 = vld [vmem:[%s5 + $0x28] sm:$0xff]
  %v580 = vld [vmem:[%s5 + $0x30] sm:$0xff]
  %v581 = vld [vmem:[%s5 + $0x38] sm:$0xff]
  %v582 = vld [vmem:[%s5 + $0x40] sm:$0xff]
  %v583 = vld [vmem:[%s5 + $0x48] sm:$0xff]
  %v584 = vld [vmem:[%s5 + $0x50] sm:$0xff]
  %v585 = vld [vmem:[%s5 + $0x58] sm:$0xff]
  %v586 = vld [vmem:[%s5 + $0x60] sm:$0xff]
  %v587 = vld [vmem:[%s5 + $0x68] sm:$0xff]
  %v588 = vld [vmem:[%s5 + $0x70] sm:$0xff]
  %v589 = vld [vmem:[%s5 + $0x78] sm:$0xff]
  %590 = vmatpush.msra.mxu0 %v589
  %591 = vmatpush.msra.mxu0 %v588
  %592 = vmatpush.msra.mxu0 %v587
  %593 = vmatpush.msra.mxu0 %v586
  %594 = vmatpush.msra.mxu0 %v585
  %595 = vmatpush.msra.mxu0 %v584
  %596 = vmatpush.msra.mxu0 %v583
  %597 = vmatpush.msra.mxu0 %v582
  %598 = vmatpush.msra.mxu0 %v581
  %599 = vmatpush.msra.mxu0 %v580
  %600 = vmatpush.msra.mxu0 %v579
  %601 = vmatpush.msra.mxu0 %v578
  %602 = vmatpush.msra.mxu0 %v577
  %603 = vmatpush.msra.mxu0 %v576
  %604 = vmatpush.msra.mxu0 %v575
  %605 = vmatpush.msra.mxu0 %v574
  %606 = vmatmul.f32.gmra.mxu0 %v573
  %v607 = vpop.f32.mrf.mxu0
  %v608 = vadd.f32 0.0, %v607
  %609 = vdwg.mxu0
  %v610 = vrcp.pop 512.0
  %v611 = vmul.f32 512.0, %v610
  %v612 = vsub.f32 1.0, %v611
  %v613 = vmul.f32 %v610, %v612
  %v614 = vadd.f32 %v610, %v613
  %vm615 = vweird.f32 %v610
  %v616 = vsel %vm615, %v610, %v614
  %v617 = vmul.f32 %v608, %v616
  %v618 = vperm.slane %v617, 0
  %v619 = vsub.f32 %v506, %v618
  %v620 = vsub.f32 %v509, %v618
  %v621 = vsub.f32 %v512, %v618
  %v622 = vsub.f32 %v515, %v618
  %v623 = vsub.f32 %v518, %v618
  %v624 = vsub.f32 %v521, %v618
  %v625 = vsub.f32 %v524, %v618
  %v626 = vsub.f32 %v527, %v618
  %v627 = vsub.f32 %v530, %v618
  %v628 = vsub.f32 %v533, %v618
  %v629 = vsub.f32 %v536, %v618
  %v630 = vsub.f32 %v539, %v618
  %v631 = vsub.f32 %v542, %v618
  %v632 = vsub.f32 %v545, %v618
  %v633 = vsub.f32 %v548, %v618
  %v634 = vsub.f32 %v551, %v618
  %v635 = vmul.f32 %v619, %v619
  %v636 = vmul.f32 %v620, %v620
  %v637 = vmul.f32 %v621, %v621
  %v638 = vmul.f32 %v622, %v622
  %v639 = vmul.f32 %v623, %v623
  %v640 = vmul.f32 %v624, %v624
  %v641 = vmul.f32 %v625, %v625
  %v642 = vmul.f32 %v626, %v626
  %v643 = vmul.f32 %v627, %v627
  %v644 = vmul.f32 %v628, %v628
  %v645 = vmul.f32 %v629, %v629
  %v646 = vmul.f32 %v630, %v630
  %v647 = vmul.f32 %v631, %v631
  %v648 = vmul.f32 %v632, %v632
  %v649 = vmul.f32 %v633, %v633
  %v650 = vmul.f32 %v634, %v634
  %v651 = vadd.f32 %v635, %v636
  %v652 = vadd.f32 %v651, %v637
  %v653 = vadd.f32 %v652, %v638
  %v654 = vadd.f32 %v653, %v639
  %v655 = vadd.f32 %v654, %v640
  %v656 = vadd.f32 %v655, %v641
  %v657 = vadd.f32 %v656, %v642
  %v658 = vadd.f32 %v657, %v643
  %v659 = vadd.f32 %v658, %v644
  %v660 = vadd.f32 %v659, %v645
  %v661 = vadd.f32 %v660, %v646
  %v662 = vadd.f32 %v661, %v647
  %v663 = vadd.f32 %v662, %v648
  %v664 = vadd.f32 %v663, %v649
  %v665 = vadd.f32 %v664, %v650
  %v666 = vrot.slane %v665, 4
  %v667 = vadd.f32 %v665, %v666
  %v668 = vrot.slane %v667, 2
  %v669 = vadd.f32 %v667, %v668
  %v670 = vrot.slane %v669, 1
  %v671 = vadd.f32 %v669, %v670
  %672 = vmatpush.msra.mxu0 %v589
  %673 = vmatpush.msra.mxu0 %v588
  %674 = vmatpush.msra.mxu0 %v587
  %675 = vmatpush.msra.mxu0 %v586
  %676 = vmatpush.msra.mxu0 %v585
  %677 = vmatpush.msra.mxu0 %v584
  %678 = vmatpush.msra.mxu0 %v583
  %679 = vmatpush.msra.mxu0 %v582
  %680 = vmatpush.msra.mxu0 %v581
  %681 = vmatpush.msra.mxu0 %v580
  %682 = vmatpush.msra.mxu0 %v579
  %683 = vmatpush.msra.mxu0 %v578
  %684 = vmatpush.msra.mxu0 %v577
  %685 = vmatpush.msra.mxu0 %v576
  %686 = vmatpush.msra.mxu0 %v575
  %687 = vmatpush.msra.mxu0 %v574
  %688 = vmatmul.f32.gmra.mxu0 %v671
  %v689 = vpop.f32.mrf.mxu0
  %v690 = vadd.f32 0.0, %v689
  %691 = vdwg.mxu0
  %v692 = vmul.f32 %v690, %v616
  %v693 = vld [vmem:[%s3] sm:$0x1]
  %v694 = vadd.f32 %v692, 1e-05
  %v695 = vrsqrt.pop %v694
  %v696 = vmul.f32 %v695, %v694
  %v697 = vmul.f32 %v696, %v695
  %v698 = vmul.f32 0.5, %v697
  %v699 = vsub.f32 1.5, %v698
  %v700 = vmul.f32 %v695, %v699
  %vm701 = vweird.f32 %v694
  %vm702 = vweird.f32 %v695
  %vm703 = vmor %vm701, %vm702
  %v704 = vsel %vm703, %v695, %v700
  %v705 = vmul.f32 %v693, %v704
  %v706 = vld [vmem:[%s4] sm:$0x1]
  %v707 = vmul.f32 %v617, %v705
  %v708 = vsub.f32 %v706, %v707
  %v710 = vperm.slane %v705, 0
  %v712 = vmul.f32 %v506, %v710
  %v713 = vmul.f32 %v509, %v710
  %v714 = vmul.f32 %v512, %v710
  %v715 = vmul.f32 %v515, %v710
  %v716 = vmul.f32 %v518, %v710
  %v717 = vmul.f32 %v521, %v710
  %v718 = vmul.f32 %v524, %v710
  %v719 = vmul.f32 %v527, %v710
  %v720 = vmul.f32 %v530, %v710
  %v721 = vmul.f32 %v533, %v710
  %v722 = vmul.f32 %v536, %v710
  %v723 = vmul.f32 %v539, %v710
  %v724 = vmul.f32 %v542, %v710
  %v725 = vmul.f32 %v545, %v710
  %v726 = vmul.f32 %v548, %v710
  %v727 = vmul.f32 %v551, %v710
  %v729 = vperm.slane %v708, 0
  %v731 = vadd.f32 %v712, %v729
  %v732 = vadd.f32 %v713, %v729
  %v733 = vadd.f32 %v714, %v729
  %v734 = vadd.f32 %v715, %v729
  %v735 = vadd.f32 %v716, %v729
  %v736 = vadd.f32 %v717, %v729
  %v737 = vadd.f32 %v718, %v729
  %v738 = vadd.f32 %v719, %v729
  %v739 = vadd.f32 %v720, %v729
  %v740 = vadd.f32 %v721, %v729
  %v741 = vadd.f32 %v722, %v729
  %v742 = vadd.f32 %v723, %v729
  %v743 = vadd.f32 %v724, %v729
  %v744 = vadd.f32 %v725, %v729
  %v745 = vadd.f32 %v726, %v729
  %v746 = vadd.f32 %v727, %v729
  %747 = vst [vmem:[%s6] sm:$0xff] %v731
  %748 = vst [vmem:[%s6 + $0x8] sm:$0xff] %v732
  %749 = vst [vmem:[%s6 + $0x10] sm:$0xff] %v733
  %750 = vst [vmem:[%s6 + $0x18] sm:$0xff] %v734
  %751 = vst [vmem:[%s6 + $0x20] sm:$0xff] %v735
  %752 = vst [vmem:[%s6 + $0x28] sm:$0xff] %v736
  %753 = vst [vmem:[%s6 + $0x30] sm:$0xff] %v737
  %754 = vst [vmem:[%s6 + $0x38] sm:$0xff] %v738
  %755 = vst [vmem:[%s6 + $0x40] sm:$0xff] %v739
  %756 = vst [vmem:[%s6 + $0x48] sm:$0xff] %v740
  %757 = vst [vmem:[%s6 + $0x50] sm:$0xff] %v741
  %758 = vst [vmem:[%s6 + $0x58] sm:$0xff] %v742
  %759 = vst [vmem:[%s6 + $0x60] sm:$0xff] %v743
  %760 = vst [vmem:[%s6 + $0x68] sm:$0xff] %v744
  %761 = vst [vmem:[%s6 + $0x70] sm:$0xff] %v745
  %762 = vst [vmem:[%s6 + $0x78] sm:$0xff] %v746
  // Predicated region
  $region26: #{decoder_forward.9} parent=0 // pred_check
    _
  $region27: #{decoder_forward.9} parent=0 // pred_check_branch
    %764 = sbr.rel (0) target = $region29
  $region28: #{decoder_forward.9} parent=0 // pred_region
    _
  $region29: #{decoder_forward.9} parent=0 // pred_fallthru
    _
  // Predicated region
  $region30: #{decoder_forward.9} parent=0 // pred_check
    _
  $region31: #{decoder_forward.9} parent=0 // pred_check_branch
    %766 = sbr.rel (0) target = $region33
  $region32: #{decoder_forward.9} parent=0 // pred_region
    _
  $region33: #{decoder_forward.9} parent=0 // pred_fallthru
    _

// kernel: decoder_forward.10
$region0: #{decoder_forward.10}
  #allocation0 [shape = 'u32[]', space=smem, size = 0x4, offset = 0x4, fixed_abs, tag = 'smem constant byte address 0x4 - core index']
  #allocation1 [shape = 'u32[72,128]{1,0:T(1,128)}', space=vmem, size = 0x9000, scoped, tag = 'internal scratch']
  %s0 = inlined_call_operand.vmem [shape: f32[512,288], index: 0, kind: input, shape index: {}]
  %s1 = inlined_call_operand.vmem [shape: f32[288,128], index: 1, kind: input, shape index: {}]
  %s2 = inlined_call_operand.vmem [shape: f32[1,128], index: 2, kind: input, shape index: {}]
  %s3 = inlined_call_operand.vmem [shape: f32[1,128], index: 3, kind: input, shape index: {}]
  %s4 = inlined_call_operand.vmem [shape: f32[1,128], index: 4, kind: input, shape index: {}]
  %s5 = inlined_call_operand.vmem [shape: f32[128,128], index: 5, kind: input, shape index: {}]
  %s6 = inlined_call_operand.vmem [shape: f32[512,128], index: 6, kind: output, shape index: {}]
  %s7 = sld [smem:[#allocation0]]
  $region34: #{decoder_forward.10} parent=0
    _
  %s9 = ssub.s32 1, %s7
  %s10 = scalar_select 0, %s9, %s7
  // Predicated region
  $region2: #{decoder_forward.10} parent=0 // pred_check
    _
  $region3: #{decoder_forward.10} parent=0 // pred_check_branch
    %12 = sbr.rel (0) target = $region5
  $region4: #{decoder_forward.10} parent=0 // pred_region
    _
  $region5: #{decoder_forward.10} parent=0 // pred_fallthru
    _
  // Predicated region
  $region6: #{decoder_forward.10} parent=0 // pred_check
    _
  $region7: #{decoder_forward.10} parent=0 // pred_check_branch
    %14 = sbr.rel (0) target = $region9
  $region8: #{decoder_forward.10} parent=0 // pred_region
    _
  $region9: #{decoder_forward.10} parent=0 // pred_fallthru
    _
  // Predicated region
  $region10: #{decoder_forward.10} parent=0 // pred_check
    _
  $region11: #{decoder_forward.10} parent=0 // pred_check_branch
    %16 = sbr.rel (0) target = $region13
  $region12: #{decoder_forward.10} parent=0 // pred_region
    _
  $region13: #{decoder_forward.10} parent=0 // pred_fallthru
    _
  // Predicated region
  $region14: #{decoder_forward.10} parent=0 // pred_check
    _
  $region15: #{decoder_forward.10} parent=0 // pred_check_branch
    %18 = sbr.rel (0) target = $region17
  $region16: #{decoder_forward.10} parent=0 // pred_region
    _
  $region17: #{decoder_forward.10} parent=0 // pred_fallthru
    _
  // Predicated region
  $region18: #{decoder_forward.10} parent=0 // pred_check
    _
  $region19: #{decoder_forward.10} parent=0 // pred_check_branch
    %20 = sbr.rel (0) target = $region21
  $region20: #{decoder_forward.10} parent=0 // pred_region
    _
  $region21: #{decoder_forward.10} parent=0 // pred_fallthru
    _
  // Predicated region
  $region22: #{decoder_forward.10} parent=0 // pred_check
    _
  $region23: #{decoder_forward.10} parent=0 // pred_check_branch
    %22 = sbr.rel (0) target = $region25
  $region24: #{decoder_forward.10} parent=0 // pred_region
    _
  $region25: #{decoder_forward.10} parent=0 // pred_fallthru
    _
  %v23 = vld [vmem:[%s0] sm:$0xff]
  %v24 = vld [vmem:[%s0 + $0x8] sm:$0xff]
  %v25 = vld [vmem:[%s0 + $0x10] sm:$0xff]
  %v26 = vld [vmem:[%s0 + $0x18] sm:$0xff]
  %v27 = vld [vmem:[%s0 + $0x20] sm:$0xff]
  %v28 = vld [vmem:[%s0 + $0x28] sm:$0xff]
  %v29 = vld [vmem:[%s0 + $0x30] sm:$0xff]
  %v30 = vld [vmem:[%s0 + $0x38] sm:$0xff]
  %v31 = vld [vmem:[%s0 + $0x40] sm:$0xff]
  %v32 = vld [vmem:[%s0 + $0x48] sm:$0xff]
  %v33 = vld [vmem:[%s0 + $0x50] sm:$0xff]
  %v34 = vld [vmem:[%s0 + $0x58] sm:$0xff]
  %v35 = vld [vmem:[%s0 + $0x60] sm:$0xff]
  %v36 = vld [vmem:[%s0 + $0x68] sm:$0xff]
  %v37 = vld [vmem:[%s0 + $0x70] sm:$0xff]
  %v38 = vld [vmem:[%s0 + $0x78] sm:$0xff]
  %v39 = vld [vmem:[%s0 + $0x80] sm:$0xff]
  %v40 = vld [vmem:[%s0 + $0x88] sm:$0xff]
  %v41 = vld [vmem:[%s0 + $0x90] sm:$0xff]
  %v42 = vld [vmem:[%s0 + $0x98] sm:$0xff]
  %v43 = vld [vmem:[%s0 + $0xa0] sm:$0xff]
  %v44 = vld [vmem:[%s0 + $0xa8] sm:$0xff]
  %v45 = vld [vmem:[%s0 + $0xb0] sm:$0xff]
  %v46 = vld [vmem:[%s0 + $0xb8] sm:$0xff]
  %v47 = vld [vmem:[%s0 + $0xc0] sm:$0xff]
  %v48 = vld [vmem:[%s0 + $0xc8] sm:$0xff]
  %v49 = vld [vmem:[%s0 + $0xd0] sm:$0xff]
  %v50 = vld [vmem:[%s0 + $0xd8] sm:$0xff]
  %v51 = vld [vmem:[%s0 + $0xe0] sm:$0xff]
  %v52 = vld [vmem:[%s0 + $0xe8] sm:$0xff]
  %v53 = vld [vmem:[%s0 + $0xf0] sm:$0xff]
  %v54 = vld [vmem:[%s0 + $0xf8] sm:$0xff]
  %v55 = vld [vmem:[%s0 + $0x100] sm:$0xff]
  %v56 = vld [vmem:[%s0 + $0x108] sm:$0xff]
  %v57 = vld [vmem:[%s0 + $0x110] sm:$0xff]
  %v58 = vld [vmem:[%s0 + $0x118] sm:$0xff]
  %v59 = vld [vmem:[%s0 + $0x120] sm:$0xff]
  %v60 = vld [vmem:[%s0 + $0x128] sm:$0xff]
  %v61 = vld [vmem:[%s0 + $0x130] sm:$0xff]
  %v62 = vld [vmem:[%s0 + $0x138] sm:$0xff]
  %v63 = vld [vmem:[%s0 + $0x140] sm:$0xff]
  %v64 = vld [vmem:[%s0 + $0x148] sm:$0xff]
  %v65 = vld [vmem:[%s0 + $0x150] sm:$0xff]
  %v66 = vld [vmem:[%s0 + $0x158] sm:$0xff]
  %v67 = vld [vmem:[%s0 + $0x160] sm:$0xff]
  %v68 = vld [vmem:[%s0 + $0x168] sm:$0xff]
  %v69 = vld [vmem:[%s0 + $0x170] sm:$0xff]
  %v70 = vld [vmem:[%s0 + $0x178] sm:$0xff]
  %v71 = vld [vmem:[%s0 + $0x180] sm:$0xff]
  %v72 = vld [vmem:[%s0 + $0x188] sm:$0xff]
  %v73 = vld [vmem:[%s0 + $0x190] sm:$0xff]
  %v74 = vld [vmem:[%s0 + $0x198] sm:$0xff]
  %v75 = vld [vmem:[%s0 + $0x1a0] sm:$0xff]
  %v76 = vld [vmem:[%s0 + $0x1a8] sm:$0xff]
  %v77 = vld [vmem:[%s0 + $0x1b0] sm:$0xff]
  %v78 = vld [vmem:[%s0 + $0x1b8] sm:$0xff]
  %v79 = vld [vmem:[%s0 + $0x1c0] sm:$0xff]
  %v80 = vld [vmem:[%s0 + $0x1c8] sm:$0xff]
  %v81 = vld [vmem:[%s0 + $0x1d0] sm:$0xff]
  %v82 = vld [vmem:[%s0 + $0x1d8] sm:$0xff]
  %v83 = vld [vmem:[%s0 + $0x1e0] sm:$0xff]
  %v84 = vld [vmem:[%s0 + $0x1e8] sm:$0xff]
  %v85 = vld [vmem:[%s0 + $0x1f0] sm:$0xff]
  %v86 = vld [vmem:[%s0 + $0x1f8] sm:$0xff]
  %v87 = vld [vmem:[%s0 + $0x200] sm:$0xff]
  %v88 = vld [vmem:[%s0 + $0x208] sm:$0xff]
  %v89 = vld [vmem:[%s0 + $0x210] sm:$0xff]
  %v90 = vld [vmem:[%s0 + $0x218] sm:$0xff]
  %v91 = vld [vmem:[%s0 + $0x220] sm:$0xff]
  %v92 = vld [vmem:[%s0 + $0x228] sm:$0xff]
  %v93 = vld [vmem:[%s0 + $0x230] sm:$0xff]
  %v94 = vld [vmem:[%s0 + $0x238] sm:$0xff]
  %v95 = vld [vmem:[%s0 + $0x240] sm:$0xff]
  %v96 = vld [vmem:[%s0 + $0x248] sm:$0xff]
  %v97 = vld [vmem:[%s0 + $0x250] sm:$0xff]
  %v98 = vld [vmem:[%s0 + $0x258] sm:$0xff]
  %v99 = vld [vmem:[%s0 + $0x260] sm:$0xff]
  %v100 = vld [vmem:[%s0 + $0x268] sm:$0xff]
  %v101 = vld [vmem:[%s0 + $0x270] sm:$0xff]
  %v102 = vld [vmem:[%s0 + $0x278] sm:$0xff]
  %v103 = vld [vmem:[%s0 + $0x280] sm:$0xff]
  %v104 = vld [vmem:[%s0 + $0x288] sm:$0xff]
  %v105 = vld [vmem:[%s0 + $0x290] sm:$0xff]
  %v106 = vld [vmem:[%s0 + $0x298] sm:$0xff]
  %v107 = vld [vmem:[%s0 + $0x2a0] sm:$0xff]
  %v108 = vld [vmem:[%s0 + $0x2a8] sm:$0xff]
  %v109 = vld [vmem:[%s0 + $0x2b0] sm:$0xff]
  %v110 = vld [vmem:[%s0 + $0x2b8] sm:$0xff]
  %v111 = vld [vmem:[%s0 + $0x2c0] sm:$0xff]
  %v112 = vld [vmem:[%s0 + $0x2c8] sm:$0xff]
  %v113 = vld [vmem:[%s0 + $0x2d0] sm:$0xff]
  %v114 = vld [vmem:[%s0 + $0x2d8] sm:$0xff]
  %v115 = vld [vmem:[%s0 + $0x2e0] sm:$0xff]
  %v116 = vld [vmem:[%s0 + $0x2e8] sm:$0xff]
  %v117 = vld [vmem:[%s0 + $0x2f0] sm:$0xff]
  %v118 = vld [vmem:[%s0 + $0x2f8] sm:$0xff]
  %v119 = vld [vmem:[%s0 + $0x300] sm:$0xff]
  %v120 = vld [vmem:[%s0 + $0x308] sm:$0xff]
  %v121 = vld [vmem:[%s0 + $0x310] sm:$0xff]
  %v122 = vld [vmem:[%s0 + $0x318] sm:$0xff]
  %v123 = vld [vmem:[%s0 + $0x320] sm:$0xff]
  %v124 = vld [vmem:[%s0 + $0x328] sm:$0xff]
  %v125 = vld [vmem:[%s0 + $0x330] sm:$0xff]
  %v126 = vld [vmem:[%s0 + $0x338] sm:$0xff]
  %v127 = vld [vmem:[%s0 + $0x340] sm:$0xff]
  %v128 = vld [vmem:[%s0 + $0x348] sm:$0xff]
  %v129 = vld [vmem:[%s0 + $0x350] sm:$0xff]
  %v130 = vld [vmem:[%s0 + $0x358] sm:$0xff]
  %v131 = vld [vmem:[%s0 + $0x360] sm:$0xff]
  %v132 = vld [vmem:[%s0 + $0x368] sm:$0xff]
  %v133 = vld [vmem:[%s0 + $0x370] sm:$0xff]
  %v134 = vld [vmem:[%s0 + $0x378] sm:$0xff]
  %v135 = vld [vmem:[%s0 + $0x380] sm:$0xff]
  %v136 = vld [vmem:[%s0 + $0x388] sm:$0xff]
  %v137 = vld [vmem:[%s0 + $0x390] sm:$0xff]
  %v138 = vld [vmem:[%s0 + $0x398] sm:$0xff]
  %v139 = vld [vmem:[%s0 + $0x3a0] sm:$0xff]
  %v140 = vld [vmem:[%s0 + $0x3a8] sm:$0xff]
  %v141 = vld [vmem:[%s0 + $0x3b0] sm:$0xff]
  %v142 = vld [vmem:[%s0 + $0x3b8] sm:$0xff]
  %v143 = vld [vmem:[%s0 + $0x3c0] sm:$0xff]
  %v144 = vld [vmem:[%s0 + $0x3c8] sm:$0xff]
  %v145 = vld [vmem:[%s0 + $0x3d0] sm:$0xff]
  %v146 = vld [vmem:[%s0 + $0x3d8] sm:$0xff]
  %v147 = vld [vmem:[%s0 + $0x3e0] sm:$0xff]
  %v148 = vld [vmem:[%s0 + $0x3e8] sm:$0xff]
  %v149 = vld [vmem:[%s0 + $0x3f0] sm:$0xff]
  %v150 = vld [vmem:[%s0 + $0x3f8] sm:$0xff]
  %v151 = vld [vmem:[%s0 + $0x400] sm:$0xff]
  %v152 = vld [vmem:[%s0 + $0x408] sm:$0xff]
  %v153 = vld [vmem:[%s0 + $0x410] sm:$0xff]
  %v154 = vld [vmem:[%s0 + $0x418] sm:$0xff]
  %v155 = vld [vmem:[%s0 + $0x420] sm:$0xff]
  %v156 = vld [vmem:[%s0 + $0x428] sm:$0xff]
  %v157 = vld [vmem:[%s0 + $0x430] sm:$0xff]
  %v158 = vld [vmem:[%s0 + $0x438] sm:$0xff]
  %v159 = vld [vmem:[%s0 + $0x440] sm:$0xff]
  %v160 = vld [vmem:[%s0 + $0x448] sm:$0xff]
  %v161 = vld [vmem:[%s0 + $0x450] sm:$0xff]
  %v162 = vld [vmem:[%s0 + $0x458] sm:$0xff]
  %v163 = vld [vmem:[%s0 + $0x460] sm:$0xff]
  %v164 = vld [vmem:[%s0 + $0x468] sm:$0xff]
  %v165 = vld [vmem:[%s0 + $0x470] sm:$0xff]
  %v166 = vld [vmem:[%s0 + $0x478] sm:$0xff]
  %v167 = vld [vmem:[%s0 + $0x480] sm:$0xff]
  %v168 = vld [vmem:[%s0 + $0x488] sm:$0xff]
  %v169 = vld [vmem:[%s0 + $0x490] sm:$0xff]
  %v170 = vld [vmem:[%s0 + $0x498] sm:$0xff]
  %v171 = vld [vmem:[%s0 + $0x4a0] sm:$0xff]
  %v172 = vld [vmem:[%s0 + $0x4a8] sm:$0xff]
  %v173 = vld [vmem:[%s0 + $0x4b0] sm:$0xff]
  %v174 = vld [vmem:[%s0 + $0x4b8] sm:$0xff]
  %v175 = vld [vmem:[%s0 + $0x4c0] sm:$0xff]
  %v176 = vld [vmem:[%s0 + $0x4c8] sm:$0xff]
  %v177 = vld [vmem:[%s0 + $0x4d0] sm:$0xff]
  %v178 = vld [vmem:[%s0 + $0x4d8] sm:$0xff]
  %v179 = vld [vmem:[%s0 + $0x4e0] sm:$0xff]
  %v180 = vld [vmem:[%s0 + $0x4e8] sm:$0xff]
  %v181 = vld [vmem:[%s0 + $0x4f0] sm:$0xff]
  %v182 = vld [vmem:[%s0 + $0x4f8] sm:$0xff]
  %v183 = vld [vmem:[%s0 + $0x500] sm:$0xff]
  %v184 = vld [vmem:[%s0 + $0x508] sm:$0xff]
  %v185 = vld [vmem:[%s0 + $0x510] sm:$0xff]
  %v186 = vld [vmem:[%s0 + $0x518] sm:$0xff]
  %v187 = vld [vmem:[%s0 + $0x520] sm:$0xff]
  %v188 = vld [vmem:[%s0 + $0x528] sm:$0xff]
  %v189 = vld [vmem:[%s0 + $0x530] sm:$0xff]
  %v190 = vld [vmem:[%s0 + $0x538] sm:$0xff]
  %v191 = vld [vmem:[%s0 + $0x540] sm:$0xff]
  %v192 = vld [vmem:[%s0 + $0x548] sm:$0xff]
  %v193 = vld [vmem:[%s0 + $0x550] sm:$0xff]
  %v194 = vld [vmem:[%s0 + $0x558] sm:$0xff]
  %v195 = vld [vmem:[%s0 + $0x560] sm:$0xff]
  %v196 = vld [vmem:[%s0 + $0x568] sm:$0xff]
  %v197 = vld [vmem:[%s0 + $0x570] sm:$0xff]
  %v198 = vld [vmem:[%s0 + $0x578] sm:$0xff]
  %v199 = vld [vmem:[%s0 + $0x580] sm:$0xff]
  %v200 = vld [vmem:[%s0 + $0x588] sm:$0xff]
  %v201 = vld [vmem:[%s0 + $0x590] sm:$0xff]
  %v202 = vld [vmem:[%s0 + $0x598] sm:$0xff]
  %v203 = vld [vmem:[%s0 + $0x5a0] sm:$0xff]
  %v204 = vld [vmem:[%s0 + $0x5a8] sm:$0xff]
  %v205 = vld [vmem:[%s0 + $0x5b0] sm:$0xff]
  %v206 = vld [vmem:[%s0 + $0x5b8] sm:$0xff]
  %v207 = vld [vmem:[%s0 + $0x5c0] sm:$0xff]
  %v208 = vld [vmem:[%s0 + $0x5c8] sm:$0xff]
  %v209 = vld [vmem:[%s0 + $0x5d0] sm:$0xff]
  %v210 = vld [vmem:[%s0 + $0x5d8] sm:$0xff]
  %v211 = vld [vmem:[%s0 + $0x5e0] sm:$0xff]
  %v212 = vld [vmem:[%s0 + $0x5e8] sm:$0xff]
  %v213 = vld [vmem:[%s0 + $0x5f0] sm:$0xff]
  %v214 = vld [vmem:[%s0 + $0x5f8] sm:$0xff]
  %v215 = vld [vmem:[%s1] sm:$0xff]
  %v216 = vld [vmem:[%s1 + $0x8] sm:$0xff]
  %v217 = vld [vmem:[%s1 + $0x10] sm:$0xff]
  %v218 = vld [vmem:[%s1 + $0x18] sm:$0xff]
  %v219 = vld [vmem:[%s1 + $0x20] sm:$0xff]
  %v220 = vld [vmem:[%s1 + $0x28] sm:$0xff]
  %v221 = vld [vmem:[%s1 + $0x30] sm:$0xff]
  %v222 = vld [vmem:[%s1 + $0x38] sm:$0xff]
  %v223 = vld [vmem:[%s1 + $0x40] sm:$0xff]
  %v224 = vld [vmem:[%s1 + $0x48] sm:$0xff]
  %v225 = vld [vmem:[%s1 + $0x50] sm:$0xff]
  %v226 = vld [vmem:[%s1 + $0x58] sm:$0xff]
  %v227 = vld [vmem:[%s1 + $0x60] sm:$0xff]
  %v228 = vld [vmem:[%s1 + $0x68] sm:$0xff]
  %v229 = vld [vmem:[%s1 + $0x70] sm:$0xff]
  %v230 = vld [vmem:[%s1 + $0x78] sm:$0xff]
  %v231 = vld [vmem:[%s1 + $0x80] sm:$0xff]
  %v232 = vld [vmem:[%s1 + $0x88] sm:$0xff]
  %v233 = vld [vmem:[%s1 + $0x90] sm:$0xff]
  %v234 = vld [vmem:[%s1 + $0x98] sm:$0xff]
  %v235 = vld [vmem:[%s1 + $0xa0] sm:$0xff]
  %v236 = vld [vmem:[%s1 + $0xa8] sm:$0xff]
  %v237 = vld [vmem:[%s1 + $0xb0] sm:$0xff]
  %v238 = vld [vmem:[%s1 + $0xb8] sm:$0xff]
  %v239 = vld [vmem:[%s1 + $0xc0] sm:$0xff]
  %v240 = vld [vmem:[%s1 + $0xc8] sm:$0xff]
  %v241 = vld [vmem:[%s1 + $0xd0] sm:$0xff]
  %v242 = vld [vmem:[%s1 + $0xd8] sm:$0xff]
  %v243 = vld [vmem:[%s1 + $0xe0] sm:$0xff]
  %v244 = vld [vmem:[%s1 + $0xe8] sm:$0xff]
  %v245 = vld [vmem:[%s1 + $0xf0] sm:$0xff]
  %v246 = vld [vmem:[%s1 + $0xf8] sm:$0xff]
  %v247 = vld [vmem:[%s1 + $0x100] sm:$0xff]
  %v248 = vld [vmem:[%s1 + $0x108] sm:$0xff]
  %v249 = vld [vmem:[%s1 + $0x110] sm:$0xff]
  %v250 = vld [vmem:[%s1 + $0x118] sm:$0xff]
  %v251 = vld [vmem:[%s2] sm:$0x1]
  %v253 = vperm.slane %v251, 0
  %vm255 = vcmask 261120
  %v257 = vsel %vm255, %v25, 0
  %v260 = vsel %vm255, %v28, 0
  %v263 = vsel %vm255, %v31, 0
  %v266 = vsel %vm255, %v34, 0
  %v269 = vsel %vm255, %v37, 0
  %v272 = vsel %vm255, %v40, 0
  %v275 = vsel %vm255, %v43, 0
  %v278 = vsel %vm255, %v46, 0
  %v281 = vsel %vm255, %v49, 0
  %v284 = vsel %vm255, %v52, 0
  %v287 = vsel %vm255, %v55, 0
  %v290 = vsel %vm255, %v58, 0
  %v293 = vsel %vm255, %v61, 0
  %v296 = vsel %vm255, %v64, 0
  %v299 = vsel %vm255, %v67, 0
  %v302 = vsel %vm255, %v70, 0
  %v305 = vsel %vm255, %v73, 0
  %v308 = vsel %vm255, %v76, 0
  %v311 = vsel %vm255, %v79, 0
  %v314 = vsel %vm255, %v82, 0
  %v317 = vsel %vm255, %v85, 0
  %v320 = vsel %vm255, %v88, 0
  %v323 = vsel %vm255, %v91, 0
  %v326 = vsel %vm255, %v94, 0
  %v329 = vsel %vm255, %v97, 0
  %v332 = vsel %vm255, %v100, 0
  %v335 = vsel %vm255, %v103, 0
  %v338 = vsel %vm255, %v106, 0
  %v341 = vsel %vm255, %v109, 0
  %v344 = vsel %vm255, %v112, 0
  %v347 = vsel %vm255, %v115, 0
  %v350 = vsel %vm255, %v118, 0
  %v353 = vsel %vm255, %v121, 0
  %v356 = vsel %vm255, %v124, 0
  %v359 = vsel %vm255, %v127, 0
  %v362 = vsel %vm255, %v130, 0
  %v365 = vsel %vm255, %v133, 0
  %v368 = vsel %vm255, %v136, 0
  %v371 = vsel %vm255, %v139, 0
  %v374 = vsel %vm255, %v142, 0
  %v377 = vsel %vm255, %v145, 0
  %v380 = vsel %vm255, %v148, 0
  %v383 = vsel %vm255, %v151, 0
  %v386 = vsel %vm255, %v154, 0
  %v389 = vsel %vm255, %v157, 0
  %v392 = vsel %vm255, %v160, 0
  %v395 = vsel %vm255, %v163, 0
  %v398 = vsel %vm255, %v166, 0
  %v401 = vsel %vm255, %v169, 0
  %v404 = vsel %vm255, %v172, 0
  %v407 = vsel %vm255, %v175, 0
  %v410 = vsel %vm255, %v178, 0
  %v413 = vsel %vm255, %v181, 0
  %v416 = vsel %vm255, %v184, 0
  %v419 = vsel %vm255, %v187, 0
  %v422 = vsel %vm255, %v190, 0
  %v425 = vsel %vm255, %v193, 0
  %v428 = vsel %vm255, %v196, 0
  %v431 = vsel %vm255, %v199, 0
  %v434 = vsel %vm255, %v202, 0
  %v437 = vsel %vm255, %v205, 0
  %v440 = vsel %vm255, %v208, 0
  %v443 = vsel %vm255, %v211, 0
  %v446 = vsel %vm255, %v214, 0
  %448 = vmatpush.msra.mxu0 %v230
  %449 = vmatpush.msra.mxu0 %v229
  %450 = vmatpush.msra.mxu0 %v228
  %451 = vmatpush.msra.mxu0 %v227
  %452 = vmatpush.msra.mxu0 %v226
  %453 = vmatpush.msra.mxu0 %v225
  %454 = vmatpush.msra.mxu0 %v224
  %455 = vmatpush.msra.mxu0 %v223
  %456 = vmatpush.msra.mxu0 %v222
  %457 = vmatpush.msra.mxu0 %v221
  %458 = vmatpush.msra.mxu0 %v220
  %459 = vmatpush.msra.mxu0 %v219
  %460 = vmatpush.msra.mxu0 %v218
  %461 = vmatpush.msra.mxu0 %v217
  %462 = vmatpush.msra.mxu0 %v216
  %463 = vmatpush.msra.mxu0 %v215
  %464 = vmatmul.f32.gmra.mxu0 %v23
  %v465 = vpop.f32.mrf.mxu0
  %v466 = vadd.f32 %v253, %v465
  %467 = vmatmul.f32.gmra.mxu0 %v26
  %v468 = vpop.f32.mrf.mxu0
  %v469 = vadd.f32 %v253, %v468
  %470 = vmatmul.f32.gmra.mxu0 %v29
  %v471 = vpop.f32.mrf.mxu0
  %v472 = vadd.f32 %v253, %v471
  %473 = vmatmul.f32.gmra.mxu0 %v32
  %v474 = vpop.f32.mrf.mxu0
  %v475 = vadd.f32 %v253, %v474
  %476 = vmatmul.f32.gmra.mxu0 %v35
  %v477 = vpop.f32.mrf.mxu0
  %v478 = vadd.f32 %v253, %v477
  %479 = vmatmul.f32.gmra.mxu0 %v38
  %v480 = vpop.f32.mrf.mxu0
  %v481 = vadd.f32 %v253, %v480
  %482 = vmatmul.f32.gmra.mxu0 %v41
  %v483 = vpop.f32.mrf.mxu0
  %v484 = vadd.f32 %v253, %v483
  %485 = vmatmul.f32.gmra.mxu0 %v44
  %v486 = vpop.f32.mrf.mxu0
  %v487 = vadd.f32 %v253, %v486
  %488 = vmatmul.f32.gmra.mxu0 %v47
  %v489 = vpop.f32.mrf.mxu0
  %v490 = vadd.f32 %v253, %v489
  %491 = vmatmul.f32.gmra.mxu0 %v50
  %v492 = vpop.f32.mrf.mxu0
  %v493 = vadd.f32 %v253, %v492
  %494 = vmatmul.f32.gmra.mxu0 %v53
  %v495 = vpop.f32.mrf.mxu0
  %v496 = vadd.f32 %v253, %v495
  %497 = vmatmul.f32.gmra.mxu0 %v56
  %v498 = vpop.f32.mrf.mxu0
  %v499 = vadd.f32 %v253, %v498
  %500 = vmatmul.f32.gmra.mxu0 %v59
  %v501 = vpop.f32.mrf.mxu0
  %v502 = vadd.f32 %v253, %v501
  %503 = vmatmul.f32.gmra.mxu0 %v62
  %v504 = vpop.f32.mrf.mxu0
  %v505 = vadd.f32 %v253, %v504
  %506 = vmatmul.f32.gmra.mxu0 %v65
  %v507 = vpop.f32.mrf.mxu0
  %v508 = vadd.f32 %v253, %v507
  %509 = vmatmul.f32.gmra.mxu0 %v68
  %v510 = vpop.f32.mrf.mxu0
  %v511 = vadd.f32 %v253, %v510
  %512 = vmatmul.f32.gmra.mxu0 %v71
  %v513 = vpop.f32.mrf.mxu0
  %v514 = vadd.f32 %v253, %v513
  %515 = vmatmul.f32.gmra.mxu0 %v74
  %v516 = vpop.f32.mrf.mxu0
  %v517 = vadd.f32 %v253, %v516
  %518 = vmatmul.f32.gmra.mxu0 %v77
  %v519 = vpop.f32.mrf.mxu0
  %v520 = vadd.f32 %v253, %v519
  %521 = vmatmul.f32.gmra.mxu0 %v80
  %v522 = vpop.f32.mrf.mxu0
  %v523 = vadd.f32 %v253, %v522
  %524 = vmatmul.f32.gmra.mxu0 %v83
  %v525 = vpop.f32.mrf.mxu0
  %v526 = vadd.f32 %v253, %v525
  %527 = vmatmul.f32.gmra.mxu0 %v86
  %v528 = vpop.f32.mrf.mxu0
  %v529 = vadd.f32 %v253, %v528
  %530 = vmatmul.f32.gmra.mxu0 %v89
  %v531 = vpop.f32.mrf.mxu0
  %v532 = vadd.f32 %v253, %v531
  %533 = vmatmul.f32.gmra.mxu0 %v92
  %v534 = vpop.f32.mrf.mxu0
  %v535 = vadd.f32 %v253, %v534
  %536 = vmatmul.f32.gmra.mxu0 %v95
  %v537 = vpop.f32.mrf.mxu0
  %v538 = vadd.f32 %v253, %v537
  %539 = vmatmul.f32.gmra.mxu0 %v98
  %v540 = vpop.f32.mrf.mxu0
  %v541 = vadd.f32 %v253, %v540
  %542 = vmatmul.f32.gmra.mxu0 %v101
  %v543 = vpop.f32.mrf.mxu0
  %v544 = vadd.f32 %v253, %v543
  %545 = vmatmul.f32.gmra.mxu0 %v104
  %v546 = vpop.f32.mrf.mxu0
  %v547 = vadd.f32 %v253, %v546
  %548 = vmatmul.f32.gmra.mxu0 %v107
  %v549 = vpop.f32.mrf.mxu0
  %v550 = vadd.f32 %v253, %v549
  %551 = vmatmul.f32.gmra.mxu0 %v110
  %v552 = vpop.f32.mrf.mxu0
  %v553 = vadd.f32 %v253, %v552
  %554 = vmatmul.f32.gmra.mxu0 %v113
  %v555 = vpop.f32.mrf.mxu0
  %v556 = vadd.f32 %v253, %v555
  %557 = vmatmul.f32.gmra.mxu0 %v116
  %v558 = vpop.f32.mrf.mxu0
  %v559 = vadd.f32 %v253, %v558
  %560 = vmatmul.f32.gmra.mxu0 %v119
  %v561 = vpop.f32.mrf.mxu0
  %v562 = vadd.f32 %v253, %v561
  %563 = vmatmul.f32.gmra.mxu0 %v122
  %v564 = vpop.f32.mrf.mxu0
  %v565 = vadd.f32 %v253, %v564
  %566 = vmatmul.f32.gmra.mxu0 %v125
  %v567 = vpop.f32.mrf.mxu0
  %v568 = vadd.f32 %v253, %v567
  %569 = vmatmul.f32.gmra.mxu0 %v128
  %v570 = vpop.f32.mrf.mxu0
  %v571 = vadd.f32 %v253, %v570
  %572 = vmatmul.f32.gmra.mxu0 %v131
  %v573 = vpop.f32.mrf.mxu0
  %v574 = vadd.f32 %v253, %v573
  %575 = vmatmul.f32.gmra.mxu0 %v134
  %v576 = vpop.f32.mrf.mxu0
  %v577 = vadd.f32 %v253, %v576
  %578 = vmatmul.f32.gmra.mxu0 %v137
  %v579 = vpop.f32.mrf.mxu0
  %v580 = vadd.f32 %v253, %v579
  %581 = vmatmul.f32.gmra.mxu0 %v140
  %v582 = vpop.f32.mrf.mxu0
  %v583 = vadd.f32 %v253, %v582
  %584 = vmatmul.f32.gmra.mxu0 %v143
  %v585 = vpop.f32.mrf.mxu0
  %v586 = vadd.f32 %v253, %v585
  %587 = vmatmul.f32.gmra.mxu0 %v146
  %v588 = vpop.f32.mrf.mxu0
  %v589 = vadd.f32 %v253, %v588
  %590 = vmatmul.f32.gmra.mxu0 %v149
  %v591 = vpop.f32.mrf.mxu0
  %v592 = vadd.f32 %v253, %v591
  %593 = vmatmul.f32.gmra.mxu0 %v152
  %v594 = vpop.f32.mrf.mxu0
  %v595 = vadd.f32 %v253, %v594
  %596 = vmatmul.f32.gmra.mxu0 %v155
  %v597 = vpop.f32.mrf.mxu0
  %v598 = vadd.f32 %v253, %v597
  %599 = vmatmul.f32.gmra.mxu0 %v158
  %v600 = vpop.f32.mrf.mxu0
  %v601 = vadd.f32 %v253, %v600
  %602 = vmatmul.f32.gmra.mxu0 %v161
  %v603 = vpop.f32.mrf.mxu0
  %v604 = vadd.f32 %v253, %v603
  %605 = vmatmul.f32.gmra.mxu0 %v164
  %v606 = vpop.f32.mrf.mxu0
  %v607 = vadd.f32 %v253, %v606
  %608 = vmatmul.f32.gmra.mxu0 %v167
  %v609 = vpop.f32.mrf.mxu0
  %v610 = vadd.f32 %v253, %v609
  %611 = vmatmul.f32.gmra.mxu0 %v170
  %v612 = vpop.f32.mrf.mxu0
  %v613 = vadd.f32 %v253, %v612
  %614 = vmatmul.f32.gmra.mxu0 %v173
  %v615 = vpop.f32.mrf.mxu0
  %v616 = vadd.f32 %v253, %v615
  %617 = vmatmul.f32.gmra.mxu0 %v176
  %v618 = vpop.f32.mrf.mxu0
  %v619 = vadd.f32 %v253, %v618
  %620 = vmatmul.f32.gmra.mxu0 %v179
  %v621 = vpop.f32.mrf.mxu0
  %v622 = vadd.f32 %v253, %v621
  %623 = vmatmul.f32.gmra.mxu0 %v182
  %v624 = vpop.f32.mrf.mxu0
  %v625 = vadd.f32 %v253, %v624
  %626 = vmatmul.f32.gmra.mxu0 %v185
  %v627 = vpop.f32.mrf.mxu0
  %v628 = vadd.f32 %v253, %v627
  %629 = vmatmul.f32.gmra.mxu0 %v188
  %v630 = vpop.f32.mrf.mxu0
  %v631 = vadd.f32 %v253, %v630
  %632 = vmatmul.f32.gmra.mxu0 %v191
  %v633 = vpop.f32.mrf.mxu0
  %v634 = vadd.f32 %v253, %v633
  %635 = vmatmul.f32.gmra.mxu0 %v194
  %v636 = vpop.f32.mrf.mxu0
  %v637 = vadd.f32 %v253, %v636
  %638 = vmatmul.f32.gmra.mxu0 %v197
  %v639 = vpop.f32.mrf.mxu0
  %v640 = vadd.f32 %v253, %v639
  %641 = vmatmul.f32.gmra.mxu0 %v200
  %v642 = vpop.f32.mrf.mxu0
  %v643 = vadd.f32 %v253, %v642
  %644 = vmatmul.f32.gmra.mxu0 %v203
  %v645 = vpop.f32.mrf.mxu0
  %v646 = vadd.f32 %v253, %v645
  %647 = vmatmul.f32.gmra.mxu0 %v206
  %v648 = vpop.f32.mrf.mxu0
  %v649 = vadd.f32 %v253, %v648
  %650 = vmatmul.f32.gmra.mxu0 %v209
  %v651 = vpop.f32.mrf.mxu0
  %v652 = vadd.f32 %v253, %v651
  %653 = vmatmul.f32.gmra.mxu0 %v212
  %v654 = vpop.f32.mrf.mxu0
  %v655 = vadd.f32 %v253, %v654
  %656 = vdwg.mxu0
  %657 = vmatpush.msra.mxu0 %v246
  %658 = vmatpush.msra.mxu0 %v245
  %659 = vmatpush.msra.mxu0 %v244
  %660 = vmatpush.msra.mxu0 %v243
  %661 = vmatpush.msra.mxu0 %v242
  %662 = vmatpush.msra.mxu0 %v241
  %663 = vmatpush.msra.mxu0 %v240
  %664 = vmatpush.msra.mxu0 %v239
  %665 = vmatpush.msra.mxu0 %v238
  %666 = vmatpush.msra.mxu0 %v237
  %667 = vmatpush.msra.mxu0 %v236
  %668 = vmatpush.msra.mxu0 %v235
  %669 = vmatpush.msra.mxu0 %v234
  %670 = vmatpush.msra.mxu0 %v233
  %671 = vmatpush.msra.mxu0 %v232
  %672 = vmatpush.msra.mxu0 %v231
  %673 = vmatmul.f32.gmra.mxu0 %v24
  %v674 = vpop.f32.mrf.mxu0
  %v675 = vadd.f32 %v466, %v674
  %676 = vmatmul.f32.gmra.mxu0 %v27
  %v677 = vpop.f32.mrf.mxu0
  %v678 = vadd.f32 %v469, %v677
  %679 = vmatmul.f32.gmra.mxu0 %v30
  %v680 = vpop.f32.mrf.mxu0
  %v681 = vadd.f32 %v472, %v680
  %682 = vmatmul.f32.gmra.mxu0 %v33
  %v683 = vpop.f32.mrf.mxu0
  %v684 = vadd.f32 %v475, %v683
  %685 = vmatmul.f32.gmra.mxu0 %v36
  %v686 = vpop.f32.mrf.mxu0
  %v687 = vadd.f32 %v478, %v686
  %688 = vmatmul.f32.gmra.mxu0 %v39
  %v689 = vpop.f32.mrf.mxu0
  %v690 = vadd.f32 %v481, %v689
  %691 = vmatmul.f32.gmra.mxu0 %v42
  %v692 = vpop.f32.mrf.mxu0
  %v693 = vadd.f32 %v484, %v692
  %694 = vmatmul.f32.gmra.mxu0 %v45
  %v695 = vpop.f32.mrf.mxu0
  %v696 = vadd.f32 %v487, %v695
  %697 = vmatmul.f32.gmra.mxu0 %v48
  %v698 = vpop.f32.mrf.mxu0
  %v699 = vadd.f32 %v490, %v698
  %700 = vmatmul.f32.gmra.mxu0 %v51
  %v701 = vpop.f32.mrf.mxu0
  %v702 = vadd.f32 %v493, %v701
  %703 = vmatmul.f32.gmra.mxu0 %v54
  %v704 = vpop.f32.mrf.mxu0
  %v705 = vadd.f32 %v496, %v704
  %706 = vmatmul.f32.gmra.mxu0 %v57
  %v707 = vpop.f32.mrf.mxu0
  %v708 = vadd.f32 %v499, %v707
  %709 = vmatmul.f32.gmra.mxu0 %v60
  %v710 = vpop.f32.mrf.mxu0
  %v711 = vadd.f32 %v502, %v710
  %712 = vmatmul.f32.gmra.mxu0 %v63
  %v713 = vpop.f32.mrf.mxu0
  %v714 = vadd.f32 %v505, %v713
  %715 = vmatmul.f32.gmra.mxu0 %v66
  %v716 = vpop.f32.mrf.mxu0
  %v717 = vadd.f32 %v508, %v716
  %718 = vmatmul.f32.gmra.mxu0 %v69
  %v719 = vpop.f32.mrf.mxu0
  %v720 = vadd.f32 %v511, %v719
  %721 = vmatmul.f32.gmra.mxu0 %v72
  %v722 = vpop.f32.mrf.mxu0
  %v723 = vadd.f32 %v514, %v722
  %724 = vmatmul.f32.gmra.mxu0 %v75
  %v725 = vpop.f32.mrf.mxu0
  %v726 = vadd.f32 %v517, %v725
  %727 = vmatmul.f32.gmra.mxu0 %v78
  %v728 = vpop.f32.mrf.mxu0
  %v729 = vadd.f32 %v520, %v728
  %730 = vmatmul.f32.gmra.mxu0 %v81
  %v731 = vpop.f32.mrf.mxu0
  %v732 = vadd.f32 %v523, %v731
  %733 = vmatmul.f32.gmra.mxu0 %v84
  %v734 = vpop.f32.mrf.mxu0
  %v735 = vadd.f32 %v526, %v734
  %736 = vmatmul.f32.gmra.mxu0 %v87
  %v737 = vpop.f32.mrf.mxu0
  %v738 = vadd.f32 %v529, %v737
  %739 = vmatmul.f32.gmra.mxu0 %v90
  %v740 = vpop.f32.mrf.mxu0
  %v741 = vadd.f32 %v532, %v740
  %742 = vmatmul.f32.gmra.mxu0 %v93
  %v743 = vpop.f32.mrf.mxu0
  %v744 = vadd.f32 %v535, %v743
  %745 = vmatmul.f32.gmra.mxu0 %v96
  %v746 = vpop.f32.mrf.mxu0
  %v747 = vadd.f32 %v538, %v746
  %748 = vmatmul.f32.gmra.mxu0 %v99
  %v749 = vpop.f32.mrf.mxu0
  %v750 = vadd.f32 %v541, %v749
  %751 = vmatmul.f32.gmra.mxu0 %v102
  %v752 = vpop.f32.mrf.mxu0
  %v753 = vadd.f32 %v544, %v752
  %754 = vmatmul.f32.gmra.mxu0 %v105
  %v755 = vpop.f32.mrf.mxu0
  %v756 = vadd.f32 %v547, %v755
  %757 = vmatmul.f32.gmra.mxu0 %v108
  %v758 = vpop.f32.mrf.mxu0
  %v759 = vadd.f32 %v550, %v758
  %760 = vmatmul.f32.gmra.mxu0 %v111
  %v761 = vpop.f32.mrf.mxu0
  %v762 = vadd.f32 %v553, %v761
  %763 = vmatmul.f32.gmra.mxu0 %v114
  %v764 = vpop.f32.mrf.mxu0
  %v765 = vadd.f32 %v556, %v764
  %766 = vmatmul.f32.gmra.mxu0 %v117
  %v767 = vpop.f32.mrf.mxu0
  %v768 = vadd.f32 %v559, %v767
  %769 = vmatmul.f32.gmra.mxu0 %v120
  %v770 = vpop.f32.mrf.mxu0
  %v771 = vadd.f32 %v562, %v770
  %772 = vmatmul.f32.gmra.mxu0 %v123
  %v773 = vpop.f32.mrf.mxu0
  %v774 = vadd.f32 %v565, %v773
  %775 = vmatmul.f32.gmra.mxu0 %v126
  %v776 = vpop.f32.mrf.mxu0
  %v777 = vadd.f32 %v568, %v776
  %778 = vmatmul.f32.gmra.mxu0 %v129
  %v779 = vpop.f32.mrf.mxu0
  %v780 = vadd.f32 %v571, %v779
  %781 = vmatmul.f32.gmra.mxu0 %v132
  %v782 = vpop.f32.mrf.mxu0
  %v783 = vadd.f32 %v574, %v782
  %784 = vmatmul.f32.gmra.mxu0 %v135
  %v785 = vpop.f32.mrf.mxu0
  %v786 = vadd.f32 %v577, %v785
  %787 = vmatmul.f32.gmra.mxu0 %v138
  %v788 = vpop.f32.mrf.mxu0
  %v789 = vadd.f32 %v580, %v788
  %790 = vmatmul.f32.gmra.mxu0 %v141
  %v791 = vpop.f32.mrf.mxu0
  %v792 = vadd.f32 %v583, %v791
  %793 = vmatmul.f32.gmra.mxu0 %v144
  %v794 = vpop.f32.mrf.mxu0
  %v795 = vadd.f32 %v586, %v794
  %796 = vmatmul.f32.gmra.mxu0 %v147
  %v797 = vpop.f32.mrf.mxu0
  %v798 = vadd.f32 %v589, %v797
  %799 = vmatmul.f32.gmra.mxu0 %v150
  %v800 = vpop.f32.mrf.mxu0
  %v801 = vadd.f32 %v592, %v800
  %802 = vmatmul.f32.gmra.mxu0 %v153
  %v803 = vpop.f32.mrf.mxu0
  %v804 = vadd.f32 %v595, %v803
  %805 = vmatmul.f32.gmra.mxu0 %v156
  %v806 = vpop.f32.mrf.mxu0
  %v807 = vadd.f32 %v598, %v806
  %808 = vmatmul.f32.gmra.mxu0 %v159
  %v809 = vpop.f32.mrf.mxu0
  %v810 = vadd.f32 %v601, %v809
  %811 = vmatmul.f32.gmra.mxu0 %v162
  %v812 = vpop.f32.mrf.mxu0
  %v813 = vadd.f32 %v604, %v812
  %814 = vmatmul.f32.gmra.mxu0 %v165
  %v815 = vpop.f32.mrf.mxu0
  %v816 = vadd.f32 %v607, %v815
  %817 = vmatmul.f32.gmra.mxu0 %v168
  %v818 = vpop.f32.mrf.mxu0
  %v819 = vadd.f32 %v610, %v818
  %820 = vmatmul.f32.gmra.mxu0 %v171
  %v821 = vpop.f32.mrf.mxu0
  %v822 = vadd.f32 %v613, %v821
  %823 = vmatmul.f32.gmra.mxu0 %v174
  %v824 = vpop.f32.mrf.mxu0
  %v825 = vadd.f32 %v616, %v824
  %826 = vmatmul.f32.gmra.mxu0 %v177
  %v827 = vpop.f32.mrf.mxu0
  %v828 = vadd.f32 %v619, %v827
  %829 = vmatmul.f32.gmra.mxu0 %v180
  %v830 = vpop.f32.mrf.mxu0
  %v831 = vadd.f32 %v622, %v830
  %832 = vmatmul.f32.gmra.mxu0 %v183
  %v833 = vpop.f32.mrf.mxu0
  %v834 = vadd.f32 %v625, %v833
  %835 = vmatmul.f32.gmra.mxu0 %v186
  %v836 = vpop.f32.mrf.mxu0
  %v837 = vadd.f32 %v628, %v836
  %838 = vmatmul.f32.gmra.mxu0 %v189
  %v839 = vpop.f32.mrf.mxu0
  %v840 = vadd.f32 %v631, %v839
  %841 = vmatmul.f32.gmra.mxu0 %v192
  %v842 = vpop.f32.mrf.mxu0
  %v843 = vadd.f32 %v634, %v842
  %844 = vmatmul.f32.gmra.mxu0 %v195
  %v845 = vpop.f32.mrf.mxu0
  %v846 = vadd.f32 %v637, %v845
  %847 = vmatmul.f32.gmra.mxu0 %v198
  %v848 = vpop.f32.mrf.mxu0
  %v849 = vadd.f32 %v640, %v848
  %850 = vmatmul.f32.gmra.mxu0 %v201
  %v851 = vpop.f32.mrf.mxu0
  %v852 = vadd.f32 %v643, %v851
  %853 = vmatmul.f32.gmra.mxu0 %v204
  %v854 = vpop.f32.mrf.mxu0
  %v855 = vadd.f32 %v646, %v854
  %856 = vmatmul.f32.gmra.mxu0 %v207
  %v857 = vpop.f32.mrf.mxu0
  %v858 = vadd.f32 %v649, %v857
  %859 = vmatmul.f32.gmra.mxu0 %v210
  %v860 = vpop.f32.mrf.mxu0
  %v861 = vadd.f32 %v652, %v860
  %862 = vmatmul.f32.gmra.mxu0 %v213
  %v863 = vpop.f32.mrf.mxu0
  %v864 = vadd.f32 %v655, %v863
  %865 = vdwg.mxu0
  %866 = vmatpush.msra.mxu0 0.0
  %867 = vmatpush.msra.mxu0 0.0
  %868 = vmatpush.msra.mxu0 0.0
  %869 = vmatpush.msra.mxu0 0.0
  %870 = vmatpush.msra.mxu0 0.0
  %871 = vmatpush.msra.mxu0 0.0
  %872 = vmatpush.msra.mxu0 0.0
  %873 = vmatpush.msra.mxu0 0.0
  %874 = vmatpush.msra.mxu0 0.0
  %875 = vmatpush.msra.mxu0 0.0
  %876 = vmatpush.msra.mxu0 0.0
  %877 = vmatpush.msra.mxu0 0.0
  %878 = vmatpush.msra.mxu0 %v250
  %879 = vmatpush.msra.mxu0 %v249
  %880 = vmatpush.msra.mxu0 %v248
  %881 = vmatpush.msra.mxu0 %v247
  %882 = vmatmul.f32.gmra.mxu0 %v257
  %v883 = vpop.f32.mrf.mxu0
  %v884 = vadd.f32 %v675, %v883
  %885 = vmatmul.f32.gmra.mxu0 %v260
  %v886 = vpop.f32.mrf.mxu0
  %v887 = vadd.f32 %v678, %v886
  %888 = vmatmul.f32.gmra.mxu0 %v263
  %v889 = vpop.f32.mrf.mxu0
  %v890 = vadd.f32 %v681, %v889
  %891 = vmatmul.f32.gmra.mxu0 %v266
  %v892 = vpop.f32.mrf.mxu0
  %v893 = vadd.f32 %v684, %v892
  %894 = vmatmul.f32.gmra.mxu0 %v269
  %v895 = vpop.f32.mrf.mxu0
  %v896 = vadd.f32 %v687, %v895
  %897 = vmatmul.f32.gmra.mxu0 %v272
  %v898 = vpop.f32.mrf.mxu0
  %v899 = vadd.f32 %v690, %v898
  %900 = vmatmul.f32.gmra.mxu0 %v275
  %v901 = vpop.f32.mrf.mxu0
  %v902 = vadd.f32 %v693, %v901
  %903 = vmatmul.f32.gmra.mxu0 %v278
  %v904 = vpop.f32.mrf.mxu0
  %v905 = vadd.f32 %v696, %v904
  %906 = vmatmul.f32.gmra.mxu0 %v281
  %v907 = vpop.f32.mrf.mxu0
  %v908 = vadd.f32 %v699, %v907
  %909 = vmatmul.f32.gmra.mxu0 %v284
  %v910 = vpop.f32.mrf.mxu0
  %v911 = vadd.f32 %v702, %v910
  %912 = vmatmul.f32.gmra.mxu0 %v287
  %v913 = vpop.f32.mrf.mxu0
  %v914 = vadd.f32 %v705, %v913
  %915 = vmatmul.f32.gmra.mxu0 %v290
  %v916 = vpop.f32.mrf.mxu0
  %v917 = vadd.f32 %v708, %v916
  %918 = vmatmul.f32.gmra.mxu0 %v293
  %v919 = vpop.f32.mrf.mxu0
  %v920 = vadd.f32 %v711, %v919
  %921 = vmatmul.f32.gmra.mxu0 %v296
  %v922 = vpop.f32.mrf.mxu0
  %v923 = vadd.f32 %v714, %v922
  %924 = vmatmul.f32.gmra.mxu0 %v299
  %v925 = vpop.f32.mrf.mxu0
  %v926 = vadd.f32 %v717, %v925
  %927 = vmatmul.f32.gmra.mxu0 %v302
  %v928 = vpop.f32.mrf.mxu0
  %v929 = vadd.f32 %v720, %v928
  %930 = vmatmul.f32.gmra.mxu0 %v305
  %v931 = vpop.f32.mrf.mxu0
  %v932 = vadd.f32 %v723, %v931
  %933 = vmatmul.f32.gmra.mxu0 %v308
  %v934 = vpop.f32.mrf.mxu0
  %v935 = vadd.f32 %v726, %v934
  %936 = vmatmul.f32.gmra.mxu0 %v311
  %v937 = vpop.f32.mrf.mxu0
  %v938 = vadd.f32 %v729, %v937
  %939 = vmatmul.f32.gmra.mxu0 %v314
  %v940 = vpop.f32.mrf.mxu0
  %v941 = vadd.f32 %v732, %v940
  %942 = vmatmul.f32.gmra.mxu0 %v317
  %v943 = vpop.f32.mrf.mxu0
  %v944 = vadd.f32 %v735, %v943
  %945 = vmatmul.f32.gmra.mxu0 %v320
  %v946 = vpop.f32.mrf.mxu0
  %v947 = vadd.f32 %v738, %v946
  %948 = vmatmul.f32.gmra.mxu0 %v323
  %v949 = vpop.f32.mrf.mxu0
  %v950 = vadd.f32 %v741, %v949
  %951 = vmatmul.f32.gmra.mxu0 %v326
  %v952 = vpop.f32.mrf.mxu0
  %v953 = vadd.f32 %v744, %v952
  %954 = vmatmul.f32.gmra.mxu0 %v329
  %v955 = vpop.f32.mrf.mxu0
  %v956 = vadd.f32 %v747, %v955
  %957 = vmatmul.f32.gmra.mxu0 %v332
  %v958 = vpop.f32.mrf.mxu0
  %v959 = vadd.f32 %v750, %v958
  %960 = vmatmul.f32.gmra.mxu0 %v335
  %v961 = vpop.f32.mrf.mxu0
  %v962 = vadd.f32 %v753, %v961
  %963 = vmatmul.f32.gmra.mxu0 %v338
  %v964 = vpop.f32.mrf.mxu0
  %v965 = vadd.f32 %v756, %v964
  %966 = vmatmul.f32.gmra.mxu0 %v341
  %v967 = vpop.f32.mrf.mxu0
  %v968 = vadd.f32 %v759, %v967
  %969 = vmatmul.f32.gmra.mxu0 %v344
  %v970 = vpop.f32.mrf.mxu0
  %v971 = vadd.f32 %v762, %v970
  %972 = vmatmul.f32.gmra.mxu0 %v347
  %v973 = vpop.f32.mrf.mxu0
  %v974 = vadd.f32 %v765, %v973
  %975 = vmatmul.f32.gmra.mxu0 %v350
  %v976 = vpop.f32.mrf.mxu0
  %v977 = vadd.f32 %v768, %v976
  %978 = vmatmul.f32.gmra.mxu0 %v353
  %v979 = vpop.f32.mrf.mxu0
  %v980 = vadd.f32 %v771, %v979
  %981 = vmatmul.f32.gmra.mxu0 %v356
  %v982 = vpop.f32.mrf.mxu0
  %v983 = vadd.f32 %v774, %v982
  %984 = vmatmul.f32.gmra.mxu0 %v359
  %v985 = vpop.f32.mrf.mxu0
  %v986 = vadd.f32 %v777, %v985
  %987 = vmatmul.f32.gmra.mxu0 %v362
  %v988 = vpop.f32.mrf.mxu0
  %v989 = vadd.f32 %v780, %v988
  %990 = vmatmul.f32.gmra.mxu0 %v365
  %v991 = vpop.f32.mrf.mxu0
  %v992 = vadd.f32 %v783, %v991
  %993 = vmatmul.f32.gmra.mxu0 %v368
  %v994 = vpop.f32.mrf.mxu0
  %v995 = vadd.f32 %v786, %v994
  %996 = vmatmul.f32.gmra.mxu0 %v371
  %v997 = vpop.f32.mrf.mxu0
  %v998 = vadd.f32 %v789, %v997
  %999 = vmatmul.f32.gmra.mxu0 %v374
  %v1000 = vpop.f32.mrf.mxu0
  %v1001 = vadd.f32 %v792, %v1000
  %1002 = vmatmul.f32.gmra.mxu0 %v377
  %v1003 = vpop.f32.mrf.mxu0
  %v1004 = vadd.f32 %v795, %v1003
  %1005 = vmatmul.f32.gmra.mxu0 %v380
  %v1006 = vpop.f32.mrf.mxu0
  %v1007 = vadd.f32 %v798, %v1006
  %1008 = vmatmul.f32.gmra.mxu0 %v383
  %v1009 = vpop.f32.mrf.mxu0
  %v1010 = vadd.f32 %v801, %v1009
  %1011 = vmatmul.f32.gmra.mxu0 %v386
  %v1012 = vpop.f32.mrf.mxu0
  %v1013 = vadd.f32 %v804, %v1012
  %1014 = vmatmul.f32.gmra.mxu0 %v389
  %v1015 = vpop.f32.mrf.mxu0
  %v1016 = vadd.f32 %v807, %v1015
  %1017 = vmatmul.f32.gmra.mxu0 %v392
  %v1018 = vpop.f32.mrf.mxu0
  %v1019 = vadd.f32 %v810, %v1018
  %1020 = vmatmul.f32.gmra.mxu0 %v395
  %v1021 = vpop.f32.mrf.mxu0
  %v1022 = vadd.f32 %v813, %v1021
  %1023 = vmatmul.f32.gmra.mxu0 %v398
  %v1024 = vpop.f32.mrf.mxu0
  %v1025 = vadd.f32 %v816, %v1024
  %1026 = vmatmul.f32.gmra.mxu0 %v401
  %v1027 = vpop.f32.mrf.mxu0
  %v1028 = vadd.f32 %v819, %v1027
  %1029 = vmatmul.f32.gmra.mxu0 %v404
  %v1030 = vpop.f32.mrf.mxu0
  %v1031 = vadd.f32 %v822, %v1030
  %1032 = vmatmul.f32.gmra.mxu0 %v407
  %v1033 = vpop.f32.mrf.mxu0
  %v1034 = vadd.f32 %v825, %v1033
  %1035 = vmatmul.f32.gmra.mxu0 %v410
  %v1036 = vpop.f32.mrf.mxu0
  %v1037 = vadd.f32 %v828, %v1036
  %1038 = vmatmul.f32.gmra.mxu0 %v413
  %v1039 = vpop.f32.mrf.mxu0
  %v1040 = vadd.f32 %v831, %v1039
  %1041 = vmatmul.f32.gmra.mxu0 %v416
  %v1042 = vpop.f32.mrf.mxu0
  %v1043 = vadd.f32 %v834, %v1042
  %1044 = vmatmul.f32.gmra.mxu0 %v419
  %v1045 = vpop.f32.mrf.mxu0
  %v1046 = vadd.f32 %v837, %v1045
  %1047 = vmatmul.f32.gmra.mxu0 %v422
  %v1048 = vpop.f32.mrf.mxu0
  %v1049 = vadd.f32 %v840, %v1048
  %1050 = vmatmul.f32.gmra.mxu0 %v425
  %v1051 = vpop.f32.mrf.mxu0
  %v1052 = vadd.f32 %v843, %v1051
  %1053 = vmatmul.f32.gmra.mxu0 %v428
  %v1054 = vpop.f32.mrf.mxu0
  %v1055 = vadd.f32 %v846, %v1054
  %1056 = vmatmul.f32.gmra.mxu0 %v431
  %v1057 = vpop.f32.mrf.mxu0
  %v1058 = vadd.f32 %v849, %v1057
  %1059 = vmatmul.f32.gmra.mxu0 %v434
  %v1060 = vpop.f32.mrf.mxu0
  %v1061 = vadd.f32 %v852, %v1060
  %1062 = vmatmul.f32.gmra.mxu0 %v437
  %v1063 = vpop.f32.mrf.mxu0
  %v1064 = vadd.f32 %v855, %v1063
  %1065 = vmatmul.f32.gmra.mxu0 %v440
  %v1066 = vpop.f32.mrf.mxu0
  %v1067 = vadd.f32 %v858, %v1066
  %1068 = vmatmul.f32.gmra.mxu0 %v443
  %v1069 = vpop.f32.mrf.mxu0
  %v1070 = vadd.f32 %v861, %v1069
  %1071 = vmatmul.f32.gmra.mxu0 %v446
  %v1072 = vpop.f32.mrf.mxu0
  %v1073 = vadd.f32 %v864, %v1072
  %1074 = vdwg.mxu0
  %v1075 = vadd.f32 %v884, %v887
  %v1076 = vadd.f32 %v1075, %v890
  %v1077 = vadd.f32 %v1076, %v893
  %v1078 = vadd.f32 %v1077, %v896
  %v1079 = vadd.f32 %v1078, %v899
  %v1080 = vadd.f32 %v1079, %v902
  %v1081 = vadd.f32 %v1080, %v905
  %v1082 = vadd.f32 %v1081, %v908
  %v1083 = vadd.f32 %v1082, %v911
  %v1084 = vadd.f32 %v1083, %v914
  %v1085 = vadd.f32 %v1084, %v917
  %v1086 = vadd.f32 %v1085, %v920
  %v1087 = vadd.f32 %v1086, %v923
  %v1088 = vadd.f32 %v1087, %v926
  %v1089 = vadd.f32 %v1088, %v929
  %v1090 = vadd.f32 %v1089, %v932
  %v1091 = vadd.f32 %v1090, %v935
  %v1092 = vadd.f32 %v1091, %v938
  %v1093 = vadd.f32 %v1092, %v941
  %v1094 = vadd.f32 %v1093, %v944
  %v1095 = vadd.f32 %v1094, %v947
  %v1096 = vadd.f32 %v1095, %v950
  %v1097 = vadd.f32 %v1096, %v953
  %v1098 = vadd.f32 %v1097, %v956
  %v1099 = vadd.f32 %v1098, %v959
  %v1100 = vadd.f32 %v1099, %v962
  %v1101 = vadd.f32 %v1100, %v965
  %v1102 = vadd.f32 %v1101, %v968
  %v1103 = vadd.f32 %v1102, %v971
  %v1104 = vadd.f32 %v1103, %v974
  %v1105 = vadd.f32 %v1104, %v977
  %v1106 = vadd.f32 %v1105, %v980
  %v1107 = vadd.f32 %v1106, %v983
  %v1108 = vadd.f32 %v1107, %v986
  %v1109 = vadd.f32 %v1108, %v989
  %v1110 = vadd.f32 %v1109, %v992
  %v1111 = vadd.f32 %v1110, %v995
  %v1112 = vadd.f32 %v1111, %v998
  %v1113 = vadd.f32 %v1112, %v1001
  %v1114 = vadd.f32 %v1113, %v1004
  %v1115 = vadd.f32 %v1114, %v1007
  %v1116 = vadd.f32 %v1115, %v1010
  %v1117 = vadd.f32 %v1116, %v1013
  %v1118 = vadd.f32 %v1117, %v1016
  %v1119 = vadd.f32 %v1118, %v1019
  %v1120 = vadd.f32 %v1119, %v1022
  %v1121 = vadd.f32 %v1120, %v1025
  %v1122 = vadd.f32 %v1121, %v1028
  %v1123 = vadd.f32 %v1122, %v1031
  %v1124 = vadd.f32 %v1123, %v1034
  %v1125 = vadd.f32 %v1124, %v1037
  %v1126 = vadd.f32 %v1125, %v1040
  %v1127 = vadd.f32 %v1126, %v1043
  %v1128 = vadd.f32 %v1127, %v1046
  %v1129 = vadd.f32 %v1128, %v1049
  %v1130 = vadd.f32 %v1129, %v1052
  %v1131 = vadd.f32 %v1130, %v1055
  %v1132 = vadd.f32 %v1131, %v1058
  %v1133 = vadd.f32 %v1132, %v1061
  %v1134 = vadd.f32 %v1133, %v1064
  %v1135 = vadd.f32 %v1134, %v1067
  %v1136 = vadd.f32 %v1135, %v1070
  %v1137 = vadd.f32 %v1136, %v1073
  %v1138 = vrot.slane %v1137, 4
  %v1139 = vadd.f32 %v1137, %v1138
  %v1140 = vrot.slane %v1139, 2
  %v1141 = vadd.f32 %v1139, %v1140
  %v1142 = vrot.slane %v1141, 1
  %v1143 = vadd.f32 %v1141, %v1142
  %v1144 = vld [vmem:[%s5] sm:$0xff]
  %v1145 = vld [vmem:[%s5 + $0x8] sm:$0xff]
  %v1146 = vld [vmem:[%s5 + $0x10] sm:$0xff]
  %v1147 = vld [vmem:[%s5 + $0x18] sm:$0xff]
  %v1148 = vld [vmem:[%s5 + $0x20] sm:$0xff]
  %v1149 = vld [vmem:[%s5 + $0x28] sm:$0xff]
  %v1150 = vld [vmem:[%s5 + $0x30] sm:$0xff]
  %v1151 = vld [vmem:[%s5 + $0x38] sm:$0xff]
  %v1152 = vld [vmem:[%s5 + $0x40] sm:$0xff]
  %v1153 = vld [vmem:[%s5 + $0x48] sm:$0xff]
  %v1154 = vld [vmem:[%s5 + $0x50] sm:$0xff]
  %v1155 = vld [vmem:[%s5 + $0x58] sm:$0xff]
  %v1156 = vld [vmem:[%s5 + $0x60] sm:$0xff]
  %v1157 = vld [vmem:[%s5 + $0x68] sm:$0xff]
  %v1158 = vld [vmem:[%s5 + $0x70] sm:$0xff]
  %v1159 = vld [vmem:[%s5 + $0x78] sm:$0xff]
  %1160 = vmatpush.msra.mxu0 %v1159
  %1161 = vmatpush.msra.mxu0 %v1158
  %1162 = vmatpush.msra.mxu0 %v1157
  %1163 = vmatpush.msra.mxu0 %v1156
  %1164 = vmatpush.msra.mxu0 %v1155
  %1165 = vmatpush.msra.mxu0 %v1154
  %1166 = vmatpush.msra.mxu0 %v1153
  %1167 = vmatpush.msra.mxu0 %v1152
  %1168 = vmatpush.msra.mxu0 %v1151
  %1169 = vmatpush.msra.mxu0 %v1150
  %1170 = vmatpush.msra.mxu0 %v1149
  %1171 = vmatpush.msra.mxu0 %v1148
  %1172 = vmatpush.msra.mxu0 %v1147
  %1173 = vmatpush.msra.mxu0 %v1146
  %1174 = vmatpush.msra.mxu0 %v1145
  %1175 = vmatpush.msra.mxu0 %v1144
  %1176 = vmatmul.f32.gmra.mxu0 %v1143
  %v1177 = vpop.f32.mrf.mxu0
  %v1178 = vadd.f32 0.0, %v1177
  %1179 = vdwg.mxu0
  %v1180 = vrcp.pop 2048.0
  %v1181 = vmul.f32 2048.0, %v1180
  %v1182 = vsub.f32 1.0, %v1181
  %v1183 = vmul.f32 %v1180, %v1182
  %v1184 = vadd.f32 %v1180, %v1183
  %vm1185 = vweird.f32 %v1180
  %v1186 = vsel %vm1185, %v1180, %v1184
  %v1187 = vmul.f32 %v1178, %v1186
  %v1188 = vperm.slane %v1187, 0
  %v1189 = vsub.f32 %v884, %v1188
  %v1190 = vsub.f32 %v887, %v1188
  %v1191 = vsub.f32 %v890, %v1188
  %v1192 = vsub.f32 %v893, %v1188
  %v1193 = vsub.f32 %v896, %v1188
  %v1194 = vsub.f32 %v899, %v1188
  %v1195 = vsub.f32 %v902, %v1188
  %v1196 = vsub.f32 %v905, %v1188
  %v1197 = vsub.f32 %v908, %v1188
  %v1198 = vsub.f32 %v911, %v1188
  %v1199 = vsub.f32 %v914, %v1188
  %v1200 = vsub.f32 %v917, %v1188
  %v1201 = vsub.f32 %v920, %v1188
  %v1202 = vsub.f32 %v923, %v1188
  %v1203 = vsub.f32 %v926, %v1188
  %v1204 = vsub.f32 %v929, %v1188
  %v1205 = vsub.f32 %v932, %v1188
  %v1206 = vsub.f32 %v935, %v1188
  %v1207 = vsub.f32 %v938, %v1188
  %v1208 = vsub.f32 %v941, %v1188
  %v1209 = vsub.f32 %v944, %v1188
  %v1210 = vsub.f32 %v947, %v1188
  %v1211 = vsub.f32 %v950, %v1188
  %v1212 = vsub.f32 %v953, %v1188
  %v1213 = vsub.f32 %v956, %v1188
  %v1214 = vsub.f32 %v959, %v1188
  %v1215 = vsub.f32 %v962, %v1188
  %v1216 = vsub.f32 %v965, %v1188
  %v1217 = vsub.f32 %v968, %v1188
  %v1218 = vsub.f32 %v971, %v1188
  %v1219 = vsub.f32 %v974, %v1188
  %v1220 = vsub.f32 %v977, %v1188
  %v1221 = vsub.f32 %v980, %v1188
  %v1222 = vsub.f32 %v983, %v1188
  %v1223 = vsub.f32 %v986, %v1188
  %v1224 = vsub.f32 %v989, %v1188
  %v1225 = vsub.f32 %v992, %v1188
  %v1226 = vsub.f32 %v995, %v1188
  %v1227 = vsub.f32 %v998, %v1188
  %v1228 = vsub.f32 %v1001, %v1188
  %v1229 = vsub.f32 %v1004, %v1188
  %v1230 = vsub.f32 %v1007, %v1188
  %v1231 = vsub.f32 %v1010, %v1188
  %v1232 = vsub.f32 %v1013, %v1188
  %v1233 = vsub.f32 %v1016, %v1188
  %v1234 = vsub.f32 %v1019, %v1188
  %v1235 = vsub.f32 %v1022, %v1188
  %v1236 = vsub.f32 %v1025, %v1188
  %v1237 = vsub.f32 %v1028, %v1188
  %v1238 = vsub.f32 %v1031, %v1188
  %v1239 = vsub.f32 %v1034, %v1188
  %v1240 = vsub.f32 %v1037, %v1188
  %v1241 = vsub.f32 %v1040, %v1188
  %v1242 = vsub.f32 %v1043, %v1188
  %v1243 = vsub.f32 %v1046, %v1188
  %v1244 = vsub.f32 %v1049, %v1188
  %v1245 = vsub.f32 %v1052, %v1188
  %v1246 = vsub.f32 %v1055, %v1188
  %v1247 = vsub.f32 %v1058, %v1188
  %v1248 = vsub.f32 %v1061, %v1188
  %v1249 = vsub.f32 %v1064, %v1188
  %v1250 = vsub.f32 %v1067, %v1188
  %v1251 = vsub.f32 %v1070, %v1188
  %v1252 = vsub.f32 %v1073, %v1188
  %v1253 = vmul.f32 %v1189, %v1189
  %v1254 = vmul.f32 %v1190, %v1190
  %v1255 = vmul.f32 %v1191, %v1191
  %v1256 = vmul.f32 %v1192, %v1192
  %v1257 = vmul.f32 %v1193, %v1193
  %v1258 = vmul.f32 %v1194, %v1194
  %v1259 = vmul.f32 %v1195, %v1195
  %v1260 = vmul.f32 %v1196, %v1196
  %v1261 = vmul.f32 %v1197, %v1197
  %v1262 = vmul.f32 %v1198, %v1198
  %v1263 = vmul.f32 %v1199, %v1199
  %v1264 = vmul.f32 %v1200, %v1200
  %v1265 = vmul.f32 %v1201, %v1201
  %v1266 = vmul.f32 %v1202, %v1202
  %v1267 = vmul.f32 %v1203, %v1203
  %v1268 = vmul.f32 %v1204, %v1204
  %v1269 = vmul.f32 %v1205, %v1205
  %v1270 = vmul.f32 %v1206, %v1206
  %v1271 = vmul.f32 %v1207, %v1207
  %v1272 = vmul.f32 %v1208, %v1208
  %v1273 = vmul.f32 %v1209, %v1209
  %v1274 = vmul.f32 %v1210, %v1210
  %v1275 = vmul.f32 %v1211, %v1211
  %v1276 = vmul.f32 %v1212, %v1212
  %v1277 = vmul.f32 %v1213, %v1213
  %v1278 = vmul.f32 %v1214, %v1214
  %v1279 = vmul.f32 %v1215, %v1215
  %v1280 = vmul.f32 %v1216, %v1216
  %v1281 = vmul.f32 %v1217, %v1217
  %v1282 = vmul.f32 %v1218, %v1218
  %v1283 = vmul.f32 %v1219, %v1219
  %v1284 = vmul.f32 %v1220, %v1220
  %v1285 = vmul.f32 %v1221, %v1221
  %v1286 = vmul.f32 %v1222, %v1222
  %v1287 = vmul.f32 %v1223, %v1223
  %v1288 = vmul.f32 %v1224, %v1224
  %v1289 = vmul.f32 %v1225, %v1225
  %v1290 = vmul.f32 %v1226, %v1226
  %v1291 = vmul.f32 %v1227, %v1227
  %v1292 = vmul.f32 %v1228, %v1228
  %v1293 = vmul.f32 %v1229, %v1229
  %v1294 = vmul.f32 %v1230, %v1230
  %v1295 = vmul.f32 %v1231, %v1231
  %v1296 = vmul.f32 %v1232, %v1232
  %v1297 = vmul.f32 %v1233, %v1233
  %v1298 = vmul.f32 %v1234, %v1234
  %v1299 = vmul.f32 %v1235, %v1235
  %v1300 = vmul.f32 %v1236, %v1236
  %v1301 = vmul.f32 %v1237, %v1237
  %v1302 = vmul.f32 %v1238, %v1238
  %v1303 = vmul.f32 %v1239, %v1239
  %v1304 = vmul.f32 %v1240, %v1240
  %v1305 = vmul.f32 %v1241, %v1241
  %v1306 = vmul.f32 %v1242, %v1242
  %v1307 = vmul.f32 %v1243, %v1243
  %v1308 = vmul.f32 %v1244, %v1244
  %v1309 = vmul.f32 %v1245, %v1245
  %v1310 = vmul.f32 %v1246, %v1246
  %v1311 = vmul.f32 %v1247, %v1247
  %v1312 = vmul.f32 %v1248, %v1248
  %v1313 = vmul.f32 %v1249, %v1249
  %v1314 = vmul.f32 %v1250, %v1250
  %v1315 = vmul.f32 %v1251, %v1251
  %v1316 = vmul.f32 %v1252, %v1252
  %v1317 = vadd.f32 %v1253, %v1254
  %v1318 = vadd.f32 %v1317, %v1255
  %v1319 = vadd.f32 %v1318, %v1256
  %v1320 = vadd.f32 %v1319, %v1257
  %v1321 = vadd.f32 %v1320, %v1258
  %v1322 = vadd.f32 %v1321, %v1259
  %v1323 = vadd.f32 %v1322, %v1260
  %v1324 = vadd.f32 %v1323, %v1261
  %v1325 = vadd.f32 %v1324, %v1262
  %v1326 = vadd.f32 %v1325, %v1263
  %v1327 = vadd.f32 %v1326, %v1264
  %v1328 = vadd.f32 %v1327, %v1265
  %v1329 = vadd.f32 %v1328, %v1266
  %v1330 = vadd.f32 %v1329, %v1267
  %v1331 = vadd.f32 %v1330, %v1268
  %v1332 = vadd.f32 %v1331, %v1269
  %v1333 = vadd.f32 %v1332, %v1270
  %v1334 = vadd.f32 %v1333, %v1271
  %v1335 = vadd.f32 %v1334, %v1272
  %v1336 = vadd.f32 %v1335, %v1273
  %v1337 = vadd.f32 %v1336, %v1274
  %v1338 = vadd.f32 %v1337, %v1275
  %v1339 = vadd.f32 %v1338, %v1276
  %v1340 = vadd.f32 %v1339, %v1277
  %v1341 = vadd.f32 %v1340, %v1278
  %v1342 = vadd.f32 %v1341, %v1279
  %v1343 = vadd.f32 %v1342, %v1280
  %v1344 = vadd.f32 %v1343, %v1281
  %v1345 = vadd.f32 %v1344, %v1282
  %v1346 = vadd.f32 %v1345, %v1283
  %v1347 = vadd.f32 %v1346, %v1284
  %v1348 = vadd.f32 %v1347, %v1285
  %v1349 = vadd.f32 %v1348, %v1286
  %v1350 = vadd.f32 %v1349, %v1287
  %v1351 = vadd.f32 %v1350, %v1288
  %v1352 = vadd.f32 %v1351, %v1289
  %v1353 = vadd.f32 %v1352, %v1290
  %v1354 = vadd.f32 %v1353, %v1291
  %v1355 = vadd.f32 %v1354, %v1292
  %v1356 = vadd.f32 %v1355, %v1293
  %v1357 = vadd.f32 %v1356, %v1294
  %v1358 = vadd.f32 %v1357, %v1295
  %v1359 = vadd.f32 %v1358, %v1296
  %v1360 = vadd.f32 %v1359, %v1297
  %v1361 = vadd.f32 %v1360, %v1298
  %v1362 = vadd.f32 %v1361, %v1299
  %v1363 = vadd.f32 %v1362, %v1300
  %v1364 = vadd.f32 %v1363, %v1301
  %v1365 = vadd.f32 %v1364, %v1302
  %v1366 = vadd.f32 %v1365, %v1303
  %v1367 = vadd.f32 %v1366, %v1304
  %v1368 = vadd.f32 %v1367, %v1305
  %v1369 = vadd.f32 %v1368, %v1306
  %v1370 = vadd.f32 %v1369, %v1307
  %v1371 = vadd.f32 %v1370, %v1308
  %v1372 = vadd.f32 %v1371, %v1309
  %v1373 = vadd.f32 %v1372, %v1310
  %v1374 = vadd.f32 %v1373, %v1311
  %v1375 = vadd.f32 %v1374, %v1312
  %v1376 = vadd.f32 %v1375, %v1313
  %v1377 = vadd.f32 %v1376, %v1314
  %v1378 = vadd.f32 %v1377, %v1315
  %v1379 = vadd.f32 %v1378, %v1316
  %v1380 = vrot.slane %v1379, 4
  %v1381 = vadd.f32 %v1379, %v1380
  %v1382 = vrot.slane %v1381, 2
  %v1383 = vadd.f32 %v1381, %v1382
  %v1384 = vrot.slane %v1383, 1
  %v1385 = vadd.f32 %v1383, %v1384
  %1386 = vmatpush.msra.mxu0 %v1159
  %1387 = vmatpush.msra.mxu0 %v1158
  %1388 = vmatpush.msra.mxu0 %v1157
  %1389 = vmatpush.msra.mxu0 %v1156
  %1390 = vmatpush.msra.mxu0 %v1155
  %1391 = vmatpush.msra.mxu0 %v1154
  %1392 = vmatpush.msra.mxu0 %v1153
  %1393 = vmatpush.msra.mxu0 %v1152
  %1394 = vmatpush.msra.mxu0 %v1151
  %1395 = vmatpush.msra.mxu0 %v1150
  %1396 = vmatpush.msra.mxu0 %v1149
  %1397 = vmatpush.msra.mxu0 %v1148
  %1398 = vmatpush.msra.mxu0 %v1147
  %1399 = vmatpush.msra.mxu0 %v1146
  %1400 = vmatpush.msra.mxu0 %v1145
  %1401 = vmatpush.msra.mxu0 %v1144
  %1402 = vmatmul.f32.gmra.mxu0 %v1385
  %v1403 = vpop.f32.mrf.mxu0
  %v1404 = vadd.f32 0.0, %v1403
  %1405 = vdwg.mxu0
  %v1406 = vmul.f32 %v1404, %v1186
  %v1407 = vld [vmem:[%s3] sm:$0x1]
  %v1408 = vadd.f32 %v1406, 1e-05
  %v1409 = vrsqrt.pop %v1408
  %v1410 = vmul.f32 %v1409, %v1408
  %v1411 = vmul.f32 %v1410, %v1409
  %v1412 = vmul.f32 0.5, %v1411
  %v1413 = vsub.f32 1.5, %v1412
  %v1414 = vmul.f32 %v1409, %v1413
  %vm1415 = vweird.f32 %v1408
  %vm1416 = vweird.f32 %v1409
  %vm1417 = vmor %vm1415, %vm1416
  %v1418 = vsel %vm1417, %v1409, %v1414
  %v1419 = vmul.f32 %v1407, %v1418
  %v1420 = vld [vmem:[%s4] sm:$0x1]
  %v1421 = vmul.f32 %v1187, %v1419
  %v1422 = vsub.f32 %v1420, %v1421
  %v1424 = vperm.slane %v1419, 0
  %v1426 = vmul.f32 %v884, %v1424
  %v1427 = vmul.f32 %v887, %v1424
  %v1428 = vmul.f32 %v890, %v1424
  %v1429 = vmul.f32 %v893, %v1424
  %v1430 = vmul.f32 %v896, %v1424
  %v1431 = vmul.f32 %v899, %v1424
  %v1432 = vmul.f32 %v902, %v1424
  %v1433 = vmul.f32 %v905, %v1424
  %v1434 = vmul.f32 %v908, %v1424
  %v1435 = vmul.f32 %v911, %v1424
  %v1436 = vmul.f32 %v914, %v1424
  %v1437 = vmul.f32 %v917, %v1424
  %v1438 = vmul.f32 %v920, %v1424
  %v1439 = vmul.f32 %v923, %v1424
  %v1440 = vmul.f32 %v926, %v1424
  %v1441 = vmul.f32 %v929, %v1424
  %v1442 = vmul.f32 %v932, %v1424
  %v1443 = vmul.f32 %v935, %v1424
  %v1444 = vmul.f32 %v938, %v1424
  %v1445 = vmul.f32 %v941, %v1424
  %v1446 = vmul.f32 %v944, %v1424
  %v1447 = vmul.f32 %v947, %v1424
  %v1448 = vmul.f32 %v950, %v1424
  %v1449 = vmul.f32 %v953, %v1424
  %v1450 = vmul.f32 %v956, %v1424
  %v1451 = vmul.f32 %v959, %v1424
  %v1452 = vmul.f32 %v962, %v1424
  %v1453 = vmul.f32 %v965, %v1424
  %v1454 = vmul.f32 %v968, %v1424
  %v1455 = vmul.f32 %v971, %v1424
  %v1456 = vmul.f32 %v974, %v1424
  %v1457 = vmul.f32 %v977, %v1424
  %v1458 = vmul.f32 %v980, %v1424
  %v1459 = vmul.f32 %v983, %v1424
  %v1460 = vmul.f32 %v986, %v1424
  %v1461 = vmul.f32 %v989, %v1424
  %v1462 = vmul.f32 %v992, %v1424
  %v1463 = vmul.f32 %v995, %v1424
  %v1464 = vmul.f32 %v998, %v1424
  %v1465 = vmul.f32 %v1001, %v1424
  %v1466 = vmul.f32 %v1004, %v1424
  %v1467 = vmul.f32 %v1007, %v1424
  %v1468 = vmul.f32 %v1010, %v1424
  %v1469 = vmul.f32 %v1013, %v1424
  %v1470 = vmul.f32 %v1016, %v1424
  %v1471 = vmul.f32 %v1019, %v1424
  %v1472 = vmul.f32 %v1022, %v1424
  %v1473 = vmul.f32 %v1025, %v1424
  %v1474 = vmul.f32 %v1028, %v1424
  %v1475 = vmul.f32 %v1031, %v1424
  %v1476 = vmul.f32 %v1034, %v1424
  %v1477 = vmul.f32 %v1037, %v1424
  %v1478 = vmul.f32 %v1040, %v1424
  %v1479 = vmul.f32 %v1043, %v1424
  %v1480 = vmul.f32 %v1046, %v1424
  %v1481 = vmul.f32 %v1049, %v1424
  %v1482 = vmul.f32 %v1052, %v1424
  %v1483 = vmul.f32 %v1055, %v1424
  %v1484 = vmul.f32 %v1058, %v1424
  %v1485 = vmul.f32 %v1061, %v1424
  %v1486 = vmul.f32 %v1064, %v1424
  %v1487 = vmul.f32 %v1067, %v1424
  %v1488 = vmul.f32 %v1070, %v1424
  %v1489 = vmul.f32 %v1073, %v1424
  %v1491 = vperm.slane %v1422, 0
  %v1493 = vadd.f32 %v1426, %v1491
  %v1494 = vadd.f32 %v1427, %v1491
  %v1495 = vadd.f32 %v1428, %v1491
  %v1496 = vadd.f32 %v1429, %v1491
  %v1497 = vadd.f32 %v1430, %v1491
  %v1498 = vadd.f32 %v1431, %v1491
  %v1499 = vadd.f32 %v1432, %v1491
  %v1500 = vadd.f32 %v1433, %v1491
  %v1501 = vadd.f32 %v1434, %v1491
  %v1502 = vadd.f32 %v1435, %v1491
  %v1503 = vadd.f32 %v1436, %v1491
  %v1504 = vadd.f32 %v1437, %v1491
  %v1505 = vadd.f32 %v1438, %v1491
  %v1506 = vadd.f32 %v1439, %v1491
  %v1507 = vadd.f32 %v1440, %v1491
  %v1508 = vadd.f32 %v1441, %v1491
  %v1509 = vadd.f32 %v1442, %v1491
  %v1510 = vadd.f32 %v1443, %v1491
  %v1511 = vadd.f32 %v1444, %v1491
  %v1512 = vadd.f32 %v1445, %v1491
  %v1513 = vadd.f32 %v1446, %v1491
  %v1514 = vadd.f32 %v1447, %v1491
  %v1515 = vadd.f32 %v1448, %v1491
  %v1516 = vadd.f32 %v1449, %v1491
  %v1517 = vadd.f32 %v1450, %v1491
  %v1518 = vadd.f32 %v1451, %v1491
  %v1519 = vadd.f32 %v1452, %v1491
  %v1520 = vadd.f32 %v1453, %v1491
  %v1521 = vadd.f32 %v1454, %v1491
  %v1522 = vadd.f32 %v1455, %v1491
  %v1523 = vadd.f32 %v1456, %v1491
  %v1524 = vadd.f32 %v1457, %v1491
  %v1525 = vadd.f32 %v1458, %v1491
  %v1526 = vadd.f32 %v1459, %v1491
  %v1527 = vadd.f32 %v1460, %v1491
  %v1528 = vadd.f32 %v1461, %v1491
  %v1529 = vadd.f32 %v1462, %v1491
  %v1530 = vadd.f32 %v1463, %v1491
  %v1531 = vadd.f32 %v1464, %v1491
  %v1532 = vadd.f32 %v1465, %v1491
  %v1533 = vadd.f32 %v1466, %v1491
  %v1534 = vadd.f32 %v1467, %v1491
  %v1535 = vadd.f32 %v1468, %v1491
  %v1536 = vadd.f32 %v1469, %v1491
  %v1537 = vadd.f32 %v1470, %v1491
  %v1538 = vadd.f32 %v1471, %v1491
  %v1539 = vadd.f32 %v1472, %v1491
  %v1540 = vadd.f32 %v1473, %v1491
  %v1541 = vadd.f32 %v1474, %v1491
  %v1542 = vadd.f32 %v1475, %v1491
  %v1543 = vadd.f32 %v1476, %v1491
  %v1544 = vadd.f32 %v1477, %v1491
  %v1545 = vadd.f32 %v1478, %v1491
  %v1546 = vadd.f32 %v1479, %v1491
  %v1547 = vadd.f32 %v1480, %v1491
  %v1548 = vadd.f32 %v1481, %v1491
  %v1549 = vadd.f32 %v1482, %v1491
  %v1550 = vadd.f32 %v1483, %v1491
  %v1551 = vadd.f32 %v1484, %v1491
  %v1552 = vadd.f32 %v1485, %v1491
  %v1553 = vadd.f32 %v1486, %v1491
  %v1554 = vadd.f32 %v1487, %v1491
  %v1555 = vadd.f32 %v1488, %v1491
  %v1556 = vadd.f32 %v1489, %v1491
  %1557 = vst [vmem:[%s6] sm:$0xff] %v1493
  %1558 = vst [vmem:[%s6 + $0x8] sm:$0xff] %v1494
  %1559 = vst [vmem:[%s6 + $0x10] sm:$0xff] %v1495
  %1560 = vst [vmem:[%s6 + $0x18] sm:$0xff] %v1496
  %1561 = vst [vmem:[%s6 + $0x20] sm:$0xff] %v1497
  %1562 = vst [vmem:[%s6 + $0x28] sm:$0xff] %v1498
  %1563 = vst [vmem:[%s6 + $0x30] sm:$0xff] %v1499
  %1564 = vst [vmem:[%s6 + $0x38] sm:$0xff] %v1500
  %1565 = vst [vmem:[%s6 + $0x40] sm:$0xff] %v1501
  %1566 = vst [vmem:[%s6 + $0x48] sm:$0xff] %v1502
  %1567 = vst [vmem:[%s6 + $0x50] sm:$0xff] %v1503
  %1568 = vst [vmem:[%s6 + $0x58] sm:$0xff] %v1504
  %1569 = vst [vmem:[%s6 + $0x60] sm:$0xff] %v1505
  %1570 = vst [vmem:[%s6 + $0x68] sm:$0xff] %v1506
  %1571 = vst [vmem:[%s6 + $0x70] sm:$0xff] %v1507
  %1572 = vst [vmem:[%s6 + $0x78] sm:$0xff] %v1508
  %1573 = vst [vmem:[%s6 + $0x80] sm:$0xff] %v1509
  %1574 = vst [vmem:[%s6 + $0x88] sm:$0xff] %v1510
  %1575 = vst [vmem:[%s6 + $0x90] sm:$0xff] %v1511
  %1576 = vst [vmem:[%s6 + $0x98] sm:$0xff] %v1512
  %1577 = vst [vmem:[%s6 + $0xa0] sm:$0xff] %v1513
  %1578 = vst [vmem:[%s6 + $0xa8] sm:$0xff] %v1514
  %1579 = vst [vmem:[%s6 + $0xb0] sm:$0xff] %v1515
  %1580 = vst [vmem:[%s6 + $0xb8] sm:$0xff] %v1516
  %1581 = vst [vmem:[%s6 + $0xc0] sm:$0xff] %v1517
  %1582 = vst [vmem:[%s6 + $0xc8] sm:$0xff] %v1518
  %1583 = vst [vmem:[%s6 + $0xd0] sm:$0xff] %v1519
  %1584 = vst [vmem:[%s6 + $0xd8] sm:$0xff] %v1520
  %1585 = vst [vmem:[%s6 + $0xe0] sm:$0xff] %v1521
  %1586 = vst [vmem:[%s6 + $0xe8] sm:$0xff] %v1522
  %1587 = vst [vmem:[%s6 + $0xf0] sm:$0xff] %v1523
  %1588 = vst [vmem:[%s6 + $0xf8] sm:$0xff] %v1524
  %1589 = vst [vmem:[%s6 + $0x100] sm:$0xff] %v1525
  %1590 = vst [vmem:[%s6 + $0x108] sm:$0xff] %v1526
  %1591 = vst [vmem:[%s6 + $0x110] sm:$0xff] %v1527
  %1592 = vst [vmem:[%s6 + $0x118] sm:$0xff] %v1528
  %1593 = vst [vmem:[%s6 + $0x120] sm:$0xff] %v1529
  %1594 = vst [vmem:[%s6 + $0x128] sm:$0xff] %v1530
  %1595 = vst [vmem:[%s6 + $0x130] sm:$0xff] %v1531
  %1596 = vst [vmem:[%s6 + $0x138] sm:$0xff] %v1532
  %1597 = vst [vmem:[%s6 + $0x140] sm:$0xff] %v1533
  %1598 = vst [vmem:[%s6 + $0x148] sm:$0xff] %v1534
  %1599 = vst [vmem:[%s6 + $0x150] sm:$0xff] %v1535
  %1600 = vst [vmem:[%s6 + $0x158] sm:$0xff] %v1536
  %1601 = vst [vmem:[%s6 + $0x160] sm:$0xff] %v1537
  %1602 = vst [vmem:[%s6 + $0x168] sm:$0xff] %v1538
  %1603 = vst [vmem:[%s6 + $0x170] sm:$0xff] %v1539
  %1604 = vst [vmem:[%s6 + $0x178] sm:$0xff] %v1540
  %1605 = vst [vmem:[%s6 + $0x180] sm:$0xff] %v1541
  %1606 = vst [vmem:[%s6 + $0x188] sm:$0xff] %v1542
  %1607 = vst [vmem:[%s6 + $0x190] sm:$0xff] %v1543
  %1608 = vst [vmem:[%s6 + $0x198] sm:$0xff] %v1544
  %1609 = vst [vmem:[%s6 + $0x1a0] sm:$0xff] %v1545
  %1610 = vst [vmem:[%s6 + $0x1a8] sm:$0xff] %v1546
  %1611 = vst [vmem:[%s6 + $0x1b0] sm:$0xff] %v1547
  %1612 = vst [vmem:[%s6 + $0x1b8] sm:$0xff] %v1548
  %1613 = vst [vmem:[%s6 + $0x1c0] sm:$0xff] %v1549
  %1614 = vst [vmem:[%s6 + $0x1c8] sm:$0xff] %v1550
  %1615 = vst [vmem:[%s6 + $0x1d0] sm:$0xff] %v1551
  %1616 = vst [vmem:[%s6 + $0x1d8] sm:$0xff] %v1552
  %1617 = vst [vmem:[%s6 + $0x1e0] sm:$0xff] %v1553
  %1618 = vst [vmem:[%s6 + $0x1e8] sm:$0xff] %v1554
  %1619 = vst [vmem:[%s6 + $0x1f0] sm:$0xff] %v1555
  %1620 = vst [vmem:[%s6 + $0x1f8] sm:$0xff] %v1556
  // Predicated region
  $region26: #{decoder_forward.10} parent=0 // pred_check
    _
  $region27: #{decoder_forward.10} parent=0 // pred_check_branch
    %1622 = sbr.rel (0) target = $region29
  $region28: #{decoder_forward.10} parent=0 // pred_region
    _
  $region29: #{decoder_forward.10} parent=0 // pred_fallthru
    _
  // Predicated region
  $region30: #{decoder_forward.10} parent=0 // pred_check
    _
  $region31: #{decoder_forward.10} parent=0 // pred_check_branch
    %1624 = sbr.rel (0) target = $region33
  $region32: #{decoder_forward.10} parent=0 // pred_region
    _
  $region33: #{decoder_forward.10} parent=0 // pred_fallthru
    _

// kernel: decoder_forward.11
$region0: #{decoder_forward.11}
  #allocation0 [shape = 'u32[]', space=smem, size = 0x4, offset = 0x4, fixed_abs, tag = 'smem constant byte address 0x4 - core index']
  #allocation1 [shape = 'u32[72,128]{1,0:T(1,128)}', space=vmem, size = 0x9000, scoped, tag = 'internal scratch']
  %s0 = inlined_call_operand.vmem [shape: f32[2048,144], index: 0, kind: input, shape index: {}]
  %s1 = inlined_call_operand.vmem [shape: f32[144,128], index: 1, kind: input, shape index: {}]
  %s2 = inlined_call_operand.vmem [shape: f32[1,128], index: 2, kind: input, shape index: {}]
  %s3 = inlined_call_operand.vmem [shape: f32[2048,128], index: 3, kind: output, shape index: {}]
  %s4 = sld [smem:[#allocation0]]
  $region45: #{decoder_forward.11} parent=0
    _
  %s6 = ssub.s32 1, %s4
  %s7 = scalar_select 0, %s6, %s4
  loop: start=0, step=1, limit=4
  $region2: #{decoder_forward.11} parent=0 // loop_pre_header
    _
  $region3: #{decoder_forward.11} parent=0 // loop_header
    %s9 = sphi 0, %s13
    %p10 = scmp.ge.s32.totalorder %s9, 4
    %s19 = sphi 0, %s21
    %s22 = sphi 0, %s19
    %s23 = sphi 0, %s22
    %s39 = sphi 0, %s23
    %s43 = sphi 0, %s43
    %s45 = sphi 0, %s43
    %s46 = sphi 0, %s45
    %s60 = sphi 0, %s46
    %s64 = sphi 0, %s64
    %s66 = sphi 0, %s64
    %s67 = sphi 0, %s66
    %s81 = sphi 0, %s67
    %s87 = sphi 0, %s89
    %s90 = sphi 0, %s87
    %s91 = sphi 0, %s90
    %s107 = sphi 0, %s91
  $region4: #{decoder_forward.11} parent=0 // loop_header_branch
    %12 = sbr.rel (%p10) target = $region8
  $region5: #{decoder_forward.11} parent=0 // loop_body
    %s14 = ssub.s32 %s9, 1
    %s15 = ssub.s32 %s9, 2
    %s16 = sadd.s32 %s9, 1
    %s17 = ssub.s32 %s9, %s16
    %p18 = scmp.eq.s32.totalorder %s17, 0
    %s20 = sadd.s32 %s19, 1
    %s21 = scalar_select %p18, %s19, %s20
    %p24 = pneg %p18
    %p25 = scmp.eq.s32.totalorder %s9, 1
    %p26 = por %p24, %p25
    %p27 = scmp.ne.s32.totalorder %s19, %s22
    %p28 = scmp.eq.s32.totalorder %s9, 0
    %p29 = por %p27, %p28
    %p30 = scmp.ne.s32.totalorder %s19, %s22
    %p31 = scmp.eq.s32.totalorder %s14, 1
    %p32 = por %p30, %p31
    %p33 = scmp.ne.s32.totalorder %s22, %s23
    %p34 = scmp.eq.s32.totalorder %s14, 0
    %p35 = por %p33, %p34
    %p36 = scmp.ne.s32.totalorder %s22, %s23
    %p37 = scmp.eq.s32.totalorder %s15, 1
    %p38 = por %p36, %p37
    %p40 = scmp.ne.s32.totalorder %s23, %s39
    %p41 = scmp.eq.s32.totalorder %s15, 0
    %p42 = por %p40, %p41
    %s44 = sadd.s32 %s43, 1
    %p47 = scmp.eq.s32.totalorder %s9, 1
    %p48 = scmp.ne.s32.totalorder %s43, %s45
    %p49 = scmp.eq.s32.totalorder %s9, 0
    %p50 = por %p48, %p49
    %p51 = scmp.ne.s32.totalorder %s43, %s45
    %p52 = scmp.eq.s32.totalorder %s14, 1
    %p53 = por %p51, %p52
    %p54 = scmp.ne.s32.totalorder %s45, %s46
    %p55 = scmp.eq.s32.totalorder %s14, 0
    %p56 = por %p54, %p55
    %p57 = scmp.ne.s32.totalorder %s45, %s46
    %p58 = scmp.eq.s32.totalorder %s15, 1
    %p59 = por %p57, %p58
    %p61 = scmp.ne.s32.totalorder %s46, %s60
    %p62 = scmp.eq.s32.totalorder %s15, 0
    %p63 = por %p61, %p62
    %s65 = sadd.s32 %s64, 1
    %p68 = scmp.eq.s32.totalorder %s9, 1
    %p69 = scmp.ne.s32.totalorder %s64, %s66
    %p70 = scmp.eq.s32.totalorder %s9, 0
    %p71 = por %p69, %p70
    %p72 = scmp.ne.s32.totalorder %s64, %s66
    %p73 = scmp.eq.s32.totalorder %s14, 1
    %p74 = por %p72, %p73
    %p75 = scmp.ne.s32.totalorder %s66, %s67
    %p76 = scmp.eq.s32.totalorder %s14, 0
    %p77 = por %p75, %p76
    %p78 = scmp.ne.s32.totalorder %s66, %s67
    %p79 = scmp.eq.s32.totalorder %s15, 1
    %p80 = por %p78, %p79
    %p82 = scmp.ne.s32.totalorder %s67, %s81
    %p83 = scmp.eq.s32.totalorder %s15, 0
    %p84 = por %p82, %p83
    %s85 = ssub.s32 %s9, %s16
    %p86 = scmp.eq.s32.totalorder %s85, 0
    %s88 = sadd.s32 %s87, 1
    %s89 = scalar_select %p86, %s87, %s88
    %p92 = pneg %p86
    %p93 = scmp.eq.s32.totalorder %s9, 1
    %p94 = por %p92, %p93
    %p95 = scmp.ne.s32.totalorder %s87, %s90
    %p96 = scmp.eq.s32.totalorder %s9, 0
    %p97 = por %p95, %p96
    %p98 = scmp.ne.s32.totalorder %s87, %s90
    %p99 = scmp.eq.s32.totalorder %s14, 1
    %p100 = por %p98, %p99
    %p101 = scmp.ne.s32.totalorder %s90, %s91
    %p102 = scmp.eq.s32.totalorder %s14, 0
    %p103 = por %p101, %p102
    %p104 = scmp.ne.s32.totalorder %s90, %s91
    %p105 = scmp.eq.s32.totalorder %s15, 1
    %p106 = por %p104, %p105
    %p108 = scmp.ne.s32.totalorder %s91, %s107
    %p109 = scmp.eq.s32.totalorder %s15, 0
    %p110 = por %p108, %p109
    %p111 = scmp.le.s32.totalorder 1, %s9
    %p112 = scmp.lt.s32.totalorder %s9, 3
    %p113 = pnand %p111, %p112
    %p114 = pneg %p113
    // Predicated region
    $region9: #{decoder_forward.11} parent=5 // pred_check
      _
    $region10: #{decoder_forward.11} parent=5 // pred_check_branch
      %116 = sbr.rel (%p113) target = $region12
    $region11: #{decoder_forward.11} parent=5 // pred_region
      %s117 = ssub.s32 %s9, 1
      // Predicated region
      $region13: #{decoder_forward.11} parent=11 // pred_check
        %p118 = pneg %p56
      $region14: #{decoder_forward.11} parent=11 // pred_check_branch
        %120 = sbr.rel (%p118) target = $region16
      $region15: #{decoder_forward.11} parent=11 // pred_region
        _
      $region16: #{decoder_forward.11} parent=11 // pred_fallthru
        _
      // Predicated region
      $region17: #{decoder_forward.11} parent=11 // pred_check
        %p121 = pneg %p77
      $region18: #{decoder_forward.11} parent=11 // pred_check_branch
        %123 = sbr.rel (%p121) target = $region20
      $region19: #{decoder_forward.11} parent=11 // pred_region
        _
      $region20: #{decoder_forward.11} parent=11 // pred_fallthru
        _
    $region12: #{decoder_forward.11} parent=5 // pred_fallthru
      _
    %p124 = scmp.lt.s32.totalorder %s9, 2
    // Predicated region
    $region21: #{decoder_forward.11} parent=5 // pred_check
      %p125 = pneg %p124
    $region22: #{decoder_forward.11} parent=5 // pred_check_branch
      %127 = sbr.rel (%p125) target = $region24
    $region23: #{decoder_forward.11} parent=5 // pred_region
      // Predicated region
      $region25: #{decoder_forward.11} parent=23 // pred_check
        %p128 = pneg %p29
      $region26: #{decoder_forward.11} parent=23 // pred_check_branch
        %130 = sbr.rel (%p128) target = $region28
      $region27: #{decoder_forward.11} parent=23 // pred_region
        %s131 = smul.u32 128, %s9
        %p132 = scmp.lt.s32.totalorder %s131, 255
        %s133 = scalar_select %p132, %s131, 255
        %s134 = smul.addr %s133, 2
        %s135 = smul.addr %s134, 8
        %s136 = scalar_lea.vmem %s0, %s135
        %s137 = smul.u32 128, %s9
      $region28: #{decoder_forward.11} parent=23 // pred_fallthru
        _
    $region24: #{decoder_forward.11} parent=5 // pred_fallthru
      _
    %p138 = scmp.le.s32.totalorder 1, %s9
    %p139 = scmp.lt.s32.totalorder %s9, 3
    %p140 = pnand %p138, %p139
    %p141 = pneg %p140
    // Predicated region
    $region29: #{decoder_forward.11} parent=5 // pred_check
      _
    $region30: #{decoder_forward.11} parent=5 // pred_check_branch
      %143 = sbr.rel (%p140) target = $region32
    $region31: #{decoder_forward.11} parent=5 // pred_region
      %s144 = ssub.s32 %s9, 1
      %s145 = smul.u32 128, %s14
      %p146 = scmp.lt.s32.totalorder %s145, 255
      %s147 = scalar_select %p146, %s145, 255
      %s148 = smul.addr %s147, 2
      %s149 = smul.addr %s148, 8
      %s150 = scalar_lea.vmem %s0, %s149
      %p151 = pneg %p35
      %p152 = pneg %p32
      %p153 = pneg %p56
      %p154 = pneg %p53
      %p155 = pneg %p77
      %p156 = pneg %p74
      %p157 = pneg %p103
      %p158 = pneg %p100
      %s159 = smul.u32 128, %s14
      %p160 = scmp.lt.s32.totalorder %s159, 255
      %s161 = scalar_select %p160, %s159, 255
      %s162 = smul.addr %s161, 8
      %s163 = scalar_lea.vmem %s3, %s162
      %s164 = smul.u32 128, %s14
      %p165 = scmp.lt.s32.totalorder %s164, 255
      %s166 = scalar_select %p165, %s164, 255
      %s167 = smul.addr %s166, 2
      %s168 = smul.addr %s167, 8
      %s169 = scalar_lea.vmem %s0, %s168
      %s170 = smul.u32 128, %s14
      %s171 = smul.u32 128, %s14
      %p172 = scmp.lt.s32.totalorder %s171, 255
      %s173 = scalar_select %p172, %s171, 255
      %s174 = smul.addr %s173, 8
      %s175 = scalar_lea.vmem %s3, %s174
      %s176 = smul.u32 128, %s14
      %v177 = vld [vmem:[%s169] sm:$0xff]
      %v178 = vld [vmem:[%s169 + $0x8] sm:$0xff]
      %v179 = vld [vmem:[%s169 + $0x10] sm:$0xff]
      %v180 = vld [vmem:[%s169 + $0x18] sm:$0xff]
      %v181 = vld [vmem:[%s169 + $0x20] sm:$0xff]
      %v182 = vld [vmem:[%s169 + $0x28] sm:$0xff]
      %v183 = vld [vmem:[%s169 + $0x30] sm:$0xff]
      %v184 = vld [vmem:[%s169 + $0x38] sm:$0xff]
      %v185 = vld [vmem:[%s169 + $0x40] sm:$0xff]
      %v186 = vld [vmem:[%s169 + $0x48] sm:$0xff]
      %v187 = vld [vmem:[%s169 + $0x50] sm:$0xff]
      %v188 = vld [vmem:[%s169 + $0x58] sm:$0xff]
      %v189 = vld [vmem:[%s169 + $0x60] sm:$0xff]
      %v190 = vld [vmem:[%s169 + $0x68] sm:$0xff]
      %v191 = vld [vmem:[%s169 + $0x70] sm:$0xff]
      %v192 = vld [vmem:[%s169 + $0x78] sm:$0xff]
      %v193 = vld [vmem:[%s169 + $0x80] sm:$0xff]
      %v194 = vld [vmem:[%s169 + $0x88] sm:$0xff]
      %v195 = vld [vmem:[%s169 + $0x90] sm:$0xff]
      %v196 = vld [vmem:[%s169 + $0x98] sm:$0xff]
      %v197 = vld [vmem:[%s169 + $0xa0] sm:$0xff]
      %v198 = vld [vmem:[%s169 + $0xa8] sm:$0xff]
      %v199 = vld [vmem:[%s169 + $0xb0] sm:$0xff]
      %v200 = vld [vmem:[%s169 + $0xb8] sm:$0xff]
      %v201 = vld [vmem:[%s169 + $0xc0] sm:$0xff]
      %v202 = vld [vmem:[%s169 + $0xc8] sm:$0xff]
      %v203 = vld [vmem:[%s169 + $0xd0] sm:$0xff]
      %v204 = vld [vmem:[%s169 + $0xd8] sm:$0xff]
      %v205 = vld [vmem:[%s169 + $0xe0] sm:$0xff]
      %v206 = vld [vmem:[%s169 + $0xe8] sm:$0xff]
      %v207 = vld [vmem:[%s169 + $0xf0] sm:$0xff]
      %v208 = vld [vmem:[%s169 + $0xf8] sm:$0xff]
      %v209 = vld [vmem:[%s169 + $0x100] sm:$0xff]
      %v210 = vld [vmem:[%s169 + $0x108] sm:$0xff]
      %v211 = vld [vmem:[%s169 + $0x110] sm:$0xff]
      %v212 = vld [vmem:[%s169 + $0x118] sm:$0xff]
      %v213 = vld [vmem:[%s169 + $0x120] sm:$0xff]
      %v214 = vld [vmem:[%s169 + $0x128] sm:$0xff]
      %v215 = vld [vmem:[%s169 + $0x130] sm:$0xff]
      %v216 = vld [vmem:[%s169 + $0x138] sm:$0xff]
      %v217 = vld [vmem:[%s169 + $0x140] sm:$0xff]
      %v218 = vld [vmem:[%s169 + $0x148] sm:$0xff]
      %v219 = vld [vmem:[%s169 + $0x150] sm:$0xff]
      %v220 = vld [vmem:[%s169 + $0x158] sm:$0xff]
      %v221 = vld [vmem:[%s169 + $0x160] sm:$0xff]
      %v222 = vld [vmem:[%s169 + $0x168] sm:$0xff]
      %v223 = vld [vmem:[%s169 + $0x170] sm:$0xff]
      %v224 = vld [vmem:[%s169 + $0x178] sm:$0xff]
      %v225 = vld [vmem:[%s169 + $0x180] sm:$0xff]
      %v226 = vld [vmem:[%s169 + $0x188] sm:$0xff]
      %v227 = vld [vmem:[%s169 + $0x190] sm:$0xff]
      %v228 = vld [vmem:[%s169 + $0x198] sm:$0xff]
      %v229 = vld [vmem:[%s169 + $0x1a0] sm:$0xff]
      %v230 = vld [vmem:[%s169 + $0x1a8] sm:$0xff]
      %v231 = vld [vmem:[%s169 + $0x1b0] sm:$0xff]
      %v232 = vld [vmem:[%s169 + $0x1b8] sm:$0xff]
      %v233 = vld [vmem:[%s169 + $0x1c0] sm:$0xff]
      %v234 = vld [vmem:[%s169 + $0x1c8] sm:$0xff]
      %v235 = vld [vmem:[%s169 + $0x1d0] sm:$0xff]
      %v236 = vld [vmem:[%s169 + $0x1d8] sm:$0xff]
      %v237 = vld [vmem:[%s169 + $0x1e0] sm:$0xff]
      %v238 = vld [vmem:[%s169 + $0x1e8] sm:$0xff]
      %v239 = vld [vmem:[%s169 + $0x1f0] sm:$0xff]
      %v240 = vld [vmem:[%s169 + $0x1f8] sm:$0xff]
      %v241 = vld [vmem:[%s169 + $0x200] sm:$0xff]
      %v242 = vld [vmem:[%s169 + $0x208] sm:$0xff]
      %v243 = vld [vmem:[%s169 + $0x210] sm:$0xff]
      %v244 = vld [vmem:[%s169 + $0x218] sm:$0xff]
      %v245 = vld [vmem:[%s169 + $0x220] sm:$0xff]
      %v246 = vld [vmem:[%s169 + $0x228] sm:$0xff]
      %v247 = vld [vmem:[%s169 + $0x230] sm:$0xff]
      %v248 = vld [vmem:[%s169 + $0x238] sm:$0xff]
      %v249 = vld [vmem:[%s169 + $0x240] sm:$0xff]
      %v250 = vld [vmem:[%s169 + $0x248] sm:$0xff]
      %v251 = vld [vmem:[%s169 + $0x250] sm:$0xff]
      %v252 = vld [vmem:[%s169 + $0x258] sm:$0xff]
      %v253 = vld [vmem:[%s169 + $0x260] sm:$0xff]
      %v254 = vld [vmem:[%s169 + $0x268] sm:$0xff]
      %v255 = vld [vmem:[%s169 + $0x270] sm:$0xff]
      %v256 = vld [vmem:[%s169 + $0x278] sm:$0xff]
      %v257 = vld [vmem:[%s169 + $0x280] sm:$0xff]
      %v258 = vld [vmem:[%s169 + $0x288] sm:$0xff]
      %v259 = vld [vmem:[%s169 + $0x290] sm:$0xff]
      %v260 = vld [vmem:[%s169 + $0x298] sm:$0xff]
      %v261 = vld [vmem:[%s169 + $0x2a0] sm:$0xff]
      %v262 = vld [vmem:[%s169 + $0x2a8] sm:$0xff]
      %v263 = vld [vmem:[%s169 + $0x2b0] sm:$0xff]
      %v264 = vld [vmem:[%s169 + $0x2b8] sm:$0xff]
      %v265 = vld [vmem:[%s169 + $0x2c0] sm:$0xff]
      %v266 = vld [vmem:[%s169 + $0x2c8] sm:$0xff]
      %v267 = vld [vmem:[%s169 + $0x2d0] sm:$0xff]
      %v268 = vld [vmem:[%s169 + $0x2d8] sm:$0xff]
      %v269 = vld [vmem:[%s169 + $0x2e0] sm:$0xff]
      %v270 = vld [vmem:[%s169 + $0x2e8] sm:$0xff]
      %v271 = vld [vmem:[%s169 + $0x2f0] sm:$0xff]
      %v272 = vld [vmem:[%s169 + $0x2f8] sm:$0xff]
      %v273 = vld [vmem:[%s169 + $0x300] sm:$0xff]
      %v274 = vld [vmem:[%s169 + $0x308] sm:$0xff]
      %v275 = vld [vmem:[%s169 + $0x310] sm:$0xff]
      %v276 = vld [vmem:[%s169 + $0x318] sm:$0xff]
      %v277 = vld [vmem:[%s169 + $0x320] sm:$0xff]
      %v278 = vld [vmem:[%s169 + $0x328] sm:$0xff]
      %v279 = vld [vmem:[%s169 + $0x330] sm:$0xff]
      %v280 = vld [vmem:[%s169 + $0x338] sm:$0xff]
      %v281 = vld [vmem:[%s169 + $0x340] sm:$0xff]
      %v282 = vld [vmem:[%s169 + $0x348] sm:$0xff]
      %v283 = vld [vmem:[%s169 + $0x350] sm:$0xff]
      %v284 = vld [vmem:[%s169 + $0x358] sm:$0xff]
      %v285 = vld [vmem:[%s169 + $0x360] sm:$0xff]
      %v286 = vld [vmem:[%s169 + $0x368] sm:$0xff]
      %v287 = vld [vmem:[%s169 + $0x370] sm:$0xff]
      %v288 = vld [vmem:[%s169 + $0x378] sm:$0xff]
      %v289 = vld [vmem:[%s169 + $0x380] sm:$0xff]
      %v290 = vld [vmem:[%s169 + $0x388] sm:$0xff]
      %v291 = vld [vmem:[%s169 + $0x390] sm:$0xff]
      %v292 = vld [vmem:[%s169 + $0x398] sm:$0xff]
      %v293 = vld [vmem:[%s169 + $0x3a0] sm:$0xff]
      %v294 = vld [vmem:[%s169 + $0x3a8] sm:$0xff]
      %v295 = vld [vmem:[%s169 + $0x3b0] sm:$0xff]
      %v296 = vld [vmem:[%s169 + $0x3b8] sm:$0xff]
      %v297 = vld [vmem:[%s169 + $0x3c0] sm:$0xff]
      %v298 = vld [vmem:[%s169 + $0x3c8] sm:$0xff]
      %v299 = vld [vmem:[%s169 + $0x3d0] sm:$0xff]
      %v300 = vld [vmem:[%s169 + $0x3d8] sm:$0xff]
      %v301 = vld [vmem:[%s169 + $0x3e0] sm:$0xff]
      %v302 = vld [vmem:[%s169 + $0x3e8] sm:$0xff]
      %v303 = vld [vmem:[%s169 + $0x3f0] sm:$0xff]
      %v304 = vld [vmem:[%s169 + $0x3f8] sm:$0xff]
      %v305 = vld [vmem:[%s169 + $0x400] sm:$0xff]
      %v306 = vld [vmem:[%s169 + $0x408] sm:$0xff]
      %v307 = vld [vmem:[%s169 + $0x410] sm:$0xff]
      %v308 = vld [vmem:[%s169 + $0x418] sm:$0xff]
      %v309 = vld [vmem:[%s169 + $0x420] sm:$0xff]
      %v310 = vld [vmem:[%s169 + $0x428] sm:$0xff]
      %v311 = vld [vmem:[%s169 + $0x430] sm:$0xff]
      %v312 = vld [vmem:[%s169 + $0x438] sm:$0xff]
      %v313 = vld [vmem:[%s169 + $0x440] sm:$0xff]
      %v314 = vld [vmem:[%s169 + $0x448] sm:$0xff]
      %v315 = vld [vmem:[%s169 + $0x450] sm:$0xff]
      %v316 = vld [vmem:[%s169 + $0x458] sm:$0xff]
      %v317 = vld [vmem:[%s169 + $0x460] sm:$0xff]
      %v318 = vld [vmem:[%s169 + $0x468] sm:$0xff]
      %v319 = vld [vmem:[%s169 + $0x470] sm:$0xff]
      %v320 = vld [vmem:[%s169 + $0x478] sm:$0xff]
      %v321 = vld [vmem:[%s169 + $0x480] sm:$0xff]
      %v322 = vld [vmem:[%s169 + $0x488] sm:$0xff]
      %v323 = vld [vmem:[%s169 + $0x490] sm:$0xff]
      %v324 = vld [vmem:[%s169 + $0x498] sm:$0xff]
      %v325 = vld [vmem:[%s169 + $0x4a0] sm:$0xff]
      %v326 = vld [vmem:[%s169 + $0x4a8] sm:$0xff]
      %v327 = vld [vmem:[%s169 + $0x4b0] sm:$0xff]
      %v328 = vld [vmem:[%s169 + $0x4b8] sm:$0xff]
      %v329 = vld [vmem:[%s169 + $0x4c0] sm:$0xff]
      %v330 = vld [vmem:[%s169 + $0x4c8] sm:$0xff]
      %v331 = vld [vmem:[%s169 + $0x4d0] sm:$0xff]
      %v332 = vld [vmem:[%s169 + $0x4d8] sm:$0xff]
      %v333 = vld [vmem:[%s169 + $0x4e0] sm:$0xff]
      %v334 = vld [vmem:[%s169 + $0x4e8] sm:$0xff]
      %v335 = vld [vmem:[%s169 + $0x4f0] sm:$0xff]
      %v336 = vld [vmem:[%s169 + $0x4f8] sm:$0xff]
      %v337 = vld [vmem:[%s169 + $0x500] sm:$0xff]
      %v338 = vld [vmem:[%s169 + $0x508] sm:$0xff]
      %v339 = vld [vmem:[%s169 + $0x510] sm:$0xff]
      %v340 = vld [vmem:[%s169 + $0x518] sm:$0xff]
      %v341 = vld [vmem:[%s169 + $0x520] sm:$0xff]
      %v342 = vld [vmem:[%s169 + $0x528] sm:$0xff]
      %v343 = vld [vmem:[%s169 + $0x530] sm:$0xff]
      %v344 = vld [vmem:[%s169 + $0x538] sm:$0xff]
      %v345 = vld [vmem:[%s169 + $0x540] sm:$0xff]
      %v346 = vld [vmem:[%s169 + $0x548] sm:$0xff]
      %v347 = vld [vmem:[%s169 + $0x550] sm:$0xff]
      %v348 = vld [vmem:[%s169 + $0x558] sm:$0xff]
      %v349 = vld [vmem:[%s169 + $0x560] sm:$0xff]
      %v350 = vld [vmem:[%s169 + $0x568] sm:$0xff]
      %v351 = vld [vmem:[%s169 + $0x570] sm:$0xff]
      %v352 = vld [vmem:[%s169 + $0x578] sm:$0xff]
      %v353 = vld [vmem:[%s169 + $0x580] sm:$0xff]
      %v354 = vld [vmem:[%s169 + $0x588] sm:$0xff]
      %v355 = vld [vmem:[%s169 + $0x590] sm:$0xff]
      %v356 = vld [vmem:[%s169 + $0x598] sm:$0xff]
      %v357 = vld [vmem:[%s169 + $0x5a0] sm:$0xff]
      %v358 = vld [vmem:[%s169 + $0x5a8] sm:$0xff]
      %v359 = vld [vmem:[%s169 + $0x5b0] sm:$0xff]
      %v360 = vld [vmem:[%s169 + $0x5b8] sm:$0xff]
      %v361 = vld [vmem:[%s169 + $0x5c0] sm:$0xff]
      %v362 = vld [vmem:[%s169 + $0x5c8] sm:$0xff]
      %v363 = vld [vmem:[%s169 + $0x5d0] sm:$0xff]
      %v364 = vld [vmem:[%s169 + $0x5d8] sm:$0xff]
      %v365 = vld [vmem:[%s169 + $0x5e0] sm:$0xff]
      %v366 = vld [vmem:[%s169 + $0x5e8] sm:$0xff]
      %v367 = vld [vmem:[%s169 + $0x5f0] sm:$0xff]
      %v368 = vld [vmem:[%s169 + $0x5f8] sm:$0xff]
      %v369 = vld [vmem:[%s169 + $0x600] sm:$0xff]
      %v370 = vld [vmem:[%s169 + $0x608] sm:$0xff]
      %v371 = vld [vmem:[%s169 + $0x610] sm:$0xff]
      %v372 = vld [vmem:[%s169 + $0x618] sm:$0xff]
      %v373 = vld [vmem:[%s169 + $0x620] sm:$0xff]
      %v374 = vld [vmem:[%s169 + $0x628] sm:$0xff]
      %v375 = vld [vmem:[%s169 + $0x630] sm:$0xff]
      %v376 = vld [vmem:[%s169 + $0x638] sm:$0xff]
      %v377 = vld [vmem:[%s169 + $0x640] sm:$0xff]
      %v378 = vld [vmem:[%s169 + $0x648] sm:$0xff]
      %v379 = vld [vmem:[%s169 + $0x650] sm:$0xff]
      %v380 = vld [vmem:[%s169 + $0x658] sm:$0xff]
      %v381 = vld [vmem:[%s169 + $0x660] sm:$0xff]
      %v382 = vld [vmem:[%s169 + $0x668] sm:$0xff]
      %v383 = vld [vmem:[%s169 + $0x670] sm:$0xff]
      %v384 = vld [vmem:[%s169 + $0x678] sm:$0xff]
      %v385 = vld [vmem:[%s169 + $0x680] sm:$0xff]
      %v386 = vld [vmem:[%s169 + $0x688] sm:$0xff]
      %v387 = vld [vmem:[%s169 + $0x690] sm:$0xff]
      %v388 = vld [vmem:[%s169 + $0x698] sm:$0xff]
      %v389 = vld [vmem:[%s169 + $0x6a0] sm:$0xff]
      %v390 = vld [vmem:[%s169 + $0x6a8] sm:$0xff]
      %v391 = vld [vmem:[%s169 + $0x6b0] sm:$0xff]
      %v392 = vld [vmem:[%s169 + $0x6b8] sm:$0xff]
      %v393 = vld [vmem:[%s169 + $0x6c0] sm:$0xff]
      %v394 = vld [vmem:[%s169 + $0x6c8] sm:$0xff]
      %v395 = vld [vmem:[%s169 + $0x6d0] sm:$0xff]
      %v396 = vld [vmem:[%s169 + $0x6d8] sm:$0xff]
      %v397 = vld [vmem:[%s169 + $0x6e0] sm:$0xff]
      %v398 = vld [vmem:[%s169 + $0x6e8] sm:$0xff]
      %v399 = vld [vmem:[%s169 + $0x6f0] sm:$0xff]
      %v400 = vld [vmem:[%s169 + $0x6f8] sm:$0xff]
      %v401 = vld [vmem:[%s169 + $0x700] sm:$0xff]
      %v402 = vld [vmem:[%s169 + $0x708] sm:$0xff]
      %v403 = vld [vmem:[%s169 + $0x710] sm:$0xff]
      %v404 = vld [vmem:[%s169 + $0x718] sm:$0xff]
      %v405 = vld [vmem:[%s169 + $0x720] sm:$0xff]
      %v406 = vld [vmem:[%s169 + $0x728] sm:$0xff]
      %v407 = vld [vmem:[%s169 + $0x730] sm:$0xff]
      %v408 = vld [vmem:[%s169 + $0x738] sm:$0xff]
      %v409 = vld [vmem:[%s169 + $0x740] sm:$0xff]
      %v410 = vld [vmem:[%s169 + $0x748] sm:$0xff]
      %v411 = vld [vmem:[%s169 + $0x750] sm:$0xff]
      %v412 = vld [vmem:[%s169 + $0x758] sm:$0xff]
      %v413 = vld [vmem:[%s169 + $0x760] sm:$0xff]
      %v414 = vld [vmem:[%s169 + $0x768] sm:$0xff]
      %v415 = vld [vmem:[%s169 + $0x770] sm:$0xff]
      %v416 = vld [vmem:[%s169 + $0x778] sm:$0xff]
      %v417 = vld [vmem:[%s169 + $0x780] sm:$0xff]
      %v418 = vld [vmem:[%s169 + $0x788] sm:$0xff]
      %v419 = vld [vmem:[%s169 + $0x790] sm:$0xff]
      %v420 = vld [vmem:[%s169 + $0x798] sm:$0xff]
      %v421 = vld [vmem:[%s169 + $0x7a0] sm:$0xff]
      %v422 = vld [vmem:[%s169 + $0x7a8] sm:$0xff]
      %v423 = vld [vmem:[%s169 + $0x7b0] sm:$0xff]
      %v424 = vld [vmem:[%s169 + $0x7b8] sm:$0xff]
      %v425 = vld [vmem:[%s169 + $0x7c0] sm:$0xff]
      %v426 = vld [vmem:[%s169 + $0x7c8] sm:$0xff]
      %v427 = vld [vmem:[%s169 + $0x7d0] sm:$0xff]
      %v428 = vld [vmem:[%s169 + $0x7d8] sm:$0xff]
      %v429 = vld [vmem:[%s169 + $0x7e0] sm:$0xff]
      %v430 = vld [vmem:[%s169 + $0x7e8] sm:$0xff]
      %v431 = vld [vmem:[%s169 + $0x7f0] sm:$0xff]
      %v432 = vld [vmem:[%s169 + $0x7f8] sm:$0xff]
      %v433 = vld [vmem:[%s1] sm:$0xff]
      %v434 = vld [vmem:[%s1 + $0x8] sm:$0xff]
      %v435 = vld [vmem:[%s1 + $0x10] sm:$0xff]
      %v436 = vld [vmem:[%s1 + $0x18] sm:$0xff]
      %v437 = vld [vmem:[%s1 + $0x20] sm:$0xff]
      %v438 = vld [vmem:[%s1 + $0x28] sm:$0xff]
      %v439 = vld [vmem:[%s1 + $0x30] sm:$0xff]
      %v440 = vld [vmem:[%s1 + $0x38] sm:$0xff]
      %v441 = vld [vmem:[%s1 + $0x40] sm:$0xff]
      %v442 = vld [vmem:[%s1 + $0x48] sm:$0xff]
      %v443 = vld [vmem:[%s1 + $0x50] sm:$0xff]
      %v444 = vld [vmem:[%s1 + $0x58] sm:$0xff]
      %v445 = vld [vmem:[%s1 + $0x60] sm:$0xff]
      %v446 = vld [vmem:[%s1 + $0x68] sm:$0xff]
      %v447 = vld [vmem:[%s1 + $0x70] sm:$0xff]
      %v448 = vld [vmem:[%s1 + $0x78] sm:$0xff]
      %v449 = vld [vmem:[%s1 + $0x80] sm:$0xff]
      %v450 = vld [vmem:[%s1 + $0x88] sm:$0xff]
      %v451 = vld [vmem:[%s2] sm:$0x1]
      %v453 = vperm.slane %v451, 0
      %vm455 = vcmask 130048
      %v457 = vsel %vm455, %v178, 0
      %v460 = vsel %vm455, %v180, 0
      %v463 = vsel %vm455, %v182, 0
      %v466 = vsel %vm455, %v184, 0
      %v469 = vsel %vm455, %v186, 0
      %v472 = vsel %vm455, %v188, 0
      %v475 = vsel %vm455, %v190, 0
      %v478 = vsel %vm455, %v192, 0
      %v481 = vsel %vm455, %v194, 0
      %v484 = vsel %vm455, %v196, 0
      %v487 = vsel %vm455, %v198, 0
      %v490 = vsel %vm455, %v200, 0
      %v493 = vsel %vm455, %v202, 0
      %v496 = vsel %vm455, %v204, 0
      %v499 = vsel %vm455, %v206, 0
      %v502 = vsel %vm455, %v208, 0
      %v505 = vsel %vm455, %v210, 0
      %v508 = vsel %vm455, %v212, 0
      %v511 = vsel %vm455, %v214, 0
      %v514 = vsel %vm455, %v216, 0
      %v517 = vsel %vm455, %v218, 0
      %v520 = vsel %vm455, %v220, 0
      %v523 = vsel %vm455, %v222, 0
      %v526 = vsel %vm455, %v224, 0
      %v529 = vsel %vm455, %v226, 0
      %v532 = vsel %vm455, %v228, 0
      %v535 = vsel %vm455, %v230, 0
      %v538 = vsel %vm455, %v232, 0
      %v541 = vsel %vm455, %v234, 0
      %v544 = vsel %vm455, %v236, 0
      %v547 = vsel %vm455, %v238, 0
      %v550 = vsel %vm455, %v240, 0
      %v553 = vsel %vm455, %v242, 0
      %v556 = vsel %vm455, %v244, 0
      %v559 = vsel %vm455, %v246, 0
      %v562 = vsel %vm455, %v248, 0
      %v565 = vsel %vm455, %v250, 0
      %v568 = vsel %vm455, %v252, 0
      %v571 = vsel %vm455, %v254, 0
      %v574 = vsel %vm455, %v256, 0
      %v577 = vsel %vm455, %v258, 0
      %v580 = vsel %vm455, %v260, 0
      %v583 = vsel %vm455, %v262, 0
      %v586 = vsel %vm455, %v264, 0
      %v589 = vsel %vm455, %v266, 0
      %v592 = vsel %vm455, %v268, 0
      %v595 = vsel %vm455, %v270, 0
      %v598 = vsel %vm455, %v272, 0
      %v601 = vsel %vm455, %v274, 0
      %v604 = vsel %vm455, %v276, 0
      %v607 = vsel %vm455, %v278, 0
      %v610 = vsel %vm455, %v280, 0
      %v613 = vsel %vm455, %v282, 0
      %v616 = vsel %vm455, %v284, 0
      %v619 = vsel %vm455, %v286, 0
      %v622 = vsel %vm455, %v288, 0
      %v625 = vsel %vm455, %v290, 0
      %v628 = vsel %vm455, %v292, 0
      %v631 = vsel %vm455, %v294, 0
      %v634 = vsel %vm455, %v296, 0
      %v637 = vsel %vm455, %v298, 0
      %v640 = vsel %vm455, %v300, 0
      %v643 = vsel %vm455, %v302, 0
      %v646 = vsel %vm455, %v304, 0
      %v649 = vsel %vm455, %v306, 0
      %v652 = vsel %vm455, %v308, 0
      %v655 = vsel %vm455, %v310, 0
      %v658 = vsel %vm455, %v312, 0
      %v661 = vsel %vm455, %v314, 0
      %v664 = vsel %vm455, %v316, 0
      %v667 = vsel %vm455, %v318, 0
      %v670 = vsel %vm455, %v320, 0
      %v673 = vsel %vm455, %v322, 0
      %v676 = vsel %vm455, %v324, 0
      %v679 = vsel %vm455, %v326, 0
      %v682 = vsel %vm455, %v328, 0
      %v685 = vsel %vm455, %v330, 0
      %v688 = vsel %vm455, %v332, 0
      %v691 = vsel %vm455, %v334, 0
      %v694 = vsel %vm455, %v336, 0
      %v697 = vsel %vm455, %v338, 0
      %v700 = vsel %vm455, %v340, 0
      %v703 = vsel %vm455, %v342, 0
      %v706 = vsel %vm455, %v344, 0
      %v709 = vsel %vm455, %v346, 0
      %v712 = vsel %vm455, %v348, 0
      %v715 = vsel %vm455, %v350, 0
      %v718 = vsel %vm455, %v352, 0
      %v721 = vsel %vm455, %v354, 0
      %v724 = vsel %vm455, %v356, 0
      %v727 = vsel %vm455, %v358, 0
      %v730 = vsel %vm455, %v360, 0
      %v733 = vsel %vm455, %v362, 0
      %v736 = vsel %vm455, %v364, 0
      %v739 = vsel %vm455, %v366, 0
      %v742 = vsel %vm455, %v368, 0
      %v745 = vsel %vm455, %v370, 0
      %v748 = vsel %vm455, %v372, 0
      %v751 = vsel %vm455, %v374, 0
      %v754 = vsel %vm455, %v376, 0
      %v757 = vsel %vm455, %v378, 0
      %v760 = vsel %vm455, %v380, 0
      %v763 = vsel %vm455, %v382, 0
      %v766 = vsel %vm455, %v384, 0
      %v769 = vsel %vm455, %v386, 0
      %v772 = vsel %vm455, %v388, 0
      %v775 = vsel %vm455, %v390, 0
      %v778 = vsel %vm455, %v392, 0
      %v781 = vsel %vm455, %v394, 0
      %v784 = vsel %vm455, %v396, 0
      %v787 = vsel %vm455, %v398, 0
      %v790 = vsel %vm455, %v400, 0
      %v793 = vsel %vm455, %v402, 0
      %v796 = vsel %vm455, %v404, 0
      %v799 = vsel %vm455, %v406, 0
      %v802 = vsel %vm455, %v408, 0
      %v805 = vsel %vm455, %v410, 0
      %v808 = vsel %vm455, %v412, 0
      %v811 = vsel %vm455, %v414, 0
      %v814 = vsel %vm455, %v416, 0
      %v817 = vsel %vm455, %v418, 0
      %v820 = vsel %vm455, %v420, 0
      %v823 = vsel %vm455, %v422, 0
      %v826 = vsel %vm455, %v424, 0
      %v829 = vsel %vm455, %v426, 0
      %v832 = vsel %vm455, %v428, 0
      %v835 = vsel %vm455, %v430, 0
      %v838 = vsel %vm455, %v432, 0
      %840 = vmatpush.msra.mxu0 %v448
      %841 = vmatpush.msra.mxu0 %v447
      %842 = vmatpush.msra.mxu0 %v446
      %843 = vmatpush.msra.mxu0 %v445
      %844 = vmatpush.msra.mxu0 %v444
      %845 = vmatpush.msra.mxu0 %v443
      %846 = vmatpush.msra.mxu0 %v442
      %847 = vmatpush.msra.mxu0 %v441
      %848 = vmatpush.msra.mxu0 %v440
      %849 = vmatpush.msra.mxu0 %v439
      %850 = vmatpush.msra.mxu0 %v438
      %851 = vmatpush.msra.mxu0 %v437
      %852 = vmatpush.msra.mxu0 %v436
      %853 = vmatpush.msra.mxu0 %v435
      %854 = vmatpush.msra.mxu0 %v434
      %855 = vmatpush.msra.mxu0 %v433
      %856 = vmatmul.f32.gmra.mxu0 %v177
      %v857 = vpop.f32.mrf.mxu0
      %v858 = vadd.f32 %v453, %v857
      %859 = vmatmul.f32.gmra.mxu0 %v179
      %v860 = vpop.f32.mrf.mxu0
      %v861 = vadd.f32 %v453, %v860
      %862 = vmatmul.f32.gmra.mxu0 %v181
      %v863 = vpop.f32.mrf.mxu0
      %v864 = vadd.f32 %v453, %v863
      %865 = vmatmul.f32.gmra.mxu0 %v183
      %v866 = vpop.f32.mrf.mxu0
      %v867 = vadd.f32 %v453, %v866
      %868 = vmatmul.f32.gmra.mxu0 %v185
      %v869 = vpop.f32.mrf.mxu0
      %v870 = vadd.f32 %v453, %v869
      %871 = vmatmul.f32.gmra.mxu0 %v187
      %v872 = vpop.f32.mrf.mxu0
      %v873 = vadd.f32 %v453, %v872
      %874 = vmatmul.f32.gmra.mxu0 %v189
      %v875 = vpop.f32.mrf.mxu0
      %v876 = vadd.f32 %v453, %v875
      %877 = vmatmul.f32.gmra.mxu0 %v191
      %v878 = vpop.f32.mrf.mxu0
      %v879 = vadd.f32 %v453, %v878
      %880 = vmatmul.f32.gmra.mxu0 %v193
      %v881 = vpop.f32.mrf.mxu0
      %v882 = vadd.f32 %v453, %v881
      %883 = vmatmul.f32.gmra.mxu0 %v195
      %v884 = vpop.f32.mrf.mxu0
      %v885 = vadd.f32 %v453, %v884
      %886 = vmatmul.f32.gmra.mxu0 %v197
      %v887 = vpop.f32.mrf.mxu0
      %v888 = vadd.f32 %v453, %v887
      %889 = vmatmul.f32.gmra.mxu0 %v199
      %v890 = vpop.f32.mrf.mxu0
      %v891 = vadd.f32 %v453, %v890
      %892 = vmatmul.f32.gmra.mxu0 %v201
      %v893 = vpop.f32.mrf.mxu0
      %v894 = vadd.f32 %v453, %v893
      %895 = vmatmul.f32.gmra.mxu0 %v203
      %v896 = vpop.f32.mrf.mxu0
      %v897 = vadd.f32 %v453, %v896
      %898 = vmatmul.f32.gmra.mxu0 %v205
      %v899 = vpop.f32.mrf.mxu0
      %v900 = vadd.f32 %v453, %v899
      %901 = vmatmul.f32.gmra.mxu0 %v207
      %v902 = vpop.f32.mrf.mxu0
      %v903 = vadd.f32 %v453, %v902
      %904 = vmatmul.f32.gmra.mxu0 %v209
      %v905 = vpop.f32.mrf.mxu0
      %v906 = vadd.f32 %v453, %v905
      %907 = vmatmul.f32.gmra.mxu0 %v211
      %v908 = vpop.f32.mrf.mxu0
      %v909 = vadd.f32 %v453, %v908
      %910 = vmatmul.f32.gmra.mxu0 %v213
      %v911 = vpop.f32.mrf.mxu0
      %v912 = vadd.f32 %v453, %v911
      %913 = vmatmul.f32.gmra.mxu0 %v215
      %v914 = vpop.f32.mrf.mxu0
      %v915 = vadd.f32 %v453, %v914
      %916 = vmatmul.f32.gmra.mxu0 %v217
      %v917 = vpop.f32.mrf.mxu0
      %v918 = vadd.f32 %v453, %v917
      %919 = vmatmul.f32.gmra.mxu0 %v219
      %v920 = vpop.f32.mrf.mxu0
      %v921 = vadd.f32 %v453, %v920
      %922 = vmatmul.f32.gmra.mxu0 %v221
      %v923 = vpop.f32.mrf.mxu0
      %v924 = vadd.f32 %v453, %v923
      %925 = vmatmul.f32.gmra.mxu0 %v223
      %v926 = vpop.f32.mrf.mxu0
      %v927 = vadd.f32 %v453, %v926
      %928 = vmatmul.f32.gmra.mxu0 %v225
      %v929 = vpop.f32.mrf.mxu0
      %v930 = vadd.f32 %v453, %v929
      %931 = vmatmul.f32.gmra.mxu0 %v227
      %v932 = vpop.f32.mrf.mxu0
      %v933 = vadd.f32 %v453, %v932
      %934 = vmatmul.f32.gmra.mxu0 %v229
      %v935 = vpop.f32.mrf.mxu0
      %v936 = vadd.f32 %v453, %v935
      %937 = vmatmul.f32.gmra.mxu0 %v231
      %v938 = vpop.f32.mrf.mxu0
      %v939 = vadd.f32 %v453, %v938
      %940 = vmatmul.f32.gmra.mxu0 %v233
      %v941 = vpop.f32.mrf.mxu0
      %v942 = vadd.f32 %v453, %v941
      %943 = vmatmul.f32.gmra.mxu0 %v235
      %v944 = vpop.f32.mrf.mxu0
      %v945 = vadd.f32 %v453, %v944
      %946 = vmatmul.f32.gmra.mxu0 %v237
      %v947 = vpop.f32.mrf.mxu0
      %v948 = vadd.f32 %v453, %v947
      %949 = vmatmul.f32.gmra.mxu0 %v239
      %v950 = vpop.f32.mrf.mxu0
      %v951 = vadd.f32 %v453, %v950
      %952 = vmatmul.f32.gmra.mxu0 %v241
      %v953 = vpop.f32.mrf.mxu0
      %v954 = vadd.f32 %v453, %v953
      %955 = vmatmul.f32.gmra.mxu0 %v243
      %v956 = vpop.f32.mrf.mxu0
      %v957 = vadd.f32 %v453, %v956
      %958 = vmatmul.f32.gmra.mxu0 %v245
      %v959 = vpop.f32.mrf.mxu0
      %v960 = vadd.f32 %v453, %v959
      %961 = vmatmul.f32.gmra.mxu0 %v247
      %v962 = vpop.f32.mrf.mxu0
      %v963 = vadd.f32 %v453, %v962
      %964 = vmatmul.f32.gmra.mxu0 %v249
      %v965 = vpop.f32.mrf.mxu0
      %v966 = vadd.f32 %v453, %v965
      %967 = vmatmul.f32.gmra.mxu0 %v251
      %v968 = vpop.f32.mrf.mxu0
      %v969 = vadd.f32 %v453, %v968
      %970 = vmatmul.f32.gmra.mxu0 %v253
      %v971 = vpop.f32.mrf.mxu0
      %v972 = vadd.f32 %v453, %v971
      %973 = vmatmul.f32.gmra.mxu0 %v255
      %v974 = vpop.f32.mrf.mxu0
      %v975 = vadd.f32 %v453, %v974
      %976 = vmatmul.f32.gmra.mxu0 %v257
      %v977 = vpop.f32.mrf.mxu0
      %v978 = vadd.f32 %v453, %v977
      %979 = vmatmul.f32.gmra.mxu0 %v259
      %v980 = vpop.f32.mrf.mxu0
      %v981 = vadd.f32 %v453, %v980
      %982 = vmatmul.f32.gmra.mxu0 %v261
      %v983 = vpop.f32.mrf.mxu0
      %v984 = vadd.f32 %v453, %v983
      %985 = vmatmul.f32.gmra.mxu0 %v263
      %v986 = vpop.f32.mrf.mxu0
      %v987 = vadd.f32 %v453, %v986
      %988 = vmatmul.f32.gmra.mxu0 %v265
      %v989 = vpop.f32.mrf.mxu0
      %v990 = vadd.f32 %v453, %v989
      %991 = vmatmul.f32.gmra.mxu0 %v267
      %v992 = vpop.f32.mrf.mxu0
      %v993 = vadd.f32 %v453, %v992
      %994 = vmatmul.f32.gmra.mxu0 %v269
      %v995 = vpop.f32.mrf.mxu0
      %v996 = vadd.f32 %v453, %v995
      %997 = vmatmul.f32.gmra.mxu0 %v271
      %v998 = vpop.f32.mrf.mxu0
      %v999 = vadd.f32 %v453, %v998
      %1000 = vmatmul.f32.gmra.mxu0 %v273
      %v1001 = vpop.f32.mrf.mxu0
      %v1002 = vadd.f32 %v453, %v1001
      %1003 = vmatmul.f32.gmra.mxu0 %v275
      %v1004 = vpop.f32.mrf.mxu0
      %v1005 = vadd.f32 %v453, %v1004
      %1006 = vmatmul.f32.gmra.mxu0 %v277
      %v1007 = vpop.f32.mrf.mxu0
      %v1008 = vadd.f32 %v453, %v1007
      %1009 = vmatmul.f32.gmra.mxu0 %v279
      %v1010 = vpop.f32.mrf.mxu0
      %v1011 = vadd.f32 %v453, %v1010
      %1012 = vmatmul.f32.gmra.mxu0 %v281
      %v1013 = vpop.f32.mrf.mxu0
      %v1014 = vadd.f32 %v453, %v1013
      %1015 = vmatmul.f32.gmra.mxu0 %v283
      %v1016 = vpop.f32.mrf.mxu0
      %v1017 = vadd.f32 %v453, %v1016
      %1018 = vmatmul.f32.gmra.mxu0 %v285
      %v1019 = vpop.f32.mrf.mxu0
      %v1020 = vadd.f32 %v453, %v1019
      %1021 = vmatmul.f32.gmra.mxu0 %v287
      %v1022 = vpop.f32.mrf.mxu0
      %v1023 = vadd.f32 %v453, %v1022
      %1024 = vmatmul.f32.gmra.mxu0 %v289
      %v1025 = vpop.f32.mrf.mxu0
      %v1026 = vadd.f32 %v453, %v1025
      %1027 = vmatmul.f32.gmra.mxu0 %v291
      %v1028 = vpop.f32.mrf.mxu0
      %v1029 = vadd.f32 %v453, %v1028
      %1030 = vmatmul.f32.gmra.mxu0 %v293
      %v1031 = vpop.f32.mrf.mxu0
      %v1032 = vadd.f32 %v453, %v1031
      %1033 = vmatmul.f32.gmra.mxu0 %v295
      %v1034 = vpop.f32.mrf.mxu0
      %v1035 = vadd.f32 %v453, %v1034
      %1036 = vmatmul.f32.gmra.mxu0 %v297
      %v1037 = vpop.f32.mrf.mxu0
      %v1038 = vadd.f32 %v453, %v1037
      %1039 = vmatmul.f32.gmra.mxu0 %v299
      %v1040 = vpop.f32.mrf.mxu0
      %v1041 = vadd.f32 %v453, %v1040
      %1042 = vmatmul.f32.gmra.mxu0 %v301
      %v1043 = vpop.f32.mrf.mxu0
      %v1044 = vadd.f32 %v453, %v1043
      %1045 = vmatmul.f32.gmra.mxu0 %v303
      %v1046 = vpop.f32.mrf.mxu0
      %v1047 = vadd.f32 %v453, %v1046
      %1048 = vmatmul.f32.gmra.mxu0 %v305
      %v1049 = vpop.f32.mrf.mxu0
      %v1050 = vadd.f32 %v453, %v1049
      %1051 = vmatmul.f32.gmra.mxu0 %v307
      %v1052 = vpop.f32.mrf.mxu0
      %v1053 = vadd.f32 %v453, %v1052
      %1054 = vmatmul.f32.gmra.mxu0 %v309
      %v1055 = vpop.f32.mrf.mxu0
      %v1056 = vadd.f32 %v453, %v1055
      %1057 = vmatmul.f32.gmra.mxu0 %v311
      %v1058 = vpop.f32.mrf.mxu0
      %v1059 = vadd.f32 %v453, %v1058
      %1060 = vmatmul.f32.gmra.mxu0 %v313
      %v1061 = vpop.f32.mrf.mxu0
      %v1062 = vadd.f32 %v453, %v1061
      %1063 = vmatmul.f32.gmra.mxu0 %v315
      %v1064 = vpop.f32.mrf.mxu0
      %v1065 = vadd.f32 %v453, %v1064
      %1066 = vmatmul.f32.gmra.mxu0 %v317
      %v1067 = vpop.f32.mrf.mxu0
      %v1068 = vadd.f32 %v453, %v1067
      %1069 = vmatmul.f32.gmra.mxu0 %v319
      %v1070 = vpop.f32.mrf.mxu0
      %v1071 = vadd.f32 %v453, %v1070
      %1072 = vmatmul.f32.gmra.mxu0 %v321
      %v1073 = vpop.f32.mrf.mxu0
      %v1074 = vadd.f32 %v453, %v1073
      %1075 = vmatmul.f32.gmra.mxu0 %v323
      %v1076 = vpop.f32.mrf.mxu0
      %v1077 = vadd.f32 %v453, %v1076
      %1078 = vmatmul.f32.gmra.mxu0 %v325
      %v1079 = vpop.f32.mrf.mxu0
      %v1080 = vadd.f32 %v453, %v1079
      %1081 = vmatmul.f32.gmra.mxu0 %v327
      %v1082 = vpop.f32.mrf.mxu0
      %v1083 = vadd.f32 %v453, %v1082
      %1084 = vmatmul.f32.gmra.mxu0 %v329
      %v1085 = vpop.f32.mrf.mxu0
      %v1086 = vadd.f32 %v453, %v1085
      %1087 = vmatmul.f32.gmra.mxu0 %v331
      %v1088 = vpop.f32.mrf.mxu0
      %v1089 = vadd.f32 %v453, %v1088
      %1090 = vmatmul.f32.gmra.mxu0 %v333
      %v1091 = vpop.f32.mrf.mxu0
      %v1092 = vadd.f32 %v453, %v1091
      %1093 = vmatmul.f32.gmra.mxu0 %v335
      %v1094 = vpop.f32.mrf.mxu0
      %v1095 = vadd.f32 %v453, %v1094
      %1096 = vmatmul.f32.gmra.mxu0 %v337
      %v1097 = vpop.f32.mrf.mxu0
      %v1098 = vadd.f32 %v453, %v1097
      %1099 = vmatmul.f32.gmra.mxu0 %v339
      %v1100 = vpop.f32.mrf.mxu0
      %v1101 = vadd.f32 %v453, %v1100
      %1102 = vmatmul.f32.gmra.mxu0 %v341
      %v1103 = vpop.f32.mrf.mxu0
      %v1104 = vadd.f32 %v453, %v1103
      %1105 = vmatmul.f32.gmra.mxu0 %v343
      %v1106 = vpop.f32.mrf.mxu0
      %v1107 = vadd.f32 %v453, %v1106
      %1108 = vmatmul.f32.gmra.mxu0 %v345
      %v1109 = vpop.f32.mrf.mxu0
      %v1110 = vadd.f32 %v453, %v1109
      %1111 = vmatmul.f32.gmra.mxu0 %v347
      %v1112 = vpop.f32.mrf.mxu0
      %v1113 = vadd.f32 %v453, %v1112
      %1114 = vmatmul.f32.gmra.mxu0 %v349
      %v1115 = vpop.f32.mrf.mxu0
      %v1116 = vadd.f32 %v453, %v1115
      %1117 = vmatmul.f32.gmra.mxu0 %v351
      %v1118 = vpop.f32.mrf.mxu0
      %v1119 = vadd.f32 %v453, %v1118
      %1120 = vmatmul.f32.gmra.mxu0 %v353
      %v1121 = vpop.f32.mrf.mxu0
      %v1122 = vadd.f32 %v453, %v1121
      %1123 = vmatmul.f32.gmra.mxu0 %v355
      %v1124 = vpop.f32.mrf.mxu0
      %v1125 = vadd.f32 %v453, %v1124
      %1126 = vmatmul.f32.gmra.mxu0 %v357
      %v1127 = vpop.f32.mrf.mxu0
      %v1128 = vadd.f32 %v453, %v1127
      %1129 = vmatmul.f32.gmra.mxu0 %v359
      %v1130 = vpop.f32.mrf.mxu0
      %v1131 = vadd.f32 %v453, %v1130
      %1132 = vmatmul.f32.gmra.mxu0 %v361
      %v1133 = vpop.f32.mrf.mxu0
      %v1134 = vadd.f32 %v453, %v1133
      %1135 = vmatmul.f32.gmra.mxu0 %v363
      %v1136 = vpop.f32.mrf.mxu0
      %v1137 = vadd.f32 %v453, %v1136
      %1138 = vmatmul.f32.gmra.mxu0 %v365
      %v1139 = vpop.f32.mrf.mxu0
      %v1140 = vadd.f32 %v453, %v1139
      %1141 = vmatmul.f32.gmra.mxu0 %v367
      %v1142 = vpop.f32.mrf.mxu0
      %v1143 = vadd.f32 %v453, %v1142
      %1144 = vmatmul.f32.gmra.mxu0 %v369
      %v1145 = vpop.f32.mrf.mxu0
      %v1146 = vadd.f32 %v453, %v1145
      %1147 = vmatmul.f32.gmra.mxu0 %v371
      %v1148 = vpop.f32.mrf.mxu0
      %v1149 = vadd.f32 %v453, %v1148
      %1150 = vmatmul.f32.gmra.mxu0 %v373
      %v1151 = vpop.f32.mrf.mxu0
      %v1152 = vadd.f32 %v453, %v1151
      %1153 = vmatmul.f32.gmra.mxu0 %v375
      %v1154 = vpop.f32.mrf.mxu0
      %v1155 = vadd.f32 %v453, %v1154
      %1156 = vmatmul.f32.gmra.mxu0 %v377
      %v1157 = vpop.f32.mrf.mxu0
      %v1158 = vadd.f32 %v453, %v1157
      %1159 = vmatmul.f32.gmra.mxu0 %v379
      %v1160 = vpop.f32.mrf.mxu0
      %v1161 = vadd.f32 %v453, %v1160
      %1162 = vmatmul.f32.gmra.mxu0 %v381
      %v1163 = vpop.f32.mrf.mxu0
      %v1164 = vadd.f32 %v453, %v1163
      %1165 = vmatmul.f32.gmra.mxu0 %v383
      %v1166 = vpop.f32.mrf.mxu0
      %v1167 = vadd.f32 %v453, %v1166
      %1168 = vmatmul.f32.gmra.mxu0 %v385
      %v1169 = vpop.f32.mrf.mxu0
      %v1170 = vadd.f32 %v453, %v1169
      %1171 = vmatmul.f32.gmra.mxu0 %v387
      %v1172 = vpop.f32.mrf.mxu0
      %v1173 = vadd.f32 %v453, %v1172
      %1174 = vmatmul.f32.gmra.mxu0 %v389
      %v1175 = vpop.f32.mrf.mxu0
      %v1176 = vadd.f32 %v453, %v1175
      %1177 = vmatmul.f32.gmra.mxu0 %v391
      %v1178 = vpop.f32.mrf.mxu0
      %v1179 = vadd.f32 %v453, %v1178
      %1180 = vmatmul.f32.gmra.mxu0 %v393
      %v1181 = vpop.f32.mrf.mxu0
      %v1182 = vadd.f32 %v453, %v1181
      %1183 = vmatmul.f32.gmra.mxu0 %v395
      %v1184 = vpop.f32.mrf.mxu0
      %v1185 = vadd.f32 %v453, %v1184
      %1186 = vmatmul.f32.gmra.mxu0 %v397
      %v1187 = vpop.f32.mrf.mxu0
      %v1188 = vadd.f32 %v453, %v1187
      %1189 = vmatmul.f32.gmra.mxu0 %v399
      %v1190 = vpop.f32.mrf.mxu0
      %v1191 = vadd.f32 %v453, %v1190
      %1192 = vmatmul.f32.gmra.mxu0 %v401
      %v1193 = vpop.f32.mrf.mxu0
      %v1194 = vadd.f32 %v453, %v1193
      %1195 = vmatmul.f32.gmra.mxu0 %v403
      %v1196 = vpop.f32.mrf.mxu0
      %v1197 = vadd.f32 %v453, %v1196
      %1198 = vmatmul.f32.gmra.mxu0 %v405
      %v1199 = vpop.f32.mrf.mxu0
      %v1200 = vadd.f32 %v453, %v1199
      %1201 = vmatmul.f32.gmra.mxu0 %v407
      %v1202 = vpop.f32.mrf.mxu0
      %v1203 = vadd.f32 %v453, %v1202
      %1204 = vmatmul.f32.gmra.mxu0 %v409
      %v1205 = vpop.f32.mrf.mxu0
      %v1206 = vadd.f32 %v453, %v1205
      %1207 = vmatmul.f32.gmra.mxu0 %v411
      %v1208 = vpop.f32.mrf.mxu0
      %v1209 = vadd.f32 %v453, %v1208
      %1210 = vmatmul.f32.gmra.mxu0 %v413
      %v1211 = vpop.f32.mrf.mxu0
      %v1212 = vadd.f32 %v453, %v1211
      %1213 = vmatmul.f32.gmra.mxu0 %v415
      %v1214 = vpop.f32.mrf.mxu0
      %v1215 = vadd.f32 %v453, %v1214
      %1216 = vmatmul.f32.gmra.mxu0 %v417
      %v1217 = vpop.f32.mrf.mxu0
      %v1218 = vadd.f32 %v453, %v1217
      %1219 = vmatmul.f32.gmra.mxu0 %v419
      %v1220 = vpop.f32.mrf.mxu0
      %v1221 = vadd.f32 %v453, %v1220
      %1222 = vmatmul.f32.gmra.mxu0 %v421
      %v1223 = vpop.f32.mrf.mxu0
      %v1224 = vadd.f32 %v453, %v1223
      %1225 = vmatmul.f32.gmra.mxu0 %v423
      %v1226 = vpop.f32.mrf.mxu0
      %v1227 = vadd.f32 %v453, %v1226
      %1228 = vmatmul.f32.gmra.mxu0 %v425
      %v1229 = vpop.f32.mrf.mxu0
      %v1230 = vadd.f32 %v453, %v1229
      %1231 = vmatmul.f32.gmra.mxu0 %v427
      %v1232 = vpop.f32.mrf.mxu0
      %v1233 = vadd.f32 %v453, %v1232
      %1234 = vmatmul.f32.gmra.mxu0 %v429
      %v1235 = vpop.f32.mrf.mxu0
      %v1236 = vadd.f32 %v453, %v1235
      %1237 = vmatmul.f32.gmra.mxu0 %v431
      %v1238 = vpop.f32.mrf.mxu0
      %v1239 = vadd.f32 %v453, %v1238
      %1240 = vdwg.mxu0
      %1241 = vmatpush.msra.mxu0 0.0
      %1242 = vmatpush.msra.mxu0 0.0
      %1243 = vmatpush.msra.mxu0 0.0
      %1244 = vmatpush.msra.mxu0 0.0
      %1245 = vmatpush.msra.mxu0 0.0
      %1246 = vmatpush.msra.mxu0 0.0
      %1247 = vmatpush.msra.mxu0 0.0
      %1248 = vmatpush.msra.mxu0 0.0
      %1249 = vmatpush.msra.mxu0 0.0
      %1250 = vmatpush.msra.mxu0 0.0
      %1251 = vmatpush.msra.mxu0 0.0
      %1252 = vmatpush.msra.mxu0 0.0
      %1253 = vmatpush.msra.mxu0 0.0
      %1254 = vmatpush.msra.mxu0 0.0
      %1255 = vmatpush.msra.mxu0 %v450
      %1256 = vmatpush.msra.mxu0 %v449
      %1257 = vmatmul.f32.gmra.mxu0 %v457
      %v1258 = vpop.f32.mrf.mxu0
      %v1259 = vadd.f32 %v858, %v1258
      %1260 = vmatmul.f32.gmra.mxu0 %v460
      %v1261 = vpop.f32.mrf.mxu0
      %v1262 = vadd.f32 %v861, %v1261
      %1263 = vmatmul.f32.gmra.mxu0 %v463
      %v1264 = vpop.f32.mrf.mxu0
      %v1265 = vadd.f32 %v864, %v1264
      %1266 = vmatmul.f32.gmra.mxu0 %v466
      %v1267 = vpop.f32.mrf.mxu0
      %v1268 = vadd.f32 %v867, %v1267
      %1269 = vmatmul.f32.gmra.mxu0 %v469
      %v1270 = vpop.f32.mrf.mxu0
      %v1271 = vadd.f32 %v870, %v1270
      %1272 = vmatmul.f32.gmra.mxu0 %v472
      %v1273 = vpop.f32.mrf.mxu0
      %v1274 = vadd.f32 %v873, %v1273
      %1275 = vmatmul.f32.gmra.mxu0 %v475
      %v1276 = vpop.f32.mrf.mxu0
      %v1277 = vadd.f32 %v876, %v1276
      %1278 = vmatmul.f32.gmra.mxu0 %v478
      %v1279 = vpop.f32.mrf.mxu0
      %v1280 = vadd.f32 %v879, %v1279
      %1281 = vmatmul.f32.gmra.mxu0 %v481
      %v1282 = vpop.f32.mrf.mxu0
      %v1283 = vadd.f32 %v882, %v1282
      %1284 = vmatmul.f32.gmra.mxu0 %v484
      %v1285 = vpop.f32.mrf.mxu0
      %v1286 = vadd.f32 %v885, %v1285
      %1287 = vmatmul.f32.gmra.mxu0 %v487
      %v1288 = vpop.f32.mrf.mxu0
      %v1289 = vadd.f32 %v888, %v1288
      %1290 = vmatmul.f32.gmra.mxu0 %v490
      %v1291 = vpop.f32.mrf.mxu0
      %v1292 = vadd.f32 %v891, %v1291
      %1293 = vmatmul.f32.gmra.mxu0 %v493
      %v1294 = vpop.f32.mrf.mxu0
      %v1295 = vadd.f32 %v894, %v1294
      %1296 = vmatmul.f32.gmra.mxu0 %v496
      %v1297 = vpop.f32.mrf.mxu0
      %v1298 = vadd.f32 %v897, %v1297
      %1299 = vmatmul.f32.gmra.mxu0 %v499
      %v1300 = vpop.f32.mrf.mxu0
      %v1301 = vadd.f32 %v900, %v1300
      %1302 = vmatmul.f32.gmra.mxu0 %v502
      %v1303 = vpop.f32.mrf.mxu0
      %v1304 = vadd.f32 %v903, %v1303
      %1305 = vmatmul.f32.gmra.mxu0 %v505
      %v1306 = vpop.f32.mrf.mxu0
      %v1307 = vadd.f32 %v906, %v1306
      %1308 = vmatmul.f32.gmra.mxu0 %v508
      %v1309 = vpop.f32.mrf.mxu0
      %v1310 = vadd.f32 %v909, %v1309
      %1311 = vmatmul.f32.gmra.mxu0 %v511
      %v1312 = vpop.f32.mrf.mxu0
      %v1313 = vadd.f32 %v912, %v1312
      %1314 = vmatmul.f32.gmra.mxu0 %v514
      %v1315 = vpop.f32.mrf.mxu0
      %v1316 = vadd.f32 %v915, %v1315
      %1317 = vmatmul.f32.gmra.mxu0 %v517
      %v1318 = vpop.f32.mrf.mxu0
      %v1319 = vadd.f32 %v918, %v1318
      %1320 = vmatmul.f32.gmra.mxu0 %v520
      %v1321 = vpop.f32.mrf.mxu0
      %v1322 = vadd.f32 %v921, %v1321
      %1323 = vmatmul.f32.gmra.mxu0 %v523
      %v1324 = vpop.f32.mrf.mxu0
      %v1325 = vadd.f32 %v924, %v1324
      %1326 = vmatmul.f32.gmra.mxu0 %v526
      %v1327 = vpop.f32.mrf.mxu0
      %v1328 = vadd.f32 %v927, %v1327
      %1329 = vmatmul.f32.gmra.mxu0 %v529
      %v1330 = vpop.f32.mrf.mxu0
      %v1331 = vadd.f32 %v930, %v1330
      %1332 = vmatmul.f32.gmra.mxu0 %v532
      %v1333 = vpop.f32.mrf.mxu0
      %v1334 = vadd.f32 %v933, %v1333
      %1335 = vmatmul.f32.gmra.mxu0 %v535
      %v1336 = vpop.f32.mrf.mxu0
      %v1337 = vadd.f32 %v936, %v1336
      %1338 = vmatmul.f32.gmra.mxu0 %v538
      %v1339 = vpop.f32.mrf.mxu0
      %v1340 = vadd.f32 %v939, %v1339
      %1341 = vmatmul.f32.gmra.mxu0 %v541
      %v1342 = vpop.f32.mrf.mxu0
      %v1343 = vadd.f32 %v942, %v1342
      %1344 = vmatmul.f32.gmra.mxu0 %v544
      %v1345 = vpop.f32.mrf.mxu0
      %v1346 = vadd.f32 %v945, %v1345
      %1347 = vmatmul.f32.gmra.mxu0 %v547
      %v1348 = vpop.f32.mrf.mxu0
      %v1349 = vadd.f32 %v948, %v1348
      %1350 = vmatmul.f32.gmra.mxu0 %v550
      %v1351 = vpop.f32.mrf.mxu0
      %v1352 = vadd.f32 %v951, %v1351
      %1353 = vmatmul.f32.gmra.mxu0 %v553
      %v1354 = vpop.f32.mrf.mxu0
      %v1355 = vadd.f32 %v954, %v1354
      %1356 = vmatmul.f32.gmra.mxu0 %v556
      %v1357 = vpop.f32.mrf.mxu0
      %v1358 = vadd.f32 %v957, %v1357
      %1359 = vmatmul.f32.gmra.mxu0 %v559
      %v1360 = vpop.f32.mrf.mxu0
      %v1361 = vadd.f32 %v960, %v1360
      %1362 = vmatmul.f32.gmra.mxu0 %v562
      %v1363 = vpop.f32.mrf.mxu0
      %v1364 = vadd.f32 %v963, %v1363
      %1365 = vmatmul.f32.gmra.mxu0 %v565
      %v1366 = vpop.f32.mrf.mxu0
      %v1367 = vadd.f32 %v966, %v1366
      %1368 = vmatmul.f32.gmra.mxu0 %v568
      %v1369 = vpop.f32.mrf.mxu0
      %v1370 = vadd.f32 %v969, %v1369
      %1371 = vmatmul.f32.gmra.mxu0 %v571
      %v1372 = vpop.f32.mrf.mxu0
      %v1373 = vadd.f32 %v972, %v1372
      %1374 = vmatmul.f32.gmra.mxu0 %v574
      %v1375 = vpop.f32.mrf.mxu0
      %v1376 = vadd.f32 %v975, %v1375
      %1377 = vmatmul.f32.gmra.mxu0 %v577
      %v1378 = vpop.f32.mrf.mxu0
      %v1379 = vadd.f32 %v978, %v1378
      %1380 = vmatmul.f32.gmra.mxu0 %v580
      %v1381 = vpop.f32.mrf.mxu0
      %v1382 = vadd.f32 %v981, %v1381
      %1383 = vmatmul.f32.gmra.mxu0 %v583
      %v1384 = vpop.f32.mrf.mxu0
      %v1385 = vadd.f32 %v984, %v1384
      %1386 = vmatmul.f32.gmra.mxu0 %v586
      %v1387 = vpop.f32.mrf.mxu0
      %v1388 = vadd.f32 %v987, %v1387
      %1389 = vmatmul.f32.gmra.mxu0 %v589
      %v1390 = vpop.f32.mrf.mxu0
      %v1391 = vadd.f32 %v990, %v1390
      %1392 = vmatmul.f32.gmra.mxu0 %v592
      %v1393 = vpop.f32.mrf.mxu0
      %v1394 = vadd.f32 %v993, %v1393
      %1395 = vmatmul.f32.gmra.mxu0 %v595
      %v1396 = vpop.f32.mrf.mxu0
      %v1397 = vadd.f32 %v996, %v1396
      %1398 = vmatmul.f32.gmra.mxu0 %v598
      %v1399 = vpop.f32.mrf.mxu0
      %v1400 = vadd.f32 %v999, %v1399
      %1401 = vmatmul.f32.gmra.mxu0 %v601
      %v1402 = vpop.f32.mrf.mxu0
      %v1403 = vadd.f32 %v1002, %v1402
      %1404 = vmatmul.f32.gmra.mxu0 %v604
      %v1405 = vpop.f32.mrf.mxu0
      %v1406 = vadd.f32 %v1005, %v1405
      %1407 = vmatmul.f32.gmra.mxu0 %v607
      %v1408 = vpop.f32.mrf.mxu0
      %v1409 = vadd.f32 %v1008, %v1408
      %1410 = vmatmul.f32.gmra.mxu0 %v610
      %v1411 = vpop.f32.mrf.mxu0
      %v1412 = vadd.f32 %v1011, %v1411
      %1413 = vmatmul.f32.gmra.mxu0 %v613
      %v1414 = vpop.f32.mrf.mxu0
      %v1415 = vadd.f32 %v1014, %v1414
      %1416 = vmatmul.f32.gmra.mxu0 %v616
      %v1417 = vpop.f32.mrf.mxu0
      %v1418 = vadd.f32 %v1017, %v1417
      %1419 = vmatmul.f32.gmra.mxu0 %v619
      %v1420 = vpop.f32.mrf.mxu0
      %v1421 = vadd.f32 %v1020, %v1420
      %1422 = vmatmul.f32.gmra.mxu0 %v622
      %v1423 = vpop.f32.mrf.mxu0
      %v1424 = vadd.f32 %v1023, %v1423
      %1425 = vmatmul.f32.gmra.mxu0 %v625
      %v1426 = vpop.f32.mrf.mxu0
      %v1427 = vadd.f32 %v1026, %v1426
      %1428 = vmatmul.f32.gmra.mxu0 %v628
      %v1429 = vpop.f32.mrf.mxu0
      %v1430 = vadd.f32 %v1029, %v1429
      %1431 = vmatmul.f32.gmra.mxu0 %v631
      %v1432 = vpop.f32.mrf.mxu0
      %v1433 = vadd.f32 %v1032, %v1432
      %1434 = vmatmul.f32.gmra.mxu0 %v634
      %v1435 = vpop.f32.mrf.mxu0
      %v1436 = vadd.f32 %v1035, %v1435
      %1437 = vmatmul.f32.gmra.mxu0 %v637
      %v1438 = vpop.f32.mrf.mxu0
      %v1439 = vadd.f32 %v1038, %v1438
      %1440 = vmatmul.f32.gmra.mxu0 %v640
      %v1441 = vpop.f32.mrf.mxu0
      %v1442 = vadd.f32 %v1041, %v1441
      %1443 = vmatmul.f32.gmra.mxu0 %v643
      %v1444 = vpop.f32.mrf.mxu0
      %v1445 = vadd.f32 %v1044, %v1444
      %1446 = vmatmul.f32.gmra.mxu0 %v646
      %v1447 = vpop.f32.mrf.mxu0
      %v1448 = vadd.f32 %v1047, %v1447
      %1449 = vmatmul.f32.gmra.mxu0 %v649
      %v1450 = vpop.f32.mrf.mxu0
      %v1451 = vadd.f32 %v1050, %v1450
      %1452 = vmatmul.f32.gmra.mxu0 %v652
      %v1453 = vpop.f32.mrf.mxu0
      %v1454 = vadd.f32 %v1053, %v1453
      %1455 = vmatmul.f32.gmra.mxu0 %v655
      %v1456 = vpop.f32.mrf.mxu0
      %v1457 = vadd.f32 %v1056, %v1456
      %1458 = vmatmul.f32.gmra.mxu0 %v658
      %v1459 = vpop.f32.mrf.mxu0
      %v1460 = vadd.f32 %v1059, %v1459
      %1461 = vmatmul.f32.gmra.mxu0 %v661
      %v1462 = vpop.f32.mrf.mxu0
      %v1463 = vadd.f32 %v1062, %v1462
      %1464 = vmatmul.f32.gmra.mxu0 %v664
      %v1465 = vpop.f32.mrf.mxu0
      %v1466 = vadd.f32 %v1065, %v1465
      %1467 = vmatmul.f32.gmra.mxu0 %v667
      %v1468 = vpop.f32.mrf.mxu0
      %v1469 = vadd.f32 %v1068, %v1468
      %1470 = vmatmul.f32.gmra.mxu0 %v670
      %v1471 = vpop.f32.mrf.mxu0
      %v1472 = vadd.f32 %v1071, %v1471
      %1473 = vmatmul.f32.gmra.mxu0 %v673
      %v1474 = vpop.f32.mrf.mxu0
      %v1475 = vadd.f32 %v1074, %v1474
      %1476 = vmatmul.f32.gmra.mxu0 %v676
      %v1477 = vpop.f32.mrf.mxu0
      %v1478 = vadd.f32 %v1077, %v1477
      %1479 = vmatmul.f32.gmra.mxu0 %v679
      %v1480 = vpop.f32.mrf.mxu0
      %v1481 = vadd.f32 %v1080, %v1480
      %1482 = vmatmul.f32.gmra.mxu0 %v682
      %v1483 = vpop.f32.mrf.mxu0
      %v1484 = vadd.f32 %v1083, %v1483
      %1485 = vmatmul.f32.gmra.mxu0 %v685
      %v1486 = vpop.f32.mrf.mxu0
      %v1487 = vadd.f32 %v1086, %v1486
      %1488 = vmatmul.f32.gmra.mxu0 %v688
      %v1489 = vpop.f32.mrf.mxu0
      %v1490 = vadd.f32 %v1089, %v1489
      %1491 = vmatmul.f32.gmra.mxu0 %v691
      %v1492 = vpop.f32.mrf.mxu0
      %v1493 = vadd.f32 %v1092, %v1492
      %1494 = vmatmul.f32.gmra.mxu0 %v694
      %v1495 = vpop.f32.mrf.mxu0
      %v1496 = vadd.f32 %v1095, %v1495
      %1497 = vmatmul.f32.gmra.mxu0 %v697
      %v1498 = vpop.f32.mrf.mxu0
      %v1499 = vadd.f32 %v1098, %v1498
      %1500 = vmatmul.f32.gmra.mxu0 %v700
      %v1501 = vpop.f32.mrf.mxu0
      %v1502 = vadd.f32 %v1101, %v1501
      %1503 = vmatmul.f32.gmra.mxu0 %v703
      %v1504 = vpop.f32.mrf.mxu0
      %v1505 = vadd.f32 %v1104, %v1504
      %1506 = vmatmul.f32.gmra.mxu0 %v706
      %v1507 = vpop.f32.mrf.mxu0
      %v1508 = vadd.f32 %v1107, %v1507
      %1509 = vmatmul.f32.gmra.mxu0 %v709
      %v1510 = vpop.f32.mrf.mxu0
      %v1511 = vadd.f32 %v1110, %v1510
      %1512 = vmatmul.f32.gmra.mxu0 %v712
      %v1513 = vpop.f32.mrf.mxu0
      %v1514 = vadd.f32 %v1113, %v1513
      %1515 = vmatmul.f32.gmra.mxu0 %v715
      %v1516 = vpop.f32.mrf.mxu0
      %v1517 = vadd.f32 %v1116, %v1516
      %1518 = vmatmul.f32.gmra.mxu0 %v718
      %v1519 = vpop.f32.mrf.mxu0
      %v1520 = vadd.f32 %v1119, %v1519
      %1521 = vmatmul.f32.gmra.mxu0 %v721
      %v1522 = vpop.f32.mrf.mxu0
      %v1523 = vadd.f32 %v1122, %v1522
      %1524 = vmatmul.f32.gmra.mxu0 %v724
      %v1525 = vpop.f32.mrf.mxu0
      %v1526 = vadd.f32 %v1125, %v1525
      %1527 = vmatmul.f32.gmra.mxu0 %v727
      %v1528 = vpop.f32.mrf.mxu0
      %v1529 = vadd.f32 %v1128, %v1528
      %1530 = vmatmul.f32.gmra.mxu0 %v730
      %v1531 = vpop.f32.mrf.mxu0
      %v1532 = vadd.f32 %v1131, %v1531
      %1533 = vmatmul.f32.gmra.mxu0 %v733
      %v1534 = vpop.f32.mrf.mxu0
      %v1535 = vadd.f32 %v1134, %v1534
      %1536 = vmatmul.f32.gmra.mxu0 %v736
      %v1537 = vpop.f32.mrf.mxu0
      %v1538 = vadd.f32 %v1137, %v1537
      %1539 = vmatmul.f32.gmra.mxu0 %v739
      %v1540 = vpop.f32.mrf.mxu0
      %v1541 = vadd.f32 %v1140, %v1540
      %1542 = vmatmul.f32.gmra.mxu0 %v742
      %v1543 = vpop.f32.mrf.mxu0
      %v1544 = vadd.f32 %v1143, %v1543
      %1545 = vmatmul.f32.gmra.mxu0 %v745
      %v1546 = vpop.f32.mrf.mxu0
      %v1547 = vadd.f32 %v1146, %v1546
      %1548 = vmatmul.f32.gmra.mxu0 %v748
      %v1549 = vpop.f32.mrf.mxu0
      %v1550 = vadd.f32 %v1149, %v1549
      %1551 = vmatmul.f32.gmra.mxu0 %v751
      %v1552 = vpop.f32.mrf.mxu0
      %v1553 = vadd.f32 %v1152, %v1552
      %1554 = vmatmul.f32.gmra.mxu0 %v754
      %v1555 = vpop.f32.mrf.mxu0
      %v1556 = vadd.f32 %v1155, %v1555
      %1557 = vmatmul.f32.gmra.mxu0 %v757
      %v1558 = vpop.f32.mrf.mxu0
      %v1559 = vadd.f32 %v1158, %v1558
      %1560 = vmatmul.f32.gmra.mxu0 %v760
      %v1561 = vpop.f32.mrf.mxu0
      %v1562 = vadd.f32 %v1161, %v1561
      %1563 = vmatmul.f32.gmra.mxu0 %v763
      %v1564 = vpop.f32.mrf.mxu0
      %v1565 = vadd.f32 %v1164, %v1564
      %1566 = vmatmul.f32.gmra.mxu0 %v766
      %v1567 = vpop.f32.mrf.mxu0
      %v1568 = vadd.f32 %v1167, %v1567
      %1569 = vmatmul.f32.gmra.mxu0 %v769
      %v1570 = vpop.f32.mrf.mxu0
      %v1571 = vadd.f32 %v1170, %v1570
      %1572 = vmatmul.f32.gmra.mxu0 %v772
      %v1573 = vpop.f32.mrf.mxu0
      %v1574 = vadd.f32 %v1173, %v1573
      %1575 = vmatmul.f32.gmra.mxu0 %v775
      %v1576 = vpop.f32.mrf.mxu0
      %v1577 = vadd.f32 %v1176, %v1576
      %1578 = vmatmul.f32.gmra.mxu0 %v778
      %v1579 = vpop.f32.mrf.mxu0
      %v1580 = vadd.f32 %v1179, %v1579
      %1581 = vmatmul.f32.gmra.mxu0 %v781
      %v1582 = vpop.f32.mrf.mxu0
      %v1583 = vadd.f32 %v1182, %v1582
      %1584 = vmatmul.f32.gmra.mxu0 %v784
      %v1585 = vpop.f32.mrf.mxu0
      %v1586 = vadd.f32 %v1185, %v1585
      %1587 = vmatmul.f32.gmra.mxu0 %v787
      %v1588 = vpop.f32.mrf.mxu0
      %v1589 = vadd.f32 %v1188, %v1588
      %1590 = vmatmul.f32.gmra.mxu0 %v790
      %v1591 = vpop.f32.mrf.mxu0
      %v1592 = vadd.f32 %v1191, %v1591
      %1593 = vmatmul.f32.gmra.mxu0 %v793
      %v1594 = vpop.f32.mrf.mxu0
      %v1595 = vadd.f32 %v1194, %v1594
      %1596 = vmatmul.f32.gmra.mxu0 %v796
      %v1597 = vpop.f32.mrf.mxu0
      %v1598 = vadd.f32 %v1197, %v1597
      %1599 = vmatmul.f32.gmra.mxu0 %v799
      %v1600 = vpop.f32.mrf.mxu0
      %v1601 = vadd.f32 %v1200, %v1600
      %1602 = vmatmul.f32.gmra.mxu0 %v802
      %v1603 = vpop.f32.mrf.mxu0
      %v1604 = vadd.f32 %v1203, %v1603
      %1605 = vmatmul.f32.gmra.mxu0 %v805
      %v1606 = vpop.f32.mrf.mxu0
      %v1607 = vadd.f32 %v1206, %v1606
      %1608 = vmatmul.f32.gmra.mxu0 %v808
      %v1609 = vpop.f32.mrf.mxu0
      %v1610 = vadd.f32 %v1209, %v1609
      %1611 = vmatmul.f32.gmra.mxu0 %v811
      %v1612 = vpop.f32.mrf.mxu0
      %v1613 = vadd.f32 %v1212, %v1612
      %1614 = vmatmul.f32.gmra.mxu0 %v814
      %v1615 = vpop.f32.mrf.mxu0
      %v1616 = vadd.f32 %v1215, %v1615
      %1617 = vmatmul.f32.gmra.mxu0 %v817
      %v1618 = vpop.f32.mrf.mxu0
      %v1619 = vadd.f32 %v1218, %v1618
      %1620 = vmatmul.f32.gmra.mxu0 %v820
      %v1621 = vpop.f32.mrf.mxu0
      %v1622 = vadd.f32 %v1221, %v1621
      %1623 = vmatmul.f32.gmra.mxu0 %v823
      %v1624 = vpop.f32.mrf.mxu0
      %v1625 = vadd.f32 %v1224, %v1624
      %1626 = vmatmul.f32.gmra.mxu0 %v826
      %v1627 = vpop.f32.mrf.mxu0
      %v1628 = vadd.f32 %v1227, %v1627
      %1629 = vmatmul.f32.gmra.mxu0 %v829
      %v1630 = vpop.f32.mrf.mxu0
      %v1631 = vadd.f32 %v1230, %v1630
      %1632 = vmatmul.f32.gmra.mxu0 %v832
      %v1633 = vpop.f32.mrf.mxu0
      %v1634 = vadd.f32 %v1233, %v1633
      %1635 = vmatmul.f32.gmra.mxu0 %v835
      %v1636 = vpop.f32.mrf.mxu0
      %v1637 = vadd.f32 %v1236, %v1636
      %1638 = vmatmul.f32.gmra.mxu0 %v838
      %v1639 = vpop.f32.mrf.mxu0
      %v1640 = vadd.f32 %v1239, %v1639
      %1641 = vdwg.mxu0
      %v1642 = vtanh.pop %v1259
      %v1643 = vtanh.pop %v1262
      %v1644 = vtanh.pop %v1265
      %v1645 = vtanh.pop %v1268
      %v1646 = vtanh.pop %v1271
      %v1647 = vtanh.pop %v1274
      %v1648 = vtanh.pop %v1277
      %v1649 = vtanh.pop %v1280
      %v1650 = vtanh.pop %v1283
      %v1651 = vtanh.pop %v1286
      %v1652 = vtanh.pop %v1289
      %v1653 = vtanh.pop %v1292
      %v1654 = vtanh.pop %v1295
      %v1655 = vtanh.pop %v1298
      %v1656 = vtanh.pop %v1301
      %v1657 = vtanh.pop %v1304
      %v1658 = vtanh.pop %v1307
      %v1659 = vtanh.pop %v1310
      %v1660 = vtanh.pop %v1313
      %v1661 = vtanh.pop %v1316
      %v1662 = vtanh.pop %v1319
      %v1663 = vtanh.pop %v1322
      %v1664 = vtanh.pop %v1325
      %v1665 = vtanh.pop %v1328
      %v1666 = vtanh.pop %v1331
      %v1667 = vtanh.pop %v1334
      %v1668 = vtanh.pop %v1337
      %v1669 = vtanh.pop %v1340
      %v1670 = vtanh.pop %v1343
      %v1671 = vtanh.pop %v1346
      %v1672 = vtanh.pop %v1349
      %v1673 = vtanh.pop %v1352
      %v1674 = vtanh.pop %v1355
      %v1675 = vtanh.pop %v1358
      %v1676 = vtanh.pop %v1361
      %v1677 = vtanh.pop %v1364
      %v1678 = vtanh.pop %v1367
      %v1679 = vtanh.pop %v1370
      %v1680 = vtanh.pop %v1373
      %v1681 = vtanh.pop %v1376
      %v1682 = vtanh.pop %v1379
      %v1683 = vtanh.pop %v1382
      %v1684 = vtanh.pop %v1385
      %v1685 = vtanh.pop %v1388
      %v1686 = vtanh.pop %v1391
      %v1687 = vtanh.pop %v1394
      %v1688 = vtanh.pop %v1397
      %v1689 = vtanh.pop %v1400
      %v1690 = vtanh.pop %v1403
      %v1691 = vtanh.pop %v1406
      %v1692 = vtanh.pop %v1409
      %v1693 = vtanh.pop %v1412
      %v1694 = vtanh.pop %v1415
      %v1695 = vtanh.pop %v1418
      %v1696 = vtanh.pop %v1421
      %v1697 = vtanh.pop %v1424
      %v1698 = vtanh.pop %v1427
      %v1699 = vtanh.pop %v1430
      %v1700 = vtanh.pop %v1433
      %v1701 = vtanh.pop %v1436
      %v1702 = vtanh.pop %v1439
      %v1703 = vtanh.pop %v1442
      %v1704 = vtanh.pop %v1445
      %v1705 = vtanh.pop %v1448
      %v1706 = vtanh.pop %v1451
      %v1707 = vtanh.pop %v1454
      %v1708 = vtanh.pop %v1457
      %v1709 = vtanh.pop %v1460
      %v1710 = vtanh.pop %v1463
      %v1711 = vtanh.pop %v1466
      %v1712 = vtanh.pop %v1469
      %v1713 = vtanh.pop %v1472
      %v1714 = vtanh.pop %v1475
      %v1715 = vtanh.pop %v1478
      %v1716 = vtanh.pop %v1481
      %v1717 = vtanh.pop %v1484
      %v1718 = vtanh.pop %v1487
      %v1719 = vtanh.pop %v1490
      %v1720 = vtanh.pop %v1493
      %v1721 = vtanh.pop %v1496
      %v1722 = vtanh.pop %v1499
      %v1723 = vtanh.pop %v1502
      %v1724 = vtanh.pop %v1505
      %v1725 = vtanh.pop %v1508
      %v1726 = vtanh.pop %v1511
      %v1727 = vtanh.pop %v1514
      %v1728 = vtanh.pop %v1517
      %v1729 = vtanh.pop %v1520
      %v1730 = vtanh.pop %v1523
      %v1731 = vtanh.pop %v1526
      %v1732 = vtanh.pop %v1529
      %v1733 = vtanh.pop %v1532
      %v1734 = vtanh.pop %v1535
      %v1735 = vtanh.pop %v1538
      %v1736 = vtanh.pop %v1541
      %v1737 = vtanh.pop %v1544
      %v1738 = vtanh.pop %v1547
      %v1739 = vtanh.pop %v1550
      %v1740 = vtanh.pop %v1553
      %v1741 = vtanh.pop %v1556
      %v1742 = vtanh.pop %v1559
      %v1743 = vtanh.pop %v1562
      %v1744 = vtanh.pop %v1565
      %v1745 = vtanh.pop %v1568
      %v1746 = vtanh.pop %v1571
      %v1747 = vtanh.pop %v1574
      %v1748 = vtanh.pop %v1577
      %v1749 = vtanh.pop %v1580
      %v1750 = vtanh.pop %v1583
      %v1751 = vtanh.pop %v1586
      %v1752 = vtanh.pop %v1589
      %v1753 = vtanh.pop %v1592
      %v1754 = vtanh.pop %v1595
      %v1755 = vtanh.pop %v1598
      %v1756 = vtanh.pop %v1601
      %v1757 = vtanh.pop %v1604
      %v1758 = vtanh.pop %v1607
      %v1759 = vtanh.pop %v1610
      %v1760 = vtanh.pop %v1613
      %v1761 = vtanh.pop %v1616
      %v1762 = vtanh.pop %v1619
      %v1763 = vtanh.pop %v1622
      %v1764 = vtanh.pop %v1625
      %v1765 = vtanh.pop %v1628
      %v1766 = vtanh.pop %v1631
      %v1767 = vtanh.pop %v1634
      %v1768 = vtanh.pop %v1637
      %v1769 = vtanh.pop %v1640
      %1770 = vst [vmem:[%s175] sm:$0xff] %v1642
      %1771 = vst [vmem:[%s175 + $0x8] sm:$0xff] %v1643
      %1772 = vst [vmem:[%s175 + $0x10] sm:$0xff] %v1644
      %1773 = vst [vmem:[%s175 + $0x18] sm:$0xff] %v1645
      %1774 = vst [vmem:[%s175 + $0x20] sm:$0xff] %v1646
      %1775 = vst [vmem:[%s175 + $0x28] sm:$0xff] %v1647
      %1776 = vst [vmem:[%s175 + $0x30] sm:$0xff] %v1648
      %1777 = vst [vmem:[%s175 + $0x38] sm:$0xff] %v1649
      %1778 = vst [vmem:[%s175 + $0x40] sm:$0xff] %v1650
      %1779 = vst [vmem:[%s175 + $0x48] sm:$0xff] %v1651
      %1780 = vst [vmem:[%s175 + $0x50] sm:$0xff] %v1652
      %1781 = vst [vmem:[%s175 + $0x58] sm:$0xff] %v1653
      %1782 = vst [vmem:[%s175 + $0x60] sm:$0xff] %v1654
      %1783 = vst [vmem:[%s175 + $0x68] sm:$0xff] %v1655
      %1784 = vst [vmem:[%s175 + $0x70] sm:$0xff] %v1656
      %1785 = vst [vmem:[%s175 + $0x78] sm:$0xff] %v1657
      %1786 = vst [vmem:[%s175 + $0x80] sm:$0xff] %v1658
      %1787 = vst [vmem:[%s175 + $0x88] sm:$0xff] %v1659
      %1788 = vst [vmem:[%s175 + $0x90] sm:$0xff] %v1660
      %1789 = vst [vmem:[%s175 + $0x98] sm:$0xff] %v1661
      %1790 = vst [vmem:[%s175 + $0xa0] sm:$0xff] %v1662
      %1791 = vst [vmem:[%s175 + $0xa8] sm:$0xff] %v1663
      %1792 = vst [vmem:[%s175 + $0xb0] sm:$0xff] %v1664
      %1793 = vst [vmem:[%s175 + $0xb8] sm:$0xff] %v1665
      %1794 = vst [vmem:[%s175 + $0xc0] sm:$0xff] %v1666
      %1795 = vst [vmem:[%s175 + $0xc8] sm:$0xff] %v1667
      %1796 = vst [vmem:[%s175 + $0xd0] sm:$0xff] %v1668
      %1797 = vst [vmem:[%s175 + $0xd8] sm:$0xff] %v1669
      %1798 = vst [vmem:[%s175 + $0xe0] sm:$0xff] %v1670
      %1799 = vst [vmem:[%s175 + $0xe8] sm:$0xff] %v1671
      %1800 = vst [vmem:[%s175 + $0xf0] sm:$0xff] %v1672
      %1801 = vst [vmem:[%s175 + $0xf8] sm:$0xff] %v1673
      %1802 = vst [vmem:[%s175 + $0x100] sm:$0xff] %v1674
      %1803 = vst [vmem:[%s175 + $0x108] sm:$0xff] %v1675
      %1804 = vst [vmem:[%s175 + $0x110] sm:$0xff] %v1676
      %1805 = vst [vmem:[%s175 + $0x118] sm:$0xff] %v1677
      %1806 = vst [vmem:[%s175 + $0x120] sm:$0xff] %v1678
      %1807 = vst [vmem:[%s175 + $0x128] sm:$0xff] %v1679
      %1808 = vst [vmem:[%s175 + $0x130] sm:$0xff] %v1680
      %1809 = vst [vmem:[%s175 + $0x138] sm:$0xff] %v1681
      %1810 = vst [vmem:[%s175 + $0x140] sm:$0xff] %v1682
      %1811 = vst [vmem:[%s175 + $0x148] sm:$0xff] %v1683
      %1812 = vst [vmem:[%s175 + $0x150] sm:$0xff] %v1684
      %1813 = vst [vmem:[%s175 + $0x158] sm:$0xff] %v1685
      %1814 = vst [vmem:[%s175 + $0x160] sm:$0xff] %v1686
      %1815 = vst [vmem:[%s175 + $0x168] sm:$0xff] %v1687
      %1816 = vst [vmem:[%s175 + $0x170] sm:$0xff] %v1688
      %1817 = vst [vmem:[%s175 + $0x178] sm:$0xff] %v1689
      %1818 = vst [vmem:[%s175 + $0x180] sm:$0xff] %v1690
      %1819 = vst [vmem:[%s175 + $0x188] sm:$0xff] %v1691
      %1820 = vst [vmem:[%s175 + $0x190] sm:$0xff] %v1692
      %1821 = vst [vmem:[%s175 + $0x198] sm:$0xff] %v1693
      %1822 = vst [vmem:[%s175 + $0x1a0] sm:$0xff] %v1694
      %1823 = vst [vmem:[%s175 + $0x1a8] sm:$0xff] %v1695
      %1824 = vst [vmem:[%s175 + $0x1b0] sm:$0xff] %v1696
      %1825 = vst [vmem:[%s175 + $0x1b8] sm:$0xff] %v1697
      %1826 = vst [vmem:[%s175 + $0x1c0] sm:$0xff] %v1698
      %1827 = vst [vmem:[%s175 + $0x1c8] sm:$0xff] %v1699
      %1828 = vst [vmem:[%s175 + $0x1d0] sm:$0xff] %v1700
      %1829 = vst [vmem:[%s175 + $0x1d8] sm:$0xff] %v1701
      %1830 = vst [vmem:[%s175 + $0x1e0] sm:$0xff] %v1702
      %1831 = vst [vmem:[%s175 + $0x1e8] sm:$0xff] %v1703
      %1832 = vst [vmem:[%s175 + $0x1f0] sm:$0xff] %v1704
      %1833 = vst [vmem:[%s175 + $0x1f8] sm:$0xff] %v1705
      %1834 = vst [vmem:[%s175 + $0x200] sm:$0xff] %v1706
      %1835 = vst [vmem:[%s175 + $0x208] sm:$0xff] %v1707
      %1836 = vst [vmem:[%s175 + $0x210] sm:$0xff] %v1708
      %1837 = vst [vmem:[%s175 + $0x218] sm:$0xff] %v1709
      %1838 = vst [vmem:[%s175 + $0x220] sm:$0xff] %v1710
      %1839 = vst [vmem:[%s175 + $0x228] sm:$0xff] %v1711
      %1840 = vst [vmem:[%s175 + $0x230] sm:$0xff] %v1712
      %1841 = vst [vmem:[%s175 + $0x238] sm:$0xff] %v1713
      %1842 = vst [vmem:[%s175 + $0x240] sm:$0xff] %v1714
      %1843 = vst [vmem:[%s175 + $0x248] sm:$0xff] %v1715
      %1844 = vst [vmem:[%s175 + $0x250] sm:$0xff] %v1716
      %1845 = vst [vmem:[%s175 + $0x258] sm:$0xff] %v1717
      %1846 = vst [vmem:[%s175 + $0x260] sm:$0xff] %v1718
      %1847 = vst [vmem:[%s175 + $0x268] sm:$0xff] %v1719
      %1848 = vst [vmem:[%s175 + $0x270] sm:$0xff] %v1720
      %1849 = vst [vmem:[%s175 + $0x278] sm:$0xff] %v1721
      %1850 = vst [vmem:[%s175 + $0x280] sm:$0xff] %v1722
      %1851 = vst [vmem:[%s175 + $0x288] sm:$0xff] %v1723
      %1852 = vst [vmem:[%s175 + $0x290] sm:$0xff] %v1724
      %1853 = vst [vmem:[%s175 + $0x298] sm:$0xff] %v1725
      %1854 = vst [vmem:[%s175 + $0x2a0] sm:$0xff] %v1726
      %1855 = vst [vmem:[%s175 + $0x2a8] sm:$0xff] %v1727
      %1856 = vst [vmem:[%s175 + $0x2b0] sm:$0xff] %v1728
      %1857 = vst [vmem:[%s175 + $0x2b8] sm:$0xff] %v1729
      %1858 = vst [vmem:[%s175 + $0x2c0] sm:$0xff] %v1730
      %1859 = vst [vmem:[%s175 + $0x2c8] sm:$0xff] %v1731
      %1860 = vst [vmem:[%s175 + $0x2d0] sm:$0xff] %v1732
      %1861 = vst [vmem:[%s175 + $0x2d8] sm:$0xff] %v1733
      %1862 = vst [vmem:[%s175 + $0x2e0] sm:$0xff] %v1734
      %1863 = vst [vmem:[%s175 + $0x2e8] sm:$0xff] %v1735
      %1864 = vst [vmem:[%s175 + $0x2f0] sm:$0xff] %v1736
      %1865 = vst [vmem:[%s175 + $0x2f8] sm:$0xff] %v1737
      %1866 = vst [vmem:[%s175 + $0x300] sm:$0xff] %v1738
      %1867 = vst [vmem:[%s175 + $0x308] sm:$0xff] %v1739
      %1868 = vst [vmem:[%s175 + $0x310] sm:$0xff] %v1740
      %1869 = vst [vmem:[%s175 + $0x318] sm:$0xff] %v1741
      %1870 = vst [vmem:[%s175 + $0x320] sm:$0xff] %v1742
      %1871 = vst [vmem:[%s175 + $0x328] sm:$0xff] %v1743
      %1872 = vst [vmem:[%s175 + $0x330] sm:$0xff] %v1744
      %1873 = vst [vmem:[%s175 + $0x338] sm:$0xff] %v1745
      %1874 = vst [vmem:[%s175 + $0x340] sm:$0xff] %v1746
      %1875 = vst [vmem:[%s175 + $0x348] sm:$0xff] %v1747
      %1876 = vst [vmem:[%s175 + $0x350] sm:$0xff] %v1748
      %1877 = vst [vmem:[%s175 + $0x358] sm:$0xff] %v1749
      %1878 = vst [vmem:[%s175 + $0x360] sm:$0xff] %v1750
      %1879 = vst [vmem:[%s175 + $0x368] sm:$0xff] %v1751
      %1880 = vst [vmem:[%s175 + $0x370] sm:$0xff] %v1752
      %1881 = vst [vmem:[%s175 + $0x378] sm:$0xff] %v1753
      %1882 = vst [vmem:[%s175 + $0x380] sm:$0xff] %v1754
      %1883 = vst [vmem:[%s175 + $0x388] sm:$0xff] %v1755
      %1884 = vst [vmem:[%s175 + $0x390] sm:$0xff] %v1756
      %1885 = vst [vmem:[%s175 + $0x398] sm:$0xff] %v1757
      %1886 = vst [vmem:[%s175 + $0x3a0] sm:$0xff] %v1758
      %1887 = vst [vmem:[%s175 + $0x3a8] sm:$0xff] %v1759
      %1888 = vst [vmem:[%s175 + $0x3b0] sm:$0xff] %v1760
      %1889 = vst [vmem:[%s175 + $0x3b8] sm:$0xff] %v1761
      %1890 = vst [vmem:[%s175 + $0x3c0] sm:$0xff] %v1762
      %1891 = vst [vmem:[%s175 + $0x3c8] sm:$0xff] %v1763
      %1892 = vst [vmem:[%s175 + $0x3d0] sm:$0xff] %v1764
      %1893 = vst [vmem:[%s175 + $0x3d8] sm:$0xff] %v1765
      %1894 = vst [vmem:[%s175 + $0x3e0] sm:$0xff] %v1766
      %1895 = vst [vmem:[%s175 + $0x3e8] sm:$0xff] %v1767
      %1896 = vst [vmem:[%s175 + $0x3f0] sm:$0xff] %v1768
      %1897 = vst [vmem:[%s175 + $0x3f8] sm:$0xff] %v1769
      %s1898 = smul.u32 128, %s14
      %p1899 = scmp.lt.s32.totalorder %s1898, 255
      %s1900 = scalar_select %p1899, %s1898, 255
      %s1901 = smul.addr %s1900, 8
      %s1902 = scalar_lea.vmem %s3, %s1901
      // Predicated region
      $region33: #{decoder_forward.11} parent=31 // pred_check
        %p1903 = pneg %p100
      $region34: #{decoder_forward.11} parent=31 // pred_check_branch
        %1905 = sbr.rel (%p1903) target = $region36
      $region35: #{decoder_forward.11} parent=31 // pred_region
        %s1906 = smul.u32 128, %s14
      $region36: #{decoder_forward.11} parent=31 // pred_fallthru
        _
    $region32: #{decoder_forward.11} parent=5 // pred_fallthru
      _
    %p1907 = scmp.le.s32.totalorder 2, %s9
    // Predicated region
    $region37: #{decoder_forward.11} parent=5 // pred_check
      %p1908 = pneg %p1907
    $region38: #{decoder_forward.11} parent=5 // pred_check_branch
      %1910 = sbr.rel (%p1908) target = $region40
    $region39: #{decoder_forward.11} parent=5 // pred_region
      %s1911 = ssub.s32 %s9, 2
      // Predicated region
      $region41: #{decoder_forward.11} parent=39 // pred_check
        %p1912 = pneg %p106
      $region42: #{decoder_forward.11} parent=39 // pred_check_branch
        %1914 = sbr.rel (%p1912) target = $region44
      $region43: #{decoder_forward.11} parent=39 // pred_region
        %s1915 = smul.u32 128, %s15
        %p1916 = scmp.lt.s32.totalorder %s1915, 255
        %s1917 = scalar_select %p1916, %s1915, 255
        %s1918 = smul.addr %s1917, 8
        %s1919 = scalar_lea.vmem %s3, %s1918
      $region44: #{decoder_forward.11} parent=39 // pred_fallthru
        _
    $region40: #{decoder_forward.11} parent=5 // pred_fallthru
      _
  $region6: #{decoder_forward.11} parent=0 // loop_footer
    %s13 = sadd.s32 1, %s9
  $region7: #{decoder_forward.11} parent=0 // loop_footer_branch
    %8 = sbr.rel target = $region3
  $region8: #{decoder_forward.11} parent=0 // loop_exit
    _

</llo_original>
